<compile_context>
chip_gen: v6e
topology: v6e:2x2x1
jax: 0.10.0
libtpu: 0.0.40
codegen_flags: <defaults>
</compile_context>

<pallas_src>
import math
from functools import partial

import jax
import jax.numpy as jnp
from jax import lax
from jax.experimental import pallas as pl
from jax.experimental.pallas import tpu as pltpu

EPS_NORM = 1e-10            # eps used by normalize_flatten_features in the reference
F_PAD = 128                 # lane/sublane-dense padded feature width
K_PAD = 128                 # padded class width (sliced back in the wrapper)
REF_DTYPE = jnp.bfloat16    # storage dtype of the big reference-feature stream
VMEM_LIMIT = 32 * 1024 * 1024


def _pixel_tile(P):
    """Largest pixel tile that is a multiple of 128 lanes (or all of P)."""
    if P % 128 != 0:
        return P
    for tp in (2048, 1024, 512, 256, 128):
        if tp <= P and P % tp == 0:
            return tp
    return P


# ---------------------------------------------------------------------------
# In-kernel helpers (pixels on lanes: feat is (F_PAD, TP))
# ---------------------------------------------------------------------------
def _conv_relu(x, w_ref, b_ref):
    """relu(W x + b): x (C, TP) -> pre, feat of shape (F_PAD, TP)."""
    pre = lax.dot_general(w_ref[...], x, (((1,), (0,)), ((), ())),
                          preferred_element_type=jnp.float32) + b_ref[...]
    return pre, jnp.maximum(pre, 0.0)


def _normalize(feat, scale):
    """normalize_flatten_features: per-pixel channel norm, /sqrt(P)."""
    r = jnp.sqrt(jnp.sum(feat * feat, axis=0, keepdims=True))       # (1, TP)
    nf = feat * (1.0 / ((r + EPS_NORM) * scale))
    return r, nf


def _sum_all(x):
    """Full reduce of a 2-D tile to (1, 1), staged lane-then-sublane."""
    return jnp.sum(jnp.sum(x, axis=1, keepdims=True), axis=0, keepdims=True)


# ---------------------------------------------------------------------------
# Kernels
# ---------------------------------------------------------------------------
def _features_kernel(x_ref, w_ref, b_ref, nf_ref, *, scale):
    """Normalized LPIPS features of the clean inputs (written once, bf16)."""
    _, feat = _conv_relu(x_ref[0], w_ref, b_ref)
    _, nf = _normalize(feat, scale)
    nf_ref[0] = nf.astype(nf_ref.dtype)


def _loss_fwd_kernel(x_ref, w_ref, b_ref, wc_ref, bc_ref, ref_ref,
                     logits_ref, sqd_ref, pool_acc, *, pixels, scale):
    """Fused loss forward: logits + squared LPIPS distance to `ref` only."""
    ri = pl.program_id(1)
    nri = pl.num_programs(1)

    @pl.when(ri == 0)
    def _init():
        pool_acc[...] = jnp.zeros_like(pool_acc)
        sqd_ref[...] = jnp.zeros_like(sqd_ref)

    _, feat = _conv_relu(x_ref[0], w_ref, b_ref)                    # (F_PAD, TP)
    _, nf = _normalize(feat, scale)

    diff = nf - ref_ref[0].astype(jnp.float32)
    sqd_ref[0] += _sum_all(diff * diff)                              # (1, 1)
    pool_acc[...] += jnp.sum(feat, axis=1, keepdims=True)            # (F_PAD, 1)

    @pl.when(ri == nri - 1)
    def _finalize():
        pool_mean = pool_acc[...] * (1.0 / pixels)                   # (F_PAD, 1)
        logits_ref[0] = (jnp.sum(pool_mean * wc_ref[...], axis=0, keepdims=True)
                         + bc_ref[...])                              # (1, K_PAD)


def _loss_bwd_kernel(x_ref, wfc_ref, wcf_ref, b_ref, wc_ref, ref_ref,
                     glog_ref, gsqd_ref, dx_ref, gnsq_ref, *, pixels, scale):
    """Fused loss backward: (g_logits, g_sqd) -> d/d(pixels), plus ||dx||^2.

    feat / r / nf are recomputed from the tiny (C, TP) input instead of being
    saved as (B, P, 128) residuals; only the bf16 reference stream is re-read.
    """
    ri = pl.program_id(1)

    @pl.when(ri == 0)
    def _init():
        gnsq_ref[...] = jnp.zeros_like(gnsq_ref)

    pre, feat = _conv_relu(x_ref[0], wfc_ref, b_ref)                 # (F_PAD, TP)
    r, nf = _normalize(feat, scale)
    inv = 1.0 / ((r + EPS_NORM) * scale)

    # cotangent landing on nf from the squared-LPIPS output
    g = (2.0 * gsqd_ref[0]) * (nf - ref_ref[0].astype(jnp.float32))

    # analytic VJP of nf = feat / ((||feat|| + eps) * scale)
    gdotn = jnp.sum(g * nf, axis=0, keepdims=True)                   # (1, TP)
    df = g * inv - nf * (gdotn * scale / jnp.maximum(r, 1e-20))

    # pooled -> logits path: d pooled[f] = sum_k g_logits[k] * wc[f, k]
    gpool = jnp.sum(wc_ref[...] * glog_ref[0], axis=1, keepdims=True)  # (F_PAD, 1)
    df = df + gpool * (1.0 / pixels)

    gpre = jnp.where(pre > 0.0, df, 0.0)                             # exact ReLU mask
    dx = lax.dot_general(wcf_ref[...], gpre, (((1,), (0,)), ((), ())),
                         preferred_element_type=jnp.float32)          # (C, TP)
    dx_ref[0] = dx
    gnsq_ref[0] += _sum_all(dx * dx)


def _dist_kernel(x_ref, w_ref, b_ref, ref_ref, sqd_ref, *, scale):
    """Squared LPIPS distance of x to a precomputed reference (no other outputs)."""
    @pl.when(pl.program_id(1) == 0)
    def _init():
        sqd_ref[...] = jnp.zeros_like(sqd_ref)

    _, feat = _conv_relu(x_ref[0], w_ref, b_ref)
    _, nf = _normalize(feat, scale)
    diff = nf - ref_ref[0].astype(jnp.float32)
    sqd_ref[0] += _sum_all(diff * diff)


def _pair_dist_kernel(x1_ref, x2_ref, w_ref, b_ref, sqd_ref, *, scale):
    """Squared LPIPS distance between two images (finite-difference pass)."""
    @pl.when(pl.program_id(1) == 0)
    def _init():
        sqd_ref[...] = jnp.zeros_like(sqd_ref)

    _, f1 = _conv_relu(x1_ref[0], w_ref, b_ref)
    _, n1 = _normalize(f1, scale)
    _, f2 = _conv_relu(x2_ref[0], w_ref, b_ref)
    _, n2 = _normalize(f2, scale)
    diff = n1 - n2
    sqd_ref[0] += _sum_all(diff * diff)


# ---------------------------------------------------------------------------
# pallas_call wrappers
# ---------------------------------------------------------------------------
def _img_spec(C, TP):
    return pl.BlockSpec((1, C, TP), lambda bi, ri: (bi, 0, ri))


def _ref_spec(Fp, TP):
    return pl.BlockSpec((1, Fp, TP), lambda bi, ri: (bi, 0, ri))


def _const_spec(shape):
    return pl.BlockSpec(shape, lambda bi, ri: (0, 0))


def _per_image_spec(shape):
    return pl.BlockSpec(shape, lambda bi, ri: (bi, 0, 0))


def _params(*sems):
    return pltpu.CompilerParams(dimension_semantics=sems,
                                vmem_limit_bytes=VMEM_LIMIT)


def _features_call(x, w_fc, b_col):
    B, C, P = x.shape
    Fp = w_fc.shape[0]
    TP = _pixel_tile(P)
    return pl.pallas_call(
        partial(_features_kernel, scale=math.sqrt(P)),
        grid_spec=pltpu.PrefetchScalarGridSpec(
            num_scalar_prefetch=0, grid=(B, P // TP),
            in_specs=[_img_spec(C, TP), _const_spec((Fp, C)), _const_spec((Fp, 1))],
            out_specs=_ref_spec(Fp, TP)),
        out_shape=jax.ShapeDtypeStruct((B, Fp, P), REF_DTYPE),
        compiler_params=_params("parallel", "parallel"),
    )(x, w_fc, b_col)


def _loss_forward_call(x, w_fc, b_col, wc, bc, ref):
    B, C, P = x.shape
    Fp = w_fc.shape[0]
    Kp = wc.shape[1]
    TP = _pixel_tile(P)
    return pl.pallas_call(
        partial(_loss_fwd_kernel, pixels=float(P), scale=math.sqrt(P)),
        grid_spec=pltpu.PrefetchScalarGridSpec(
            num_scalar_prefetch=0, grid=(B, P // TP),
            in_specs=[_img_spec(C, TP), _const_spec((Fp, C)), _const_spec((Fp, 1)),
                      _const_spec((Fp, Kp)), _const_spec((1, Kp)),
                      _ref_spec(Fp, TP)],
            out_specs=(_per_image_spec((1, 1, Kp)), _per_image_spec((1, 1, 1))),
            scratch_shapes=[pltpu.VMEM((Fp, 1), jnp.float32)]),
        out_shape=(jax.ShapeDtypeStruct((B, 1, Kp), jnp.float32),
                   jax.ShapeDtypeStruct((B, 1, 1), jnp.float32)),
        compiler_params=_params("parallel", "arbitrary"),
    )(x, w_fc, b_col, wc, bc, ref)


def _loss_backward_call(x, w_fc, w_cf, b_col, wc, ref, g_logits, g_sqd):
    B, C, P = x.shape
    Fp = w_fc.shape[0]
    Kp = wc.shape[1]
    TP = _pixel_tile(P)
    return pl.pallas_call(
        partial(_loss_bwd_kernel, pixels=float(P), scale=math.sqrt(P)),
        grid_spec=pltpu.PrefetchScalarGridSpec(
            num_scalar_prefetch=0, grid=(B, P // TP),
            in_specs=[_img_spec(C, TP), _const_spec((Fp, C)), _const_spec((C, Fp)),
                      _const_spec((Fp, 1)), _const_spec((Fp, Kp)),
                      _ref_spec(Fp, TP),
                      _per_image_spec((1, 1, Kp)), _per_image_spec((1, 1, 1))],
            out_specs=(_img_spec(C, TP), _per_image_spec((1, 1, 1)))),
        out_shape=(jax.ShapeDtypeStruct((B, C, P), jnp.float32),
                   jax.ShapeDtypeStruct((B, 1, 1), jnp.float32)),
        compiler_params=_params("parallel", "arbitrary"),
    )(x, w_fc, w_cf, b_col, wc, ref, g_logits, g_sqd)


def _dist_call(x, w_fc, b_col, ref):
    B, C, P = x.shape
    Fp = w_fc.shape[0]
    TP = _pixel_tile(P)
    return pl.pallas_call(
        partial(_dist_kernel, scale=math.sqrt(P)),
        grid_spec=pltpu.PrefetchScalarGridSpec(
            num_scalar_prefetch=0, grid=(B, P // TP),
            in_specs=[_img_spec(C, TP), _const_spec((Fp, C)), _const_spec((Fp, 1)),
                      _ref_spec(Fp, TP)],
            out_specs=_per_image_spec((1, 1, 1))),
        out_shape=jax.ShapeDtypeStruct((B, 1, 1), jnp.float32),
        compiler_params=_params("parallel", "arbitrary"),
    )(x, w_fc, b_col, ref)


def _pair_dist_call(x1, x2, w_fc, b_col):
    B, C, P = x1.shape
    Fp = w_fc.shape[0]
    TP = _pixel_tile(P)
    return pl.pallas_call(
        partial(_pair_dist_kernel, scale=math.sqrt(P)),
        grid_spec=pltpu.PrefetchScalarGridSpec(
            num_scalar_prefetch=0, grid=(B, P // TP),
            in_specs=[_img_spec(C, TP), _img_spec(C, TP),
                      _const_spec((Fp, C)), _const_spec((Fp, 1))],
            out_specs=_per_image_spec((1, 1, 1))),
        out_shape=jax.ShapeDtypeStruct((B, 1, 1), jnp.float32),
        compiler_params=_params("parallel", "arbitrary"),
    )(x1, x2, w_fc, b_col)


# ---------------------------------------------------------------------------
# Tiny "self" LPIPS model (1x1-conv features + global-pool linear classifier).
# Weights are zero-padded to lane-dense widths; padding does not change feature
# norms, pooling or the real logits.
# ---------------------------------------------------------------------------
class TinyLPIPSModel:
    def __init__(self, key, in_channels, feat_channels, num_classes):
        k1, k2, k3, k4 = jax.random.split(key, 4)
        self.in_channels = in_channels
        self.feat_channels = feat_channels
        self.num_classes = num_classes
        w_feat = 0.5 * jax.random.normal(k1, (in_channels, feat_channels), jnp.float32)
        b_feat = 0.1 * jax.random.normal(k2, (feat_channels,), jnp.float32)
        w_cls = 0.5 * jax.random.normal(k3, (feat_channels, num_classes), jnp.float32)
        b_cls = 0.1 * jax.random.normal(k4, (num_classes,), jnp.float32)
        # (F_PAD, C): forward 1x1-conv weight; (C, F_PAD): transposed copy for dx
        self.w_fc = jnp.zeros((F_PAD, in_channels), jnp.float32).at[:feat_channels, :].set(w_feat.T)
        self.w_cf = jnp.zeros((in_channels, F_PAD), jnp.float32).at[:, :feat_channels].set(w_feat)
        self.b_col = jnp.zeros((F_PAD, 1), jnp.float32).at[:feat_channels, 0].set(b_feat)
        self.w_cls = jnp.zeros((F_PAD, K_PAD), jnp.float32).at[:feat_channels, :num_classes].set(w_cls)
        self.b_cls = jnp.zeros((1, K_PAD), jnp.float32).at[0, :num_classes].set(b_cls)


# ---------------------------------------------------------------------------
# LagrangePerceptualAttack (single jit, lax.fori_loop control flow)
# ---------------------------------------------------------------------------
class LagrangePerceptualAttack:
    def __init__(self, model, bound=0.5, step=None, num_iterations=20,
                 binary_steps=5, h=0.1, decay_step_size=True,
                 projection_steps=5, kappa=1.0):
        self.model = model                 # lpips_model == model ('self')
        self.bound = bound
        self.decay_step_size = decay_step_size
        self.num_iterations = num_iterations
        if step is None:
            self.step = bound if decay_step_size else bound * 2 / num_iterations
        else:
            self.step = step
        self.binary_steps = binary_steps
        self.h = h
        self.kappa = kappa
        self.projection_steps = projection_steps   # BisectionPerceptualProjection
        self._attack_jit = jax.jit(self._attack)

    # inputs_cp / pert0 are pixels-on-lanes: (B, C, H*W)
    def _attack(self, inputs_cp, labels, pert0):
        m = self.model
        B, C, P = inputs_cp.shape
        K = m.num_classes
        w_fc, w_cf, b_col, wc, bc = m.w_fc, m.w_cf, m.b_col, m.w_cls, m.b_cls

        # reference LPIPS features of the clean inputs (computed once, bf16 stream)
        input_nf = _features_call(inputs_cp, w_fc, b_col)
        onehot_lab = jax.nn.one_hot(labels, K, dtype=jnp.float32)

        def forward_and_grad(pert, lam_v, live):
            """Fused Pallas forward + hand-derived cotangents + fused Pallas backward."""
            x_adv = inputs_cp + pert
            logits_p, sqd = _loss_forward_call(x_adv, w_fc, b_col, wc, bc, input_nf)
            logits = logits_p[:, 0, :K]
            lpips = jnp.sqrt(jnp.maximum(sqd[:, 0, 0], 1e-20))

            # MarginLoss(kappa=1, untargeted) pieces
            correct = jnp.sum(logits * onehot_lab, axis=1)
            masked = jnp.where(onehot_lab > 0, -jnp.inf, logits)
            max_incorrect = jnp.max(masked, axis=1)
            arg_incorrect = jnp.argmax(masked, axis=1)

            live_f = live.astype(jnp.float32)
            # total = sum_b live_b * (-min(max_inc - correct, kappa)
            #                           + lam_b * relu(lpips_b - bound))
            under = ((max_incorrect - correct) < self.kappa).astype(jnp.float32)
            g_logits = (-live_f * under)[:, None] * (
                jax.nn.one_hot(arg_incorrect, K, dtype=jnp.float32) - onehot_lab)
            g_logits_p = jnp.zeros((B, 1, K_PAD), jnp.float32).at[:, 0, :K].set(g_logits)
            g_sqd = (live_f * lam_v
                     * (lpips > self.bound).astype(jnp.float32)
                     * 0.5 / lpips)[:, None, None]

            dx, gnsq = _loss_backward_call(x_adv, w_fc, w_cf, b_col, wc,
                                           input_nf, g_logits_p, g_sqd)
            gnorm = jnp.sqrt(jnp.maximum(gnsq[:, 0, 0], 0.0))
            return x_adv, logits, lpips, dx, gnorm

        def inner_body(attack_iter, state):
            pert, lam_v, live, all_lpips = state
            if self.decay_step_size:
                step_size = self.step * jnp.power(
                    0.1, attack_iter.astype(jnp.float32) / self.num_iterations)
            else:
                step_size = self.step

            x_adv, logits, lpips, grad, gnorm = forward_and_grad(pert, lam_v, live)
            adv_labels = jnp.argmax(logits, axis=1)
            grad_normed = grad / (gnorm[:, None, None] + 1e-8)

            # finite-difference LPIPS step scaling: fused pair-distance kernel,
            # no normalized features ever touch HBM.
            sqd_shift = _pair_dist_call(x_adv, x_adv + grad_normed * self.h,
                                        w_fc, b_col)
            dist_grads = jnp.sqrt(jnp.maximum(sqd_shift[:, 0, 0], 0.0)) / self.h

            updates = -grad_normed * (step_size / (dist_grads + 1e-8))[:, None, None]
            new_pert = jnp.clip(inputs_cp + pert + updates, 0.0, 1.0) - inputs_cp
            pert = jnp.where(live[:, None, None], new_pert, pert)

            # keep the last snapshot taken while at least one sample was live
            # (emulates the reference's early `break` without a host sync).
            any_live = jnp.any(live)
            all_lpips = jnp.where(any_live, jnp.where(live, lpips, 0.0), all_lpips)
            live = live & ((adv_labels == labels) | (lpips > self.bound))
            return pert, lam_v, live, all_lpips

        def outer_body(_, state):
            pert, lam_v, live, all_lpips = lax.fori_loop(
                0, self.num_iterations, inner_body, state)
            lam_v = jnp.where(all_lpips >= self.bound, lam_v * 10.0, lam_v)
            return pert, lam_v, live, all_lpips

        state0 = (pert0,
                  0.01 * jnp.ones((B,), jnp.float32),
                  jnp.ones((B,), bool),
                  jnp.zeros((B,), jnp.float32))
        pert, _, _, _ = lax.fori_loop(0, self.binary_steps, outer_body, state0)

        adv_inputs = inputs_cp + pert

        # BisectionPerceptualProjection (num_steps = projection_steps);
        # distance-only kernel, no feature/logit writes.
        def proj_body(_, st):
            lam_min, lam_max, lam_p, _projected = st
            l3 = lam_p[:, None, None]
            projected = inputs_cp * (1.0 - l3) + adv_inputs * l3
            sqd = _dist_call(projected, w_fc, b_col, input_nf)
            nd = jnp.sqrt(jnp.maximum(sqd[:, 0, 0], 0.0))
            lam_max = jnp.where(nd > self.bound, lam_p, lam_max)
            lam_min = jnp.where(nd <= self.bound, lam_p, lam_min)
            lam_p = 0.5 * (lam_min + lam_max)
            return lam_min, lam_max, lam_p, projected

        _, _, _, projected = lax.fori_loop(
            0, self.projection_steps, proj_body,
            (jnp.zeros((B,), jnp.float32), jnp.ones((B,), jnp.float32),
             0.5 * jnp.ones((B,), jnp.float32), adv_inputs))
        return projected

    def __call__(self, inputs_nchw, labels, key):
        B, C, H, W = inputs_nchw.shape
        # pixels-on-lanes layout is a pure reshape of NCHW (no transpose).
        inputs_cp = inputs_nchw.reshape(B, C, H * W)
        pert0 = 0.01 * jax.random.normal(key, inputs_cp.shape, inputs_cp.dtype)
        projected = self._attack_jit(inputs_cp, labels, pert0)
        return projected.reshape(B, C, H, W)


# ---------------------------------------------------------------------------
if __name__ == "__main__":
    key = jax.random.PRNGKey(0)
    k_in, k_lab, k_model, k_pert = jax.random.split(key, 4)

    B, C, H, W = 2, 4, 16, 16
    F_CH, NUM_CLASSES = 32, 10

    inputs = jax.random.uniform(k_in, (B, C, H, W), jnp.float32)
    labels = jax.random.randint(k_lab, (B,), 0, NUM_CLASSES, dtype=jnp.int32)

    model = TinyLPIPSModel(k_model, C, F_CH, NUM_CLASSES)
    attack = LagrangePerceptualAttack(model, bound=0.5,
                                      num_iterations=3, binary_steps=2)

    adv = attack(inputs, labels, k_pert)
    adv = jax.block_until_ready(adv)
    assert adv.shape == inputs.shape and adv.dtype == inputs.dtype
    assert bool(jnp.all(jnp.isfinite(adv)))
    print("KERNEL_OK")
</pallas_src>

<mosaic_0001>
module attributes {stable_mosaic.version = 11 : i64} {
  func.func @_features_kernel(%arg0: i32, %arg1: i32, %arg2: memref<1x4x256xf32, #tpu.memory_space<vmem>>, %arg3: memref<128x4xf32, #tpu.memory_space<vmem>>, %arg4: memref<128x1xf32, #tpu.memory_space<vmem>>, %arg5: memref<1x128x256xbf16, #tpu.memory_space<vmem>>) attributes {dimension_semantics = [#tpu.dimension_semantics<parallel>, #tpu.dimension_semantics<parallel>], iteration_bounds = array<i64: 2, 1>, scalar_prefetch = 0 : i64, scratch_operands = 0 : i64, tpu.core_type = #tpu.core_type<tc>, window_params = [{transform_indices = @transform_0, window_bounds = array<i64: 1, 4, 256>}, {pipeline_mode = #tpu.pipeline_mode<synchronous>, transform_indices = @transform_1, window_bounds = array<i64: 128, 4>}, {pipeline_mode = #tpu.pipeline_mode<synchronous>, transform_indices = @transform_2, window_bounds = array<i64: 128, 1>}, {transform_indices = @transform_3, window_bounds = array<i64: 1, 128, 256>}]} {
    %c0 = arith.constant 0 : index
    %c0_0 = arith.constant 0 : index
    %c0_1 = arith.constant 0 : index
    %0 = vector.load %arg2[%c0, %c0_0, %c0_1] : memref<1x4x256xf32, #tpu.memory_space<vmem>>, vector<1x4x256xf32>
    %1 = vector.shape_cast %0 : vector<1x4x256xf32> to vector<4x256xf32>
    %c0_2 = arith.constant 0 : index
    %c0_3 = arith.constant 0 : index
    %2 = vector.load %arg3[%c0_2, %c0_3] : memref<128x4xf32, #tpu.memory_space<vmem>>, vector<128x4xf32>
    %cst = arith.constant dense<0.000000e+00> : vector<128x256xf32>
    %3 = tpu.matmul %2, %1, %cst {dimension_numbers = #tpu.dot_dimension_numbers<[1], [0], [0], [1], [0, 0, 1, 1], [], []>} : vector<128x4xf32>, vector<4x256xf32>, vector<128x256xf32> -> vector<128x256xf32>
    %c0_4 = arith.constant 0 : index
    %c0_5 = arith.constant 0 : index
    %4 = vector.load %arg4[%c0_4, %c0_5] : memref<128x1xf32, #tpu.memory_space<vmem>>, vector<128x1xf32>
    %5 = vector.broadcast %4 : vector<128x1xf32> to vector<128x256xf32>
    %6 = arith.addf %3, %5 : vector<128x256xf32>
    %cst_6 = arith.constant 0.000000e+00 : f32
    %7 = vector.broadcast %cst_6 : f32 to vector<128x256xf32>
    %8 = arith.maximumf %6, %7 : vector<128x256xf32>
    %9 = arith.mulf %8, %8 : vector<128x256xf32>
    %cst_7 = arith.constant dense<0.000000e+00> : vector<256xf32>
    %10 = vector.multi_reduction <add>, %9, %cst_7 [0] : vector<128x256xf32> to vector<256xf32>
    %11 = vector.shape_cast %10 : vector<256xf32> to vector<1x256xf32>
    %12 = math.sqrt %11 : vector<1x256xf32>
    %cst_8 = arith.constant 1.000000e-10 : f32
    %13 = vector.broadcast %cst_8 : f32 to vector<1x256xf32>
    %14 = arith.addf %12, %13 : vector<1x256xf32>
    %cst_9 = arith.constant 1.600000e+01 : f32
    %15 = vector.broadcast %cst_9 : f32 to vector<1x256xf32>
    %16 = arith.mulf %14, %15 : vector<1x256xf32>
    %cst_10 = arith.constant 1.000000e+00 : f32
    %17 = vector.broadcast %cst_10 : f32 to vector<1x256xf32>
    %18 = arith.divf %17, %16 : vector<1x256xf32>
    %19 = vector.broadcast %18 : vector<1x256xf32> to vector<128x256xf32>
    %20 = arith.mulf %8, %19 : vector<128x256xf32>
    %21 = arith.truncf %20 : vector<128x256xf32> to vector<128x256xbf16>
    %c0_11 = arith.constant 0 : index
    %c0_12 = arith.constant 0 : index
    %c0_13 = arith.constant 0 : index
    %22 = vector.load %arg5[%c0_11, %c0_12, %c0_13] : memref<1x128x256xbf16, #tpu.memory_space<vmem>>, vector<1x128x256xbf16>
    %23 = vector.shape_cast %22 : vector<1x128x256xbf16> to vector<128x256xbf16>
    %24 = vector.shape_cast %21 : vector<128x256xbf16> to vector<1x128x256xbf16>
    tpu.vector_store %arg5[%c0_11, %c0_12, %c0_13], %24 {strides = array<i32>} : memref<1x128x256xbf16, #tpu.memory_space<vmem>>, vector<1x128x256xbf16>,
    return
  }
  func.func @transform_0(%arg0: i32, %arg1: i32) -> (i32, i32, i32) {
    %c0_i32 = arith.constant 0 : i32
    %c0_i32_0 = arith.constant 0 : i32
    return %arg0, %c0_i32, %arg1 : i32, i32, i32
  }
  func.func @transform_1(%arg0: i32, %arg1: i32) -> (i32, i32) {
    %c0_i32 = arith.constant 0 : i32
    %c0_i32_0 = arith.constant 0 : i32
    %c0_i32_1 = arith.constant 0 : i32
    return %c0_i32, %c0_i32_0 : i32, i32
  }
  func.func @transform_2(%arg0: i32, %arg1: i32) -> (i32, i32) {
    %c0_i32 = arith.constant 0 : i32
    %c0_i32_0 = arith.constant 0 : i32
    %c0_i32_1 = arith.constant 0 : i32
    return %c0_i32, %c0_i32_0 : i32, i32
  }
  func.func @transform_3(%arg0: i32, %arg1: i32) -> (i32, i32, i32) {
    %c0_i32 = arith.constant 0 : i32
    %c0_i32_0 = arith.constant 0 : i32
    return %arg0, %c0_i32, %arg1 : i32, i32, i32
  }
}

module attributes {stable_mosaic.version = 11 : i64} {
  func.func @_loss_fwd_kernel(%arg0: i32, %arg1: i32, %arg2: memref<1x4x256xf32, #tpu.memory_space<vmem>>, %arg3: memref<128x4xf32, #tpu.memory_space<vmem>>, %arg4: memref<128x1xf32, #tpu.memory_space<vmem>>, %arg5: memref<128x128xf32, #tpu.memory_space<vmem>>, %arg6: memref<1x128xf32, #tpu.memory_space<vmem>>, %arg7: memref<1x128x256xbf16, #tpu.memory_space<vmem>>, %arg8: memref<1x1x128xf32, #tpu.memory_space<vmem>>, %arg9: memref<1x1x1xf32, #tpu.memory_space<vmem>>, %arg10: memref<128x1xf32, #tpu.memory_space<vmem>>) attributes {dimension_semantics = [#tpu.dimension_semantics<parallel>, #tpu.dimension_semantics<arbitrary>], iteration_bounds = array<i64: 2, 1>, scalar_prefetch = 0 : i64, scratch_operands = 1 : i64, tpu.core_type = #tpu.core_type<tc>, window_params = [{transform_indices = @transform_0, window_bounds = array<i64: 1, 4, 256>}, {pipeline_mode = #tpu.pipeline_mode<synchronous>, transform_indices = @transform_1, window_bounds = array<i64: 128, 4>}, {pipeline_mode = #tpu.pipeline_mode<synchronous>, transform_indices = @transform_2, window_bounds = array<i64: 128, 1>}, {pipeline_mode = #tpu.pipeline_mode<synchronous>, transform_indices = @transform_3, window_bounds = array<i64: 128, 128>}, {pipeline_mode = #tpu.pipeline_mode<synchronous>, transform_indices = @transform_4, window_bounds = array<i64: 1, 128>}, {transform_indices = @transform_5, window_bounds = array<i64: 1, 128, 256>}, {transform_indices = @transform_6, window_bounds = array<i64: 1, 1, 128>}, {transform_indices = @transform_7, window_bounds = array<i64: 1, 1, 1>}]} {
    %c0_i32 = arith.constant 0 : i32
    %0 = arith.cmpi eq, %arg1, %c0_i32 : i32
    %1 = arith.extui %0 : i1 to i32
    %c0_i32_0 = arith.constant 0 : i32
    %2 = arith.cmpi ne, %1, %c0_i32_0 : i32
    scf.if %2 {
      %cst_30 = arith.constant 0.000000e+00 : f32
      %47 = vector.broadcast %cst_30 : f32 to vector<128x1xf32>
      %c0_31 = arith.constant 0 : index
      %c0_32 = arith.constant 0 : index
      %48 = vector.load %arg10[%c0_31, %c0_32] : memref<128x1xf32, #tpu.memory_space<vmem>>, vector<128x1xf32>
      tpu.vector_store %arg10[%c0_31, %c0_32], %47 {strides = array<i32>} : memref<128x1xf32, #tpu.memory_space<vmem>>, vector<128x1xf32>,
      %cst_33 = arith.constant 0.000000e+00 : f32
      %49 = vector.broadcast %cst_33 : f32 to vector<1x1x1xf32>
      %c0_34 = arith.constant 0 : index
      %c0_35 = arith.constant 0 : index
      %c0_36 = arith.constant 0 : index
      %50 = vector.load %arg9[%c0_34, %c0_35, %c0_36] : memref<1x1x1xf32, #tpu.memory_space<vmem>>, vector<1x1x1xf32>
      tpu.vector_store %arg9[%c0_34, %c0_35, %c0_36], %49 {strides = array<i32>} : memref<1x1x1xf32, #tpu.memory_space<vmem>>, vector<1x1x1xf32>,
    } else {
    }
    %c0 = arith.constant 0 : index
    %c0_1 = arith.constant 0 : index
    %c0_2 = arith.constant 0 : index
    %3 = vector.load %arg2[%c0, %c0_1, %c0_2] : memref<1x4x256xf32, #tpu.memory_space<vmem>>, vector<1x4x256xf32>
    %4 = vector.shape_cast %3 : vector<1x4x256xf32> to vector<4x256xf32>
    %c0_3 = arith.constant 0 : index
    %c0_4 = arith.constant 0 : index
    %5 = vector.load %arg3[%c0_3, %c0_4] : memref<128x4xf32, #tpu.memory_space<vmem>>, vector<128x4xf32>
    %cst = arith.constant dense<0.000000e+00> : vector<128x256xf32>
    %6 = tpu.matmul %5, %4, %cst {dimension_numbers = #tpu.dot_dimension_numbers<[1], [0], [0], [1], [0, 0, 1, 1], [], []>} : vector<128x4xf32>, vector<4x256xf32>, vector<128x256xf32> -> vector<128x256xf32>
    %c0_5 = arith.constant 0 : index
    %c0_6 = arith.constant 0 : index
    %7 = vector.load %arg4[%c0_5, %c0_6] : memref<128x1xf32, #tpu.memory_space<vmem>>, vector<128x1xf32>
    %8 = vector.broadcast %7 : vector<128x1xf32> to vector<128x256xf32>
    %9 = arith.addf %6, %8 : vector<128x256xf32>
    %cst_7 = arith.constant 0.000000e+00 : f32
    %10 = vector.broadcast %cst_7 : f32 to vector<128x256xf32>
    %11 = arith.maximumf %9, %10 : vector<128x256xf32>
    %12 = arith.mulf %11, %11 : vector<128x256xf32>
    %cst_8 = arith.constant dense<0.000000e+00> : vector<256xf32>
    %13 = vector.multi_reduction <add>, %12, %cst_8 [0] : vector<128x256xf32> to vector<256xf32>
    %14 = vector.shape_cast %13 : vector<256xf32> to vector<1x256xf32>
    %15 = math.sqrt %14 : vector<1x256xf32>
    %cst_9 = arith.constant 1.000000e-10 : f32
    %16 = vector.broadcast %cst_9 : f32 to vector<1x256xf32>
    %17 = arith.addf %15, %16 : vector<1x256xf32>
    %cst_10 = arith.constant 1.600000e+01 : f32
    %18 = vector.broadcast %cst_10 : f32 to vector<1x256xf32>
    %19 = arith.mulf %17, %18 : vector<1x256xf32>
    %cst_11 = arith.constant 1.000000e+00 : f32
    %20 = vector.broadcast %cst_11 : f32 to vector<1x256xf32>
    %21 = arith.divf %20, %19 : vector<1x256xf32>
    %22 = vector.broadcast %21 : vector<1x256xf32> to vector<128x256xf32>
    %23 = arith.mulf %11, %22 : vector<128x256xf32>
    %c0_12 = arith.constant 0 : index
    %c0_13 = arith.constant 0 : index
    %c0_14 = arith.constant 0 : index
    %24 = vector.load %arg7[%c0_12, %c0_13, %c0_14] : memref<1x128x256xbf16, #tpu.memory_space<vmem>>, vector<1x128x256xbf16>
    %25 = vector.shape_cast %24 : vector<1x128x256xbf16> to vector<128x256xbf16>
    %26 = arith.extf %25 : vector<128x256xbf16> to vector<128x256xf32>
    %27 = arith.subf %23, %26 : vector<128x256xf32>
    %c0_15 = arith.constant 0 : index
    %c0_16 = arith.constant 0 : index
    %c0_17 = arith.constant 0 : index
    %28 = vector.load %arg9[%c0_15, %c0_16, %c0_17] : memref<1x1x1xf32, #tpu.memory_space<vmem>>, vector<1x1x1xf32>
    %29 = vector.shape_cast %28 : vector<1x1x1xf32> to vector<1x1xf32>
    %30 = arith.mulf %27, %27 : vector<128x256xf32>
    %cst_18 = arith.constant dense<0.000000e+00> : vector<128xf32>
    %31 = vector.multi_reduction <add>, %30, %cst_18 [1] : vector<128x256xf32> to vector<128xf32>
    %32 = vector.shape_cast %31 : vector<128xf32> to vector<128x1xf32>
    %cst_19 = arith.constant dense<0.000000e+00> : vector<1xf32>
    %33 = vector.multi_reduction <add>, %32, %cst_19 [0] : vector<128x1xf32> to vector<1xf32>
    %34 = vector.shape_cast %33 : vector<1xf32> to vector<1x1xf32>
    %35 = arith.addf %29, %34 : vector<1x1xf32>
    %c0_20 = arith.constant 0 : index
    %c0_21 = arith.constant 0 : index
    %c0_22 = arith.constant 0 : index
    %36 = vector.load %arg9[%c0_20, %c0_21, %c0_22] : memref<1x1x1xf32, #tpu.memory_space<vmem>>, vector<1x1x1xf32>
    %37 = vector.shape_cast %36 : vector<1x1x1xf32> to vector<1x1xf32>
    %38 = vector.shape_cast %35 : vector<1x1xf32> to vector<1x1x1xf32>
    tpu.vector_store %arg9[%c0_20, %c0_21, %c0_22], %38 {strides = array<i32>} : memref<1x1x1xf32, #tpu.memory_space<vmem>>, vector<1x1x1xf32>,
    %c0_23 = arith.constant 0 : index
    %c0_24 = arith.constant 0 : index
    %39 = vector.load %arg10[%c0_23, %c0_24] : memref<128x1xf32, #tpu.memory_space<vmem>>, vector<128x1xf32>
    %cst_25 = arith.constant dense<0.000000e+00> : vector<128xf32>
    %40 = vector.multi_reduction <add>, %11, %cst_25 [1] : vector<128x256xf32> to vector<128xf32>
    %41 = vector.shape_cast %40 : vector<128xf32> to vector<128x1xf32>
    %42 = arith.addf %39, %41 : vector<128x1xf32>
    %c0_26 = arith.constant 0 : index
    %c0_27 = arith.constant 0 : index
    %43 = vector.load %arg10[%c0_26, %c0_27] : memref<128x1xf32, #tpu.memory_space<vmem>>, vector<128x1xf32>
    tpu.vector_store %arg10[%c0_26, %c0_27], %42 {strides = array<i32>} : memref<128x1xf32, #tpu.memory_space<vmem>>, vector<128x1xf32>,
    %c0_i32_28 = arith.constant 0 : i32
    %44 = arith.cmpi eq, %arg1, %c0_i32_28 : i32
    %45 = arith.extui %44 : i1 to i32
    %c0_i32_29 = arith.constant 0 : i32
    %46 = arith.cmpi ne, %45, %c0_i32_29 : i32
    scf.if %46 {
      %c0_30 = arith.constant 0 : index
      %c0_31 = arith.constant 0 : index
      %47 = vector.load %arg10[%c0_30, %c0_31] : memref<128x1xf32, #tpu.memory_space<vmem>>, vector<128x1xf32>
      %cst_32 = arith.constant 3.906250e-03 : f32
      %48 = vector.broadcast %cst_32 : f32 to vector<128x1xf32>
      %49 = arith.mulf %47, %48 : vector<128x1xf32>
      %c0_33 = arith.constant 0 : index
      %c0_34 = arith.constant 0 : index
      %50 = vector.load %arg5[%c0_33, %c0_34] : memref<128x128xf32, #tpu.memory_space<vmem>>, vector<128x128xf32>
      %51 = vector.broadcast %49 : vector<128x1xf32> to vector<128x128xf32>
      %52 = arith.mulf %51, %50 : vector<128x128xf32>
      %cst_35 = arith.constant dense<0.000000e+00> : vector<128xf32>
      %53 = vector.multi_reduction <add>, %52, %cst_35 [0] : vector<128x128xf32> to vector<128xf32>
      %54 = vector.shape_cast %53 : vector<128xf32> to vector<1x128xf32>
      %c0_36 = arith.constant 0 : index
      %c0_37 = arith.constant 0 : index
      %55 = vector.load %arg6[%c0_36, %c0_37] : memref<1x128xf32, #tpu.memory_space<vmem>>, vector<1x128xf32>
      %56 = arith.addf %54, %55 : vector<1x128xf32>
      %c0_38 = arith.constant 0 : index
      %c0_39 = arith.constant 0 : index
      %c0_40 = arith.constant 0 : index
      %57 = vector.load %arg8[%c0_38, %c0_39, %c0_40] : memref<1x1x128xf32, #tpu.memory_space<vmem>>, vector<1x1x128xf32>
      %58 = vector.shape_cast %57 : vector<1x1x128xf32> to vector<1x128xf32>
      %59 = vector.shape_cast %56 : vector<1x128xf32> to vector<1x1x128xf32>
      tpu.vector_store %arg8[%c0_38, %c0_39, %c0_40], %59 {strides = array<i32>} : memref<1x1x128xf32, #tpu.memory_space<vmem>>, vector<1x1x128xf32>,
    } else {
    }
    return
  }
  func.func @transform_0(%arg0: i32, %arg1: i32) -> (i32, i32, i32) {
    %c0_i32 = arith.constant 0 : i32
    %c0_i32_0 = arith.constant 0 : i32
    return %arg0, %c0_i32, %arg1 : i32, i32, i32
  }
  func.func @transform_1(%arg0: i32, %arg1: i32) -> (i32, i32) {
    %c0_i32 = arith.constant 0 : i32
    %c0_i32_0 = arith.constant 0 : i32
    %c0_i32_1 = arith.constant 0 : i32
    return %c0_i32, %c0_i32_0 : i32, i32
  }
  func.func @transform_2(%arg0: i32, %arg1: i32) -> (i32, i32) {
    %c0_i32 = arith.constant 0 : i32
    %c0_i32_0 = arith.constant 0 : i32
    %c0_i32_1 = arith.constant 0 : i32
    return %c0_i32, %c0_i32_0 : i32, i32
  }
  func.func @transform_3(%arg0: i32, %arg1: i32) -> (i32, i32) {
    %c0_i32 = arith.constant 0 : i32
    %c0_i32_0 = arith.constant 0 : i32
    %c0_i32_1 = arith.constant 0 : i32
    return %c0_i32, %c0_i32_0 : i32, i32
  }
  func.func @transform_4(%arg0: i32, %arg1: i32) -> (i32, i32) {
    %c0_i32 = arith.constant 0 : i32
    %c0_i32_0 = arith.constant 0 : i32
    %c0_i32_1 = arith.constant 0 : i32
    return %c0_i32, %c0_i32_0 : i32, i32
  }
  func.func @transform_5(%arg0: i32, %arg1: i32) -> (i32, i32, i32) {
    %c0_i32 = arith.constant 0 : i32
    %c0_i32_0 = arith.constant 0 : i32
    return %arg0, %c0_i32, %arg1 : i32, i32, i32
  }
  func.func @transform_6(%arg0: i32, %arg1: i32) -> (i32, i32, i32) {
    %c0_i32 = arith.constant 0 : i32
    %c0_i32_0 = arith.constant 0 : i32
    %c0_i32_1 = arith.constant 0 : i32
    return %arg0, %c0_i32, %c0_i32_0 : i32, i32, i32
  }
  func.func @transform_7(%arg0: i32, %arg1: i32) -> (i32, i32, i32) {
    %c0_i32 = arith.constant 0 : i32
    %c0_i32_0 = arith.constant 0 : i32
    %c0_i32_1 = arith.constant 0 : i32
    return %arg0, %c0_i32, %c0_i32_0 : i32, i32, i32
  }
}

module attributes {stable_mosaic.version = 11 : i64} {
  func.func @_loss_bwd_kernel(%arg0: i32, %arg1: i32, %arg2: memref<1x4x256xf32, #tpu.memory_space<vmem>>, %arg3: memref<128x4xf32, #tpu.memory_space<vmem>>, %arg4: memref<4x128xf32, #tpu.memory_space<vmem>>, %arg5: memref<128x1xf32, #tpu.memory_space<vmem>>, %arg6: memref<128x128xf32, #tpu.memory_space<vmem>>, %arg7: memref<1x128x256xbf16, #tpu.memory_space<vmem>>, %arg8: memref<1x1x128xf32, #tpu.memory_space<vmem>>, %arg9: memref<1x1x1xf32, #tpu.memory_space<vmem>>, %arg10: memref<1x4x256xf32, #tpu.memory_space<vmem>>, %arg11: memref<1x1x1xf32, #tpu.memory_space<vmem>>) attributes {dimension_semantics = [#tpu.dimension_semantics<parallel>, #tpu.dimension_semantics<arbitrary>], iteration_bounds = array<i64: 2, 1>, scalar_prefetch = 0 : i64, scratch_operands = 0 : i64, tpu.core_type = #tpu.core_type<tc>, window_params = [{transform_indices = @transform_0, window_bounds = array<i64: 1, 4, 256>}, {pipeline_mode = #tpu.pipeline_mode<synchronous>, transform_indices = @transform_1, window_bounds = array<i64: 128, 4>}, {pipeline_mode = #tpu.pipeline_mode<synchronous>, transform_indices = @transform_2, window_bounds = array<i64: 4, 128>}, {pipeline_mode = #tpu.pipeline_mode<synchronous>, transform_indices = @transform_3, window_bounds = array<i64: 128, 1>}, {pipeline_mode = #tpu.pipeline_mode<synchronous>, transform_indices = @transform_4, window_bounds = array<i64: 128, 128>}, {transform_indices = @transform_5, window_bounds = array<i64: 1, 128, 256>}, {transform_indices = @transform_6, window_bounds = array<i64: 1, 1, 128>}, {transform_indices = @transform_7, window_bounds = array<i64: 1, 1, 1>}, {transform_indices = @transform_8, window_bounds = array<i64: 1, 4, 256>}, {transform_indices = @transform_9, window_bounds = array<i64: 1, 1, 1>}]} {
    %c0_i32 = arith.constant 0 : i32
    %0 = arith.cmpi eq, %arg1, %c0_i32 : i32
    %1 = arith.extui %0 : i1 to i32
    %c0_i32_0 = arith.constant 0 : i32
    %2 = arith.cmpi ne, %1, %c0_i32_0 : i32
    scf.if %2 {
      %cst_48 = arith.constant 0.000000e+00 : f32
      %84 = vector.broadcast %cst_48 : f32 to vector<1x1x1xf32>
      %c0_49 = arith.constant 0 : index
      %c0_50 = arith.constant 0 : index
      %c0_51 = arith.constant 0 : index
      %85 = vector.load %arg11[%c0_49, %c0_50, %c0_51] : memref<1x1x1xf32, #tpu.memory_space<vmem>>, vector<1x1x1xf32>
      tpu.vector_store %arg11[%c0_49, %c0_50, %c0_51], %84 {strides = array<i32>} : memref<1x1x1xf32, #tpu.memory_space<vmem>>, vector<1x1x1xf32>,
    } else {
    }
    %c0 = arith.constant 0 : index
    %c0_1 = arith.constant 0 : index
    %c0_2 = arith.constant 0 : index
    %3 = vector.load %arg2[%c0, %c0_1, %c0_2] : memref<1x4x256xf32, #tpu.memory_space<vmem>>, vector<1x4x256xf32>
    %4 = vector.shape_cast %3 : vector<1x4x256xf32> to vector<4x256xf32>
    %c0_3 = arith.constant 0 : index
    %c0_4 = arith.constant 0 : index
    %5 = vector.load %arg3[%c0_3, %c0_4] : memref<128x4xf32, #tpu.memory_space<vmem>>, vector<128x4xf32>
    %cst = arith.constant dense<0.000000e+00> : vector<128x256xf32>
    %6 = tpu.matmul %5, %4, %cst {dimension_numbers = #tpu.dot_dimension_numbers<[1], [0], [0], [1], [0, 0, 1, 1], [], []>} : vector<128x4xf32>, vector<4x256xf32>, vector<128x256xf32> -> vector<128x256xf32>
    %c0_5 = arith.constant 0 : index
    %c0_6 = arith.constant 0 : index
    %7 = vector.load %arg5[%c0_5, %c0_6] : memref<128x1xf32, #tpu.memory_space<vmem>>, vector<128x1xf32>
    %8 = vector.broadcast %7 : vector<128x1xf32> to vector<128x256xf32>
    %9 = arith.addf %6, %8 : vector<128x256xf32>
    %cst_7 = arith.constant 0.000000e+00 : f32
    %10 = vector.broadcast %cst_7 : f32 to vector<128x256xf32>
    %11 = arith.maximumf %9, %10 : vector<128x256xf32>
    %12 = arith.mulf %11, %11 : vector<128x256xf32>
    %cst_8 = arith.constant dense<0.000000e+00> : vector<256xf32>
    %13 = vector.multi_reduction <add>, %12, %cst_8 [0] : vector<128x256xf32> to vector<256xf32>
    %14 = vector.shape_cast %13 : vector<256xf32> to vector<1x256xf32>
    %15 = math.sqrt %14 : vector<1x256xf32>
    %cst_9 = arith.constant 1.000000e-10 : f32
    %16 = vector.broadcast %cst_9 : f32 to vector<1x256xf32>
    %17 = arith.addf %15, %16 : vector<1x256xf32>
    %cst_10 = arith.constant 1.600000e+01 : f32
    %18 = vector.broadcast %cst_10 : f32 to vector<1x256xf32>
    %19 = arith.mulf %17, %18 : vector<1x256xf32>
    %cst_11 = arith.constant 1.000000e+00 : f32
    %20 = vector.broadcast %cst_11 : f32 to vector<1x256xf32>
    %21 = arith.divf %20, %19 : vector<1x256xf32>
    %22 = vector.broadcast %21 : vector<1x256xf32> to vector<128x256xf32>
    %23 = arith.mulf %11, %22 : vector<128x256xf32>
    %cst_12 = arith.constant 1.000000e-10 : f32
    %24 = vector.broadcast %cst_12 : f32 to vector<1x256xf32>
    %25 = arith.addf %15, %24 : vector<1x256xf32>
    %cst_13 = arith.constant 1.600000e+01 : f32
    %26 = vector.broadcast %cst_13 : f32 to vector<1x256xf32>
    %27 = arith.mulf %25, %26 : vector<1x256xf32>
    %cst_14 = arith.constant 1.000000e+00 : f32
    %28 = vector.broadcast %cst_14 : f32 to vector<1x256xf32>
    %29 = arith.divf %28, %27 : vector<1x256xf32>
    %c0_15 = arith.constant 0 : index
    %c0_16 = arith.constant 0 : index
    %c0_17 = arith.constant 0 : index
    %30 = vector.load %arg9[%c0_15, %c0_16, %c0_17] : memref<1x1x1xf32, #tpu.memory_space<vmem>>, vector<1x1x1xf32>
    %31 = vector.shape_cast %30 : vector<1x1x1xf32> to vector<1x1xf32>
    %cst_18 = arith.constant 2.000000e+00 : f32
    %32 = vector.broadcast %cst_18 : f32 to vector<1x1xf32>
    %33 = arith.mulf %32, %31 : vector<1x1xf32>
    %c0_19 = arith.constant 0 : index
    %c0_20 = arith.constant 0 : index
    %c0_21 = arith.constant 0 : index
    %34 = vector.load %arg7[%c0_19, %c0_20, %c0_21] : memref<1x128x256xbf16, #tpu.memory_space<vmem>>, vector<1x128x256xbf16>
    %35 = vector.shape_cast %34 : vector<1x128x256xbf16> to vector<128x256xbf16>
    %36 = arith.extf %35 : vector<128x256xbf16> to vector<128x256xf32>
    %37 = arith.subf %23, %36 : vector<128x256xf32>
    %38 = vector.broadcast %33 : vector<1x1xf32> to vector<128x256xf32>
    %39 = arith.mulf %38, %37 : vector<128x256xf32>
    %40 = arith.mulf %39, %23 : vector<128x256xf32>
    %cst_22 = arith.constant dense<0.000000e+00> : vector<256xf32>
    %41 = vector.multi_reduction <add>, %40, %cst_22 [0] : vector<128x256xf32> to vector<256xf32>
    %42 = vector.shape_cast %41 : vector<256xf32> to vector<1x256xf32>
    %43 = vector.broadcast %29 : vector<1x256xf32> to vector<128x256xf32>
    %44 = arith.mulf %39, %43 : vector<128x256xf32>
    %cst_23 = arith.constant 1.600000e+01 : f32
    %45 = vector.broadcast %cst_23 : f32 to vector<1x256xf32>
    %46 = arith.mulf %42, %45 : vector<1x256xf32>
    %cst_24 = arith.constant 9.99999968E-21 : f32
    %47 = vector.broadcast %cst_24 : f32 to vector<1x256xf32>
    %48 = arith.maximumf %15, %47 : vector<1x256xf32>
    %49 = arith.divf %46, %48 : vector<1x256xf32>
    %50 = vector.broadcast %49 : vector<1x256xf32> to vector<128x256xf32>
    %51 = arith.mulf %23, %50 : vector<128x256xf32>
    %52 = arith.subf %44, %51 : vector<128x256xf32>
    %c0_25 = arith.constant 0 : index
    %c0_26 = arith.constant 0 : index
    %53 = vector.load %arg6[%c0_25, %c0_26] : memref<128x128xf32, #tpu.memory_space<vmem>>, vector<128x128xf32>
    %c0_27 = arith.constant 0 : index
    %c0_28 = arith.constant 0 : index
    %c0_29 = arith.constant 0 : index
    %54 = vector.load %arg8[%c0_27, %c0_28, %c0_29] : memref<1x1x128xf32, #tpu.memory_space<vmem>>, vector<1x1x128xf32>
    %55 = vector.shape_cast %54 : vector<1x1x128xf32> to vector<1x128xf32>
    %56 = vector.broadcast %55 : vector<1x128xf32> to vector<128x128xf32>
    %57 = arith.mulf %53, %56 : vector<128x128xf32>
    %cst_30 = arith.constant dense<0.000000e+00> : vector<128xf32>
    %58 = vector.multi_reduction <add>, %57, %cst_30 [1] : vector<128x128xf32> to vector<128xf32>
    %59 = vector.shape_cast %58 : vector<128xf32> to vector<128x1xf32>
    %cst_31 = arith.constant 3.906250e-03 : f32
    %60 = vector.broadcast %cst_31 : f32 to vector<128x1xf32>
    %61 = arith.mulf %59, %60 : vector<128x1xf32>
    %62 = vector.broadcast %61 : vector<128x1xf32> to vector<128x256xf32>
    %63 = arith.addf %52, %62 : vector<128x256xf32>
    %cst_32 = arith.constant 0.000000e+00 : f32
    %64 = vector.broadcast %cst_32 : f32 to vector<128x256xf32>
    %65 = arith.cmpf ogt, %9, %64 : vector<128x256xf32>
    %cst_33 = arith.constant 0.000000e+00 : f32
    %66 = vector.broadcast %cst_33 : f32 to vector<128x256xf32>
    %67 = arith.select %65, %63, %66 : vector<128x256xi1>, vector<128x256xf32>
    %c0_34 = arith.constant 0 : index
    %c0_35 = arith.constant 0 : index
    %68 = vector.load %arg4[%c0_34, %c0_35] : memref<4x128xf32, #tpu.memory_space<vmem>>, vector<4x128xf32>
    %cst_36 = arith.constant dense<0.000000e+00> : vector<4x256xf32>
    %69 = tpu.matmul %68, %67, %cst_36 {dimension_numbers = #tpu.dot_dimension_numbers<[1], [0], [0], [1], [0, 0, 1, 1], [], []>} : vector<4x128xf32>, vector<128x256xf32>, vector<4x256xf32> -> vector<4x256xf32>
    %c0_37 = arith.constant 0 : index
    %c0_38 = arith.constant 0 : index
    %c0_39 = arith.constant 0 : index
    %70 = vector.load %arg10[%c0_37, %c0_38, %c0_39] : memref<1x4x256xf32, #tpu.memory_space<vmem>>, vector<1x4x256xf32>
    %71 = vector.shape_cast %70 : vector<1x4x256xf32> to vector<4x256xf32>
    %72 = vector.shape_cast %69 : vector<4x256xf32> to vector<1x4x256xf32>
    tpu.vector_store %arg10[%c0_37, %c0_38, %c0_39], %72 {strides = array<i32>} : memref<1x4x256xf32, #tpu.memory_space<vmem>>, vector<1x4x256xf32>,
    %c0_40 = arith.constant 0 : index
    %c0_41 = arith.constant 0 : index
    %c0_42 = arith.constant 0 : index
    %73 = vector.load %arg11[%c0_40, %c0_41, %c0_42] : memref<1x1x1xf32, #tpu.memory_space<vmem>>, vector<1x1x1xf32>
    %74 = vector.shape_cast %73 : vector<1x1x1xf32> to vector<1x1xf32>
    %75 = arith.mulf %69, %69 : vector<4x256xf32>
    %cst_43 = arith.constant dense<0.000000e+00> : vector<4xf32>
    %76 = vector.multi_reduction <add>, %75, %cst_43 [1] : vector<4x256xf32> to vector<4xf32>
    %77 = vector.shape_cast %76 : vector<4xf32> to vector<4x1xf32>
    %cst_44 = arith.constant dense<0.000000e+00> : vector<1xf32>
    %78 = vector.multi_reduction <add>, %77, %cst_44 [0] : vector<4x1xf32> to vector<1xf32>
    %79 = vector.shape_cast %78 : vector<1xf32> to vector<1x1xf32>
    %80 = arith.addf %74, %79 : vector<1x1xf32>
    %c0_45 = arith.constant 0 : index
    %c0_46 = arith.constant 0 : index
    %c0_47 = arith.constant 0 : index
    %81 = vector.load %arg11[%c0_45, %c0_46, %c0_47] : memref<1x1x1xf32, #tpu.memory_space<vmem>>, vector<1x1x1xf32>
    %82 = vector.shape_cast %81 : vector<1x1x1xf32> to vector<1x1xf32>
    %83 = vector.shape_cast %80 : vector<1x1xf32> to vector<1x1x1xf32>
    tpu.vector_store %arg11[%c0_45, %c0_46, %c0_47], %83 {strides = array<i32>} : memref<1x1x1xf32, #tpu.memory_space<vmem>>, vector<1x1x1xf32>,
    return
  }
  func.func @transform_0(%arg0: i32, %arg1: i32) -> (i32, i32, i32) {
    %c0_i32 = arith.constant 0 : i32
    %c0_i32_0 = arith.constant 0 : i32
    return %arg0, %c0_i32, %arg1 : i32, i32, i32
  }
  func.func @transform_1(%arg0: i32, %arg1: i32) -> (i32, i32) {
    %c0_i32 = arith.constant 0 : i32
    %c0_i32_0 = arith.constant 0 : i32
    %c0_i32_1 = arith.constant 0 : i32
    return %c0_i32, %c0_i32_0 : i32, i32
  }
  func.func @transform_2(%arg0: i32, %arg1: i32) -> (i32, i32) {
    %c0_i32 = arith.constant 0 : i32
    %c0_i32_0 = arith.constant 0 : i32
    %c0_i32_1 = arith.constant 0 : i32
    return %c0_i32, %c0_i32_0 : i32, i32
  }
  func.func @transform_3(%arg0: i32, %arg1: i32) -> (i32, i32) {
    %c0_i32 = arith.constant 0 : i32
    %c0_i32_0 = arith.constant 0 : i32
    %c0_i32_1 = arith.constant 0 : i32
    return %c0_i32, %c0_i32_0 : i32, i32
  }
  func.func @transform_4(%arg0: i32, %arg1: i32) -> (i32, i32) {
    %c0_i32 = arith.constant 0 : i32
    %c0_i32_0 = arith.constant 0 : i32
    %c0_i32_1 = arith.constant 0 : i32
    return %c0_i32, %c0_i32_0 : i32, i32
  }
  func.func @transform_5(%arg0: i32, %arg1: i32) -> (i32, i32, i32) {
    %c0_i32 = arith.constant 0 : i32
    %c0_i32_0 = arith.constant 0 : i32
    return %arg0, %c0_i32, %arg1 : i32, i32, i32
  }
  func.func @transform_6(%arg0: i32, %arg1: i32) -> (i32, i32, i32) {
    %c0_i32 = arith.constant 0 : i32
    %c0_i32_0 = arith.constant 0 : i32
    %c0_i32_1 = arith.constant 0 : i32
    return %arg0, %c0_i32, %c0_i32_0 : i32, i32, i32
  }
  func.func @transform_7(%arg0: i32, %arg1: i32) -> (i32, i32, i32) {
    %c0_i32 = arith.constant 0 : i32
    %c0_i32_0 = arith.constant 0 : i32
    %c0_i32_1 = arith.constant 0 : i32
    return %arg0, %c0_i32, %c0_i32_0 : i32, i32, i32
  }
  func.func @transform_8(%arg0: i32, %arg1: i32) -> (i32, i32, i32) {
    %c0_i32 = arith.constant 0 : i32
    %c0_i32_0 = arith.constant 0 : i32
    return %arg0, %c0_i32, %arg1 : i32, i32, i32
  }
  func.func @transform_9(%arg0: i32, %arg1: i32) -> (i32, i32, i32) {
    %c0_i32 = arith.constant 0 : i32
    %c0_i32_0 = arith.constant 0 : i32
    %c0_i32_1 = arith.constant 0 : i32
    return %arg0, %c0_i32, %c0_i32_0 : i32, i32, i32
  }
}

module attributes {stable_mosaic.version = 11 : i64} {
  func.func @_pair_dist_kernel(%arg0: i32, %arg1: i32, %arg2: memref<1x4x256xf32, #tpu.memory_space<vmem>>, %arg3: memref<1x4x256xf32, #tpu.memory_space<vmem>>, %arg4: memref<128x4xf32, #tpu.memory_space<vmem>>, %arg5: memref<128x1xf32, #tpu.memory_space<vmem>>, %arg6: memref<1x1x1xf32, #tpu.memory_space<vmem>>) attributes {dimension_semantics = [#tpu.dimension_semantics<parallel>, #tpu.dimension_semantics<arbitrary>], iteration_bounds = array<i64: 2, 1>, scalar_prefetch = 0 : i64, scratch_operands = 0 : i64, tpu.core_type = #tpu.core_type<tc>, window_params = [{transform_indices = @transform_0, window_bounds = array<i64: 1, 4, 256>}, {transform_indices = @transform_1, window_bounds = array<i64: 1, 4, 256>}, {pipeline_mode = #tpu.pipeline_mode<synchronous>, transform_indices = @transform_2, window_bounds = array<i64: 128, 4>}, {pipeline_mode = #tpu.pipeline_mode<synchronous>, transform_indices = @transform_3, window_bounds = array<i64: 128, 1>}, {transform_indices = @transform_4, window_bounds = array<i64: 1, 1, 1>}]} {
    %c0_i32 = arith.constant 0 : i32
    %0 = arith.cmpi eq, %arg1, %c0_i32 : i32
    %1 = arith.extui %0 : i1 to i32
    %c0_i32_0 = arith.constant 0 : i32
    %2 = arith.cmpi ne, %1, %c0_i32_0 : i32
    scf.if %2 {
      %cst_33 = arith.constant 0.000000e+00 : f32
      %57 = vector.broadcast %cst_33 : f32 to vector<1x1x1xf32>
      %c0_34 = arith.constant 0 : index
      %c0_35 = arith.constant 0 : index
      %c0_36 = arith.constant 0 : index
      %58 = vector.load %arg6[%c0_34, %c0_35, %c0_36] : memref<1x1x1xf32, #tpu.memory_space<vmem>>, vector<1x1x1xf32>
      tpu.vector_store %arg6[%c0_34, %c0_35, %c0_36], %57 {strides = array<i32>} : memref<1x1x1xf32, #tpu.memory_space<vmem>>, vector<1x1x1xf32>,
    } else {
    }
    %c0 = arith.constant 0 : index
    %c0_1 = arith.constant 0 : index
    %c0_2 = arith.constant 0 : index
    %3 = vector.load %arg2[%c0, %c0_1, %c0_2] : memref<1x4x256xf32, #tpu.memory_space<vmem>>, vector<1x4x256xf32>
    %4 = vector.shape_cast %3 : vector<1x4x256xf32> to vector<4x256xf32>
    %c0_3 = arith.constant 0 : index
    %c0_4 = arith.constant 0 : index
    %5 = vector.load %arg4[%c0_3, %c0_4] : memref<128x4xf32, #tpu.memory_space<vmem>>, vector<128x4xf32>
    %cst = arith.constant dense<0.000000e+00> : vector<128x256xf32>
    %6 = tpu.matmul %5, %4, %cst {dimension_numbers = #tpu.dot_dimension_numbers<[1], [0], [0], [1], [0, 0, 1, 1], [], []>} : vector<128x4xf32>, vector<4x256xf32>, vector<128x256xf32> -> vector<128x256xf32>
    %c0_5 = arith.constant 0 : index
    %c0_6 = arith.constant 0 : index
    %7 = vector.load %arg5[%c0_5, %c0_6] : memref<128x1xf32, #tpu.memory_space<vmem>>, vector<128x1xf32>
    %8 = vector.broadcast %7 : vector<128x1xf32> to vector<128x256xf32>
    %9 = arith.addf %6, %8 : vector<128x256xf32>
    %cst_7 = arith.constant 0.000000e+00 : f32
    %10 = vector.broadcast %cst_7 : f32 to vector<128x256xf32>
    %11 = arith.maximumf %9, %10 : vector<128x256xf32>
    %12 = arith.mulf %11, %11 : vector<128x256xf32>
    %cst_8 = arith.constant dense<0.000000e+00> : vector<256xf32>
    %13 = vector.multi_reduction <add>, %12, %cst_8 [0] : vector<128x256xf32> to vector<256xf32>
    %14 = vector.shape_cast %13 : vector<256xf32> to vector<1x256xf32>
    %15 = math.sqrt %14 : vector<1x256xf32>
    %cst_9 = arith.constant 1.000000e-10 : f32
    %16 = vector.broadcast %cst_9 : f32 to vector<1x256xf32>
    %17 = arith.addf %15, %16 : vector<1x256xf32>
    %cst_10 = arith.constant 1.600000e+01 : f32
    %18 = vector.broadcast %cst_10 : f32 to vector<1x256xf32>
    %19 = arith.mulf %17, %18 : vector<1x256xf32>
    %cst_11 = arith.constant 1.000000e+00 : f32
    %20 = vector.broadcast %cst_11 : f32 to vector<1x256xf32>
    %21 = arith.divf %20, %19 : vector<1x256xf32>
    %22 = vector.broadcast %21 : vector<1x256xf32> to vector<128x256xf32>
    %23 = arith.mulf %11, %22 : vector<128x256xf32>
    %c0_12 = arith.constant 0 : index
    %c0_13 = arith.constant 0 : index
    %c0_14 = arith.constant 0 : index
    %24 = vector.load %arg3[%c0_12, %c0_13, %c0_14] : memref<1x4x256xf32, #tpu.memory_space<vmem>>, vector<1x4x256xf32>
    %25 = vector.shape_cast %24 : vector<1x4x256xf32> to vector<4x256xf32>
    %c0_15 = arith.constant 0 : index
    %c0_16 = arith.constant 0 : index
    %26 = vector.load %arg4[%c0_15, %c0_16] : memref<128x4xf32, #tpu.memory_space<vmem>>, vector<128x4xf32>
    %cst_17 = arith.constant dense<0.000000e+00> : vector<128x256xf32>
    %27 = tpu.matmul %26, %25, %cst_17 {dimension_numbers = #tpu.dot_dimension_numbers<[1], [0], [0], [1], [0, 0, 1, 1], [], []>} : vector<128x4xf32>, vector<4x256xf32>, vector<128x256xf32> -> vector<128x256xf32>
    %c0_18 = arith.constant 0 : index
    %c0_19 = arith.constant 0 : index
    %28 = vector.load %arg5[%c0_18, %c0_19] : memref<128x1xf32, #tpu.memory_space<vmem>>, vector<128x1xf32>
    %29 = vector.broadcast %28 : vector<128x1xf32> to vector<128x256xf32>
    %30 = arith.addf %27, %29 : vector<128x256xf32>
    %cst_20 = arith.constant 0.000000e+00 : f32
    %31 = vector.broadcast %cst_20 : f32 to vector<128x256xf32>
    %32 = arith.maximumf %30, %31 : vector<128x256xf32>
    %33 = arith.mulf %32, %32 : vector<128x256xf32>
    %cst_21 = arith.constant dense<0.000000e+00> : vector<256xf32>
    %34 = vector.multi_reduction <add>, %33, %cst_21 [0] : vector<128x256xf32> to vector<256xf32>
    %35 = vector.shape_cast %34 : vector<256xf32> to vector<1x256xf32>
    %36 = math.sqrt %35 : vector<1x256xf32>
    %cst_22 = arith.constant 1.000000e-10 : f32
    %37 = vector.broadcast %cst_22 : f32 to vector<1x256xf32>
    %38 = arith.addf %36, %37 : vector<1x256xf32>
    %cst_23 = arith.constant 1.600000e+01 : f32
    %39 = vector.broadcast %cst_23 : f32 to vector<1x256xf32>
    %40 = arith.mulf %38, %39 : vector<1x256xf32>
    %cst_24 = arith.constant 1.000000e+00 : f32
    %41 = vector.broadcast %cst_24 : f32 to vector<1x256xf32>
    %42 = arith.divf %41, %40 : vector<1x256xf32>
    %43 = vector.broadcast %42 : vector<1x256xf32> to vector<128x256xf32>
    %44 = arith.mulf %32, %43 : vector<128x256xf32>
    %45 = arith.subf %23, %44 : vector<128x256xf32>
    %c0_25 = arith.constant 0 : index
    %c0_26 = arith.constant 0 : index
    %c0_27 = arith.constant 0 : index
    %46 = vector.load %arg6[%c0_25, %c0_26, %c0_27] : memref<1x1x1xf32, #tpu.memory_space<vmem>>, vector<1x1x1xf32>
    %47 = vector.shape_cast %46 : vector<1x1x1xf32> to vector<1x1xf32>
    %48 = arith.mulf %45, %45 : vector<128x256xf32>
    %cst_28 = arith.constant dense<0.000000e+00> : vector<128xf32>
    %49 = vector.multi_reduction <add>, %48, %cst_28 [1] : vector<128x256xf32> to vector<128xf32>
    %50 = vector.shape_cast %49 : vector<128xf32> to vector<128x1xf32>
    %cst_29 = arith.constant dense<0.000000e+00> : vector<1xf32>
    %51 = vector.multi_reduction <add>, %50, %cst_29 [0] : vector<128x1xf32> to vector<1xf32>
    %52 = vector.shape_cast %51 : vector<1xf32> to vector<1x1xf32>
    %53 = arith.addf %47, %52 : vector<1x1xf32>
    %c0_30 = arith.constant 0 : index
    %c0_31 = arith.constant 0 : index
    %c0_32 = arith.constant 0 : index
    %54 = vector.load %arg6[%c0_30, %c0_31, %c0_32] : memref<1x1x1xf32, #tpu.memory_space<vmem>>, vector<1x1x1xf32>
    %55 = vector.shape_cast %54 : vector<1x1x1xf32> to vector<1x1xf32>
    %56 = vector.shape_cast %53 : vector<1x1xf32> to vector<1x1x1xf32>
    tpu.vector_store %arg6[%c0_30, %c0_31, %c0_32], %56 {strides = array<i32>} : memref<1x1x1xf32, #tpu.memory_space<vmem>>, vector<1x1x1xf32>,
    return
  }
  func.func @transform_0(%arg0: i32, %arg1: i32) -> (i32, i32, i32) {
    %c0_i32 = arith.constant 0 : i32
    %c0_i32_0 = arith.constant 0 : i32
    return %arg0, %c0_i32, %arg1 : i32, i32, i32
  }
  func.func @transform_1(%arg0: i32, %arg1: i32) -> (i32, i32, i32) {
    %c0_i32 = arith.constant 0 : i32
    %c0_i32_0 = arith.constant 0 : i32
    return %arg0, %c0_i32, %arg1 : i32, i32, i32
  }
  func.func @transform_2(%arg0: i32, %arg1: i32) -> (i32, i32) {
    %c0_i32 = arith.constant 0 : i32
    %c0_i32_0 = arith.constant 0 : i32
    %c0_i32_1 = arith.constant 0 : i32
    return %c0_i32, %c0_i32_0 : i32, i32
  }
  func.func @transform_3(%arg0: i32, %arg1: i32) -> (i32, i32) {
    %c0_i32 = arith.constant 0 : i32
    %c0_i32_0 = arith.constant 0 : i32
    %c0_i32_1 = arith.constant 0 : i32
    return %c0_i32, %c0_i32_0 : i32, i32
  }
  func.func @transform_4(%arg0: i32, %arg1: i32) -> (i32, i32, i32) {
    %c0_i32 = arith.constant 0 : i32
    %c0_i32_0 = arith.constant 0 : i32
    %c0_i32_1 = arith.constant 0 : i32
    return %arg0, %c0_i32, %c0_i32_0 : i32, i32, i32
  }
}

module attributes {stable_mosaic.version = 11 : i64} {
  func.func @_dist_kernel(%arg0: i32, %arg1: i32, %arg2: memref<1x4x256xf32, #tpu.memory_space<vmem>>, %arg3: memref<128x4xf32, #tpu.memory_space<vmem>>, %arg4: memref<128x1xf32, #tpu.memory_space<vmem>>, %arg5: memref<1x128x256xbf16, #tpu.memory_space<vmem>>, %arg6: memref<1x1x1xf32, #tpu.memory_space<vmem>>) attributes {dimension_semantics = [#tpu.dimension_semantics<parallel>, #tpu.dimension_semantics<arbitrary>], iteration_bounds = array<i64: 2, 1>, scalar_prefetch = 0 : i64, scratch_operands = 0 : i64, tpu.core_type = #tpu.core_type<tc>, window_params = [{transform_indices = @transform_0, window_bounds = array<i64: 1, 4, 256>}, {pipeline_mode = #tpu.pipeline_mode<synchronous>, transform_indices = @transform_1, window_bounds = array<i64: 128, 4>}, {pipeline_mode = #tpu.pipeline_mode<synchronous>, transform_indices = @transform_2, window_bounds = array<i64: 128, 1>}, {transform_indices = @transform_3, window_bounds = array<i64: 1, 128, 256>}, {transform_indices = @transform_4, window_bounds = array<i64: 1, 1, 1>}]} {
    %c0_i32 = arith.constant 0 : i32
    %0 = arith.cmpi eq, %arg1, %c0_i32 : i32
    %1 = arith.extui %0 : i1 to i32
    %c0_i32_0 = arith.constant 0 : i32
    %2 = arith.cmpi ne, %1, %c0_i32_0 : i32
    scf.if %2 {
      %cst_23 = arith.constant 0.000000e+00 : f32
      %39 = vector.broadcast %cst_23 : f32 to vector<1x1x1xf32>
      %c0_24 = arith.constant 0 : index
      %c0_25 = arith.constant 0 : index
      %c0_26 = arith.constant 0 : index
      %40 = vector.load %arg6[%c0_24, %c0_25, %c0_26] : memref<1x1x1xf32, #tpu.memory_space<vmem>>, vector<1x1x1xf32>
      tpu.vector_store %arg6[%c0_24, %c0_25, %c0_26], %39 {strides = array<i32>} : memref<1x1x1xf32, #tpu.memory_space<vmem>>, vector<1x1x1xf32>,
    } else {
    }
    %c0 = arith.constant 0 : index
    %c0_1 = arith.constant 0 : index
    %c0_2 = arith.constant 0 : index
    %3 = vector.load %arg2[%c0, %c0_1, %c0_2] : memref<1x4x256xf32, #tpu.memory_space<vmem>>, vector<1x4x256xf32>
    %4 = vector.shape_cast %3 : vector<1x4x256xf32> to vector<4x256xf32>
    %c0_3 = arith.constant 0 : index
    %c0_4 = arith.constant 0 : index
    %5 = vector.load %arg3[%c0_3, %c0_4] : memref<128x4xf32, #tpu.memory_space<vmem>>, vector<128x4xf32>
    %cst = arith.constant dense<0.000000e+00> : vector<128x256xf32>
    %6 = tpu.matmul %5, %4, %cst {dimension_numbers = #tpu.dot_dimension_numbers<[1], [0], [0], [1], [0, 0, 1, 1], [], []>} : vector<128x4xf32>, vector<4x256xf32>, vector<128x256xf32> -> vector<128x256xf32>
    %c0_5 = arith.constant 0 : index
    %c0_6 = arith.constant 0 : index
    %7 = vector.load %arg4[%c0_5, %c0_6] : memref<128x1xf32, #tpu.memory_space<vmem>>, vector<128x1xf32>
    %8 = vector.broadcast %7 : vector<128x1xf32> to vector<128x256xf32>
    %9 = arith.addf %6, %8 : vector<128x256xf32>
    %cst_7 = arith.constant 0.000000e+00 : f32
    %10 = vector.broadcast %cst_7 : f32 to vector<128x256xf32>
    %11 = arith.maximumf %9, %10 : vector<128x256xf32>
    %12 = arith.mulf %11, %11 : vector<128x256xf32>
    %cst_8 = arith.constant dense<0.000000e+00> : vector<256xf32>
    %13 = vector.multi_reduction <add>, %12, %cst_8 [0] : vector<128x256xf32> to vector<256xf32>
    %14 = vector.shape_cast %13 : vector<256xf32> to vector<1x256xf32>
    %15 = math.sqrt %14 : vector<1x256xf32>
    %cst_9 = arith.constant 1.000000e-10 : f32
    %16 = vector.broadcast %cst_9 : f32 to vector<1x256xf32>
    %17 = arith.addf %15, %16 : vector<1x256xf32>
    %cst_10 = arith.constant 1.600000e+01 : f32
    %18 = vector.broadcast %cst_10 : f32 to vector<1x256xf32>
    %19 = arith.mulf %17, %18 : vector<1x256xf32>
    %cst_11 = arith.constant 1.000000e+00 : f32
    %20 = vector.broadcast %cst_11 : f32 to vector<1x256xf32>
    %21 = arith.divf %20, %19 : vector<1x256xf32>
    %22 = vector.broadcast %21 : vector<1x256xf32> to vector<128x256xf32>
    %23 = arith.mulf %11, %22 : vector<128x256xf32>
    %c0_12 = arith.constant 0 : index
    %c0_13 = arith.constant 0 : index
    %c0_14 = arith.constant 0 : index
    %24 = vector.load %arg5[%c0_12, %c0_13, %c0_14] : memref<1x128x256xbf16, #tpu.memory_space<vmem>>, vector<1x128x256xbf16>
    %25 = vector.shape_cast %24 : vector<1x128x256xbf16> to vector<128x256xbf16>
    %26 = arith.extf %25 : vector<128x256xbf16> to vector<128x256xf32>
    %27 = arith.subf %23, %26 : vector<128x256xf32>
    %c0_15 = arith.constant 0 : index
    %c0_16 = arith.constant 0 : index
    %c0_17 = arith.constant 0 : index
    %28 = vector.load %arg6[%c0_15, %c0_16, %c0_17] : memref<1x1x1xf32, #tpu.memory_space<vmem>>, vector<1x1x1xf32>
    %29 = vector.shape_cast %28 : vector<1x1x1xf32> to vector<1x1xf32>
    %30 = arith.mulf %27, %27 : vector<128x256xf32>
    %cst_18 = arith.constant dense<0.000000e+00> : vector<128xf32>
    %31 = vector.multi_reduction <add>, %30, %cst_18 [1] : vector<128x256xf32> to vector<128xf32>
    %32 = vector.shape_cast %31 : vector<128xf32> to vector<128x1xf32>
    %cst_19 = arith.constant dense<0.000000e+00> : vector<1xf32>
    %33 = vector.multi_reduction <add>, %32, %cst_19 [0] : vector<128x1xf32> to vector<1xf32>
    %34 = vector.shape_cast %33 : vector<1xf32> to vector<1x1xf32>
    %35 = arith.addf %29, %34 : vector<1x1xf32>
    %c0_20 = arith.constant 0 : index
    %c0_21 = arith.constant 0 : index
    %c0_22 = arith.constant 0 : index
    %36 = vector.load %arg6[%c0_20, %c0_21, %c0_22] : memref<1x1x1xf32, #tpu.memory_space<vmem>>, vector<1x1x1xf32>
    %37 = vector.shape_cast %36 : vector<1x1x1xf32> to vector<1x1xf32>
    %38 = vector.shape_cast %35 : vector<1x1xf32> to vector<1x1x1xf32>
    tpu.vector_store %arg6[%c0_20, %c0_21, %c0_22], %38 {strides = array<i32>} : memref<1x1x1xf32, #tpu.memory_space<vmem>>, vector<1x1x1xf32>,
    return
  }
  func.func @transform_0(%arg0: i32, %arg1: i32) -> (i32, i32, i32) {
    %c0_i32 = arith.constant 0 : i32
    %c0_i32_0 = arith.constant 0 : i32
    return %arg0, %c0_i32, %arg1 : i32, i32, i32
  }
  func.func @transform_1(%arg0: i32, %arg1: i32) -> (i32, i32) {
    %c0_i32 = arith.constant 0 : i32
    %c0_i32_0 = arith.constant 0 : i32
    %c0_i32_1 = arith.constant 0 : i32
    return %c0_i32, %c0_i32_0 : i32, i32
  }
  func.func @transform_2(%arg0: i32, %arg1: i32) -> (i32, i32) {
    %c0_i32 = arith.constant 0 : i32
    %c0_i32_0 = arith.constant 0 : i32
    %c0_i32_1 = arith.constant 0 : i32
    return %c0_i32, %c0_i32_0 : i32, i32
  }
  func.func @transform_3(%arg0: i32, %arg1: i32) -> (i32, i32, i32) {
    %c0_i32 = arith.constant 0 : i32
    %c0_i32_0 = arith.constant 0 : i32
    return %arg0, %c0_i32, %arg1 : i32, i32, i32
  }
  func.func @transform_4(%arg0: i32, %arg1: i32) -> (i32, i32, i32) {
    %c0_i32 = arith.constant 0 : i32
    %c0_i32_0 = arith.constant 0 : i32
    %c0_i32_1 = arith.constant 0 : i32
    return %arg0, %c0_i32, %c0_i32_0 : i32, i32, i32
  }
}

</mosaic_0001>

<llo_original>
// kernel: custom-call.3
$region0: #{custom-call.3}
  %s0 = inlined_call_operand.vmem [shape: f32[2], index: 0, kind: output, shape index: {}]

// kernel: _attack.1
$region0: #{_attack.1}
  #allocation0 [shape = 'u32[]', space=smem, size = 0x4, offset = 0x4, fixed_abs, tag = 'smem constant byte address 0x4 - core index']
  #allocation1 [shape = 'u32[144,128]{1,0:T(1,128)}', space=vmem, size = 0x12000, scoped, tag = 'internal scratch']
  %s0 = inlined_call_operand.vmem [shape: f32[2,4,256], index: 0, kind: input, shape index: {}]
  %s1 = inlined_call_operand.hbm [shape: f32[128,4], index: 1, kind: input, shape index: {}]
  %s2 = inlined_call_operand.hbm [shape: f32[128,1], index: 2, kind: input, shape index: {}]
  %s3 = inlined_call_operand.vmem [shape: bf16[2,128,256], index: 3, kind: output, shape index: {}]
  %s4 = sld [smem:[#allocation0]]
  $region53: #{_attack.1} parent=0
    _
  %s6 = ssub.s32 1, %s4
  %s7 = scalar_select 0, %s6, %s4
  $region1: #{_attack.1} parent=0
    #allocation2 [shape = 'u8[65536]{0}', space=vmem, size = 0x10000, scoped, tag = 'input window, operand 1, single buffered']
    #allocation3 [shape = 's32[2]{0}', space=sflag, size = 0x8, scoped, tag = 'scoped memory for _attack.1']
    #allocation4 [shape = 'u8[65536]{0}', space=vmem, size = 0x10000, scoped, tag = 'input window, operand 2, single buffered']
    #allocation5 [shape = 's32[1]{0}', space=sflag, size = 0x4, scoped, tag = 'scoped memory for _attack.1']
    %8 = vsyncpa [#allocation3], 0
    %9 = vsyncpa [#allocation5], 0
    loop: start=0, step=1, limit=4
    $region2: #{_attack.1} parent=1 // loop_pre_header
      _
    $region3: #{_attack.1} parent=1 // loop_header
      %s11 = sphi 0, %s15
      %p12 = scmp.ge.s32.totalorder %s11, 4
      %s18 = sphi 0, %s30
      %s19 = sphi 0, %s26
      %s20 = sphi 0, %s18
      %s21 = sphi 0, %s19
      %s22 = sphi 0, %s20
      %s23 = sphi 0, %s21
      %s35 = sphi 0, %s37
      %s38 = sphi 0, %s35
      %s39 = sphi 0, %s38
      %s55 = sphi 0, %s39
      %s59 = sphi 0, %s59
      %s61 = sphi 0, %s59
      %s62 = sphi 0, %s61
      %s76 = sphi 0, %s62
      %s80 = sphi 0, %s80
      %s82 = sphi 0, %s80
      %s83 = sphi 0, %s82
      %s97 = sphi 0, %s83
      %s105 = sphi 0, %s107
      %s108 = sphi 0, %s105
      %s109 = sphi 0, %s108
      %s125 = sphi 0, %s109
    $region4: #{_attack.1} parent=1 // loop_header_branch
      %14 = sbr.rel (%p12) target = $region8
    $region5: #{_attack.1} parent=1 // loop_body
      %s16 = ssub.s32 %s11, 1
      %s17 = ssub.s32 %s11, 2
      %s24 = sadd.s32 1, %s19
      %p25 = scmp.ge.s32.totalorder %s24, 1
      %s26 = scalar_select %p25, 0, %s24
      %s27 = sadd.s32 1, %s18
      %s28 = scalar_select %p25, %s27, %s18
      %p29 = scmp.ge.s32.totalorder %s28, 2
      %s30 = scalar_select %p29, 0, %s28
      %s31 = ssub.s32 %s18, %s30
      %s32 = ssub.s32 %s19, %s26
      %s33 = sor.u32 %s31, %s32
      %p34 = scmp.eq.s32.totalorder %s33, 0
      %s36 = sadd.s32 %s35, 1
      %s37 = scalar_select %p34, %s35, %s36
      %p40 = pneg %p34
      %p41 = scmp.eq.s32.totalorder %s11, 1
      %p42 = por %p40, %p41
      %p43 = scmp.ne.s32.totalorder %s35, %s38
      %p44 = scmp.eq.s32.totalorder %s11, 0
      %p45 = por %p43, %p44
      %p46 = scmp.ne.s32.totalorder %s35, %s38
      %p47 = scmp.eq.s32.totalorder %s16, 1
      %p48 = por %p46, %p47
      %p49 = scmp.ne.s32.totalorder %s38, %s39
      %p50 = scmp.eq.s32.totalorder %s16, 0
      %p51 = por %p49, %p50
      %p52 = scmp.ne.s32.totalorder %s38, %s39
      %p53 = scmp.eq.s32.totalorder %s17, 1
      %p54 = por %p52, %p53
      %p56 = scmp.ne.s32.totalorder %s39, %s55
      %p57 = scmp.eq.s32.totalorder %s17, 0
      %p58 = por %p56, %p57
      %s60 = sadd.s32 %s59, 1
      %p63 = scmp.eq.s32.totalorder %s11, 1
      %p64 = scmp.ne.s32.totalorder %s59, %s61
      %p65 = scmp.eq.s32.totalorder %s11, 0
      %p66 = por %p64, %p65
      %p67 = scmp.ne.s32.totalorder %s59, %s61
      %p68 = scmp.eq.s32.totalorder %s16, 1
      %p69 = por %p67, %p68
      %p70 = scmp.ne.s32.totalorder %s61, %s62
      %p71 = scmp.eq.s32.totalorder %s16, 0
      %p72 = por %p70, %p71
      %p73 = scmp.ne.s32.totalorder %s61, %s62
      %p74 = scmp.eq.s32.totalorder %s17, 1
      %p75 = por %p73, %p74
      %p77 = scmp.ne.s32.totalorder %s62, %s76
      %p78 = scmp.eq.s32.totalorder %s17, 0
      %p79 = por %p77, %p78
      %s81 = sadd.s32 %s80, 1
      %p84 = scmp.eq.s32.totalorder %s11, 1
      %p85 = scmp.ne.s32.totalorder %s80, %s82
      %p86 = scmp.eq.s32.totalorder %s11, 0
      %p87 = por %p85, %p86
      %p88 = scmp.ne.s32.totalorder %s80, %s82
      %p89 = scmp.eq.s32.totalorder %s16, 1
      %p90 = por %p88, %p89
      %p91 = scmp.ne.s32.totalorder %s82, %s83
      %p92 = scmp.eq.s32.totalorder %s16, 0
      %p93 = por %p91, %p92
      %p94 = scmp.ne.s32.totalorder %s82, %s83
      %p95 = scmp.eq.s32.totalorder %s17, 1
      %p96 = por %p94, %p95
      %p98 = scmp.ne.s32.totalorder %s83, %s97
      %p99 = scmp.eq.s32.totalorder %s17, 0
      %p100 = por %p98, %p99
      %s101 = ssub.s32 %s18, %s30
      %s102 = ssub.s32 %s19, %s26
      %s103 = sor.u32 %s101, %s102
      %p104 = scmp.eq.s32.totalorder %s103, 0
      %s106 = sadd.s32 %s105, 1
      %s107 = scalar_select %p104, %s105, %s106
      %p110 = pneg %p104
      %p111 = scmp.eq.s32.totalorder %s11, 1
      %p112 = por %p110, %p111
      %p113 = scmp.ne.s32.totalorder %s105, %s108
      %p114 = scmp.eq.s32.totalorder %s11, 0
      %p115 = por %p113, %p114
      %p116 = scmp.ne.s32.totalorder %s105, %s108
      %p117 = scmp.eq.s32.totalorder %s16, 1
      %p118 = por %p116, %p117
      %p119 = scmp.ne.s32.totalorder %s108, %s109
      %p120 = scmp.eq.s32.totalorder %s16, 0
      %p121 = por %p119, %p120
      %p122 = scmp.ne.s32.totalorder %s108, %s109
      %p123 = scmp.eq.s32.totalorder %s17, 1
      %p124 = por %p122, %p123
      %p126 = scmp.ne.s32.totalorder %s109, %s125
      %p127 = scmp.eq.s32.totalorder %s17, 0
      %p128 = por %p126, %p127
      %p129 = scmp.le.s32.totalorder 1, %s11
      %p130 = scmp.lt.s32.totalorder %s11, 3
      %p131 = pnand %p129, %p130
      %p132 = pneg %p131
      // Predicated region
      $region9: #{_attack.1} parent=5 // pred_check
        _
      $region10: #{_attack.1} parent=5 // pred_check_branch
        %134 = sbr.rel (%p131) target = $region12
      $region11: #{_attack.1} parent=5 // pred_region
        %s135 = ssub.s32 %s11, 1
        // Predicated region
        $region13: #{_attack.1} parent=11 // pred_check
          %p136 = pneg %p72
        $region14: #{_attack.1} parent=11 // pred_check_branch
          %138 = sbr.rel (%p136) target = $region16
        $region15: #{_attack.1} parent=11 // pred_region
          %s140 = ssub.s32 2048, 2048
          %141 = vsyncadd [#allocation3], %s140
          %s142 = sshll.u32 [#allocation2], 4
          %s143 = int_to_ptr.vmem [resolvable:$true] %s142
          %148 = dma.hbm_to_vmem [thread:$0]  %s1, 2048, %s143, [#allocation3], 128, 128, 8
        $region16: #{_attack.1} parent=11 // pred_fallthru
          _
        // Predicated region
        $region17: #{_attack.1} parent=11 // pred_check
          %p149 = pneg %p93
        $region18: #{_attack.1} parent=11 // pred_check_branch
          %151 = sbr.rel (%p149) target = $region20
        $region19: #{_attack.1} parent=11 // pred_region
          %s153 = ssub.s32 2048, 2048
          %154 = vsyncadd [#allocation5], %s153
          %s155 = sshll.u32 [#allocation4], 4
          %s156 = int_to_ptr.vmem [resolvable:$true] %s155
          %161 = dma.hbm_to_vmem [thread:$0]  %s2, 2048, %s156, [#allocation5], 128, 128, 8
        $region20: #{_attack.1} parent=11 // pred_fallthru
          _
      $region12: #{_attack.1} parent=5 // pred_fallthru
        _
      %p162 = scmp.lt.s32.totalorder %s11, 2
      // Predicated region
      $region21: #{_attack.1} parent=5 // pred_check
        %p163 = pneg %p162
      $region22: #{_attack.1} parent=5 // pred_check_branch
        %165 = sbr.rel (%p163) target = $region24
      $region23: #{_attack.1} parent=5 // pred_region
        // Predicated region
        $region25: #{_attack.1} parent=23 // pred_check
          %p166 = pneg %p45
        $region26: #{_attack.1} parent=23 // pred_check_branch
          %168 = sbr.rel (%p166) target = $region28
        $region27: #{_attack.1} parent=23 // pred_region
          %s169 = smul.u32 2, %s19
          %p170 = scmp.lt.s32.totalorder %s18, 1
          %s171 = scalar_select %p170, %s18, 1
          %p172 = scmp.lt.s32.totalorder %s169, 1
          %s173 = scalar_select %p172, %s169, 1
          %s174 = smul.addr %s171, 2
          %s175 = sadd.s32 %s173, %s174
          %s176 = smul.addr %s175, 4
          %s177 = scalar_lea.vmem %s0, %s176
          %s178 = smul.u32 2, %s19
        $region28: #{_attack.1} parent=23 // pred_fallthru
          _
      $region24: #{_attack.1} parent=5 // pred_fallthru
        _
      %p179 = scmp.le.s32.totalorder 1, %s11
      %p180 = scmp.lt.s32.totalorder %s11, 3
      %p181 = pnand %p179, %p180
      %p182 = pneg %p181
      // Predicated region
      $region29: #{_attack.1} parent=5 // pred_check
        _
      $region30: #{_attack.1} parent=5 // pred_check_branch
        %184 = sbr.rel (%p181) target = $region32
      $region31: #{_attack.1} parent=5 // pred_region
        %s185 = ssub.s32 %s11, 1
        // Predicated region
        $region33: #{_attack.1} parent=31 // pred_check
          %p186 = pneg %p72
        $region34: #{_attack.1} parent=31 // pred_check_branch
          %188 = sbr.rel (%p186) target = $region36
        $region35: #{_attack.1} parent=31 // pred_region
          %189 = dma.done [#allocation3], 2048
        $region36: #{_attack.1} parent=31 // pred_fallthru
          _
        // Predicated region
        $region37: #{_attack.1} parent=31 // pred_check
          %p190 = pneg %p93
        $region38: #{_attack.1} parent=31 // pred_check_branch
          %192 = sbr.rel (%p190) target = $region40
        $region39: #{_attack.1} parent=31 // pred_region
          %193 = dma.done [#allocation5], 2048
        $region40: #{_attack.1} parent=31 // pred_fallthru
          _
        %s194 = smul.u32 2, %s21
        %p195 = scmp.lt.s32.totalorder %s20, 1
        %s196 = scalar_select %p195, %s20, 1
        %p197 = scmp.lt.s32.totalorder %s194, 1
        %s198 = scalar_select %p197, %s194, 1
        %s199 = smul.addr %s196, 2
        %s200 = sadd.s32 %s198, %s199
        %s201 = smul.addr %s200, 4
        %s202 = scalar_lea.vmem %s0, %s201
        %p203 = pneg %p51
        %p204 = pneg %p48
        %p205 = pneg %p72
        %p206 = pneg %p69
        %p207 = pneg %p93
        %p208 = pneg %p90
        %p209 = pneg %p121
        %p210 = pneg %p118
        %s211 = smul.u32 2, %s21
        %p212 = scmp.lt.s32.totalorder %s20, 1
        %s213 = scalar_select %p212, %s20, 1
        %p214 = scmp.lt.s32.totalorder %s211, 1
        %s215 = scalar_select %p214, %s211, 1
        %s216 = smul.addr %s213, 32
        %s217 = sadd.s32 %s215, %s216
        %s218 = smul.addr %s217, 4
        %s219 = scalar_lea.vmem %s3, %s218
        %s220 = smul.u32 2, %s21
        %p221 = scmp.lt.s32.totalorder %s20, 1
        %s222 = scalar_select %p221, %s20, 1
        %p223 = scmp.lt.s32.totalorder %s220, 1
        %s224 = scalar_select %p223, %s220, 1
        %s225 = smul.addr %s222, 2
        %s226 = sadd.s32 %s224, %s225
        %s227 = smul.addr %s226, 4
        %s228 = scalar_lea.vmem %s0, %s227
        %s229 = smul.u32 2, %s21
        %s230 = smul.u32 2, %s21
        %p231 = scmp.lt.s32.totalorder %s20, 1
        %s232 = scalar_select %p231, %s20, 1
        %p233 = scmp.lt.s32.totalorder %s230, 1
        %s234 = scalar_select %p233, %s230, 1
        %s235 = smul.addr %s232, 32
        %s236 = sadd.s32 %s234, %s235
        %s237 = smul.addr %s236, 4
        %s238 = scalar_lea.vmem %s3, %s237
        %s239 = smul.u32 2, %s21
        %v240 = vld [vmem:[%s228] sm:$0xff]
        %v241 = vld [vmem:[#allocation2] sm:$0xff]
        %v242 = vld [vmem:[#allocation2 + $0x8] sm:$0xff]
        %v243 = vld [vmem:[#allocation2 + $0x10] sm:$0xff]
        %v244 = vld [vmem:[#allocation2 + $0x18] sm:$0xff]
        %v245 = vld [vmem:[#allocation2 + $0x20] sm:$0xff]
        %v246 = vld [vmem:[#allocation2 + $0x28] sm:$0xff]
        %v247 = vld [vmem:[#allocation2 + $0x30] sm:$0xff]
        %v248 = vld [vmem:[#allocation2 + $0x38] sm:$0xff]
        %v249 = vld [vmem:[#allocation2 + $0x40] sm:$0xff]
        %v250 = vld [vmem:[#allocation2 + $0x48] sm:$0xff]
        %v251 = vld [vmem:[#allocation2 + $0x50] sm:$0xff]
        %v252 = vld [vmem:[#allocation2 + $0x58] sm:$0xff]
        %v253 = vld [vmem:[#allocation2 + $0x60] sm:$0xff]
        %v254 = vld [vmem:[#allocation2 + $0x68] sm:$0xff]
        %v255 = vld [vmem:[#allocation2 + $0x70] sm:$0xff]
        %v256 = vld [vmem:[#allocation2 + $0x78] sm:$0xff]
        %v257 = vld [vmem:[#allocation4] sm:$0xff]
        %v258 = vld [vmem:[#allocation4 + $0x8] sm:$0xff]
        %v259 = vld [vmem:[#allocation4 + $0x10] sm:$0xff]
        %v260 = vld [vmem:[#allocation4 + $0x18] sm:$0xff]
        %v261 = vld [vmem:[#allocation4 + $0x20] sm:$0xff]
        %v262 = vld [vmem:[#allocation4 + $0x28] sm:$0xff]
        %v263 = vld [vmem:[#allocation4 + $0x30] sm:$0xff]
        %v264 = vld [vmem:[#allocation4 + $0x38] sm:$0xff]
        %v265 = vld [vmem:[#allocation4 + $0x40] sm:$0xff]
        %v266 = vld [vmem:[#allocation4 + $0x48] sm:$0xff]
        %v267 = vld [vmem:[#allocation4 + $0x50] sm:$0xff]
        %v268 = vld [vmem:[#allocation4 + $0x58] sm:$0xff]
        %v269 = vld [vmem:[#allocation4 + $0x60] sm:$0xff]
        %v270 = vld [vmem:[#allocation4 + $0x68] sm:$0xff]
        %v271 = vld [vmem:[#allocation4 + $0x70] sm:$0xff]
        %v272 = vld [vmem:[#allocation4 + $0x78] sm:$0xff]
        %274 = vset.pattern.permute.xlu0 0
        %275 = vperm.xlu0 %274, %v257
        %v276 = vpop.permute.xlu0 %275
        %279 = vset.pattern.permute.xlu0 0
        %280 = vperm.xlu0 %279, %v258
        %v281 = vpop.permute.xlu0 %280
        %284 = vset.pattern.permute.xlu0 0
        %285 = vperm.xlu0 %284, %v259
        %v286 = vpop.permute.xlu0 %285
        %289 = vset.pattern.permute.xlu0 0
        %290 = vperm.xlu0 %289, %v260
        %v291 = vpop.permute.xlu0 %290
        %294 = vset.pattern.permute.xlu0 0
        %295 = vperm.xlu0 %294, %v261
        %v296 = vpop.permute.xlu0 %295
        %299 = vset.pattern.permute.xlu0 0
        %300 = vperm.xlu0 %299, %v262
        %v301 = vpop.permute.xlu0 %300
        %304 = vset.pattern.permute.xlu0 0
        %305 = vperm.xlu0 %304, %v263
        %v306 = vpop.permute.xlu0 %305
        %309 = vset.pattern.permute.xlu0 0
        %310 = vperm.xlu0 %309, %v264
        %v311 = vpop.permute.xlu0 %310
        %314 = vset.pattern.permute.xlu0 0
        %315 = vperm.xlu0 %314, %v265
        %v316 = vpop.permute.xlu0 %315
        %319 = vset.pattern.permute.xlu0 0
        %320 = vperm.xlu0 %319, %v266
        %v321 = vpop.permute.xlu0 %320
        %324 = vset.pattern.permute.xlu0 0
        %325 = vperm.xlu0 %324, %v267
        %v326 = vpop.permute.xlu0 %325
        %329 = vset.pattern.permute.xlu0 0
        %330 = vperm.xlu0 %329, %v268
        %v331 = vpop.permute.xlu0 %330
        %334 = vset.pattern.permute.xlu0 0
        %335 = vperm.xlu0 %334, %v269
        %v336 = vpop.permute.xlu0 %335
        %339 = vset.pattern.permute.xlu0 0
        %340 = vperm.xlu0 %339, %v270
        %v341 = vpop.permute.xlu0 %340
        %344 = vset.pattern.permute.xlu0 0
        %345 = vperm.xlu0 %344, %v271
        %v346 = vpop.permute.xlu0 %345
        %349 = vset.pattern.permute.xlu0 0
        %350 = vperm.xlu0 %349, %v272
        %v351 = vpop.permute.xlu0 %350
        %v354 = vcombine.high %v240, %v240
        %vm355 = vcmask 31744
        %v357 = vsel %vm355, %v241, 0
        %v360 = vsel %vm355, %v242, 0
        %v363 = vsel %vm355, %v243, 0
        %v366 = vsel %vm355, %v244, 0
        %v369 = vsel %vm355, %v245, 0
        %v372 = vsel %vm355, %v246, 0
        %v375 = vsel %vm355, %v247, 0
        %v378 = vsel %vm355, %v248, 0
        %v381 = vsel %vm355, %v249, 0
        %v384 = vsel %vm355, %v250, 0
        %v387 = vsel %vm355, %v251, 0
        %v390 = vsel %vm355, %v252, 0
        %v393 = vsel %vm355, %v253, 0
        %v396 = vsel %vm355, %v254, 0
        %v399 = vsel %vm355, %v255, 0
        %v402 = vsel %vm355, %v256, 0
        %vm404 = vcmask 1043456
        %v405 = vsel %vm404, %v240, 0
        %v407 = vsel %vm404, %v354, 0
        %409 = vmatprep.subr.mxu0 0.0
        %410 = vmatpush1.msra.mxu0 0.0
        %411 = vmatprep.subr.mxu0 0.0
        %412 = vmatpush1.msra.mxu0 0.0
        %413 = vmatprep.subr.mxu0 0.0
        %414 = vmatpush1.msra.mxu0 0.0
        %415 = vmatprep.subr.mxu0 0.0
        %416 = vmatpush1.msra.mxu0 0.0
        %417 = vmatprep.subr.mxu0 0.0
        %418 = vmatpush1.msra.mxu0 0.0
        %419 = vmatprep.subr.mxu0 0.0
        %420 = vmatpush1.msra.mxu0 0.0
        %421 = vmatprep.subr.mxu0 0.0
        %422 = vmatpush1.msra.mxu0 0.0
        %423 = vmatprep.subr.mxu0 0.0
        %424 = vmatpush1.msra.mxu0 0.0
        %425 = vmatprep.subr.mxu0 0.0
        %426 = vmatpush1.msra.mxu0 0.0
        %427 = vmatprep.subr.mxu0 0.0
        %428 = vmatpush1.msra.mxu0 0.0
        %429 = vmatprep.subr.mxu0 0.0
        %430 = vmatpush1.msra.mxu0 0.0
        %431 = vmatprep.subr.mxu0 0.0
        %432 = vmatpush1.msra.mxu0 0.0
        %433 = vmatprep.subr.mxu0 0.0
        %434 = vmatpush1.msra.mxu0 0.0
        %435 = vmatprep.subr.mxu0 0.0
        %436 = vmatpush1.msra.mxu0 0.0
        %437 = vmatprep.subr.mxu0 0.0
        %438 = vmatpush1.msra.mxu0 0.0
        %439 = vmatprep.subr.mxu0 %v407
        %440 = vmatpush1.msra.mxu0 %v405
        %441 = vmatprep.subr.mxu0 0.0
        %442 = vmatpush2.msra.mxu0 0.0
        %443 = vmatprep.subr.mxu0 0.0
        %444 = vmatpush2.msra.mxu0 0.0
        %445 = vmatprep.subr.mxu0 0.0
        %446 = vmatpush2.msra.mxu0 0.0
        %447 = vmatprep.subr.mxu0 0.0
        %448 = vmatpush2.msra.mxu0 0.0
        %449 = vmatprep.subr.mxu0 0.0
        %450 = vmatpush2.msra.mxu0 0.0
        %451 = vmatprep.subr.mxu0 0.0
        %452 = vmatpush2.msra.mxu0 0.0
        %453 = vmatprep.subr.mxu0 0.0
        %454 = vmatpush2.msra.mxu0 0.0
        %455 = vmatprep.subr.mxu0 0.0
        %456 = vmatpush2.msra.mxu0 0.0
        %457 = vmatprep.subr.mxu0 0.0
        %458 = vmatpush2.msra.mxu0 0.0
        %459 = vmatprep.subr.mxu0 0.0
        %460 = vmatpush2.msra.mxu0 0.0
        %461 = vmatprep.subr.mxu0 0.0
        %462 = vmatpush2.msra.mxu0 0.0
        %463 = vmatprep.subr.mxu0 0.0
        %464 = vmatpush2.msra.mxu0 0.0
        %465 = vmatprep.subr.mxu0 0.0
        %466 = vmatpush2.msra.mxu0 0.0
        %467 = vmatprep.subr.mxu0 0.0
        %468 = vmatpush2.msra.mxu0 0.0
        %469 = vmatprep.subr.mxu0 0.0
        %470 = vmatpush2.msra.mxu0 0.0
        %471 = vmatprep.subr.mxu0 0.0
        %472 = vmatpush2.msra.mxu0 0.0
        %473 = vmatprep.mubr.f32.mxu0 0.0
        %474 = vmatmul.mubr.f32.gmra.mxu0 %v357
        %v475 = vpop.f32.mrf.mxu0
        %v476 = vadd.f32 %v276, %v475
        %v477 = vpop.f32.mrf.mxu0
        %v478 = vadd.f32 %v276, %v477
        %479 = vmatprep.mubr.f32.mxu0 0.0
        %480 = vmatmul.mubr.f32.gmra.mxu0 %v360
        %v481 = vpop.f32.mrf.mxu0
        %v482 = vadd.f32 %v281, %v481
        %v483 = vpop.f32.mrf.mxu0
        %v484 = vadd.f32 %v281, %v483
        %485 = vmatprep.mubr.f32.mxu0 0.0
        %486 = vmatmul.mubr.f32.gmra.mxu0 %v363
        %v487 = vpop.f32.mrf.mxu0
        %v488 = vadd.f32 %v286, %v487
        %v489 = vpop.f32.mrf.mxu0
        %v490 = vadd.f32 %v286, %v489
        %491 = vmatprep.mubr.f32.mxu0 0.0
        %492 = vmatmul.mubr.f32.gmra.mxu0 %v366
        %v493 = vpop.f32.mrf.mxu0
        %v494 = vadd.f32 %v291, %v493
        %v495 = vpop.f32.mrf.mxu0
        %v496 = vadd.f32 %v291, %v495
        %497 = vmatprep.mubr.f32.mxu0 0.0
        %498 = vmatmul.mubr.f32.gmra.mxu0 %v369
        %v499 = vpop.f32.mrf.mxu0
        %v500 = vadd.f32 %v296, %v499
        %v501 = vpop.f32.mrf.mxu0
        %v502 = vadd.f32 %v296, %v501
        %503 = vmatprep.mubr.f32.mxu0 0.0
        %504 = vmatmul.mubr.f32.gmra.mxu0 %v372
        %v505 = vpop.f32.mrf.mxu0
        %v506 = vadd.f32 %v301, %v505
        %v507 = vpop.f32.mrf.mxu0
        %v508 = vadd.f32 %v301, %v507
        %509 = vmatprep.mubr.f32.mxu0 0.0
        %510 = vmatmul.mubr.f32.gmra.mxu0 %v375
        %v511 = vpop.f32.mrf.mxu0
        %v512 = vadd.f32 %v306, %v511
        %v513 = vpop.f32.mrf.mxu0
        %v514 = vadd.f32 %v306, %v513
        %515 = vmatprep.mubr.f32.mxu0 0.0
        %516 = vmatmul.mubr.f32.gmra.mxu0 %v378
        %v517 = vpop.f32.mrf.mxu0
        %v518 = vadd.f32 %v311, %v517
        %v519 = vpop.f32.mrf.mxu0
        %v520 = vadd.f32 %v311, %v519
        %521 = vmatprep.mubr.f32.mxu0 0.0
        %522 = vmatmul.mubr.f32.gmra.mxu0 %v381
        %v523 = vpop.f32.mrf.mxu0
        %v524 = vadd.f32 %v316, %v523
        %v525 = vpop.f32.mrf.mxu0
        %v526 = vadd.f32 %v316, %v525
        %527 = vmatprep.mubr.f32.mxu0 0.0
        %528 = vmatmul.mubr.f32.gmra.mxu0 %v384
        %v529 = vpop.f32.mrf.mxu0
        %v530 = vadd.f32 %v321, %v529
        %v531 = vpop.f32.mrf.mxu0
        %v532 = vadd.f32 %v321, %v531
        %533 = vmatprep.mubr.f32.mxu0 0.0
        %534 = vmatmul.mubr.f32.gmra.mxu0 %v387
        %v535 = vpop.f32.mrf.mxu0
        %v536 = vadd.f32 %v326, %v535
        %v537 = vpop.f32.mrf.mxu0
        %v538 = vadd.f32 %v326, %v537
        %539 = vmatprep.mubr.f32.mxu0 0.0
        %540 = vmatmul.mubr.f32.gmra.mxu0 %v390
        %v541 = vpop.f32.mrf.mxu0
        %v542 = vadd.f32 %v331, %v541
        %v543 = vpop.f32.mrf.mxu0
        %v544 = vadd.f32 %v331, %v543
        %545 = vmatprep.mubr.f32.mxu0 0.0
        %546 = vmatmul.mubr.f32.gmra.mxu0 %v393
        %v547 = vpop.f32.mrf.mxu0
        %v548 = vadd.f32 %v336, %v547
        %v549 = vpop.f32.mrf.mxu0
        %v550 = vadd.f32 %v336, %v549
        %551 = vmatprep.mubr.f32.mxu0 0.0
        %552 = vmatmul.mubr.f32.gmra.mxu0 %v396
        %v553 = vpop.f32.mrf.mxu0
        %v554 = vadd.f32 %v341, %v553
        %v555 = vpop.f32.mrf.mxu0
        %v556 = vadd.f32 %v341, %v555
        %557 = vmatprep.mubr.f32.mxu0 0.0
        %558 = vmatmul.mubr.f32.gmra.mxu0 %v399
        %v559 = vpop.f32.mrf.mxu0
        %v560 = vadd.f32 %v346, %v559
        %v561 = vpop.f32.mrf.mxu0
        %v562 = vadd.f32 %v346, %v561
        %563 = vmatprep.mubr.f32.mxu0 0.0
        %564 = vmatmul.mubr.f32.gmra.mxu0 %v402
        %v565 = vpop.f32.mrf.mxu0
        %v566 = vadd.f32 %v351, %v565
        %v567 = vpop.f32.mrf.mxu0
        %v568 = vadd.f32 %v351, %v567
        %569 = vdwg.mxu0
        %v570 = vmax.f32 %v476, 0.0
        %v571 = vmax.f32 %v478, 0.0
        %v572 = vmax.f32 %v482, 0.0
        %v573 = vmax.f32 %v484, 0.0
        %v574 = vmax.f32 %v488, 0.0
        %v575 = vmax.f32 %v490, 0.0
        %v576 = vmax.f32 %v494, 0.0
        %v577 = vmax.f32 %v496, 0.0
        %v578 = vmax.f32 %v500, 0.0
        %v579 = vmax.f32 %v502, 0.0
        %v580 = vmax.f32 %v506, 0.0
        %v581 = vmax.f32 %v508, 0.0
        %v582 = vmax.f32 %v512, 0.0
        %v583 = vmax.f32 %v514, 0.0
        %v584 = vmax.f32 %v518, 0.0
        %v585 = vmax.f32 %v520, 0.0
        %v586 = vmax.f32 %v524, 0.0
        %v587 = vmax.f32 %v526, 0.0
        %v588 = vmax.f32 %v530, 0.0
        %v589 = vmax.f32 %v532, 0.0
        %v590 = vmax.f32 %v536, 0.0
        %v591 = vmax.f32 %v538, 0.0
        %v592 = vmax.f32 %v542, 0.0
        %v593 = vmax.f32 %v544, 0.0
        %v594 = vmax.f32 %v548, 0.0
        %v595 = vmax.f32 %v550, 0.0
        %v596 = vmax.f32 %v554, 0.0
        %v597 = vmax.f32 %v556, 0.0
        %v598 = vmax.f32 %v560, 0.0
        %v599 = vmax.f32 %v562, 0.0
        %v600 = vmax.f32 %v566, 0.0
        %v601 = vmax.f32 %v568, 0.0
        %v602 = vmul.f32 %v570, %v570
        %v603 = vmul.f32 %v571, %v571
        %v604 = vmul.f32 %v572, %v572
        %v605 = vmul.f32 %v573, %v573
        %v606 = vmul.f32 %v574, %v574
        %v607 = vmul.f32 %v575, %v575
        %v608 = vmul.f32 %v576, %v576
        %v609 = vmul.f32 %v577, %v577
        %v610 = vmul.f32 %v578, %v578
        %v611 = vmul.f32 %v579, %v579
        %v612 = vmul.f32 %v580, %v580
        %v613 = vmul.f32 %v581, %v581
        %v614 = vmul.f32 %v582, %v582
        %v615 = vmul.f32 %v583, %v583
        %v616 = vmul.f32 %v584, %v584
        %v617 = vmul.f32 %v585, %v585
        %v618 = vmul.f32 %v586, %v586
        %v619 = vmul.f32 %v587, %v587
        %v620 = vmul.f32 %v588, %v588
        %v621 = vmul.f32 %v589, %v589
        %v622 = vmul.f32 %v590, %v590
        %v623 = vmul.f32 %v591, %v591
        %v624 = vmul.f32 %v592, %v592
        %v625 = vmul.f32 %v593, %v593
        %v626 = vmul.f32 %v594, %v594
        %v627 = vmul.f32 %v595, %v595
        %v628 = vmul.f32 %v596, %v596
        %v629 = vmul.f32 %v597, %v597
        %v630 = vmul.f32 %v598, %v598
        %v631 = vmul.f32 %v599, %v599
        %v632 = vmul.f32 %v600, %v600
        %v633 = vmul.f32 %v601, %v601
        %v634 = vadd.f32 %v602, %v604
        %v635 = vadd.f32 %v634, %v606
        %v636 = vadd.f32 %v635, %v608
        %v637 = vadd.f32 %v636, %v610
        %v638 = vadd.f32 %v637, %v612
        %v639 = vadd.f32 %v638, %v614
        %v640 = vadd.f32 %v639, %v616
        %v641 = vadd.f32 %v640, %v618
        %v642 = vadd.f32 %v641, %v620
        %v643 = vadd.f32 %v642, %v622
        %v644 = vadd.f32 %v643, %v624
        %v645 = vadd.f32 %v644, %v626
        %v646 = vadd.f32 %v645, %v628
        %v647 = vadd.f32 %v646, %v630
        %v648 = vadd.f32 %v647, %v632
        %v649 = vrot.slane %v648, 4
        %v650 = vadd.f32 %v648, %v649
        %v651 = vrot.slane %v650, 2
        %v652 = vadd.f32 %v650, %v651
        %v653 = vrot.slane %v652, 1
        %v654 = vadd.f32 %v652, %v653
        %v655 = vadd.f32 %v603, %v605
        %v656 = vadd.f32 %v655, %v607
        %v657 = vadd.f32 %v656, %v609
        %v658 = vadd.f32 %v657, %v611
        %v659 = vadd.f32 %v658, %v613
        %v660 = vadd.f32 %v659, %v615
        %v661 = vadd.f32 %v660, %v617
        %v662 = vadd.f32 %v661, %v619
        %v663 = vadd.f32 %v662, %v621
        %v664 = vadd.f32 %v663, %v623
        %v665 = vadd.f32 %v664, %v625
        %v666 = vadd.f32 %v665, %v627
        %v667 = vadd.f32 %v666, %v629
        %v668 = vadd.f32 %v667, %v631
        %v669 = vadd.f32 %v668, %v633
        %v670 = vrot.slane %v669, 4
        %v671 = vadd.f32 %v669, %v670
        %v672 = vrot.slane %v671, 2
        %v673 = vadd.f32 %v671, %v672
        %v674 = vrot.slane %v673, 1
        %v675 = vadd.f32 %v673, %v674
        %v676 = vrsqrt.pop %v654
        %v677 = vmul.f32 %v654, %v676
        %vm678 = vcmp.eq.f32.partialorder %v654, inf
        %v679 = vsel %vm678, %v654, %v677
        %vm680 = vcmp.eq.f32.partialorder %v654, 0.0
        %v681 = vand.u32 %v654, 2147483648
        %v682 = vsel %vm680, %v681, %v679
        %v683 = vrsqrt.pop %v675
        %v684 = vmul.f32 %v675, %v683
        %vm685 = vcmp.eq.f32.partialorder %v675, inf
        %v686 = vsel %vm685, %v675, %v684
        %vm687 = vcmp.eq.f32.partialorder %v675, 0.0
        %v688 = vand.u32 %v675, 2147483648
        %v689 = vsel %vm687, %v688, %v686
        %v690 = vadd.f32 %v682, 1e-10
        %v691 = vadd.f32 %v689, 1e-10
        %v692 = vmul.f32 %v690, 16.0
        %v693 = vmul.f32 %v691, 16.0
        %v694 = vrcp.pop %v692
        %v695 = vmul.f32 1.0, %v694
        %v696 = vrcp.pop %v693
        %v697 = vmul.f32 1.0, %v696
        %v698 = vmul.f32 %v570, %v695
        %v699 = vmul.f32 %v571, %v697
        %v700 = vmul.f32 %v572, %v695
        %v701 = vmul.f32 %v573, %v697
        %v702 = vmul.f32 %v574, %v695
        %v703 = vmul.f32 %v575, %v697
        %v704 = vmul.f32 %v576, %v695
        %v705 = vmul.f32 %v577, %v697
        %v706 = vmul.f32 %v578, %v695
        %v707 = vmul.f32 %v579, %v697
        %v708 = vmul.f32 %v580, %v695
        %v709 = vmul.f32 %v581, %v697
        %v710 = vmul.f32 %v582, %v695
        %v711 = vmul.f32 %v583, %v697
        %v712 = vmul.f32 %v584, %v695
        %v713 = vmul.f32 %v585, %v697
        %v714 = vmul.f32 %v586, %v695
        %v715 = vmul.f32 %v587, %v697
        %v716 = vmul.f32 %v588, %v695
        %v717 = vmul.f32 %v589, %v697
        %v718 = vmul.f32 %v590, %v695
        %v719 = vmul.f32 %v591, %v697
        %v720 = vmul.f32 %v592, %v695
        %v721 = vmul.f32 %v593, %v697
        %v722 = vmul.f32 %v594, %v695
        %v723 = vmul.f32 %v595, %v697
        %v724 = vmul.f32 %v596, %v695
        %v725 = vmul.f32 %v597, %v697
        %v726 = vmul.f32 %v598, %v695
        %v727 = vmul.f32 %v599, %v697
        %v728 = vmul.f32 %v600, %v695
        %v729 = vmul.f32 %v601, %v697
        %v730 = vpack.c.bf16 %v700, %v698
        %v731 = vpack.c.bf16 %v701, %v699
        %v732 = vpack.c.bf16 %v704, %v702
        %v733 = vpack.c.bf16 %v705, %v703
        %v734 = vpack.c.bf16 %v708, %v706
        %v735 = vpack.c.bf16 %v709, %v707
        %v736 = vpack.c.bf16 %v712, %v710
        %v737 = vpack.c.bf16 %v713, %v711
        %v738 = vpack.c.bf16 %v716, %v714
        %v739 = vpack.c.bf16 %v717, %v715
        %v740 = vpack.c.bf16 %v720, %v718
        %v741 = vpack.c.bf16 %v721, %v719
        %v742 = vpack.c.bf16 %v724, %v722
        %v743 = vpack.c.bf16 %v725, %v723
        %v744 = vpack.c.bf16 %v728, %v726
        %v745 = vpack.c.bf16 %v729, %v727
        %v762 = vunpack.c.l.b16 %v730
        %v763 = vunpack.c.l.b16 %v731
        %v764 = vunpack.c.h.b16 %v730
        %v765 = vunpack.c.h.b16 %v731
        %v766 = vunpack.c.l.b16 %v732
        %v767 = vunpack.c.l.b16 %v733
        %v768 = vunpack.c.h.b16 %v732
        %v769 = vunpack.c.h.b16 %v733
        %v770 = vunpack.c.l.b16 %v734
        %v771 = vunpack.c.l.b16 %v735
        %v772 = vunpack.c.h.b16 %v734
        %v773 = vunpack.c.h.b16 %v735
        %v774 = vunpack.c.l.b16 %v736
        %v775 = vunpack.c.l.b16 %v737
        %v776 = vunpack.c.h.b16 %v736
        %v777 = vunpack.c.h.b16 %v737
        %v778 = vunpack.c.l.b16 %v738
        %v779 = vunpack.c.l.b16 %v739
        %v780 = vunpack.c.h.b16 %v738
        %v781 = vunpack.c.h.b16 %v739
        %v782 = vunpack.c.l.b16 %v740
        %v783 = vunpack.c.l.b16 %v741
        %v784 = vunpack.c.h.b16 %v740
        %v785 = vunpack.c.h.b16 %v741
        %v786 = vunpack.c.l.b16 %v742
        %v787 = vunpack.c.l.b16 %v743
        %v788 = vunpack.c.h.b16 %v742
        %v789 = vunpack.c.h.b16 %v743
        %v790 = vunpack.c.l.b16 %v744
        %v791 = vunpack.c.l.b16 %v745
        %v792 = vunpack.c.h.b16 %v744
        %v793 = vunpack.c.h.b16 %v745
        %v794 = vpack.c.b16 %v763, %v762
        %v795 = vpack.c.b16 %v765, %v764
        %v796 = vpack.c.b16 %v767, %v766
        %v797 = vpack.c.b16 %v769, %v768
        %v798 = vpack.c.b16 %v771, %v770
        %v799 = vpack.c.b16 %v773, %v772
        %v800 = vpack.c.b16 %v775, %v774
        %v801 = vpack.c.b16 %v777, %v776
        %v802 = vpack.c.b16 %v779, %v778
        %v803 = vpack.c.b16 %v781, %v780
        %v804 = vpack.c.b16 %v783, %v782
        %v805 = vpack.c.b16 %v785, %v784
        %v806 = vpack.c.b16 %v787, %v786
        %v807 = vpack.c.b16 %v789, %v788
        %v808 = vpack.c.b16 %v791, %v790
        %v809 = vpack.c.b16 %v793, %v792
        %826 = vst [vmem:[%s238] sm:$0xff] %v794
        %827 = vst [vmem:[%s238 + $0x8] sm:$0xff] %v795
        %828 = vst [vmem:[%s238 + $0x10] sm:$0xff] %v796
        %829 = vst [vmem:[%s238 + $0x18] sm:$0xff] %v797
        %830 = vst [vmem:[%s238 + $0x20] sm:$0xff] %v798
        %831 = vst [vmem:[%s238 + $0x28] sm:$0xff] %v799
        %832 = vst [vmem:[%s238 + $0x30] sm:$0xff] %v800
        %833 = vst [vmem:[%s238 + $0x38] sm:$0xff] %v801
        %834 = vst [vmem:[%s238 + $0x40] sm:$0xff] %v802
        %835 = vst [vmem:[%s238 + $0x48] sm:$0xff] %v803
        %836 = vst [vmem:[%s238 + $0x50] sm:$0xff] %v804
        %837 = vst [vmem:[%s238 + $0x58] sm:$0xff] %v805
        %838 = vst [vmem:[%s238 + $0x60] sm:$0xff] %v806
        %839 = vst [vmem:[%s238 + $0x68] sm:$0xff] %v807
        %840 = vst [vmem:[%s238 + $0x70] sm:$0xff] %v808
        %841 = vst [vmem:[%s238 + $0x78] sm:$0xff] %v809
        %s842 = smul.u32 2, %s21
        %p843 = scmp.lt.s32.totalorder %s20, 1
        %s844 = scalar_select %p843, %s20, 1
        %p845 = scmp.lt.s32.totalorder %s842, 1
        %s846 = scalar_select %p845, %s842, 1
        %s847 = smul.addr %s844, 32
        %s848 = sadd.s32 %s846, %s847
        %s849 = smul.addr %s848, 4
        %s850 = scalar_lea.vmem %s3, %s849
        // Predicated region
        $region41: #{_attack.1} parent=31 // pred_check
          %p851 = pneg %p118
        $region42: #{_attack.1} parent=31 // pred_check_branch
          %853 = sbr.rel (%p851) target = $region44
        $region43: #{_attack.1} parent=31 // pred_region
          %s854 = smul.u32 2, %s21
        $region44: #{_attack.1} parent=31 // pred_fallthru
          _
      $region32: #{_attack.1} parent=5 // pred_fallthru
        _
      %p855 = scmp.le.s32.totalorder 2, %s11
      // Predicated region
      $region45: #{_attack.1} parent=5 // pred_check
        %p856 = pneg %p855
      $region46: #{_attack.1} parent=5 // pred_check_branch
        %858 = sbr.rel (%p856) target = $region48
      $region47: #{_attack.1} parent=5 // pred_region
        %s859 = ssub.s32 %s11, 2
        // Predicated region
        $region49: #{_attack.1} parent=47 // pred_check
          %p860 = pneg %p124
        $region50: #{_attack.1} parent=47 // pred_check_branch
          %862 = sbr.rel (%p860) target = $region52
        $region51: #{_attack.1} parent=47 // pred_region
          %s863 = smul.u32 2, %s23
          %p864 = scmp.lt.s32.totalorder %s22, 1
          %s865 = scalar_select %p864, %s22, 1
          %p866 = scmp.lt.s32.totalorder %s863, 1
          %s867 = scalar_select %p866, %s863, 1
          %s868 = smul.addr %s865, 32
          %s869 = sadd.s32 %s867, %s868
          %s870 = smul.addr %s869, 4
          %s871 = scalar_lea.vmem %s3, %s870
        $region52: #{_attack.1} parent=47 // pred_fallthru
          _
      $region48: #{_attack.1} parent=5 // pred_fallthru
        _
    $region6: #{_attack.1} parent=1 // loop_footer
      %s15 = sadd.s32 1, %s11
    $region7: #{_attack.1} parent=1 // loop_footer_branch
      %10 = sbr.rel target = $region3
    $region8: #{_attack.1} parent=1 // loop_exit
      _
    %872 = vsyncpa [#allocation3], 1
    %s873 = scalar_lea.sflag [#allocation3], 1
    %874 = vsyncpa %s873, 1
    %875 = vsyncpa [#allocation5], 1

// kernel: closed_call.53
$region0: #{closed_call.53}
  #allocation0 [shape = 'u32[]', space=smem, size = 0x4, offset = 0x4, fixed_abs, tag = 'smem constant byte address 0x4 - core index']
  #allocation1 [shape = 'u32[144,128]{1,0:T(1,128)}', space=vmem, size = 0x12000, scoped, tag = 'internal scratch']
  #allocation2 [shape = 'f32[128,1]{1,0:T(8,128)}', space=vmem, size = 0x10000, scoped, tag = 'scratch operand']
  %s0 = inlined_call_operand.vmem [shape: f32[2,4,256], index: 0, kind: input, shape index: {}]
  %s1 = inlined_call_operand.vmem [shape: f32[128,4], index: 1, kind: input, shape index: {}]
  %s2 = inlined_call_operand.vmem [shape: f32[128,1], index: 2, kind: input, shape index: {}]
  %s3 = inlined_call_operand.vmem [shape: f32[128,128], index: 3, kind: input, shape index: {}]
  %s4 = inlined_call_operand.vmem [shape: f32[1,128], index: 4, kind: input, shape index: {}]
  %s5 = inlined_call_operand.vmem [shape: bf16[2,128,256], index: 5, kind: input, shape index: {}]
  %s6 = inlined_call_operand.vmem [shape: f32[2,1,128], index: 6, kind: output, shape index: {0}]
  %s7 = inlined_call_operand.vmem [shape: f32[2,1,1], index: 7, kind: output, shape index: {1}]
  %8 = xla_tuple %s6, %s7
  %s9 = sld [smem:[#allocation0]]
  $region73: #{closed_call.53} parent=0
    _
  %s11 = ssub.s32 1, %s9
  %s12 = scalar_select 0, %s11, %s9
  loop: start=0, step=1, limit=4
  $region2: #{closed_call.53} parent=0 // loop_pre_header
    _
  $region3: #{closed_call.53} parent=0 // loop_header
    %s14 = sphi 0, %s18
    %p15 = scmp.ge.s32.totalorder %s14, 4
    %s21 = sphi 0, %s33
    %s22 = sphi 0, %s29
    %s23 = sphi 0, %s21
    %s24 = sphi 0, %s22
    %s25 = sphi 0, %s23
    %s26 = sphi 0, %s24
    %s38 = sphi 0, %s40
    %s41 = sphi 0, %s38
    %s42 = sphi 0, %s41
    %s58 = sphi 0, %s42
    %s62 = sphi 0, %s62
    %s64 = sphi 0, %s62
    %s65 = sphi 0, %s64
    %s79 = sphi 0, %s65
    %s83 = sphi 0, %s83
    %s85 = sphi 0, %s83
    %s86 = sphi 0, %s85
    %s100 = sphi 0, %s86
    %s104 = sphi 0, %s104
    %s106 = sphi 0, %s104
    %s107 = sphi 0, %s106
    %s121 = sphi 0, %s107
    %s125 = sphi 0, %s125
    %s127 = sphi 0, %s125
    %s128 = sphi 0, %s127
    %s142 = sphi 0, %s128
    %s150 = sphi 0, %s152
    %s153 = sphi 0, %s150
    %s154 = sphi 0, %s153
    %s170 = sphi 0, %s154
    %s176 = sphi 0, %s178
    %s179 = sphi 0, %s176
    %s180 = sphi 0, %s179
    %s196 = sphi 0, %s180
    %s202 = sphi 0, %s204
    %s205 = sphi 0, %s202
    %s206 = sphi 0, %s205
    %s222 = sphi 0, %s206
  $region4: #{closed_call.53} parent=0 // loop_header_branch
    %17 = sbr.rel (%p15) target = $region8
  $region5: #{closed_call.53} parent=0 // loop_body
    %s19 = ssub.s32 %s14, 1
    %s20 = ssub.s32 %s14, 2
    %s27 = sadd.s32 1, %s22
    %p28 = scmp.ge.s32.totalorder %s27, 1
    %s29 = scalar_select %p28, 0, %s27
    %s30 = sadd.s32 1, %s21
    %s31 = scalar_select %p28, %s30, %s21
    %p32 = scmp.ge.s32.totalorder %s31, 2
    %s33 = scalar_select %p32, 0, %s31
    %s34 = ssub.s32 %s21, %s33
    %s35 = ssub.s32 %s22, %s29
    %s36 = sor.u32 %s34, %s35
    %p37 = scmp.eq.s32.totalorder %s36, 0
    %s39 = sadd.s32 %s38, 1
    %s40 = scalar_select %p37, %s38, %s39
    %p43 = pneg %p37
    %p44 = scmp.eq.s32.totalorder %s14, 1
    %p45 = por %p43, %p44
    %p46 = scmp.ne.s32.totalorder %s38, %s41
    %p47 = scmp.eq.s32.totalorder %s14, 0
    %p48 = por %p46, %p47
    %p49 = scmp.ne.s32.totalorder %s38, %s41
    %p50 = scmp.eq.s32.totalorder %s19, 1
    %p51 = por %p49, %p50
    %p52 = scmp.ne.s32.totalorder %s41, %s42
    %p53 = scmp.eq.s32.totalorder %s19, 0
    %p54 = por %p52, %p53
    %p55 = scmp.ne.s32.totalorder %s41, %s42
    %p56 = scmp.eq.s32.totalorder %s20, 1
    %p57 = por %p55, %p56
    %p59 = scmp.ne.s32.totalorder %s42, %s58
    %p60 = scmp.eq.s32.totalorder %s20, 0
    %p61 = por %p59, %p60
    %s63 = sadd.s32 %s62, 1
    %p66 = scmp.eq.s32.totalorder %s14, 1
    %p67 = scmp.ne.s32.totalorder %s62, %s64
    %p68 = scmp.eq.s32.totalorder %s14, 0
    %p69 = por %p67, %p68
    %p70 = scmp.ne.s32.totalorder %s62, %s64
    %p71 = scmp.eq.s32.totalorder %s19, 1
    %p72 = por %p70, %p71
    %p73 = scmp.ne.s32.totalorder %s64, %s65
    %p74 = scmp.eq.s32.totalorder %s19, 0
    %p75 = por %p73, %p74
    %p76 = scmp.ne.s32.totalorder %s64, %s65
    %p77 = scmp.eq.s32.totalorder %s20, 1
    %p78 = por %p76, %p77
    %p80 = scmp.ne.s32.totalorder %s65, %s79
    %p81 = scmp.eq.s32.totalorder %s20, 0
    %p82 = por %p80, %p81
    %s84 = sadd.s32 %s83, 1
    %p87 = scmp.eq.s32.totalorder %s14, 1
    %p88 = scmp.ne.s32.totalorder %s83, %s85
    %p89 = scmp.eq.s32.totalorder %s14, 0
    %p90 = por %p88, %p89
    %p91 = scmp.ne.s32.totalorder %s83, %s85
    %p92 = scmp.eq.s32.totalorder %s19, 1
    %p93 = por %p91, %p92
    %p94 = scmp.ne.s32.totalorder %s85, %s86
    %p95 = scmp.eq.s32.totalorder %s19, 0
    %p96 = por %p94, %p95
    %p97 = scmp.ne.s32.totalorder %s85, %s86
    %p98 = scmp.eq.s32.totalorder %s20, 1
    %p99 = por %p97, %p98
    %p101 = scmp.ne.s32.totalorder %s86, %s100
    %p102 = scmp.eq.s32.totalorder %s20, 0
    %p103 = por %p101, %p102
    %s105 = sadd.s32 %s104, 1
    %p108 = scmp.eq.s32.totalorder %s14, 1
    %p109 = scmp.ne.s32.totalorder %s104, %s106
    %p110 = scmp.eq.s32.totalorder %s14, 0
    %p111 = por %p109, %p110
    %p112 = scmp.ne.s32.totalorder %s104, %s106
    %p113 = scmp.eq.s32.totalorder %s19, 1
    %p114 = por %p112, %p113
    %p115 = scmp.ne.s32.totalorder %s106, %s107
    %p116 = scmp.eq.s32.totalorder %s19, 0
    %p117 = por %p115, %p116
    %p118 = scmp.ne.s32.totalorder %s106, %s107
    %p119 = scmp.eq.s32.totalorder %s20, 1
    %p120 = por %p118, %p119
    %p122 = scmp.ne.s32.totalorder %s107, %s121
    %p123 = scmp.eq.s32.totalorder %s20, 0
    %p124 = por %p122, %p123
    %s126 = sadd.s32 %s125, 1
    %p129 = scmp.eq.s32.totalorder %s14, 1
    %p130 = scmp.ne.s32.totalorder %s125, %s127
    %p131 = scmp.eq.s32.totalorder %s14, 0
    %p132 = por %p130, %p131
    %p133 = scmp.ne.s32.totalorder %s125, %s127
    %p134 = scmp.eq.s32.totalorder %s19, 1
    %p135 = por %p133, %p134
    %p136 = scmp.ne.s32.totalorder %s127, %s128
    %p137 = scmp.eq.s32.totalorder %s19, 0
    %p138 = por %p136, %p137
    %p139 = scmp.ne.s32.totalorder %s127, %s128
    %p140 = scmp.eq.s32.totalorder %s20, 1
    %p141 = por %p139, %p140
    %p143 = scmp.ne.s32.totalorder %s128, %s142
    %p144 = scmp.eq.s32.totalorder %s20, 0
    %p145 = por %p143, %p144
    %s146 = ssub.s32 %s21, %s33
    %s147 = ssub.s32 %s22, %s29
    %s148 = sor.u32 %s146, %s147
    %p149 = scmp.eq.s32.totalorder %s148, 0
    %s151 = sadd.s32 %s150, 1
    %s152 = scalar_select %p149, %s150, %s151
    %p155 = pneg %p149
    %p156 = scmp.eq.s32.totalorder %s14, 1
    %p157 = por %p155, %p156
    %p158 = scmp.ne.s32.totalorder %s150, %s153
    %p159 = scmp.eq.s32.totalorder %s14, 0
    %p160 = por %p158, %p159
    %p161 = scmp.ne.s32.totalorder %s150, %s153
    %p162 = scmp.eq.s32.totalorder %s19, 1
    %p163 = por %p161, %p162
    %p164 = scmp.ne.s32.totalorder %s153, %s154
    %p165 = scmp.eq.s32.totalorder %s19, 0
    %p166 = por %p164, %p165
    %p167 = scmp.ne.s32.totalorder %s153, %s154
    %p168 = scmp.eq.s32.totalorder %s20, 1
    %p169 = por %p167, %p168
    %p171 = scmp.ne.s32.totalorder %s154, %s170
    %p172 = scmp.eq.s32.totalorder %s20, 0
    %p173 = por %p171, %p172
    %s174 = ssub.s32 %s21, %s33
    %p175 = scmp.eq.s32.totalorder %s174, 0
    %s177 = sadd.s32 %s176, 1
    %s178 = scalar_select %p175, %s176, %s177
    %p181 = pneg %p175
    %p182 = scmp.eq.s32.totalorder %s14, 1
    %p183 = por %p181, %p182
    %p184 = scmp.ne.s32.totalorder %s176, %s179
    %p185 = scmp.eq.s32.totalorder %s14, 0
    %p186 = por %p184, %p185
    %p187 = scmp.ne.s32.totalorder %s176, %s179
    %p188 = scmp.eq.s32.totalorder %s19, 1
    %p189 = por %p187, %p188
    %p190 = scmp.ne.s32.totalorder %s179, %s180
    %p191 = scmp.eq.s32.totalorder %s19, 0
    %p192 = por %p190, %p191
    %p193 = scmp.ne.s32.totalorder %s179, %s180
    %p194 = scmp.eq.s32.totalorder %s20, 1
    %p195 = por %p193, %p194
    %p197 = scmp.ne.s32.totalorder %s180, %s196
    %p198 = scmp.eq.s32.totalorder %s20, 0
    %p199 = por %p197, %p198
    %s200 = ssub.s32 %s21, %s33
    %p201 = scmp.eq.s32.totalorder %s200, 0
    %s203 = sadd.s32 %s202, 1
    %s204 = scalar_select %p201, %s202, %s203
    %p207 = pneg %p201
    %p208 = scmp.eq.s32.totalorder %s14, 1
    %p209 = por %p207, %p208
    %p210 = scmp.ne.s32.totalorder %s202, %s205
    %p211 = scmp.eq.s32.totalorder %s14, 0
    %p212 = por %p210, %p211
    %p213 = scmp.ne.s32.totalorder %s202, %s205
    %p214 = scmp.eq.s32.totalorder %s19, 1
    %p215 = por %p213, %p214
    %p216 = scmp.ne.s32.totalorder %s205, %s206
    %p217 = scmp.eq.s32.totalorder %s19, 0
    %p218 = por %p216, %p217
    %p219 = scmp.ne.s32.totalorder %s205, %s206
    %p220 = scmp.eq.s32.totalorder %s20, 1
    %p221 = por %p219, %p220
    %p223 = scmp.ne.s32.totalorder %s206, %s222
    %p224 = scmp.eq.s32.totalorder %s20, 0
    %p225 = por %p223, %p224
    %p226 = scmp.le.s32.totalorder 1, %s14
    %p227 = scmp.lt.s32.totalorder %s14, 3
    %p228 = pnand %p226, %p227
    %p229 = pneg %p228
    // Predicated region
    $region9: #{closed_call.53} parent=5 // pred_check
      _
    $region10: #{closed_call.53} parent=5 // pred_check_branch
      %231 = sbr.rel (%p228) target = $region12
    $region11: #{closed_call.53} parent=5 // pred_region
      %s232 = ssub.s32 %s14, 1
      // Predicated region
      $region13: #{closed_call.53} parent=11 // pred_check
        %p233 = pneg %p75
      $region14: #{closed_call.53} parent=11 // pred_check_branch
        %235 = sbr.rel (%p233) target = $region16
      $region15: #{closed_call.53} parent=11 // pred_region
        _
      $region16: #{closed_call.53} parent=11 // pred_fallthru
        _
      // Predicated region
      $region17: #{closed_call.53} parent=11 // pred_check
        %p236 = pneg %p96
      $region18: #{closed_call.53} parent=11 // pred_check_branch
        %238 = sbr.rel (%p236) target = $region20
      $region19: #{closed_call.53} parent=11 // pred_region
        _
      $region20: #{closed_call.53} parent=11 // pred_fallthru
        _
      // Predicated region
      $region21: #{closed_call.53} parent=11 // pred_check
        %p239 = pneg %p117
      $region22: #{closed_call.53} parent=11 // pred_check_branch
        %241 = sbr.rel (%p239) target = $region24
      $region23: #{closed_call.53} parent=11 // pred_region
        _
      $region24: #{closed_call.53} parent=11 // pred_fallthru
        _
      // Predicated region
      $region25: #{closed_call.53} parent=11 // pred_check
        %p242 = pneg %p138
      $region26: #{closed_call.53} parent=11 // pred_check_branch
        %244 = sbr.rel (%p242) target = $region28
      $region27: #{closed_call.53} parent=11 // pred_region
        _
      $region28: #{closed_call.53} parent=11 // pred_fallthru
        _
    $region12: #{closed_call.53} parent=5 // pred_fallthru
      _
    %p245 = scmp.lt.s32.totalorder %s14, 2
    // Predicated region
    $region29: #{closed_call.53} parent=5 // pred_check
      %p246 = pneg %p245
    $region30: #{closed_call.53} parent=5 // pred_check_branch
      %248 = sbr.rel (%p246) target = $region32
    $region31: #{closed_call.53} parent=5 // pred_region
      // Predicated region
      $region33: #{closed_call.53} parent=31 // pred_check
        %p249 = pneg %p48
      $region34: #{closed_call.53} parent=31 // pred_check_branch
        %251 = sbr.rel (%p249) target = $region36
      $region35: #{closed_call.53} parent=31 // pred_region
        %s252 = smul.u32 2, %s22
        %p253 = scmp.lt.s32.totalorder %s21, 1
        %s254 = scalar_select %p253, %s21, 1
        %p255 = scmp.lt.s32.totalorder %s252, 1
        %s256 = scalar_select %p255, %s252, 1
        %s257 = smul.addr %s254, 2
        %s258 = sadd.s32 %s256, %s257
        %s259 = smul.addr %s258, 4
        %s260 = scalar_lea.vmem %s0, %s259
        %s261 = smul.u32 2, %s22
      $region36: #{closed_call.53} parent=31 // pred_fallthru
        _
      // Predicated region
      $region37: #{closed_call.53} parent=31 // pred_check
        %p262 = pneg %p160
      $region38: #{closed_call.53} parent=31 // pred_check_branch
        %264 = sbr.rel (%p262) target = $region40
      $region39: #{closed_call.53} parent=31 // pred_region
        %s265 = smul.u32 2, %s22
        %p266 = scmp.lt.s32.totalorder %s21, 1
        %s267 = scalar_select %p266, %s21, 1
        %p268 = scmp.lt.s32.totalorder %s265, 1
        %s269 = scalar_select %p268, %s265, 1
        %s270 = smul.addr %s267, 32
        %s271 = sadd.s32 %s269, %s270
        %s272 = smul.addr %s271, 4
        %s273 = scalar_lea.vmem %s5, %s272
        %s274 = smul.u32 2, %s22
      $region40: #{closed_call.53} parent=31 // pred_fallthru
        _
    $region32: #{closed_call.53} parent=5 // pred_fallthru
      _
    %p275 = scmp.le.s32.totalorder 1, %s14
    %p276 = scmp.lt.s32.totalorder %s14, 3
    %p277 = pnand %p275, %p276
    %p278 = pneg %p277
    // Predicated region
    $region41: #{closed_call.53} parent=5 // pred_check
      _
    $region42: #{closed_call.53} parent=5 // pred_check_branch
      %280 = sbr.rel (%p277) target = $region44
    $region43: #{closed_call.53} parent=5 // pred_region
      %s281 = ssub.s32 %s14, 1
      %s282 = smul.u32 2, %s24
      %p283 = scmp.lt.s32.totalorder %s23, 1
      %s284 = scalar_select %p283, %s23, 1
      %p285 = scmp.lt.s32.totalorder %s282, 1
      %s286 = scalar_select %p285, %s282, 1
      %s287 = smul.addr %s284, 2
      %s288 = sadd.s32 %s286, %s287
      %s289 = smul.addr %s288, 4
      %s290 = scalar_lea.vmem %s0, %s289
      %p291 = pneg %p54
      %p292 = pneg %p51
      %p293 = pneg %p75
      %p294 = pneg %p72
      %p295 = pneg %p96
      %p296 = pneg %p93
      %p297 = pneg %p117
      %p298 = pneg %p114
      %p299 = pneg %p138
      %p300 = pneg %p135
      %s301 = smul.u32 2, %s24
      %p302 = scmp.lt.s32.totalorder %s23, 1
      %s303 = scalar_select %p302, %s23, 1
      %p304 = scmp.lt.s32.totalorder %s301, 1
      %s305 = scalar_select %p304, %s301, 1
      %s306 = smul.addr %s303, 32
      %s307 = sadd.s32 %s305, %s306
      %s308 = smul.addr %s307, 4
      %s309 = scalar_lea.vmem %s5, %s308
      %p310 = pneg %p166
      %p311 = pneg %p163
      %p312 = pneg %p192
      %p313 = pneg %p189
      %p314 = scmp.lt.s32.totalorder %s23, 1
      %s315 = scalar_select %p314, %s23, 1
      %s316 = scalar_lea.vmem %s6, %s315
      %p317 = pneg %p218
      %p318 = pneg %p215
      %p319 = scmp.lt.s32.totalorder %s23, 1
      %s320 = scalar_select %p319, %s23, 1
      %s321 = scalar_lea.vmem %s7, %s320
      %s322 = smul.u32 2, %s24
      %p323 = scmp.lt.s32.totalorder %s23, 1
      %s324 = scalar_select %p323, %s23, 1
      %p325 = scmp.lt.s32.totalorder %s322, 1
      %s326 = scalar_select %p325, %s322, 1
      %s327 = smul.addr %s324, 2
      %s328 = sadd.s32 %s326, %s327
      %s329 = smul.addr %s328, 4
      %s330 = scalar_lea.vmem %s0, %s329
      %s331 = smul.u32 2, %s24
      %s332 = smul.u32 2, %s24
      %p333 = scmp.lt.s32.totalorder %s23, 1
      %s334 = scalar_select %p333, %s23, 1
      %p335 = scmp.lt.s32.totalorder %s332, 1
      %s336 = scalar_select %p335, %s332, 1
      %s337 = smul.addr %s334, 32
      %s338 = sadd.s32 %s336, %s337
      %s339 = smul.addr %s338, 4
      %s340 = scalar_lea.vmem %s5, %s339
      %s341 = smul.u32 2, %s24
      %p342 = scmp.lt.s32.totalorder %s23, 1
      %s343 = scalar_select %p342, %s23, 1
      %s344 = scalar_lea.vmem %s6, %s343
      %p345 = scmp.lt.s32.totalorder %s23, 1
      %s346 = scalar_select %p345, %s23, 1
      %s347 = scalar_lea.vmem %s7, %s346
      %p348 = scmp.eq.s32.totalorder %s24, 0
      // Predicated region
      $region45: #{closed_call.53} parent=43 // pred_check
        %p349 = pneg %p348
      $region46: #{closed_call.53} parent=43 // pred_check_branch
        %351 = sbr.rel (%p349) target = $region48
      $region47: #{closed_call.53} parent=43 // pred_region
        %vm352 = vcmask 7168
        %353 = vst.msk [vmem:[#allocation2] sm:$0xff] %vm352, 0.0
        %354 = vst.msk [vmem:[#allocation2 + $0x8] sm:$0xff] %vm352, 0.0
        %355 = vst.msk [vmem:[#allocation2 + $0x10] sm:$0xff] %vm352, 0.0
        %356 = vst.msk [vmem:[#allocation2 + $0x18] sm:$0xff] %vm352, 0.0
        %357 = vst.msk [vmem:[#allocation2 + $0x20] sm:$0xff] %vm352, 0.0
        %358 = vst.msk [vmem:[#allocation2 + $0x28] sm:$0xff] %vm352, 0.0
        %359 = vst.msk [vmem:[#allocation2 + $0x30] sm:$0xff] %vm352, 0.0
        %360 = vst.msk [vmem:[#allocation2 + $0x38] sm:$0xff] %vm352, 0.0
        %361 = vst.msk [vmem:[#allocation2 + $0x40] sm:$0xff] %vm352, 0.0
        %362 = vst.msk [vmem:[#allocation2 + $0x48] sm:$0xff] %vm352, 0.0
        %363 = vst.msk [vmem:[#allocation2 + $0x50] sm:$0xff] %vm352, 0.0
        %364 = vst.msk [vmem:[#allocation2 + $0x58] sm:$0xff] %vm352, 0.0
        %365 = vst.msk [vmem:[#allocation2 + $0x60] sm:$0xff] %vm352, 0.0
        %366 = vst.msk [vmem:[#allocation2 + $0x68] sm:$0xff] %vm352, 0.0
        %367 = vst.msk [vmem:[#allocation2 + $0x70] sm:$0xff] %vm352, 0.0
        %368 = vst.msk [vmem:[#allocation2 + $0x78] sm:$0xff] %vm352, 0.0
        %vm369 = vcmask 0
        %370 = vst.msk [vmem:[%s347] sm:$0x1] %vm369, 0.0
      $region48: #{closed_call.53} parent=43 // pred_fallthru
        _
      %v371 = vld [vmem:[%s330] sm:$0xff]
      %v372 = vld [vmem:[%s1] sm:$0xff]
      %v373 = vld [vmem:[%s1 + $0x8] sm:$0xff]
      %v374 = vld [vmem:[%s1 + $0x10] sm:$0xff]
      %v375 = vld [vmem:[%s1 + $0x18] sm:$0xff]
      %v376 = vld [vmem:[%s1 + $0x20] sm:$0xff]
      %v377 = vld [vmem:[%s1 + $0x28] sm:$0xff]
      %v378 = vld [vmem:[%s1 + $0x30] sm:$0xff]
      %v379 = vld [vmem:[%s1 + $0x38] sm:$0xff]
      %v380 = vld [vmem:[%s1 + $0x40] sm:$0xff]
      %v381 = vld [vmem:[%s1 + $0x48] sm:$0xff]
      %v382 = vld [vmem:[%s1 + $0x50] sm:$0xff]
      %v383 = vld [vmem:[%s1 + $0x58] sm:$0xff]
      %v384 = vld [vmem:[%s1 + $0x60] sm:$0xff]
      %v385 = vld [vmem:[%s1 + $0x68] sm:$0xff]
      %v386 = vld [vmem:[%s1 + $0x70] sm:$0xff]
      %v387 = vld [vmem:[%s1 + $0x78] sm:$0xff]
      %v388 = vld [vmem:[%s2] sm:$0xff]
      %v389 = vld [vmem:[%s2 + $0x8] sm:$0xff]
      %v390 = vld [vmem:[%s2 + $0x10] sm:$0xff]
      %v391 = vld [vmem:[%s2 + $0x18] sm:$0xff]
      %v392 = vld [vmem:[%s2 + $0x20] sm:$0xff]
      %v393 = vld [vmem:[%s2 + $0x28] sm:$0xff]
      %v394 = vld [vmem:[%s2 + $0x30] sm:$0xff]
      %v395 = vld [vmem:[%s2 + $0x38] sm:$0xff]
      %v396 = vld [vmem:[%s2 + $0x40] sm:$0xff]
      %v397 = vld [vmem:[%s2 + $0x48] sm:$0xff]
      %v398 = vld [vmem:[%s2 + $0x50] sm:$0xff]
      %v399 = vld [vmem:[%s2 + $0x58] sm:$0xff]
      %v400 = vld [vmem:[%s2 + $0x60] sm:$0xff]
      %v401 = vld [vmem:[%s2 + $0x68] sm:$0xff]
      %v402 = vld [vmem:[%s2 + $0x70] sm:$0xff]
      %v403 = vld [vmem:[%s2 + $0x78] sm:$0xff]
      %405 = vset.pattern.permute.xlu0 0
      %406 = vperm.xlu0 %405, %v388
      %v407 = vpop.permute.xlu0 %406
      %410 = vset.pattern.permute.xlu0 0
      %411 = vperm.xlu0 %410, %v389
      %v412 = vpop.permute.xlu0 %411
      %415 = vset.pattern.permute.xlu0 0
      %416 = vperm.xlu0 %415, %v390
      %v417 = vpop.permute.xlu0 %416
      %420 = vset.pattern.permute.xlu0 0
      %421 = vperm.xlu0 %420, %v391
      %v422 = vpop.permute.xlu0 %421
      %425 = vset.pattern.permute.xlu0 0
      %426 = vperm.xlu0 %425, %v392
      %v427 = vpop.permute.xlu0 %426
      %430 = vset.pattern.permute.xlu0 0
      %431 = vperm.xlu0 %430, %v393
      %v432 = vpop.permute.xlu0 %431
      %435 = vset.pattern.permute.xlu0 0
      %436 = vperm.xlu0 %435, %v394
      %v437 = vpop.permute.xlu0 %436
      %440 = vset.pattern.permute.xlu0 0
      %441 = vperm.xlu0 %440, %v395
      %v442 = vpop.permute.xlu0 %441
      %445 = vset.pattern.permute.xlu0 0
      %446 = vperm.xlu0 %445, %v396
      %v447 = vpop.permute.xlu0 %446
      %450 = vset.pattern.permute.xlu0 0
      %451 = vperm.xlu0 %450, %v397
      %v452 = vpop.permute.xlu0 %451
      %455 = vset.pattern.permute.xlu0 0
      %456 = vperm.xlu0 %455, %v398
      %v457 = vpop.permute.xlu0 %456
      %460 = vset.pattern.permute.xlu0 0
      %461 = vperm.xlu0 %460, %v399
      %v462 = vpop.permute.xlu0 %461
      %465 = vset.pattern.permute.xlu0 0
      %466 = vperm.xlu0 %465, %v400
      %v467 = vpop.permute.xlu0 %466
      %470 = vset.pattern.permute.xlu0 0
      %471 = vperm.xlu0 %470, %v401
      %v472 = vpop.permute.xlu0 %471
      %475 = vset.pattern.permute.xlu0 0
      %476 = vperm.xlu0 %475, %v402
      %v477 = vpop.permute.xlu0 %476
      %480 = vset.pattern.permute.xlu0 0
      %481 = vperm.xlu0 %480, %v403
      %v482 = vpop.permute.xlu0 %481
      %v485 = vcombine.high %v371, %v371
      %vm486 = vcmask 31744
      %v488 = vsel %vm486, %v372, 0
      %v491 = vsel %vm486, %v373, 0
      %v494 = vsel %vm486, %v374, 0
      %v497 = vsel %vm486, %v375, 0
      %v500 = vsel %vm486, %v376, 0
      %v503 = vsel %vm486, %v377, 0
      %v506 = vsel %vm486, %v378, 0
      %v509 = vsel %vm486, %v379, 0
      %v512 = vsel %vm486, %v380, 0
      %v515 = vsel %vm486, %v381, 0
      %v518 = vsel %vm486, %v382, 0
      %v521 = vsel %vm486, %v383, 0
      %v524 = vsel %vm486, %v384, 0
      %v527 = vsel %vm486, %v385, 0
      %v530 = vsel %vm486, %v386, 0
      %v533 = vsel %vm486, %v387, 0
      %vm535 = vcmask 1043456
      %v536 = vsel %vm535, %v371, 0
      %v538 = vsel %vm535, %v485, 0
      %540 = vmatprep.subr.mxu0 0.0
      %541 = vmatpush1.msra.mxu0 0.0
      %542 = vmatprep.subr.mxu0 0.0
      %543 = vmatpush1.msra.mxu0 0.0
      %544 = vmatprep.subr.mxu0 0.0
      %545 = vmatpush1.msra.mxu0 0.0
      %546 = vmatprep.subr.mxu0 0.0
      %547 = vmatpush1.msra.mxu0 0.0
      %548 = vmatprep.subr.mxu0 0.0
      %549 = vmatpush1.msra.mxu0 0.0
      %550 = vmatprep.subr.mxu0 0.0
      %551 = vmatpush1.msra.mxu0 0.0
      %552 = vmatprep.subr.mxu0 0.0
      %553 = vmatpush1.msra.mxu0 0.0
      %554 = vmatprep.subr.mxu0 0.0
      %555 = vmatpush1.msra.mxu0 0.0
      %556 = vmatprep.subr.mxu0 0.0
      %557 = vmatpush1.msra.mxu0 0.0
      %558 = vmatprep.subr.mxu0 0.0
      %559 = vmatpush1.msra.mxu0 0.0
      %560 = vmatprep.subr.mxu0 0.0
      %561 = vmatpush1.msra.mxu0 0.0
      %562 = vmatprep.subr.mxu0 0.0
      %563 = vmatpush1.msra.mxu0 0.0
      %564 = vmatprep.subr.mxu0 0.0
      %565 = vmatpush1.msra.mxu0 0.0
      %566 = vmatprep.subr.mxu0 0.0
      %567 = vmatpush1.msra.mxu0 0.0
      %568 = vmatprep.subr.mxu0 0.0
      %569 = vmatpush1.msra.mxu0 0.0
      %570 = vmatprep.subr.mxu0 %v538
      %571 = vmatpush1.msra.mxu0 %v536
      %572 = vmatprep.subr.mxu0 0.0
      %573 = vmatpush2.msra.mxu0 0.0
      %574 = vmatprep.subr.mxu0 0.0
      %575 = vmatpush2.msra.mxu0 0.0
      %576 = vmatprep.subr.mxu0 0.0
      %577 = vmatpush2.msra.mxu0 0.0
      %578 = vmatprep.subr.mxu0 0.0
      %579 = vmatpush2.msra.mxu0 0.0
      %580 = vmatprep.subr.mxu0 0.0
      %581 = vmatpush2.msra.mxu0 0.0
      %582 = vmatprep.subr.mxu0 0.0
      %583 = vmatpush2.msra.mxu0 0.0
      %584 = vmatprep.subr.mxu0 0.0
      %585 = vmatpush2.msra.mxu0 0.0
      %586 = vmatprep.subr.mxu0 0.0
      %587 = vmatpush2.msra.mxu0 0.0
      %588 = vmatprep.subr.mxu0 0.0
      %589 = vmatpush2.msra.mxu0 0.0
      %590 = vmatprep.subr.mxu0 0.0
      %591 = vmatpush2.msra.mxu0 0.0
      %592 = vmatprep.subr.mxu0 0.0
      %593 = vmatpush2.msra.mxu0 0.0
      %594 = vmatprep.subr.mxu0 0.0
      %595 = vmatpush2.msra.mxu0 0.0
      %596 = vmatprep.subr.mxu0 0.0
      %597 = vmatpush2.msra.mxu0 0.0
      %598 = vmatprep.subr.mxu0 0.0
      %599 = vmatpush2.msra.mxu0 0.0
      %600 = vmatprep.subr.mxu0 0.0
      %601 = vmatpush2.msra.mxu0 0.0
      %602 = vmatprep.subr.mxu0 0.0
      %603 = vmatpush2.msra.mxu0 0.0
      %604 = vmatprep.mubr.f32.mxu0 0.0
      %605 = vmatmul.mubr.f32.gmra.mxu0 %v488
      %v606 = vpop.f32.mrf.mxu0
      %v607 = vadd.f32 %v407, %v606
      %v608 = vpop.f32.mrf.mxu0
      %v609 = vadd.f32 %v407, %v608
      %610 = vmatprep.mubr.f32.mxu0 0.0
      %611 = vmatmul.mubr.f32.gmra.mxu0 %v491
      %v612 = vpop.f32.mrf.mxu0
      %v613 = vadd.f32 %v412, %v612
      %v614 = vpop.f32.mrf.mxu0
      %v615 = vadd.f32 %v412, %v614
      %616 = vmatprep.mubr.f32.mxu0 0.0
      %617 = vmatmul.mubr.f32.gmra.mxu0 %v494
      %v618 = vpop.f32.mrf.mxu0
      %v619 = vadd.f32 %v417, %v618
      %v620 = vpop.f32.mrf.mxu0
      %v621 = vadd.f32 %v417, %v620
      %622 = vmatprep.mubr.f32.mxu0 0.0
      %623 = vmatmul.mubr.f32.gmra.mxu0 %v497
      %v624 = vpop.f32.mrf.mxu0
      %v625 = vadd.f32 %v422, %v624
      %v626 = vpop.f32.mrf.mxu0
      %v627 = vadd.f32 %v422, %v626
      %628 = vmatprep.mubr.f32.mxu0 0.0
      %629 = vmatmul.mubr.f32.gmra.mxu0 %v500
      %v630 = vpop.f32.mrf.mxu0
      %v631 = vadd.f32 %v427, %v630
      %v632 = vpop.f32.mrf.mxu0
      %v633 = vadd.f32 %v427, %v632
      %634 = vmatprep.mubr.f32.mxu0 0.0
      %635 = vmatmul.mubr.f32.gmra.mxu0 %v503
      %v636 = vpop.f32.mrf.mxu0
      %v637 = vadd.f32 %v432, %v636
      %v638 = vpop.f32.mrf.mxu0
      %v639 = vadd.f32 %v432, %v638
      %640 = vmatprep.mubr.f32.mxu0 0.0
      %641 = vmatmul.mubr.f32.gmra.mxu0 %v506
      %v642 = vpop.f32.mrf.mxu0
      %v643 = vadd.f32 %v437, %v642
      %v644 = vpop.f32.mrf.mxu0
      %v645 = vadd.f32 %v437, %v644
      %646 = vmatprep.mubr.f32.mxu0 0.0
      %647 = vmatmul.mubr.f32.gmra.mxu0 %v509
      %v648 = vpop.f32.mrf.mxu0
      %v649 = vadd.f32 %v442, %v648
      %v650 = vpop.f32.mrf.mxu0
      %v651 = vadd.f32 %v442, %v650
      %652 = vmatprep.mubr.f32.mxu0 0.0
      %653 = vmatmul.mubr.f32.gmra.mxu0 %v512
      %v654 = vpop.f32.mrf.mxu0
      %v655 = vadd.f32 %v447, %v654
      %v656 = vpop.f32.mrf.mxu0
      %v657 = vadd.f32 %v447, %v656
      %658 = vmatprep.mubr.f32.mxu0 0.0
      %659 = vmatmul.mubr.f32.gmra.mxu0 %v515
      %v660 = vpop.f32.mrf.mxu0
      %v661 = vadd.f32 %v452, %v660
      %v662 = vpop.f32.mrf.mxu0
      %v663 = vadd.f32 %v452, %v662
      %664 = vmatprep.mubr.f32.mxu0 0.0
      %665 = vmatmul.mubr.f32.gmra.mxu0 %v518
      %v666 = vpop.f32.mrf.mxu0
      %v667 = vadd.f32 %v457, %v666
      %v668 = vpop.f32.mrf.mxu0
      %v669 = vadd.f32 %v457, %v668
      %670 = vmatprep.mubr.f32.mxu0 0.0
      %671 = vmatmul.mubr.f32.gmra.mxu0 %v521
      %v672 = vpop.f32.mrf.mxu0
      %v673 = vadd.f32 %v462, %v672
      %v674 = vpop.f32.mrf.mxu0
      %v675 = vadd.f32 %v462, %v674
      %676 = vmatprep.mubr.f32.mxu0 0.0
      %677 = vmatmul.mubr.f32.gmra.mxu0 %v524
      %v678 = vpop.f32.mrf.mxu0
      %v679 = vadd.f32 %v467, %v678
      %v680 = vpop.f32.mrf.mxu0
      %v681 = vadd.f32 %v467, %v680
      %682 = vmatprep.mubr.f32.mxu0 0.0
      %683 = vmatmul.mubr.f32.gmra.mxu0 %v527
      %v684 = vpop.f32.mrf.mxu0
      %v685 = vadd.f32 %v472, %v684
      %v686 = vpop.f32.mrf.mxu0
      %v687 = vadd.f32 %v472, %v686
      %688 = vmatprep.mubr.f32.mxu0 0.0
      %689 = vmatmul.mubr.f32.gmra.mxu0 %v530
      %v690 = vpop.f32.mrf.mxu0
      %v691 = vadd.f32 %v477, %v690
      %v692 = vpop.f32.mrf.mxu0
      %v693 = vadd.f32 %v477, %v692
      %694 = vmatprep.mubr.f32.mxu0 0.0
      %695 = vmatmul.mubr.f32.gmra.mxu0 %v533
      %v696 = vpop.f32.mrf.mxu0
      %v697 = vadd.f32 %v482, %v696
      %v698 = vpop.f32.mrf.mxu0
      %v699 = vadd.f32 %v482, %v698
      %700 = vdwg.mxu0
      %v701 = vmax.f32 %v607, 0.0
      %v702 = vmax.f32 %v609, 0.0
      %v703 = vmax.f32 %v613, 0.0
      %v704 = vmax.f32 %v615, 0.0
      %v705 = vmax.f32 %v619, 0.0
      %v706 = vmax.f32 %v621, 0.0
      %v707 = vmax.f32 %v625, 0.0
      %v708 = vmax.f32 %v627, 0.0
      %v709 = vmax.f32 %v631, 0.0
      %v710 = vmax.f32 %v633, 0.0
      %v711 = vmax.f32 %v637, 0.0
      %v712 = vmax.f32 %v639, 0.0
      %v713 = vmax.f32 %v643, 0.0
      %v714 = vmax.f32 %v645, 0.0
      %v715 = vmax.f32 %v649, 0.0
      %v716 = vmax.f32 %v651, 0.0
      %v717 = vmax.f32 %v655, 0.0
      %v718 = vmax.f32 %v657, 0.0
      %v719 = vmax.f32 %v661, 0.0
      %v720 = vmax.f32 %v663, 0.0
      %v721 = vmax.f32 %v667, 0.0
      %v722 = vmax.f32 %v669, 0.0
      %v723 = vmax.f32 %v673, 0.0
      %v724 = vmax.f32 %v675, 0.0
      %v725 = vmax.f32 %v679, 0.0
      %v726 = vmax.f32 %v681, 0.0
      %v727 = vmax.f32 %v685, 0.0
      %v728 = vmax.f32 %v687, 0.0
      %v729 = vmax.f32 %v691, 0.0
      %v730 = vmax.f32 %v693, 0.0
      %v731 = vmax.f32 %v697, 0.0
      %v732 = vmax.f32 %v699, 0.0
      %v733 = vmul.f32 %v701, %v701
      %v734 = vmul.f32 %v702, %v702
      %v735 = vmul.f32 %v703, %v703
      %v736 = vmul.f32 %v704, %v704
      %v737 = vmul.f32 %v705, %v705
      %v738 = vmul.f32 %v706, %v706
      %v739 = vmul.f32 %v707, %v707
      %v740 = vmul.f32 %v708, %v708
      %v741 = vmul.f32 %v709, %v709
      %v742 = vmul.f32 %v710, %v710
      %v743 = vmul.f32 %v711, %v711
      %v744 = vmul.f32 %v712, %v712
      %v745 = vmul.f32 %v713, %v713
      %v746 = vmul.f32 %v714, %v714
      %v747 = vmul.f32 %v715, %v715
      %v748 = vmul.f32 %v716, %v716
      %v749 = vmul.f32 %v717, %v717
      %v750 = vmul.f32 %v718, %v718
      %v751 = vmul.f32 %v719, %v719
      %v752 = vmul.f32 %v720, %v720
      %v753 = vmul.f32 %v721, %v721
      %v754 = vmul.f32 %v722, %v722
      %v755 = vmul.f32 %v723, %v723
      %v756 = vmul.f32 %v724, %v724
      %v757 = vmul.f32 %v725, %v725
      %v758 = vmul.f32 %v726, %v726
      %v759 = vmul.f32 %v727, %v727
      %v760 = vmul.f32 %v728, %v728
      %v761 = vmul.f32 %v729, %v729
      %v762 = vmul.f32 %v730, %v730
      %v763 = vmul.f32 %v731, %v731
      %v764 = vmul.f32 %v732, %v732
      %v765 = vadd.f32 %v733, %v735
      %v766 = vadd.f32 %v765, %v737
      %v767 = vadd.f32 %v766, %v739
      %v768 = vadd.f32 %v767, %v741
      %v769 = vadd.f32 %v768, %v743
      %v770 = vadd.f32 %v769, %v745
      %v771 = vadd.f32 %v770, %v747
      %v772 = vadd.f32 %v771, %v749
      %v773 = vadd.f32 %v772, %v751
      %v774 = vadd.f32 %v773, %v753
      %v775 = vadd.f32 %v774, %v755
      %v776 = vadd.f32 %v775, %v757
      %v777 = vadd.f32 %v776, %v759
      %v778 = vadd.f32 %v777, %v761
      %v779 = vadd.f32 %v778, %v763
      %v780 = vrot.slane %v779, 4
      %v781 = vadd.f32 %v779, %v780
      %v782 = vrot.slane %v781, 2
      %v783 = vadd.f32 %v781, %v782
      %v784 = vrot.slane %v783, 1
      %v785 = vadd.f32 %v783, %v784
      %v786 = vadd.f32 %v734, %v736
      %v787 = vadd.f32 %v786, %v738
      %v788 = vadd.f32 %v787, %v740
      %v789 = vadd.f32 %v788, %v742
      %v790 = vadd.f32 %v789, %v744
      %v791 = vadd.f32 %v790, %v746
      %v792 = vadd.f32 %v791, %v748
      %v793 = vadd.f32 %v792, %v750
      %v794 = vadd.f32 %v793, %v752
      %v795 = vadd.f32 %v794, %v754
      %v796 = vadd.f32 %v795, %v756
      %v797 = vadd.f32 %v796, %v758
      %v798 = vadd.f32 %v797, %v760
      %v799 = vadd.f32 %v798, %v762
      %v800 = vadd.f32 %v799, %v764
      %v801 = vrot.slane %v800, 4
      %v802 = vadd.f32 %v800, %v801
      %v803 = vrot.slane %v802, 2
      %v804 = vadd.f32 %v802, %v803
      %v805 = vrot.slane %v804, 1
      %v806 = vadd.f32 %v804, %v805
      %v807 = vrsqrt.pop %v785
      %v808 = vmul.f32 %v785, %v807
      %vm809 = vcmp.eq.f32.partialorder %v785, inf
      %v810 = vsel %vm809, %v785, %v808
      %vm811 = vcmp.eq.f32.partialorder %v785, 0.0
      %v812 = vand.u32 %v785, 2147483648
      %v813 = vsel %vm811, %v812, %v810
      %v814 = vrsqrt.pop %v806
      %v815 = vmul.f32 %v806, %v814
      %vm816 = vcmp.eq.f32.partialorder %v806, inf
      %v817 = vsel %vm816, %v806, %v815
      %vm818 = vcmp.eq.f32.partialorder %v806, 0.0
      %v819 = vand.u32 %v806, 2147483648
      %v820 = vsel %vm818, %v819, %v817
      %v821 = vadd.f32 %v813, 1e-10
      %v822 = vadd.f32 %v820, 1e-10
      %v823 = vmul.f32 %v821, 16.0
      %v824 = vmul.f32 %v822, 16.0
      %v825 = vrcp.pop %v823
      %v826 = vmul.f32 1.0, %v825
      %v827 = vrcp.pop %v824
      %v828 = vmul.f32 1.0, %v827
      %v829 = vmul.f32 %v701, %v826
      %v830 = vmul.f32 %v702, %v828
      %v831 = vmul.f32 %v703, %v826
      %v832 = vmul.f32 %v704, %v828
      %v833 = vmul.f32 %v705, %v826
      %v834 = vmul.f32 %v706, %v828
      %v835 = vmul.f32 %v707, %v826
      %v836 = vmul.f32 %v708, %v828
      %v837 = vmul.f32 %v709, %v826
      %v838 = vmul.f32 %v710, %v828
      %v839 = vmul.f32 %v711, %v826
      %v840 = vmul.f32 %v712, %v828
      %v841 = vmul.f32 %v713, %v826
      %v842 = vmul.f32 %v714, %v828
      %v843 = vmul.f32 %v715, %v826
      %v844 = vmul.f32 %v716, %v828
      %v845 = vmul.f32 %v717, %v826
      %v846 = vmul.f32 %v718, %v828
      %v847 = vmul.f32 %v719, %v826
      %v848 = vmul.f32 %v720, %v828
      %v849 = vmul.f32 %v721, %v826
      %v850 = vmul.f32 %v722, %v828
      %v851 = vmul.f32 %v723, %v826
      %v852 = vmul.f32 %v724, %v828
      %v853 = vmul.f32 %v725, %v826
      %v854 = vmul.f32 %v726, %v828
      %v855 = vmul.f32 %v727, %v826
      %v856 = vmul.f32 %v728, %v828
      %v857 = vmul.f32 %v729, %v826
      %v858 = vmul.f32 %v730, %v828
      %v859 = vmul.f32 %v731, %v826
      %v860 = vmul.f32 %v732, %v828
      %v861 = vld [vmem:[%s340] sm:$0xff]
      %v862 = vld [vmem:[%s340 + $0x8] sm:$0xff]
      %v863 = vld [vmem:[%s340 + $0x10] sm:$0xff]
      %v864 = vld [vmem:[%s340 + $0x18] sm:$0xff]
      %v865 = vld [vmem:[%s340 + $0x20] sm:$0xff]
      %v866 = vld [vmem:[%s340 + $0x28] sm:$0xff]
      %v867 = vld [vmem:[%s340 + $0x30] sm:$0xff]
      %v868 = vld [vmem:[%s340 + $0x38] sm:$0xff]
      %v869 = vld [vmem:[%s340 + $0x40] sm:$0xff]
      %v870 = vld [vmem:[%s340 + $0x48] sm:$0xff]
      %v871 = vld [vmem:[%s340 + $0x50] sm:$0xff]
      %v872 = vld [vmem:[%s340 + $0x58] sm:$0xff]
      %v873 = vld [vmem:[%s340 + $0x60] sm:$0xff]
      %v874 = vld [vmem:[%s340 + $0x68] sm:$0xff]
      %v875 = vld [vmem:[%s340 + $0x70] sm:$0xff]
      %v876 = vld [vmem:[%s340 + $0x78] sm:$0xff]
      %v877 = vunpack.c.l.bf16 %v861
      %v878 = vunpack.c.h.bf16 %v861
      %v879 = vunpack.c.l.bf16 %v862
      %v880 = vunpack.c.h.bf16 %v862
      %v881 = vunpack.c.l.bf16 %v863
      %v882 = vunpack.c.h.bf16 %v863
      %v883 = vunpack.c.l.bf16 %v864
      %v884 = vunpack.c.h.bf16 %v864
      %v885 = vunpack.c.l.bf16 %v865
      %v886 = vunpack.c.h.bf16 %v865
      %v887 = vunpack.c.l.bf16 %v866
      %v888 = vunpack.c.h.bf16 %v866
      %v889 = vunpack.c.l.bf16 %v867
      %v890 = vunpack.c.h.bf16 %v867
      %v891 = vunpack.c.l.bf16 %v868
      %v892 = vunpack.c.h.bf16 %v868
      %v893 = vunpack.c.l.bf16 %v869
      %v894 = vunpack.c.h.bf16 %v869
      %v895 = vunpack.c.l.bf16 %v870
      %v896 = vunpack.c.h.bf16 %v870
      %v897 = vunpack.c.l.bf16 %v871
      %v898 = vunpack.c.h.bf16 %v871
      %v899 = vunpack.c.l.bf16 %v872
      %v900 = vunpack.c.h.bf16 %v872
      %v901 = vunpack.c.l.bf16 %v873
      %v902 = vunpack.c.h.bf16 %v873
      %v903 = vunpack.c.l.bf16 %v874
      %v904 = vunpack.c.h.bf16 %v874
      %v905 = vunpack.c.l.bf16 %v875
      %v906 = vunpack.c.h.bf16 %v875
      %v907 = vunpack.c.l.bf16 %v876
      %v908 = vunpack.c.h.bf16 %v876
      %v909 = vsub.f32 %v829, %v877
      %v910 = vsub.f32 %v830, %v878
      %v911 = vsub.f32 %v831, %v879
      %v912 = vsub.f32 %v832, %v880
      %v913 = vsub.f32 %v833, %v881
      %v914 = vsub.f32 %v834, %v882
      %v915 = vsub.f32 %v835, %v883
      %v916 = vsub.f32 %v836, %v884
      %v917 = vsub.f32 %v837, %v885
      %v918 = vsub.f32 %v838, %v886
      %v919 = vsub.f32 %v839, %v887
      %v920 = vsub.f32 %v840, %v888
      %v921 = vsub.f32 %v841, %v889
      %v922 = vsub.f32 %v842, %v890
      %v923 = vsub.f32 %v843, %v891
      %v924 = vsub.f32 %v844, %v892
      %v925 = vsub.f32 %v845, %v893
      %v926 = vsub.f32 %v846, %v894
      %v927 = vsub.f32 %v847, %v895
      %v928 = vsub.f32 %v848, %v896
      %v929 = vsub.f32 %v849, %v897
      %v930 = vsub.f32 %v850, %v898
      %v931 = vsub.f32 %v851, %v899
      %v932 = vsub.f32 %v852, %v900
      %v933 = vsub.f32 %v853, %v901
      %v934 = vsub.f32 %v854, %v902
      %v935 = vsub.f32 %v855, %v903
      %v936 = vsub.f32 %v856, %v904
      %v937 = vsub.f32 %v857, %v905
      %v938 = vsub.f32 %v858, %v906
      %v939 = vsub.f32 %v859, %v907
      %v940 = vsub.f32 %v860, %v908
      %v941 = vld [vmem:[%s347] sm:$0x1]
      %v942 = vmul.f32 %v909, %v909
      %v943 = vmul.f32 %v910, %v910
      %v944 = vmul.f32 %v911, %v911
      %v945 = vmul.f32 %v912, %v912
      %v946 = vmul.f32 %v913, %v913
      %v947 = vmul.f32 %v914, %v914
      %v948 = vmul.f32 %v915, %v915
      %v949 = vmul.f32 %v916, %v916
      %v950 = vmul.f32 %v917, %v917
      %v951 = vmul.f32 %v918, %v918
      %v952 = vmul.f32 %v919, %v919
      %v953 = vmul.f32 %v920, %v920
      %v954 = vmul.f32 %v921, %v921
      %v955 = vmul.f32 %v922, %v922
      %v956 = vmul.f32 %v923, %v923
      %v957 = vmul.f32 %v924, %v924
      %v958 = vmul.f32 %v925, %v925
      %v959 = vmul.f32 %v926, %v926
      %v960 = vmul.f32 %v927, %v927
      %v961 = vmul.f32 %v928, %v928
      %v962 = vmul.f32 %v929, %v929
      %v963 = vmul.f32 %v930, %v930
      %v964 = vmul.f32 %v931, %v931
      %v965 = vmul.f32 %v932, %v932
      %v966 = vmul.f32 %v933, %v933
      %v967 = vmul.f32 %v934, %v934
      %v968 = vmul.f32 %v935, %v935
      %v969 = vmul.f32 %v936, %v936
      %v970 = vmul.f32 %v937, %v937
      %v971 = vmul.f32 %v938, %v938
      %v972 = vmul.f32 %v939, %v939
      %v973 = vmul.f32 %v940, %v940
      %v974 = vadd.f32 %v942, %v943
      %975 = vadd.xlane.f32.xlu0 %v974
      %v976 = vpop.xlane.xlu0 %975
      %v977 = vadd.f32 %v944, %v945
      %978 = vadd.xlane.f32.xlu0 %v977
      %v979 = vpop.xlane.xlu0 %978
      %v980 = vadd.f32 %v946, %v947
      %981 = vadd.xlane.f32.xlu0 %v980
      %v982 = vpop.xlane.xlu0 %981
      %v983 = vadd.f32 %v948, %v949
      %984 = vadd.xlane.f32.xlu0 %v983
      %v985 = vpop.xlane.xlu0 %984
      %v986 = vadd.f32 %v950, %v951
      %987 = vadd.xlane.f32.xlu0 %v986
      %v988 = vpop.xlane.xlu0 %987
      %v989 = vadd.f32 %v952, %v953
      %990 = vadd.xlane.f32.xlu0 %v989
      %v991 = vpop.xlane.xlu0 %990
      %v992 = vadd.f32 %v954, %v955
      %993 = vadd.xlane.f32.xlu0 %v992
      %v994 = vpop.xlane.xlu0 %993
      %v995 = vadd.f32 %v956, %v957
      %996 = vadd.xlane.f32.xlu0 %v995
      %v997 = vpop.xlane.xlu0 %996
      %v998 = vadd.f32 %v958, %v959
      %999 = vadd.xlane.f32.xlu0 %v998
      %v1000 = vpop.xlane.xlu0 %999
      %v1001 = vadd.f32 %v960, %v961
      %1002 = vadd.xlane.f32.xlu0 %v1001
      %v1003 = vpop.xlane.xlu0 %1002
      %v1004 = vadd.f32 %v962, %v963
      %1005 = vadd.xlane.f32.xlu0 %v1004
      %v1006 = vpop.xlane.xlu0 %1005
      %v1007 = vadd.f32 %v964, %v965
      %1008 = vadd.xlane.f32.xlu0 %v1007
      %v1009 = vpop.xlane.xlu0 %1008
      %v1010 = vadd.f32 %v966, %v967
      %1011 = vadd.xlane.f32.xlu0 %v1010
      %v1012 = vpop.xlane.xlu0 %1011
      %v1013 = vadd.f32 %v968, %v969
      %1014 = vadd.xlane.f32.xlu0 %v1013
      %v1015 = vpop.xlane.xlu0 %1014
      %v1016 = vadd.f32 %v970, %v971
      %1017 = vadd.xlane.f32.xlu0 %v1016
      %v1018 = vpop.xlane.xlu0 %1017
      %v1019 = vadd.f32 %v972, %v973
      %1020 = vadd.xlane.f32.xlu0 %v1019
      %v1021 = vpop.xlane.xlu0 %1020
      %v1022 = vadd.f32 %v976, %v979
      %v1023 = vadd.f32 %v1022, %v982
      %v1024 = vadd.f32 %v1023, %v985
      %v1025 = vadd.f32 %v1024, %v988
      %v1026 = vadd.f32 %v1025, %v991
      %v1027 = vadd.f32 %v1026, %v994
      %v1028 = vadd.f32 %v1027, %v997
      %v1029 = vadd.f32 %v1028, %v1000
      %v1030 = vadd.f32 %v1029, %v1003
      %v1031 = vadd.f32 %v1030, %v1006
      %v1032 = vadd.f32 %v1031, %v1009
      %v1033 = vadd.f32 %v1032, %v1012
      %v1034 = vadd.f32 %v1033, %v1015
      %v1035 = vadd.f32 %v1034, %v1018
      %v1036 = vadd.f32 %v1035, %v1021
      %v1037 = vrot.slane %v1036, 4
      %v1038 = vadd.f32 %v1036, %v1037
      %v1039 = vrot.slane %v1038, 2
      %v1040 = vadd.f32 %v1038, %v1039
      %v1041 = vrot.slane %v1040, 1
      %v1042 = vadd.f32 %v1040, %v1041
      %v1043 = vadd.f32 %v941, %v1042
      %vm1044 = vcmask 0
      %1045 = vst.msk [vmem:[%s347] sm:$0x1] %vm1044, %v1043
      %v1046 = vld [vmem:[#allocation2] sm:$0xff]
      %v1047 = vld [vmem:[#allocation2 + $0x8] sm:$0xff]
      %v1048 = vld [vmem:[#allocation2 + $0x10] sm:$0xff]
      %v1049 = vld [vmem:[#allocation2 + $0x18] sm:$0xff]
      %v1050 = vld [vmem:[#allocation2 + $0x20] sm:$0xff]
      %v1051 = vld [vmem:[#allocation2 + $0x28] sm:$0xff]
      %v1052 = vld [vmem:[#allocation2 + $0x30] sm:$0xff]
      %v1053 = vld [vmem:[#allocation2 + $0x38] sm:$0xff]
      %v1054 = vld [vmem:[#allocation2 + $0x40] sm:$0xff]
      %v1055 = vld [vmem:[#allocation2 + $0x48] sm:$0xff]
      %v1056 = vld [vmem:[#allocation2 + $0x50] sm:$0xff]
      %v1057 = vld [vmem:[#allocation2 + $0x58] sm:$0xff]
      %v1058 = vld [vmem:[#allocation2 + $0x60] sm:$0xff]
      %v1059 = vld [vmem:[#allocation2 + $0x68] sm:$0xff]
      %v1060 = vld [vmem:[#allocation2 + $0x70] sm:$0xff]
      %v1061 = vld [vmem:[#allocation2 + $0x78] sm:$0xff]
      %v1062 = vadd.f32 %v701, %v702
      %1063 = vadd.xlane.f32.xlu0 %v1062
      %v1064 = vpop.xlane.xlu0 %1063
      %v1065 = vadd.f32 %v703, %v704
      %1066 = vadd.xlane.f32.xlu0 %v1065
      %v1067 = vpop.xlane.xlu0 %1066
      %v1068 = vadd.f32 %v705, %v706
      %1069 = vadd.xlane.f32.xlu0 %v1068
      %v1070 = vpop.xlane.xlu0 %1069
      %v1071 = vadd.f32 %v707, %v708
      %1072 = vadd.xlane.f32.xlu0 %v1071
      %v1073 = vpop.xlane.xlu0 %1072
      %v1074 = vadd.f32 %v709, %v710
      %1075 = vadd.xlane.f32.xlu0 %v1074
      %v1076 = vpop.xlane.xlu0 %1075
      %v1077 = vadd.f32 %v711, %v712
      %1078 = vadd.xlane.f32.xlu0 %v1077
      %v1079 = vpop.xlane.xlu0 %1078
      %v1080 = vadd.f32 %v713, %v714
      %1081 = vadd.xlane.f32.xlu0 %v1080
      %v1082 = vpop.xlane.xlu0 %1081
      %v1083 = vadd.f32 %v715, %v716
      %1084 = vadd.xlane.f32.xlu0 %v1083
      %v1085 = vpop.xlane.xlu0 %1084
      %v1086 = vadd.f32 %v717, %v718
      %1087 = vadd.xlane.f32.xlu0 %v1086
      %v1088 = vpop.xlane.xlu0 %1087
      %v1089 = vadd.f32 %v719, %v720
      %1090 = vadd.xlane.f32.xlu0 %v1089
      %v1091 = vpop.xlane.xlu0 %1090
      %v1092 = vadd.f32 %v721, %v722
      %1093 = vadd.xlane.f32.xlu0 %v1092
      %v1094 = vpop.xlane.xlu0 %1093
      %v1095 = vadd.f32 %v723, %v724
      %1096 = vadd.xlane.f32.xlu0 %v1095
      %v1097 = vpop.xlane.xlu0 %1096
      %v1098 = vadd.f32 %v725, %v726
      %1099 = vadd.xlane.f32.xlu0 %v1098
      %v1100 = vpop.xlane.xlu0 %1099
      %v1101 = vadd.f32 %v727, %v728
      %1102 = vadd.xlane.f32.xlu0 %v1101
      %v1103 = vpop.xlane.xlu0 %1102
      %v1104 = vadd.f32 %v729, %v730
      %1105 = vadd.xlane.f32.xlu0 %v1104
      %v1106 = vpop.xlane.xlu0 %1105
      %v1107 = vadd.f32 %v731, %v732
      %1108 = vadd.xlane.f32.xlu0 %v1107
      %v1109 = vpop.xlane.xlu0 %1108
      %v1110 = vadd.f32 %v1046, %v1064
      %v1111 = vadd.f32 %v1047, %v1067
      %v1112 = vadd.f32 %v1048, %v1070
      %v1113 = vadd.f32 %v1049, %v1073
      %v1114 = vadd.f32 %v1050, %v1076
      %v1115 = vadd.f32 %v1051, %v1079
      %v1116 = vadd.f32 %v1052, %v1082
      %v1117 = vadd.f32 %v1053, %v1085
      %v1118 = vadd.f32 %v1054, %v1088
      %v1119 = vadd.f32 %v1055, %v1091
      %v1120 = vadd.f32 %v1056, %v1094
      %v1121 = vadd.f32 %v1057, %v1097
      %v1122 = vadd.f32 %v1058, %v1100
      %v1123 = vadd.f32 %v1059, %v1103
      %v1124 = vadd.f32 %v1060, %v1106
      %v1125 = vadd.f32 %v1061, %v1109
      %vm1126 = vcmask 7168
      %1127 = vst.msk [vmem:[#allocation2] sm:$0xff] %vm1126, %v1110
      %1128 = vst.msk [vmem:[#allocation2 + $0x8] sm:$0xff] %vm1126, %v1111
      %1129 = vst.msk [vmem:[#allocation2 + $0x10] sm:$0xff] %vm1126, %v1112
      %1130 = vst.msk [vmem:[#allocation2 + $0x18] sm:$0xff] %vm1126, %v1113
      %1131 = vst.msk [vmem:[#allocation2 + $0x20] sm:$0xff] %vm1126, %v1114
      %1132 = vst.msk [vmem:[#allocation2 + $0x28] sm:$0xff] %vm1126, %v1115
      %1133 = vst.msk [vmem:[#allocation2 + $0x30] sm:$0xff] %vm1126, %v1116
      %1134 = vst.msk [vmem:[#allocation2 + $0x38] sm:$0xff] %vm1126, %v1117
      %1135 = vst.msk [vmem:[#allocation2 + $0x40] sm:$0xff] %vm1126, %v1118
      %1136 = vst.msk [vmem:[#allocation2 + $0x48] sm:$0xff] %vm1126, %v1119
      %1137 = vst.msk [vmem:[#allocation2 + $0x50] sm:$0xff] %vm1126, %v1120
      %1138 = vst.msk [vmem:[#allocation2 + $0x58] sm:$0xff] %vm1126, %v1121
      %1139 = vst.msk [vmem:[#allocation2 + $0x60] sm:$0xff] %vm1126, %v1122
      %1140 = vst.msk [vmem:[#allocation2 + $0x68] sm:$0xff] %vm1126, %v1123
      %1141 = vst.msk [vmem:[#allocation2 + $0x70] sm:$0xff] %vm1126, %v1124
      %1142 = vst.msk [vmem:[#allocation2 + $0x78] sm:$0xff] %vm1126, %v1125
      // Predicated region
      $region49: #{closed_call.53} parent=43 // pred_check
        %p1143 = pneg %p348
      $region50: #{closed_call.53} parent=43 // pred_check_branch
        %1145 = sbr.rel (%p1143) target = $region52
      $region51: #{closed_call.53} parent=43 // pred_region
        %v1146 = vld [vmem:[#allocation2] sm:$0xff]
        %v1147 = vld [vmem:[#allocation2 + $0x8] sm:$0xff]
        %v1148 = vld [vmem:[#allocation2 + $0x10] sm:$0xff]
        %v1149 = vld [vmem:[#allocation2 + $0x18] sm:$0xff]
        %v1150 = vld [vmem:[#allocation2 + $0x20] sm:$0xff]
        %v1151 = vld [vmem:[#allocation2 + $0x28] sm:$0xff]
        %v1152 = vld [vmem:[#allocation2 + $0x30] sm:$0xff]
        %v1153 = vld [vmem:[#allocation2 + $0x38] sm:$0xff]
        %v1154 = vld [vmem:[#allocation2 + $0x40] sm:$0xff]
        %v1155 = vld [vmem:[#allocation2 + $0x48] sm:$0xff]
        %v1156 = vld [vmem:[#allocation2 + $0x50] sm:$0xff]
        %v1157 = vld [vmem:[#allocation2 + $0x58] sm:$0xff]
        %v1158 = vld [vmem:[#allocation2 + $0x60] sm:$0xff]
        %v1159 = vld [vmem:[#allocation2 + $0x68] sm:$0xff]
        %v1160 = vld [vmem:[#allocation2 + $0x70] sm:$0xff]
        %v1161 = vld [vmem:[#allocation2 + $0x78] sm:$0xff]
        %v1162 = vmul.f32 %v1146, 0.00390625
        %v1163 = vmul.f32 %v1147, 0.00390625
        %v1164 = vmul.f32 %v1148, 0.00390625
        %v1165 = vmul.f32 %v1149, 0.00390625
        %v1166 = vmul.f32 %v1150, 0.00390625
        %v1167 = vmul.f32 %v1151, 0.00390625
        %v1168 = vmul.f32 %v1152, 0.00390625
        %v1169 = vmul.f32 %v1153, 0.00390625
        %v1170 = vmul.f32 %v1154, 0.00390625
        %v1171 = vmul.f32 %v1155, 0.00390625
        %v1172 = vmul.f32 %v1156, 0.00390625
        %v1173 = vmul.f32 %v1157, 0.00390625
        %v1174 = vmul.f32 %v1158, 0.00390625
        %v1175 = vmul.f32 %v1159, 0.00390625
        %v1176 = vmul.f32 %v1160, 0.00390625
        %v1177 = vmul.f32 %v1161, 0.00390625
        %v1178 = vld [vmem:[%s3] sm:$0xff]
        %v1179 = vld [vmem:[%s3 + $0x8] sm:$0xff]
        %v1180 = vld [vmem:[%s3 + $0x10] sm:$0xff]
        %v1181 = vld [vmem:[%s3 + $0x18] sm:$0xff]
        %v1182 = vld [vmem:[%s3 + $0x20] sm:$0xff]
        %v1183 = vld [vmem:[%s3 + $0x28] sm:$0xff]
        %v1184 = vld [vmem:[%s3 + $0x30] sm:$0xff]
        %v1185 = vld [vmem:[%s3 + $0x38] sm:$0xff]
        %v1186 = vld [vmem:[%s3 + $0x40] sm:$0xff]
        %v1187 = vld [vmem:[%s3 + $0x48] sm:$0xff]
        %v1188 = vld [vmem:[%s3 + $0x50] sm:$0xff]
        %v1189 = vld [vmem:[%s3 + $0x58] sm:$0xff]
        %v1190 = vld [vmem:[%s3 + $0x60] sm:$0xff]
        %v1191 = vld [vmem:[%s3 + $0x68] sm:$0xff]
        %v1192 = vld [vmem:[%s3 + $0x70] sm:$0xff]
        %v1193 = vld [vmem:[%s3 + $0x78] sm:$0xff]
        %1195 = vset.pattern.permute.xlu0 0
        %1196 = vperm.xlu0 %1195, %v1162
        %v1197 = vpop.permute.xlu0 %1196
        %1200 = vset.pattern.permute.xlu0 0
        %1201 = vperm.xlu0 %1200, %v1163
        %v1202 = vpop.permute.xlu0 %1201
        %1205 = vset.pattern.permute.xlu0 0
        %1206 = vperm.xlu0 %1205, %v1164
        %v1207 = vpop.permute.xlu0 %1206
        %1210 = vset.pattern.permute.xlu0 0
        %1211 = vperm.xlu0 %1210, %v1165
        %v1212 = vpop.permute.xlu0 %1211
        %1215 = vset.pattern.permute.xlu0 0
        %1216 = vperm.xlu0 %1215, %v1166
        %v1217 = vpop.permute.xlu0 %1216
        %1220 = vset.pattern.permute.xlu0 0
        %1221 = vperm.xlu0 %1220, %v1167
        %v1222 = vpop.permute.xlu0 %1221
        %1225 = vset.pattern.permute.xlu0 0
        %1226 = vperm.xlu0 %1225, %v1168
        %v1227 = vpop.permute.xlu0 %1226
        %1230 = vset.pattern.permute.xlu0 0
        %1231 = vperm.xlu0 %1230, %v1169
        %v1232 = vpop.permute.xlu0 %1231
        %1235 = vset.pattern.permute.xlu0 0
        %1236 = vperm.xlu0 %1235, %v1170
        %v1237 = vpop.permute.xlu0 %1236
        %1240 = vset.pattern.permute.xlu0 0
        %1241 = vperm.xlu0 %1240, %v1171
        %v1242 = vpop.permute.xlu0 %1241
        %1245 = vset.pattern.permute.xlu0 0
        %1246 = vperm.xlu0 %1245, %v1172
        %v1247 = vpop.permute.xlu0 %1246
        %1250 = vset.pattern.permute.xlu0 0
        %1251 = vperm.xlu0 %1250, %v1173
        %v1252 = vpop.permute.xlu0 %1251
        %1255 = vset.pattern.permute.xlu0 0
        %1256 = vperm.xlu0 %1255, %v1174
        %v1257 = vpop.permute.xlu0 %1256
        %1260 = vset.pattern.permute.xlu0 0
        %1261 = vperm.xlu0 %1260, %v1175
        %v1262 = vpop.permute.xlu0 %1261
        %1265 = vset.pattern.permute.xlu0 0
        %1266 = vperm.xlu0 %1265, %v1176
        %v1267 = vpop.permute.xlu0 %1266
        %1270 = vset.pattern.permute.xlu0 0
        %1271 = vperm.xlu0 %1270, %v1177
        %v1272 = vpop.permute.xlu0 %1271
        %v1274 = vmul.f32 %v1197, %v1178
        %v1275 = vmul.f32 %v1202, %v1179
        %v1276 = vmul.f32 %v1207, %v1180
        %v1277 = vmul.f32 %v1212, %v1181
        %v1278 = vmul.f32 %v1217, %v1182
        %v1279 = vmul.f32 %v1222, %v1183
        %v1280 = vmul.f32 %v1227, %v1184
        %v1281 = vmul.f32 %v1232, %v1185
        %v1282 = vmul.f32 %v1237, %v1186
        %v1283 = vmul.f32 %v1242, %v1187
        %v1284 = vmul.f32 %v1247, %v1188
        %v1285 = vmul.f32 %v1252, %v1189
        %v1286 = vmul.f32 %v1257, %v1190
        %v1287 = vmul.f32 %v1262, %v1191
        %v1288 = vmul.f32 %v1267, %v1192
        %v1289 = vmul.f32 %v1272, %v1193
        %v1290 = vadd.f32 %v1274, %v1275
        %v1291 = vadd.f32 %v1290, %v1276
        %v1292 = vadd.f32 %v1291, %v1277
        %v1293 = vadd.f32 %v1292, %v1278
        %v1294 = vadd.f32 %v1293, %v1279
        %v1295 = vadd.f32 %v1294, %v1280
        %v1296 = vadd.f32 %v1295, %v1281
        %v1297 = vadd.f32 %v1296, %v1282
        %v1298 = vadd.f32 %v1297, %v1283
        %v1299 = vadd.f32 %v1298, %v1284
        %v1300 = vadd.f32 %v1299, %v1285
        %v1301 = vadd.f32 %v1300, %v1286
        %v1302 = vadd.f32 %v1301, %v1287
        %v1303 = vadd.f32 %v1302, %v1288
        %v1304 = vadd.f32 %v1303, %v1289
        %v1305 = vrot.slane %v1304, 4
        %v1306 = vadd.f32 %v1304, %v1305
        %v1307 = vrot.slane %v1306, 2
        %v1308 = vadd.f32 %v1306, %v1307
        %v1309 = vrot.slane %v1308, 1
        %v1310 = vadd.f32 %v1308, %v1309
        %v1311 = vld [vmem:[%s4] sm:$0x1]
        %v1312 = vadd.f32 %v1310, %v1311
        %1313 = vst [vmem:[%s344] sm:$0x1] %v1312
      $region52: #{closed_call.53} parent=43 // pred_fallthru
        _
      %p1314 = scmp.lt.s32.totalorder %s23, 1
      %s1315 = scalar_select %p1314, %s23, 1
      %s1316 = scalar_lea.vmem %s6, %s1315
      %p1317 = scmp.lt.s32.totalorder %s23, 1
      %s1318 = scalar_select %p1317, %s23, 1
      %s1319 = scalar_lea.vmem %s7, %s1318
      // Predicated region
      $region53: #{closed_call.53} parent=43 // pred_check
        %p1320 = pneg %p189
      $region54: #{closed_call.53} parent=43 // pred_check_branch
        %1322 = sbr.rel (%p1320) target = $region56
      $region55: #{closed_call.53} parent=43 // pred_region
        _
      $region56: #{closed_call.53} parent=43 // pred_fallthru
        _
      // Predicated region
      $region57: #{closed_call.53} parent=43 // pred_check
        %p1323 = pneg %p215
      $region58: #{closed_call.53} parent=43 // pred_check_branch
        %1325 = sbr.rel (%p1323) target = $region60
      $region59: #{closed_call.53} parent=43 // pred_region
        _
      $region60: #{closed_call.53} parent=43 // pred_fallthru
        _
    $region44: #{closed_call.53} parent=5 // pred_fallthru
      _
    %p1326 = scmp.le.s32.totalorder 2, %s14
    // Predicated region
    $region61: #{closed_call.53} parent=5 // pred_check
      %p1327 = pneg %p1326
    $region62: #{closed_call.53} parent=5 // pred_check_branch
      %1329 = sbr.rel (%p1327) target = $region64
    $region63: #{closed_call.53} parent=5 // pred_region
      %s1330 = ssub.s32 %s14, 2
      // Predicated region
      $region65: #{closed_call.53} parent=63 // pred_check
        %p1331 = pneg %p195
      $region66: #{closed_call.53} parent=63 // pred_check_branch
        %1333 = sbr.rel (%p1331) target = $region68
      $region67: #{closed_call.53} parent=63 // pred_region
        %p1334 = scmp.lt.s32.totalorder %s25, 1
        %s1335 = scalar_select %p1334, %s25, 1
        %s1336 = scalar_lea.vmem %s6, %s1335
      $region68: #{closed_call.53} parent=63 // pred_fallthru
        _
      // Predicated region
      $region69: #{closed_call.53} parent=63 // pred_check
        %p1337 = pneg %p221
      $region70: #{closed_call.53} parent=63 // pred_check_branch
        %1339 = sbr.rel (%p1337) target = $region72
      $region71: #{closed_call.53} parent=63 // pred_region
        %p1340 = scmp.lt.s32.totalorder %s25, 1
        %s1341 = scalar_select %p1340, %s25, 1
        %s1342 = scalar_lea.vmem %s7, %s1341
      $region72: #{closed_call.53} parent=63 // pred_fallthru
        _
    $region64: #{closed_call.53} parent=5 // pred_fallthru
      _
  $region6: #{closed_call.53} parent=0 // loop_footer
    %s18 = sadd.s32 1, %s14
  $region7: #{closed_call.53} parent=0 // loop_footer_branch
    %13 = sbr.rel target = $region3
  $region8: #{closed_call.53} parent=0 // loop_exit
    _

// kernel: closed_call.55
$region0: #{closed_call.55}
  #allocation0 [shape = 'u32[]', space=smem, size = 0x4, offset = 0x4, fixed_abs, tag = 'smem constant byte address 0x4 - core index']
  #allocation1 [shape = 'u32[144,128]{1,0:T(1,128)}', space=vmem, size = 0x12000, scoped, tag = 'internal scratch']
  %s0 = inlined_call_operand.vmem [shape: f32[2,4,256], index: 0, kind: input, shape index: {}]
  %s1 = inlined_call_operand.vmem [shape: f32[2,4,256], index: 1, kind: input, shape index: {}]
  %s2 = inlined_call_operand.vmem [shape: f32[128,4], index: 2, kind: input, shape index: {}]
  %s3 = inlined_call_operand.vmem [shape: f32[128,1], index: 3, kind: input, shape index: {}]
  %s4 = inlined_call_operand.vmem [shape: f32[2,1,1], index: 4, kind: output, shape index: {}]
  %s5 = sld [smem:[#allocation0]]
  $region53: #{closed_call.55} parent=0
    _
  %s7 = ssub.s32 1, %s5
  %s8 = scalar_select 0, %s7, %s5
  loop: start=0, step=1, limit=4
  $region2: #{closed_call.55} parent=0 // loop_pre_header
    _
  $region3: #{closed_call.55} parent=0 // loop_header
    %s10 = sphi 0, %s14
    %p11 = scmp.ge.s32.totalorder %s10, 4
    %s17 = sphi 0, %s29
    %s18 = sphi 0, %s25
    %s19 = sphi 0, %s17
    %s20 = sphi 0, %s18
    %s21 = sphi 0, %s19
    %s22 = sphi 0, %s20
    %s34 = sphi 0, %s36
    %s37 = sphi 0, %s34
    %s38 = sphi 0, %s37
    %s54 = sphi 0, %s38
    %s62 = sphi 0, %s64
    %s65 = sphi 0, %s62
    %s66 = sphi 0, %s65
    %s82 = sphi 0, %s66
    %s86 = sphi 0, %s86
    %s88 = sphi 0, %s86
    %s89 = sphi 0, %s88
    %s103 = sphi 0, %s89
    %s107 = sphi 0, %s107
    %s109 = sphi 0, %s107
    %s110 = sphi 0, %s109
    %s124 = sphi 0, %s110
    %s130 = sphi 0, %s132
    %s133 = sphi 0, %s130
    %s134 = sphi 0, %s133
    %s150 = sphi 0, %s134
  $region4: #{closed_call.55} parent=0 // loop_header_branch
    %13 = sbr.rel (%p11) target = $region8
  $region5: #{closed_call.55} parent=0 // loop_body
    %s15 = ssub.s32 %s10, 1
    %s16 = ssub.s32 %s10, 2
    %s23 = sadd.s32 1, %s18
    %p24 = scmp.ge.s32.totalorder %s23, 1
    %s25 = scalar_select %p24, 0, %s23
    %s26 = sadd.s32 1, %s17
    %s27 = scalar_select %p24, %s26, %s17
    %p28 = scmp.ge.s32.totalorder %s27, 2
    %s29 = scalar_select %p28, 0, %s27
    %s30 = ssub.s32 %s17, %s29
    %s31 = ssub.s32 %s18, %s25
    %s32 = sor.u32 %s30, %s31
    %p33 = scmp.eq.s32.totalorder %s32, 0
    %s35 = sadd.s32 %s34, 1
    %s36 = scalar_select %p33, %s34, %s35
    %p39 = pneg %p33
    %p40 = scmp.eq.s32.totalorder %s10, 1
    %p41 = por %p39, %p40
    %p42 = scmp.ne.s32.totalorder %s34, %s37
    %p43 = scmp.eq.s32.totalorder %s10, 0
    %p44 = por %p42, %p43
    %p45 = scmp.ne.s32.totalorder %s34, %s37
    %p46 = scmp.eq.s32.totalorder %s15, 1
    %p47 = por %p45, %p46
    %p48 = scmp.ne.s32.totalorder %s37, %s38
    %p49 = scmp.eq.s32.totalorder %s15, 0
    %p50 = por %p48, %p49
    %p51 = scmp.ne.s32.totalorder %s37, %s38
    %p52 = scmp.eq.s32.totalorder %s16, 1
    %p53 = por %p51, %p52
    %p55 = scmp.ne.s32.totalorder %s38, %s54
    %p56 = scmp.eq.s32.totalorder %s16, 0
    %p57 = por %p55, %p56
    %s58 = ssub.s32 %s17, %s29
    %s59 = ssub.s32 %s18, %s25
    %s60 = sor.u32 %s58, %s59
    %p61 = scmp.eq.s32.totalorder %s60, 0
    %s63 = sadd.s32 %s62, 1
    %s64 = scalar_select %p61, %s62, %s63
    %p67 = pneg %p61
    %p68 = scmp.eq.s32.totalorder %s10, 1
    %p69 = por %p67, %p68
    %p70 = scmp.ne.s32.totalorder %s62, %s65
    %p71 = scmp.eq.s32.totalorder %s10, 0
    %p72 = por %p70, %p71
    %p73 = scmp.ne.s32.totalorder %s62, %s65
    %p74 = scmp.eq.s32.totalorder %s15, 1
    %p75 = por %p73, %p74
    %p76 = scmp.ne.s32.totalorder %s65, %s66
    %p77 = scmp.eq.s32.totalorder %s15, 0
    %p78 = por %p76, %p77
    %p79 = scmp.ne.s32.totalorder %s65, %s66
    %p80 = scmp.eq.s32.totalorder %s16, 1
    %p81 = por %p79, %p80
    %p83 = scmp.ne.s32.totalorder %s66, %s82
    %p84 = scmp.eq.s32.totalorder %s16, 0
    %p85 = por %p83, %p84
    %s87 = sadd.s32 %s86, 1
    %p90 = scmp.eq.s32.totalorder %s10, 1
    %p91 = scmp.ne.s32.totalorder %s86, %s88
    %p92 = scmp.eq.s32.totalorder %s10, 0
    %p93 = por %p91, %p92
    %p94 = scmp.ne.s32.totalorder %s86, %s88
    %p95 = scmp.eq.s32.totalorder %s15, 1
    %p96 = por %p94, %p95
    %p97 = scmp.ne.s32.totalorder %s88, %s89
    %p98 = scmp.eq.s32.totalorder %s15, 0
    %p99 = por %p97, %p98
    %p100 = scmp.ne.s32.totalorder %s88, %s89
    %p101 = scmp.eq.s32.totalorder %s16, 1
    %p102 = por %p100, %p101
    %p104 = scmp.ne.s32.totalorder %s89, %s103
    %p105 = scmp.eq.s32.totalorder %s16, 0
    %p106 = por %p104, %p105
    %s108 = sadd.s32 %s107, 1
    %p111 = scmp.eq.s32.totalorder %s10, 1
    %p112 = scmp.ne.s32.totalorder %s107, %s109
    %p113 = scmp.eq.s32.totalorder %s10, 0
    %p114 = por %p112, %p113
    %p115 = scmp.ne.s32.totalorder %s107, %s109
    %p116 = scmp.eq.s32.totalorder %s15, 1
    %p117 = por %p115, %p116
    %p118 = scmp.ne.s32.totalorder %s109, %s110
    %p119 = scmp.eq.s32.totalorder %s15, 0
    %p120 = por %p118, %p119
    %p121 = scmp.ne.s32.totalorder %s109, %s110
    %p122 = scmp.eq.s32.totalorder %s16, 1
    %p123 = por %p121, %p122
    %p125 = scmp.ne.s32.totalorder %s110, %s124
    %p126 = scmp.eq.s32.totalorder %s16, 0
    %p127 = por %p125, %p126
    %s128 = ssub.s32 %s17, %s29
    %p129 = scmp.eq.s32.totalorder %s128, 0
    %s131 = sadd.s32 %s130, 1
    %s132 = scalar_select %p129, %s130, %s131
    %p135 = pneg %p129
    %p136 = scmp.eq.s32.totalorder %s10, 1
    %p137 = por %p135, %p136
    %p138 = scmp.ne.s32.totalorder %s130, %s133
    %p139 = scmp.eq.s32.totalorder %s10, 0
    %p140 = por %p138, %p139
    %p141 = scmp.ne.s32.totalorder %s130, %s133
    %p142 = scmp.eq.s32.totalorder %s15, 1
    %p143 = por %p141, %p142
    %p144 = scmp.ne.s32.totalorder %s133, %s134
    %p145 = scmp.eq.s32.totalorder %s15, 0
    %p146 = por %p144, %p145
    %p147 = scmp.ne.s32.totalorder %s133, %s134
    %p148 = scmp.eq.s32.totalorder %s16, 1
    %p149 = por %p147, %p148
    %p151 = scmp.ne.s32.totalorder %s134, %s150
    %p152 = scmp.eq.s32.totalorder %s16, 0
    %p153 = por %p151, %p152
    %p154 = scmp.le.s32.totalorder 1, %s10
    %p155 = scmp.lt.s32.totalorder %s10, 3
    %p156 = pnand %p154, %p155
    %p157 = pneg %p156
    // Predicated region
    $region9: #{closed_call.55} parent=5 // pred_check
      _
    $region10: #{closed_call.55} parent=5 // pred_check_branch
      %159 = sbr.rel (%p156) target = $region12
    $region11: #{closed_call.55} parent=5 // pred_region
      %s160 = ssub.s32 %s10, 1
      // Predicated region
      $region13: #{closed_call.55} parent=11 // pred_check
        %p161 = pneg %p99
      $region14: #{closed_call.55} parent=11 // pred_check_branch
        %163 = sbr.rel (%p161) target = $region16
      $region15: #{closed_call.55} parent=11 // pred_region
        _
      $region16: #{closed_call.55} parent=11 // pred_fallthru
        _
      // Predicated region
      $region17: #{closed_call.55} parent=11 // pred_check
        %p164 = pneg %p120
      $region18: #{closed_call.55} parent=11 // pred_check_branch
        %166 = sbr.rel (%p164) target = $region20
      $region19: #{closed_call.55} parent=11 // pred_region
        _
      $region20: #{closed_call.55} parent=11 // pred_fallthru
        _
    $region12: #{closed_call.55} parent=5 // pred_fallthru
      _
    %p167 = scmp.lt.s32.totalorder %s10, 2
    // Predicated region
    $region21: #{closed_call.55} parent=5 // pred_check
      %p168 = pneg %p167
    $region22: #{closed_call.55} parent=5 // pred_check_branch
      %170 = sbr.rel (%p168) target = $region24
    $region23: #{closed_call.55} parent=5 // pred_region
      // Predicated region
      $region25: #{closed_call.55} parent=23 // pred_check
        %p171 = pneg %p44
      $region26: #{closed_call.55} parent=23 // pred_check_branch
        %173 = sbr.rel (%p171) target = $region28
      $region27: #{closed_call.55} parent=23 // pred_region
        %s174 = smul.u32 2, %s18
        %p175 = scmp.lt.s32.totalorder %s17, 1
        %s176 = scalar_select %p175, %s17, 1
        %p177 = scmp.lt.s32.totalorder %s174, 1
        %s178 = scalar_select %p177, %s174, 1
        %s179 = smul.addr %s176, 2
        %s180 = sadd.s32 %s178, %s179
        %s181 = smul.addr %s180, 4
        %s182 = scalar_lea.vmem %s0, %s181
        %s183 = smul.u32 2, %s18
      $region28: #{closed_call.55} parent=23 // pred_fallthru
        _
      // Predicated region
      $region29: #{closed_call.55} parent=23 // pred_check
        %p184 = pneg %p72
      $region30: #{closed_call.55} parent=23 // pred_check_branch
        %186 = sbr.rel (%p184) target = $region32
      $region31: #{closed_call.55} parent=23 // pred_region
        %s187 = smul.u32 2, %s18
        %p188 = scmp.lt.s32.totalorder %s17, 1
        %s189 = scalar_select %p188, %s17, 1
        %p190 = scmp.lt.s32.totalorder %s187, 1
        %s191 = scalar_select %p190, %s187, 1
        %s192 = smul.addr %s189, 2
        %s193 = sadd.s32 %s191, %s192
        %s194 = smul.addr %s193, 4
        %s195 = scalar_lea.vmem %s1, %s194
        %s196 = smul.u32 2, %s18
      $region32: #{closed_call.55} parent=23 // pred_fallthru
        _
    $region24: #{closed_call.55} parent=5 // pred_fallthru
      _
    %p197 = scmp.le.s32.totalorder 1, %s10
    %p198 = scmp.lt.s32.totalorder %s10, 3
    %p199 = pnand %p197, %p198
    %p200 = pneg %p199
    // Predicated region
    $region33: #{closed_call.55} parent=5 // pred_check
      _
    $region34: #{closed_call.55} parent=5 // pred_check_branch
      %202 = sbr.rel (%p199) target = $region36
    $region35: #{closed_call.55} parent=5 // pred_region
      %s203 = ssub.s32 %s10, 1
      %s204 = smul.u32 2, %s20
      %p205 = scmp.lt.s32.totalorder %s19, 1
      %s206 = scalar_select %p205, %s19, 1
      %p207 = scmp.lt.s32.totalorder %s204, 1
      %s208 = scalar_select %p207, %s204, 1
      %s209 = smul.addr %s206, 2
      %s210 = sadd.s32 %s208, %s209
      %s211 = smul.addr %s210, 4
      %s212 = scalar_lea.vmem %s0, %s211
      %p213 = pneg %p50
      %p214 = pneg %p47
      %s215 = smul.u32 2, %s20
      %p216 = scmp.lt.s32.totalorder %s19, 1
      %s217 = scalar_select %p216, %s19, 1
      %p218 = scmp.lt.s32.totalorder %s215, 1
      %s219 = scalar_select %p218, %s215, 1
      %s220 = smul.addr %s217, 2
      %s221 = sadd.s32 %s219, %s220
      %s222 = smul.addr %s221, 4
      %s223 = scalar_lea.vmem %s1, %s222
      %p224 = pneg %p78
      %p225 = pneg %p75
      %p226 = pneg %p99
      %p227 = pneg %p96
      %p228 = pneg %p120
      %p229 = pneg %p117
      %p230 = pneg %p146
      %p231 = pneg %p143
      %p232 = scmp.lt.s32.totalorder %s19, 1
      %s233 = scalar_select %p232, %s19, 1
      %s234 = scalar_lea.vmem %s4, %s233
      %s235 = smul.u32 2, %s20
      %p236 = scmp.lt.s32.totalorder %s19, 1
      %s237 = scalar_select %p236, %s19, 1
      %p238 = scmp.lt.s32.totalorder %s235, 1
      %s239 = scalar_select %p238, %s235, 1
      %s240 = smul.addr %s237, 2
      %s241 = sadd.s32 %s239, %s240
      %s242 = smul.addr %s241, 4
      %s243 = scalar_lea.vmem %s0, %s242
      %s244 = smul.u32 2, %s20
      %s245 = smul.u32 2, %s20
      %p246 = scmp.lt.s32.totalorder %s19, 1
      %s247 = scalar_select %p246, %s19, 1
      %p248 = scmp.lt.s32.totalorder %s245, 1
      %s249 = scalar_select %p248, %s245, 1
      %s250 = smul.addr %s247, 2
      %s251 = sadd.s32 %s249, %s250
      %s252 = smul.addr %s251, 4
      %s253 = scalar_lea.vmem %s1, %s252
      %s254 = smul.u32 2, %s20
      %p255 = scmp.lt.s32.totalorder %s19, 1
      %s256 = scalar_select %p255, %s19, 1
      %s257 = scalar_lea.vmem %s4, %s256
      %p258 = scmp.eq.s32.totalorder %s20, 0
      // Predicated region
      $region37: #{closed_call.55} parent=35 // pred_check
        %p259 = pneg %p258
      $region38: #{closed_call.55} parent=35 // pred_check_branch
        %261 = sbr.rel (%p259) target = $region40
      $region39: #{closed_call.55} parent=35 // pred_region
        %vm262 = vcmask 0
        %263 = vst.msk [vmem:[%s257] sm:$0x1] %vm262, 0.0
      $region40: #{closed_call.55} parent=35 // pred_fallthru
        _
      %v264 = vld [vmem:[%s243] sm:$0xff]
      %v265 = vld [vmem:[%s2] sm:$0xff]
      %v266 = vld [vmem:[%s2 + $0x8] sm:$0xff]
      %v267 = vld [vmem:[%s2 + $0x10] sm:$0xff]
      %v268 = vld [vmem:[%s2 + $0x18] sm:$0xff]
      %v269 = vld [vmem:[%s2 + $0x20] sm:$0xff]
      %v270 = vld [vmem:[%s2 + $0x28] sm:$0xff]
      %v271 = vld [vmem:[%s2 + $0x30] sm:$0xff]
      %v272 = vld [vmem:[%s2 + $0x38] sm:$0xff]
      %v273 = vld [vmem:[%s2 + $0x40] sm:$0xff]
      %v274 = vld [vmem:[%s2 + $0x48] sm:$0xff]
      %v275 = vld [vmem:[%s2 + $0x50] sm:$0xff]
      %v276 = vld [vmem:[%s2 + $0x58] sm:$0xff]
      %v277 = vld [vmem:[%s2 + $0x60] sm:$0xff]
      %v278 = vld [vmem:[%s2 + $0x68] sm:$0xff]
      %v279 = vld [vmem:[%s2 + $0x70] sm:$0xff]
      %v280 = vld [vmem:[%s2 + $0x78] sm:$0xff]
      %v281 = vld [vmem:[%s3] sm:$0xff]
      %v282 = vld [vmem:[%s3 + $0x8] sm:$0xff]
      %v283 = vld [vmem:[%s3 + $0x10] sm:$0xff]
      %v284 = vld [vmem:[%s3 + $0x18] sm:$0xff]
      %v285 = vld [vmem:[%s3 + $0x20] sm:$0xff]
      %v286 = vld [vmem:[%s3 + $0x28] sm:$0xff]
      %v287 = vld [vmem:[%s3 + $0x30] sm:$0xff]
      %v288 = vld [vmem:[%s3 + $0x38] sm:$0xff]
      %v289 = vld [vmem:[%s3 + $0x40] sm:$0xff]
      %v290 = vld [vmem:[%s3 + $0x48] sm:$0xff]
      %v291 = vld [vmem:[%s3 + $0x50] sm:$0xff]
      %v292 = vld [vmem:[%s3 + $0x58] sm:$0xff]
      %v293 = vld [vmem:[%s3 + $0x60] sm:$0xff]
      %v294 = vld [vmem:[%s3 + $0x68] sm:$0xff]
      %v295 = vld [vmem:[%s3 + $0x70] sm:$0xff]
      %v296 = vld [vmem:[%s3 + $0x78] sm:$0xff]
      %298 = vset.pattern.permute.xlu0 0
      %299 = vperm.xlu0 %298, %v281
      %v300 = vpop.permute.xlu0 %299
      %303 = vset.pattern.permute.xlu0 0
      %304 = vperm.xlu0 %303, %v282
      %v305 = vpop.permute.xlu0 %304
      %308 = vset.pattern.permute.xlu0 0
      %309 = vperm.xlu0 %308, %v283
      %v310 = vpop.permute.xlu0 %309
      %313 = vset.pattern.permute.xlu0 0
      %314 = vperm.xlu0 %313, %v284
      %v315 = vpop.permute.xlu0 %314
      %318 = vset.pattern.permute.xlu0 0
      %319 = vperm.xlu0 %318, %v285
      %v320 = vpop.permute.xlu0 %319
      %323 = vset.pattern.permute.xlu0 0
      %324 = vperm.xlu0 %323, %v286
      %v325 = vpop.permute.xlu0 %324
      %328 = vset.pattern.permute.xlu0 0
      %329 = vperm.xlu0 %328, %v287
      %v330 = vpop.permute.xlu0 %329
      %333 = vset.pattern.permute.xlu0 0
      %334 = vperm.xlu0 %333, %v288
      %v335 = vpop.permute.xlu0 %334
      %338 = vset.pattern.permute.xlu0 0
      %339 = vperm.xlu0 %338, %v289
      %v340 = vpop.permute.xlu0 %339
      %343 = vset.pattern.permute.xlu0 0
      %344 = vperm.xlu0 %343, %v290
      %v345 = vpop.permute.xlu0 %344
      %348 = vset.pattern.permute.xlu0 0
      %349 = vperm.xlu0 %348, %v291
      %v350 = vpop.permute.xlu0 %349
      %353 = vset.pattern.permute.xlu0 0
      %354 = vperm.xlu0 %353, %v292
      %v355 = vpop.permute.xlu0 %354
      %358 = vset.pattern.permute.xlu0 0
      %359 = vperm.xlu0 %358, %v293
      %v360 = vpop.permute.xlu0 %359
      %363 = vset.pattern.permute.xlu0 0
      %364 = vperm.xlu0 %363, %v294
      %v365 = vpop.permute.xlu0 %364
      %368 = vset.pattern.permute.xlu0 0
      %369 = vperm.xlu0 %368, %v295
      %v370 = vpop.permute.xlu0 %369
      %373 = vset.pattern.permute.xlu0 0
      %374 = vperm.xlu0 %373, %v296
      %v375 = vpop.permute.xlu0 %374
      %v378 = vcombine.high %v264, %v264
      %vm379 = vcmask 31744
      %v381 = vsel %vm379, %v265, 0
      %v384 = vsel %vm379, %v266, 0
      %v387 = vsel %vm379, %v267, 0
      %v390 = vsel %vm379, %v268, 0
      %v393 = vsel %vm379, %v269, 0
      %v396 = vsel %vm379, %v270, 0
      %v399 = vsel %vm379, %v271, 0
      %v402 = vsel %vm379, %v272, 0
      %v405 = vsel %vm379, %v273, 0
      %v408 = vsel %vm379, %v274, 0
      %v411 = vsel %vm379, %v275, 0
      %v414 = vsel %vm379, %v276, 0
      %v417 = vsel %vm379, %v277, 0
      %v420 = vsel %vm379, %v278, 0
      %v423 = vsel %vm379, %v279, 0
      %v426 = vsel %vm379, %v280, 0
      %vm428 = vcmask 1043456
      %v429 = vsel %vm428, %v264, 0
      %v431 = vsel %vm428, %v378, 0
      %433 = vmatprep.subr.mxu0 0.0
      %434 = vmatpush1.msra.mxu0 0.0
      %435 = vmatprep.subr.mxu0 0.0
      %436 = vmatpush1.msra.mxu0 0.0
      %437 = vmatprep.subr.mxu0 0.0
      %438 = vmatpush1.msra.mxu0 0.0
      %439 = vmatprep.subr.mxu0 0.0
      %440 = vmatpush1.msra.mxu0 0.0
      %441 = vmatprep.subr.mxu0 0.0
      %442 = vmatpush1.msra.mxu0 0.0
      %443 = vmatprep.subr.mxu0 0.0
      %444 = vmatpush1.msra.mxu0 0.0
      %445 = vmatprep.subr.mxu0 0.0
      %446 = vmatpush1.msra.mxu0 0.0
      %447 = vmatprep.subr.mxu0 0.0
      %448 = vmatpush1.msra.mxu0 0.0
      %449 = vmatprep.subr.mxu0 0.0
      %450 = vmatpush1.msra.mxu0 0.0
      %451 = vmatprep.subr.mxu0 0.0
      %452 = vmatpush1.msra.mxu0 0.0
      %453 = vmatprep.subr.mxu0 0.0
      %454 = vmatpush1.msra.mxu0 0.0
      %455 = vmatprep.subr.mxu0 0.0
      %456 = vmatpush1.msra.mxu0 0.0
      %457 = vmatprep.subr.mxu0 0.0
      %458 = vmatpush1.msra.mxu0 0.0
      %459 = vmatprep.subr.mxu0 0.0
      %460 = vmatpush1.msra.mxu0 0.0
      %461 = vmatprep.subr.mxu0 0.0
      %462 = vmatpush1.msra.mxu0 0.0
      %463 = vmatprep.subr.mxu0 %v431
      %464 = vmatpush1.msra.mxu0 %v429
      %465 = vmatprep.subr.mxu0 0.0
      %466 = vmatpush2.msra.mxu0 0.0
      %467 = vmatprep.subr.mxu0 0.0
      %468 = vmatpush2.msra.mxu0 0.0
      %469 = vmatprep.subr.mxu0 0.0
      %470 = vmatpush2.msra.mxu0 0.0
      %471 = vmatprep.subr.mxu0 0.0
      %472 = vmatpush2.msra.mxu0 0.0
      %473 = vmatprep.subr.mxu0 0.0
      %474 = vmatpush2.msra.mxu0 0.0
      %475 = vmatprep.subr.mxu0 0.0
      %476 = vmatpush2.msra.mxu0 0.0
      %477 = vmatprep.subr.mxu0 0.0
      %478 = vmatpush2.msra.mxu0 0.0
      %479 = vmatprep.subr.mxu0 0.0
      %480 = vmatpush2.msra.mxu0 0.0
      %481 = vmatprep.subr.mxu0 0.0
      %482 = vmatpush2.msra.mxu0 0.0
      %483 = vmatprep.subr.mxu0 0.0
      %484 = vmatpush2.msra.mxu0 0.0
      %485 = vmatprep.subr.mxu0 0.0
      %486 = vmatpush2.msra.mxu0 0.0
      %487 = vmatprep.subr.mxu0 0.0
      %488 = vmatpush2.msra.mxu0 0.0
      %489 = vmatprep.subr.mxu0 0.0
      %490 = vmatpush2.msra.mxu0 0.0
      %491 = vmatprep.subr.mxu0 0.0
      %492 = vmatpush2.msra.mxu0 0.0
      %493 = vmatprep.subr.mxu0 0.0
      %494 = vmatpush2.msra.mxu0 0.0
      %495 = vmatprep.subr.mxu0 0.0
      %496 = vmatpush2.msra.mxu0 0.0
      %497 = vmatprep.mubr.f32.mxu0 0.0
      %498 = vmatmul.mubr.f32.gmra.mxu0 %v381
      %v499 = vpop.f32.mrf.mxu0
      %v500 = vadd.f32 %v300, %v499
      %v501 = vpop.f32.mrf.mxu0
      %v502 = vadd.f32 %v300, %v501
      %503 = vmatprep.mubr.f32.mxu0 0.0
      %504 = vmatmul.mubr.f32.gmra.mxu0 %v384
      %v505 = vpop.f32.mrf.mxu0
      %v506 = vadd.f32 %v305, %v505
      %v507 = vpop.f32.mrf.mxu0
      %v508 = vadd.f32 %v305, %v507
      %509 = vmatprep.mubr.f32.mxu0 0.0
      %510 = vmatmul.mubr.f32.gmra.mxu0 %v387
      %v511 = vpop.f32.mrf.mxu0
      %v512 = vadd.f32 %v310, %v511
      %v513 = vpop.f32.mrf.mxu0
      %v514 = vadd.f32 %v310, %v513
      %515 = vmatprep.mubr.f32.mxu0 0.0
      %516 = vmatmul.mubr.f32.gmra.mxu0 %v390
      %v517 = vpop.f32.mrf.mxu0
      %v518 = vadd.f32 %v315, %v517
      %v519 = vpop.f32.mrf.mxu0
      %v520 = vadd.f32 %v315, %v519
      %521 = vmatprep.mubr.f32.mxu0 0.0
      %522 = vmatmul.mubr.f32.gmra.mxu0 %v393
      %v523 = vpop.f32.mrf.mxu0
      %v524 = vadd.f32 %v320, %v523
      %v525 = vpop.f32.mrf.mxu0
      %v526 = vadd.f32 %v320, %v525
      %527 = vmatprep.mubr.f32.mxu0 0.0
      %528 = vmatmul.mubr.f32.gmra.mxu0 %v396
      %v529 = vpop.f32.mrf.mxu0
      %v530 = vadd.f32 %v325, %v529
      %v531 = vpop.f32.mrf.mxu0
      %v532 = vadd.f32 %v325, %v531
      %533 = vmatprep.mubr.f32.mxu0 0.0
      %534 = vmatmul.mubr.f32.gmra.mxu0 %v399
      %v535 = vpop.f32.mrf.mxu0
      %v536 = vadd.f32 %v330, %v535
      %v537 = vpop.f32.mrf.mxu0
      %v538 = vadd.f32 %v330, %v537
      %539 = vmatprep.mubr.f32.mxu0 0.0
      %540 = vmatmul.mubr.f32.gmra.mxu0 %v402
      %v541 = vpop.f32.mrf.mxu0
      %v542 = vadd.f32 %v335, %v541
      %v543 = vpop.f32.mrf.mxu0
      %v544 = vadd.f32 %v335, %v543
      %545 = vmatprep.mubr.f32.mxu0 0.0
      %546 = vmatmul.mubr.f32.gmra.mxu0 %v405
      %v547 = vpop.f32.mrf.mxu0
      %v548 = vadd.f32 %v340, %v547
      %v549 = vpop.f32.mrf.mxu0
      %v550 = vadd.f32 %v340, %v549
      %551 = vmatprep.mubr.f32.mxu0 0.0
      %552 = vmatmul.mubr.f32.gmra.mxu0 %v408
      %v553 = vpop.f32.mrf.mxu0
      %v554 = vadd.f32 %v345, %v553
      %v555 = vpop.f32.mrf.mxu0
      %v556 = vadd.f32 %v345, %v555
      %557 = vmatprep.mubr.f32.mxu0 0.0
      %558 = vmatmul.mubr.f32.gmra.mxu0 %v411
      %v559 = vpop.f32.mrf.mxu0
      %v560 = vadd.f32 %v350, %v559
      %v561 = vpop.f32.mrf.mxu0
      %v562 = vadd.f32 %v350, %v561
      %563 = vmatprep.mubr.f32.mxu0 0.0
      %564 = vmatmul.mubr.f32.gmra.mxu0 %v414
      %v565 = vpop.f32.mrf.mxu0
      %v566 = vadd.f32 %v355, %v565
      %v567 = vpop.f32.mrf.mxu0
      %v568 = vadd.f32 %v355, %v567
      %569 = vmatprep.mubr.f32.mxu0 0.0
      %570 = vmatmul.mubr.f32.gmra.mxu0 %v417
      %v571 = vpop.f32.mrf.mxu0
      %v572 = vadd.f32 %v360, %v571
      %v573 = vpop.f32.mrf.mxu0
      %v574 = vadd.f32 %v360, %v573
      %575 = vmatprep.mubr.f32.mxu0 0.0
      %576 = vmatmul.mubr.f32.gmra.mxu0 %v420
      %v577 = vpop.f32.mrf.mxu0
      %v578 = vadd.f32 %v365, %v577
      %v579 = vpop.f32.mrf.mxu0
      %v580 = vadd.f32 %v365, %v579
      %581 = vmatprep.mubr.f32.mxu0 0.0
      %582 = vmatmul.mubr.f32.gmra.mxu0 %v423
      %v583 = vpop.f32.mrf.mxu0
      %v584 = vadd.f32 %v370, %v583
      %v585 = vpop.f32.mrf.mxu0
      %v586 = vadd.f32 %v370, %v585
      %587 = vmatprep.mubr.f32.mxu0 0.0
      %588 = vmatmul.mubr.f32.gmra.mxu0 %v426
      %v589 = vpop.f32.mrf.mxu0
      %v590 = vadd.f32 %v375, %v589
      %v591 = vpop.f32.mrf.mxu0
      %v592 = vadd.f32 %v375, %v591
      %593 = vdwg.mxu0
      %v594 = vmax.f32 %v500, 0.0
      %v595 = vmax.f32 %v502, 0.0
      %v596 = vmax.f32 %v506, 0.0
      %v597 = vmax.f32 %v508, 0.0
      %v598 = vmax.f32 %v512, 0.0
      %v599 = vmax.f32 %v514, 0.0
      %v600 = vmax.f32 %v518, 0.0
      %v601 = vmax.f32 %v520, 0.0
      %v602 = vmax.f32 %v524, 0.0
      %v603 = vmax.f32 %v526, 0.0
      %v604 = vmax.f32 %v530, 0.0
      %v605 = vmax.f32 %v532, 0.0
      %v606 = vmax.f32 %v536, 0.0
      %v607 = vmax.f32 %v538, 0.0
      %v608 = vmax.f32 %v542, 0.0
      %v609 = vmax.f32 %v544, 0.0
      %v610 = vmax.f32 %v548, 0.0
      %v611 = vmax.f32 %v550, 0.0
      %v612 = vmax.f32 %v554, 0.0
      %v613 = vmax.f32 %v556, 0.0
      %v614 = vmax.f32 %v560, 0.0
      %v615 = vmax.f32 %v562, 0.0
      %v616 = vmax.f32 %v566, 0.0
      %v617 = vmax.f32 %v568, 0.0
      %v618 = vmax.f32 %v572, 0.0
      %v619 = vmax.f32 %v574, 0.0
      %v620 = vmax.f32 %v578, 0.0
      %v621 = vmax.f32 %v580, 0.0
      %v622 = vmax.f32 %v584, 0.0
      %v623 = vmax.f32 %v586, 0.0
      %v624 = vmax.f32 %v590, 0.0
      %v625 = vmax.f32 %v592, 0.0
      %v626 = vmul.f32 %v594, %v594
      %v627 = vmul.f32 %v595, %v595
      %v628 = vmul.f32 %v596, %v596
      %v629 = vmul.f32 %v597, %v597
      %v630 = vmul.f32 %v598, %v598
      %v631 = vmul.f32 %v599, %v599
      %v632 = vmul.f32 %v600, %v600
      %v633 = vmul.f32 %v601, %v601
      %v634 = vmul.f32 %v602, %v602
      %v635 = vmul.f32 %v603, %v603
      %v636 = vmul.f32 %v604, %v604
      %v637 = vmul.f32 %v605, %v605
      %v638 = vmul.f32 %v606, %v606
      %v639 = vmul.f32 %v607, %v607
      %v640 = vmul.f32 %v608, %v608
      %v641 = vmul.f32 %v609, %v609
      %v642 = vmul.f32 %v610, %v610
      %v643 = vmul.f32 %v611, %v611
      %v644 = vmul.f32 %v612, %v612
      %v645 = vmul.f32 %v613, %v613
      %v646 = vmul.f32 %v614, %v614
      %v647 = vmul.f32 %v615, %v615
      %v648 = vmul.f32 %v616, %v616
      %v649 = vmul.f32 %v617, %v617
      %v650 = vmul.f32 %v618, %v618
      %v651 = vmul.f32 %v619, %v619
      %v652 = vmul.f32 %v620, %v620
      %v653 = vmul.f32 %v621, %v621
      %v654 = vmul.f32 %v622, %v622
      %v655 = vmul.f32 %v623, %v623
      %v656 = vmul.f32 %v624, %v624
      %v657 = vmul.f32 %v625, %v625
      %v658 = vadd.f32 %v626, %v628
      %v659 = vadd.f32 %v658, %v630
      %v660 = vadd.f32 %v659, %v632
      %v661 = vadd.f32 %v660, %v634
      %v662 = vadd.f32 %v661, %v636
      %v663 = vadd.f32 %v662, %v638
      %v664 = vadd.f32 %v663, %v640
      %v665 = vadd.f32 %v664, %v642
      %v666 = vadd.f32 %v665, %v644
      %v667 = vadd.f32 %v666, %v646
      %v668 = vadd.f32 %v667, %v648
      %v669 = vadd.f32 %v668, %v650
      %v670 = vadd.f32 %v669, %v652
      %v671 = vadd.f32 %v670, %v654
      %v672 = vadd.f32 %v671, %v656
      %v673 = vrot.slane %v672, 4
      %v674 = vadd.f32 %v672, %v673
      %v675 = vrot.slane %v674, 2
      %v676 = vadd.f32 %v674, %v675
      %v677 = vrot.slane %v676, 1
      %v678 = vadd.f32 %v676, %v677
      %v679 = vadd.f32 %v627, %v629
      %v680 = vadd.f32 %v679, %v631
      %v681 = vadd.f32 %v680, %v633
      %v682 = vadd.f32 %v681, %v635
      %v683 = vadd.f32 %v682, %v637
      %v684 = vadd.f32 %v683, %v639
      %v685 = vadd.f32 %v684, %v641
      %v686 = vadd.f32 %v685, %v643
      %v687 = vadd.f32 %v686, %v645
      %v688 = vadd.f32 %v687, %v647
      %v689 = vadd.f32 %v688, %v649
      %v690 = vadd.f32 %v689, %v651
      %v691 = vadd.f32 %v690, %v653
      %v692 = vadd.f32 %v691, %v655
      %v693 = vadd.f32 %v692, %v657
      %v694 = vrot.slane %v693, 4
      %v695 = vadd.f32 %v693, %v694
      %v696 = vrot.slane %v695, 2
      %v697 = vadd.f32 %v695, %v696
      %v698 = vrot.slane %v697, 1
      %v699 = vadd.f32 %v697, %v698
      %v700 = vrsqrt.pop %v678
      %v701 = vmul.f32 %v678, %v700
      %vm702 = vcmp.eq.f32.partialorder %v678, inf
      %v703 = vsel %vm702, %v678, %v701
      %vm704 = vcmp.eq.f32.partialorder %v678, 0.0
      %v705 = vand.u32 %v678, 2147483648
      %v706 = vsel %vm704, %v705, %v703
      %v707 = vrsqrt.pop %v699
      %v708 = vmul.f32 %v699, %v707
      %vm709 = vcmp.eq.f32.partialorder %v699, inf
      %v710 = vsel %vm709, %v699, %v708
      %vm711 = vcmp.eq.f32.partialorder %v699, 0.0
      %v712 = vand.u32 %v699, 2147483648
      %v713 = vsel %vm711, %v712, %v710
      %v714 = vadd.f32 %v706, 1e-10
      %v715 = vadd.f32 %v713, 1e-10
      %v716 = vmul.f32 %v714, 16.0
      %v717 = vmul.f32 %v715, 16.0
      %v718 = vrcp.pop %v716
      %v719 = vmul.f32 1.0, %v718
      %v720 = vrcp.pop %v717
      %v721 = vmul.f32 1.0, %v720
      %v722 = vmul.f32 %v594, %v719
      %v723 = vmul.f32 %v595, %v721
      %v724 = vmul.f32 %v596, %v719
      %v725 = vmul.f32 %v597, %v721
      %v726 = vmul.f32 %v598, %v719
      %v727 = vmul.f32 %v599, %v721
      %v728 = vmul.f32 %v600, %v719
      %v729 = vmul.f32 %v601, %v721
      %v730 = vmul.f32 %v602, %v719
      %v731 = vmul.f32 %v603, %v721
      %v732 = vmul.f32 %v604, %v719
      %v733 = vmul.f32 %v605, %v721
      %v734 = vmul.f32 %v606, %v719
      %v735 = vmul.f32 %v607, %v721
      %v736 = vmul.f32 %v608, %v719
      %v737 = vmul.f32 %v609, %v721
      %v738 = vmul.f32 %v610, %v719
      %v739 = vmul.f32 %v611, %v721
      %v740 = vmul.f32 %v612, %v719
      %v741 = vmul.f32 %v613, %v721
      %v742 = vmul.f32 %v614, %v719
      %v743 = vmul.f32 %v615, %v721
      %v744 = vmul.f32 %v616, %v719
      %v745 = vmul.f32 %v617, %v721
      %v746 = vmul.f32 %v618, %v719
      %v747 = vmul.f32 %v619, %v721
      %v748 = vmul.f32 %v620, %v719
      %v749 = vmul.f32 %v621, %v721
      %v750 = vmul.f32 %v622, %v719
      %v751 = vmul.f32 %v623, %v721
      %v752 = vmul.f32 %v624, %v719
      %v753 = vmul.f32 %v625, %v721
      %v754 = vld [vmem:[%s253] sm:$0xff]
      %v756 = vcombine.high %v754, %v754
      %v757 = vsel %vm428, %v754, 0
      %v759 = vsel %vm428, %v756, 0
      %761 = vmatprep.subr.mxu0 0.0
      %762 = vmatpush1.msra.mxu0 0.0
      %763 = vmatprep.subr.mxu0 0.0
      %764 = vmatpush1.msra.mxu0 0.0
      %765 = vmatprep.subr.mxu0 0.0
      %766 = vmatpush1.msra.mxu0 0.0
      %767 = vmatprep.subr.mxu0 0.0
      %768 = vmatpush1.msra.mxu0 0.0
      %769 = vmatprep.subr.mxu0 0.0
      %770 = vmatpush1.msra.mxu0 0.0
      %771 = vmatprep.subr.mxu0 0.0
      %772 = vmatpush1.msra.mxu0 0.0
      %773 = vmatprep.subr.mxu0 0.0
      %774 = vmatpush1.msra.mxu0 0.0
      %775 = vmatprep.subr.mxu0 0.0
      %776 = vmatpush1.msra.mxu0 0.0
      %777 = vmatprep.subr.mxu0 0.0
      %778 = vmatpush1.msra.mxu0 0.0
      %779 = vmatprep.subr.mxu0 0.0
      %780 = vmatpush1.msra.mxu0 0.0
      %781 = vmatprep.subr.mxu0 0.0
      %782 = vmatpush1.msra.mxu0 0.0
      %783 = vmatprep.subr.mxu0 0.0
      %784 = vmatpush1.msra.mxu0 0.0
      %785 = vmatprep.subr.mxu0 0.0
      %786 = vmatpush1.msra.mxu0 0.0
      %787 = vmatprep.subr.mxu0 0.0
      %788 = vmatpush1.msra.mxu0 0.0
      %789 = vmatprep.subr.mxu0 0.0
      %790 = vmatpush1.msra.mxu0 0.0
      %791 = vmatprep.subr.mxu0 %v759
      %792 = vmatpush1.msra.mxu0 %v757
      %793 = vmatprep.subr.mxu0 0.0
      %794 = vmatpush2.msra.mxu0 0.0
      %795 = vmatprep.subr.mxu0 0.0
      %796 = vmatpush2.msra.mxu0 0.0
      %797 = vmatprep.subr.mxu0 0.0
      %798 = vmatpush2.msra.mxu0 0.0
      %799 = vmatprep.subr.mxu0 0.0
      %800 = vmatpush2.msra.mxu0 0.0
      %801 = vmatprep.subr.mxu0 0.0
      %802 = vmatpush2.msra.mxu0 0.0
      %803 = vmatprep.subr.mxu0 0.0
      %804 = vmatpush2.msra.mxu0 0.0
      %805 = vmatprep.subr.mxu0 0.0
      %806 = vmatpush2.msra.mxu0 0.0
      %807 = vmatprep.subr.mxu0 0.0
      %808 = vmatpush2.msra.mxu0 0.0
      %809 = vmatprep.subr.mxu0 0.0
      %810 = vmatpush2.msra.mxu0 0.0
      %811 = vmatprep.subr.mxu0 0.0
      %812 = vmatpush2.msra.mxu0 0.0
      %813 = vmatprep.subr.mxu0 0.0
      %814 = vmatpush2.msra.mxu0 0.0
      %815 = vmatprep.subr.mxu0 0.0
      %816 = vmatpush2.msra.mxu0 0.0
      %817 = vmatprep.subr.mxu0 0.0
      %818 = vmatpush2.msra.mxu0 0.0
      %819 = vmatprep.subr.mxu0 0.0
      %820 = vmatpush2.msra.mxu0 0.0
      %821 = vmatprep.subr.mxu0 0.0
      %822 = vmatpush2.msra.mxu0 0.0
      %823 = vmatprep.subr.mxu0 0.0
      %824 = vmatpush2.msra.mxu0 0.0
      %825 = vmatprep.mubr.f32.mxu0 0.0
      %826 = vmatmul.mubr.f32.gmra.mxu0 %v381
      %v827 = vpop.f32.mrf.mxu0
      %v828 = vadd.f32 %v300, %v827
      %v829 = vpop.f32.mrf.mxu0
      %v830 = vadd.f32 %v300, %v829
      %831 = vmatprep.mubr.f32.mxu0 0.0
      %832 = vmatmul.mubr.f32.gmra.mxu0 %v384
      %v833 = vpop.f32.mrf.mxu0
      %v834 = vadd.f32 %v305, %v833
      %v835 = vpop.f32.mrf.mxu0
      %v836 = vadd.f32 %v305, %v835
      %837 = vmatprep.mubr.f32.mxu0 0.0
      %838 = vmatmul.mubr.f32.gmra.mxu0 %v387
      %v839 = vpop.f32.mrf.mxu0
      %v840 = vadd.f32 %v310, %v839
      %v841 = vpop.f32.mrf.mxu0
      %v842 = vadd.f32 %v310, %v841
      %843 = vmatprep.mubr.f32.mxu0 0.0
      %844 = vmatmul.mubr.f32.gmra.mxu0 %v390
      %v845 = vpop.f32.mrf.mxu0
      %v846 = vadd.f32 %v315, %v845
      %v847 = vpop.f32.mrf.mxu0
      %v848 = vadd.f32 %v315, %v847
      %849 = vmatprep.mubr.f32.mxu0 0.0
      %850 = vmatmul.mubr.f32.gmra.mxu0 %v393
      %v851 = vpop.f32.mrf.mxu0
      %v852 = vadd.f32 %v320, %v851
      %v853 = vpop.f32.mrf.mxu0
      %v854 = vadd.f32 %v320, %v853
      %855 = vmatprep.mubr.f32.mxu0 0.0
      %856 = vmatmul.mubr.f32.gmra.mxu0 %v396
      %v857 = vpop.f32.mrf.mxu0
      %v858 = vadd.f32 %v325, %v857
      %v859 = vpop.f32.mrf.mxu0
      %v860 = vadd.f32 %v325, %v859
      %861 = vmatprep.mubr.f32.mxu0 0.0
      %862 = vmatmul.mubr.f32.gmra.mxu0 %v399
      %v863 = vpop.f32.mrf.mxu0
      %v864 = vadd.f32 %v330, %v863
      %v865 = vpop.f32.mrf.mxu0
      %v866 = vadd.f32 %v330, %v865
      %867 = vmatprep.mubr.f32.mxu0 0.0
      %868 = vmatmul.mubr.f32.gmra.mxu0 %v402
      %v869 = vpop.f32.mrf.mxu0
      %v870 = vadd.f32 %v335, %v869
      %v871 = vpop.f32.mrf.mxu0
      %v872 = vadd.f32 %v335, %v871
      %873 = vmatprep.mubr.f32.mxu0 0.0
      %874 = vmatmul.mubr.f32.gmra.mxu0 %v405
      %v875 = vpop.f32.mrf.mxu0
      %v876 = vadd.f32 %v340, %v875
      %v877 = vpop.f32.mrf.mxu0
      %v878 = vadd.f32 %v340, %v877
      %879 = vmatprep.mubr.f32.mxu0 0.0
      %880 = vmatmul.mubr.f32.gmra.mxu0 %v408
      %v881 = vpop.f32.mrf.mxu0
      %v882 = vadd.f32 %v345, %v881
      %v883 = vpop.f32.mrf.mxu0
      %v884 = vadd.f32 %v345, %v883
      %885 = vmatprep.mubr.f32.mxu0 0.0
      %886 = vmatmul.mubr.f32.gmra.mxu0 %v411
      %v887 = vpop.f32.mrf.mxu0
      %v888 = vadd.f32 %v350, %v887
      %v889 = vpop.f32.mrf.mxu0
      %v890 = vadd.f32 %v350, %v889
      %891 = vmatprep.mubr.f32.mxu0 0.0
      %892 = vmatmul.mubr.f32.gmra.mxu0 %v414
      %v893 = vpop.f32.mrf.mxu0
      %v894 = vadd.f32 %v355, %v893
      %v895 = vpop.f32.mrf.mxu0
      %v896 = vadd.f32 %v355, %v895
      %897 = vmatprep.mubr.f32.mxu0 0.0
      %898 = vmatmul.mubr.f32.gmra.mxu0 %v417
      %v899 = vpop.f32.mrf.mxu0
      %v900 = vadd.f32 %v360, %v899
      %v901 = vpop.f32.mrf.mxu0
      %v902 = vadd.f32 %v360, %v901
      %903 = vmatprep.mubr.f32.mxu0 0.0
      %904 = vmatmul.mubr.f32.gmra.mxu0 %v420
      %v905 = vpop.f32.mrf.mxu0
      %v906 = vadd.f32 %v365, %v905
      %v907 = vpop.f32.mrf.mxu0
      %v908 = vadd.f32 %v365, %v907
      %909 = vmatprep.mubr.f32.mxu0 0.0
      %910 = vmatmul.mubr.f32.gmra.mxu0 %v423
      %v911 = vpop.f32.mrf.mxu0
      %v912 = vadd.f32 %v370, %v911
      %v913 = vpop.f32.mrf.mxu0
      %v914 = vadd.f32 %v370, %v913
      %915 = vmatprep.mubr.f32.mxu0 0.0
      %916 = vmatmul.mubr.f32.gmra.mxu0 %v426
      %v917 = vpop.f32.mrf.mxu0
      %v918 = vadd.f32 %v375, %v917
      %v919 = vpop.f32.mrf.mxu0
      %v920 = vadd.f32 %v375, %v919
      %921 = vdwg.mxu0
      %v922 = vmax.f32 %v828, 0.0
      %v923 = vmax.f32 %v830, 0.0
      %v924 = vmax.f32 %v834, 0.0
      %v925 = vmax.f32 %v836, 0.0
      %v926 = vmax.f32 %v840, 0.0
      %v927 = vmax.f32 %v842, 0.0
      %v928 = vmax.f32 %v846, 0.0
      %v929 = vmax.f32 %v848, 0.0
      %v930 = vmax.f32 %v852, 0.0
      %v931 = vmax.f32 %v854, 0.0
      %v932 = vmax.f32 %v858, 0.0
      %v933 = vmax.f32 %v860, 0.0
      %v934 = vmax.f32 %v864, 0.0
      %v935 = vmax.f32 %v866, 0.0
      %v936 = vmax.f32 %v870, 0.0
      %v937 = vmax.f32 %v872, 0.0
      %v938 = vmax.f32 %v876, 0.0
      %v939 = vmax.f32 %v878, 0.0
      %v940 = vmax.f32 %v882, 0.0
      %v941 = vmax.f32 %v884, 0.0
      %v942 = vmax.f32 %v888, 0.0
      %v943 = vmax.f32 %v890, 0.0
      %v944 = vmax.f32 %v894, 0.0
      %v945 = vmax.f32 %v896, 0.0
      %v946 = vmax.f32 %v900, 0.0
      %v947 = vmax.f32 %v902, 0.0
      %v948 = vmax.f32 %v906, 0.0
      %v949 = vmax.f32 %v908, 0.0
      %v950 = vmax.f32 %v912, 0.0
      %v951 = vmax.f32 %v914, 0.0
      %v952 = vmax.f32 %v918, 0.0
      %v953 = vmax.f32 %v920, 0.0
      %v954 = vmul.f32 %v922, %v922
      %v955 = vmul.f32 %v923, %v923
      %v956 = vmul.f32 %v924, %v924
      %v957 = vmul.f32 %v925, %v925
      %v958 = vmul.f32 %v926, %v926
      %v959 = vmul.f32 %v927, %v927
      %v960 = vmul.f32 %v928, %v928
      %v961 = vmul.f32 %v929, %v929
      %v962 = vmul.f32 %v930, %v930
      %v963 = vmul.f32 %v931, %v931
      %v964 = vmul.f32 %v932, %v932
      %v965 = vmul.f32 %v933, %v933
      %v966 = vmul.f32 %v934, %v934
      %v967 = vmul.f32 %v935, %v935
      %v968 = vmul.f32 %v936, %v936
      %v969 = vmul.f32 %v937, %v937
      %v970 = vmul.f32 %v938, %v938
      %v971 = vmul.f32 %v939, %v939
      %v972 = vmul.f32 %v940, %v940
      %v973 = vmul.f32 %v941, %v941
      %v974 = vmul.f32 %v942, %v942
      %v975 = vmul.f32 %v943, %v943
      %v976 = vmul.f32 %v944, %v944
      %v977 = vmul.f32 %v945, %v945
      %v978 = vmul.f32 %v946, %v946
      %v979 = vmul.f32 %v947, %v947
      %v980 = vmul.f32 %v948, %v948
      %v981 = vmul.f32 %v949, %v949
      %v982 = vmul.f32 %v950, %v950
      %v983 = vmul.f32 %v951, %v951
      %v984 = vmul.f32 %v952, %v952
      %v985 = vmul.f32 %v953, %v953
      %v986 = vadd.f32 %v954, %v956
      %v987 = vadd.f32 %v986, %v958
      %v988 = vadd.f32 %v987, %v960
      %v989 = vadd.f32 %v988, %v962
      %v990 = vadd.f32 %v989, %v964
      %v991 = vadd.f32 %v990, %v966
      %v992 = vadd.f32 %v991, %v968
      %v993 = vadd.f32 %v992, %v970
      %v994 = vadd.f32 %v993, %v972
      %v995 = vadd.f32 %v994, %v974
      %v996 = vadd.f32 %v995, %v976
      %v997 = vadd.f32 %v996, %v978
      %v998 = vadd.f32 %v997, %v980
      %v999 = vadd.f32 %v998, %v982
      %v1000 = vadd.f32 %v999, %v984
      %v1001 = vrot.slane %v1000, 4
      %v1002 = vadd.f32 %v1000, %v1001
      %v1003 = vrot.slane %v1002, 2
      %v1004 = vadd.f32 %v1002, %v1003
      %v1005 = vrot.slane %v1004, 1
      %v1006 = vadd.f32 %v1004, %v1005
      %v1007 = vadd.f32 %v955, %v957
      %v1008 = vadd.f32 %v1007, %v959
      %v1009 = vadd.f32 %v1008, %v961
      %v1010 = vadd.f32 %v1009, %v963
      %v1011 = vadd.f32 %v1010, %v965
      %v1012 = vadd.f32 %v1011, %v967
      %v1013 = vadd.f32 %v1012, %v969
      %v1014 = vadd.f32 %v1013, %v971
      %v1015 = vadd.f32 %v1014, %v973
      %v1016 = vadd.f32 %v1015, %v975
      %v1017 = vadd.f32 %v1016, %v977
      %v1018 = vadd.f32 %v1017, %v979
      %v1019 = vadd.f32 %v1018, %v981
      %v1020 = vadd.f32 %v1019, %v983
      %v1021 = vadd.f32 %v1020, %v985
      %v1022 = vrot.slane %v1021, 4
      %v1023 = vadd.f32 %v1021, %v1022
      %v1024 = vrot.slane %v1023, 2
      %v1025 = vadd.f32 %v1023, %v1024
      %v1026 = vrot.slane %v1025, 1
      %v1027 = vadd.f32 %v1025, %v1026
      %v1028 = vrsqrt.pop %v1006
      %v1029 = vmul.f32 %v1006, %v1028
      %vm1030 = vcmp.eq.f32.partialorder %v1006, inf
      %v1031 = vsel %vm1030, %v1006, %v1029
      %vm1032 = vcmp.eq.f32.partialorder %v1006, 0.0
      %v1033 = vand.u32 %v1006, 2147483648
      %v1034 = vsel %vm1032, %v1033, %v1031
      %v1035 = vrsqrt.pop %v1027
      %v1036 = vmul.f32 %v1027, %v1035
      %vm1037 = vcmp.eq.f32.partialorder %v1027, inf
      %v1038 = vsel %vm1037, %v1027, %v1036
      %vm1039 = vcmp.eq.f32.partialorder %v1027, 0.0
      %v1040 = vand.u32 %v1027, 2147483648
      %v1041 = vsel %vm1039, %v1040, %v1038
      %v1042 = vadd.f32 %v1034, 1e-10
      %v1043 = vadd.f32 %v1041, 1e-10
      %v1044 = vmul.f32 %v1042, 16.0
      %v1045 = vmul.f32 %v1043, 16.0
      %v1046 = vrcp.pop %v1044
      %v1047 = vmul.f32 1.0, %v1046
      %v1048 = vrcp.pop %v1045
      %v1049 = vmul.f32 1.0, %v1048
      %v1050 = vmul.f32 %v922, %v1047
      %v1051 = vmul.f32 %v923, %v1049
      %v1052 = vmul.f32 %v924, %v1047
      %v1053 = vmul.f32 %v925, %v1049
      %v1054 = vmul.f32 %v926, %v1047
      %v1055 = vmul.f32 %v927, %v1049
      %v1056 = vmul.f32 %v928, %v1047
      %v1057 = vmul.f32 %v929, %v1049
      %v1058 = vmul.f32 %v930, %v1047
      %v1059 = vmul.f32 %v931, %v1049
      %v1060 = vmul.f32 %v932, %v1047
      %v1061 = vmul.f32 %v933, %v1049
      %v1062 = vmul.f32 %v934, %v1047
      %v1063 = vmul.f32 %v935, %v1049
      %v1064 = vmul.f32 %v936, %v1047
      %v1065 = vmul.f32 %v937, %v1049
      %v1066 = vmul.f32 %v938, %v1047
      %v1067 = vmul.f32 %v939, %v1049
      %v1068 = vmul.f32 %v940, %v1047
      %v1069 = vmul.f32 %v941, %v1049
      %v1070 = vmul.f32 %v942, %v1047
      %v1071 = vmul.f32 %v943, %v1049
      %v1072 = vmul.f32 %v944, %v1047
      %v1073 = vmul.f32 %v945, %v1049
      %v1074 = vmul.f32 %v946, %v1047
      %v1075 = vmul.f32 %v947, %v1049
      %v1076 = vmul.f32 %v948, %v1047
      %v1077 = vmul.f32 %v949, %v1049
      %v1078 = vmul.f32 %v950, %v1047
      %v1079 = vmul.f32 %v951, %v1049
      %v1080 = vmul.f32 %v952, %v1047
      %v1081 = vmul.f32 %v953, %v1049
      %v1082 = vsub.f32 %v722, %v1050
      %v1083 = vsub.f32 %v723, %v1051
      %v1084 = vsub.f32 %v724, %v1052
      %v1085 = vsub.f32 %v725, %v1053
      %v1086 = vsub.f32 %v726, %v1054
      %v1087 = vsub.f32 %v727, %v1055
      %v1088 = vsub.f32 %v728, %v1056
      %v1089 = vsub.f32 %v729, %v1057
      %v1090 = vsub.f32 %v730, %v1058
      %v1091 = vsub.f32 %v731, %v1059
      %v1092 = vsub.f32 %v732, %v1060
      %v1093 = vsub.f32 %v733, %v1061
      %v1094 = vsub.f32 %v734, %v1062
      %v1095 = vsub.f32 %v735, %v1063
      %v1096 = vsub.f32 %v736, %v1064
      %v1097 = vsub.f32 %v737, %v1065
      %v1098 = vsub.f32 %v738, %v1066
      %v1099 = vsub.f32 %v739, %v1067
      %v1100 = vsub.f32 %v740, %v1068
      %v1101 = vsub.f32 %v741, %v1069
      %v1102 = vsub.f32 %v742, %v1070
      %v1103 = vsub.f32 %v743, %v1071
      %v1104 = vsub.f32 %v744, %v1072
      %v1105 = vsub.f32 %v745, %v1073
      %v1106 = vsub.f32 %v746, %v1074
      %v1107 = vsub.f32 %v747, %v1075
      %v1108 = vsub.f32 %v748, %v1076
      %v1109 = vsub.f32 %v749, %v1077
      %v1110 = vsub.f32 %v750, %v1078
      %v1111 = vsub.f32 %v751, %v1079
      %v1112 = vsub.f32 %v752, %v1080
      %v1113 = vsub.f32 %v753, %v1081
      %v1114 = vld [vmem:[%s257] sm:$0x1]
      %v1115 = vmul.f32 %v1082, %v1082
      %v1116 = vmul.f32 %v1083, %v1083
      %v1117 = vmul.f32 %v1084, %v1084
      %v1118 = vmul.f32 %v1085, %v1085
      %v1119 = vmul.f32 %v1086, %v1086
      %v1120 = vmul.f32 %v1087, %v1087
      %v1121 = vmul.f32 %v1088, %v1088
      %v1122 = vmul.f32 %v1089, %v1089
      %v1123 = vmul.f32 %v1090, %v1090
      %v1124 = vmul.f32 %v1091, %v1091
      %v1125 = vmul.f32 %v1092, %v1092
      %v1126 = vmul.f32 %v1093, %v1093
      %v1127 = vmul.f32 %v1094, %v1094
      %v1128 = vmul.f32 %v1095, %v1095
      %v1129 = vmul.f32 %v1096, %v1096
      %v1130 = vmul.f32 %v1097, %v1097
      %v1131 = vmul.f32 %v1098, %v1098
      %v1132 = vmul.f32 %v1099, %v1099
      %v1133 = vmul.f32 %v1100, %v1100
      %v1134 = vmul.f32 %v1101, %v1101
      %v1135 = vmul.f32 %v1102, %v1102
      %v1136 = vmul.f32 %v1103, %v1103
      %v1137 = vmul.f32 %v1104, %v1104
      %v1138 = vmul.f32 %v1105, %v1105
      %v1139 = vmul.f32 %v1106, %v1106
      %v1140 = vmul.f32 %v1107, %v1107
      %v1141 = vmul.f32 %v1108, %v1108
      %v1142 = vmul.f32 %v1109, %v1109
      %v1143 = vmul.f32 %v1110, %v1110
      %v1144 = vmul.f32 %v1111, %v1111
      %v1145 = vmul.f32 %v1112, %v1112
      %v1146 = vmul.f32 %v1113, %v1113
      %v1147 = vadd.f32 %v1115, %v1116
      %1148 = vadd.xlane.f32.xlu0 %v1147
      %v1149 = vpop.xlane.xlu0 %1148
      %v1150 = vadd.f32 %v1117, %v1118
      %1151 = vadd.xlane.f32.xlu0 %v1150
      %v1152 = vpop.xlane.xlu0 %1151
      %v1153 = vadd.f32 %v1119, %v1120
      %1154 = vadd.xlane.f32.xlu0 %v1153
      %v1155 = vpop.xlane.xlu0 %1154
      %v1156 = vadd.f32 %v1121, %v1122
      %1157 = vadd.xlane.f32.xlu0 %v1156
      %v1158 = vpop.xlane.xlu0 %1157
      %v1159 = vadd.f32 %v1123, %v1124
      %1160 = vadd.xlane.f32.xlu0 %v1159
      %v1161 = vpop.xlane.xlu0 %1160
      %v1162 = vadd.f32 %v1125, %v1126
      %1163 = vadd.xlane.f32.xlu0 %v1162
      %v1164 = vpop.xlane.xlu0 %1163
      %v1165 = vadd.f32 %v1127, %v1128
      %1166 = vadd.xlane.f32.xlu0 %v1165
      %v1167 = vpop.xlane.xlu0 %1166
      %v1168 = vadd.f32 %v1129, %v1130
      %1169 = vadd.xlane.f32.xlu0 %v1168
      %v1170 = vpop.xlane.xlu0 %1169
      %v1171 = vadd.f32 %v1131, %v1132
      %1172 = vadd.xlane.f32.xlu0 %v1171
      %v1173 = vpop.xlane.xlu0 %1172
      %v1174 = vadd.f32 %v1133, %v1134
      %1175 = vadd.xlane.f32.xlu0 %v1174
      %v1176 = vpop.xlane.xlu0 %1175
      %v1177 = vadd.f32 %v1135, %v1136
      %1178 = vadd.xlane.f32.xlu0 %v1177
      %v1179 = vpop.xlane.xlu0 %1178
      %v1180 = vadd.f32 %v1137, %v1138
      %1181 = vadd.xlane.f32.xlu0 %v1180
      %v1182 = vpop.xlane.xlu0 %1181
      %v1183 = vadd.f32 %v1139, %v1140
      %1184 = vadd.xlane.f32.xlu0 %v1183
      %v1185 = vpop.xlane.xlu0 %1184
      %v1186 = vadd.f32 %v1141, %v1142
      %1187 = vadd.xlane.f32.xlu0 %v1186
      %v1188 = vpop.xlane.xlu0 %1187
      %v1189 = vadd.f32 %v1143, %v1144
      %1190 = vadd.xlane.f32.xlu0 %v1189
      %v1191 = vpop.xlane.xlu0 %1190
      %v1192 = vadd.f32 %v1145, %v1146
      %1193 = vadd.xlane.f32.xlu0 %v1192
      %v1194 = vpop.xlane.xlu0 %1193
      %v1195 = vadd.f32 %v1149, %v1152
      %v1196 = vadd.f32 %v1195, %v1155
      %v1197 = vadd.f32 %v1196, %v1158
      %v1198 = vadd.f32 %v1197, %v1161
      %v1199 = vadd.f32 %v1198, %v1164
      %v1200 = vadd.f32 %v1199, %v1167
      %v1201 = vadd.f32 %v1200, %v1170
      %v1202 = vadd.f32 %v1201, %v1173
      %v1203 = vadd.f32 %v1202, %v1176
      %v1204 = vadd.f32 %v1203, %v1179
      %v1205 = vadd.f32 %v1204, %v1182
      %v1206 = vadd.f32 %v1205, %v1185
      %v1207 = vadd.f32 %v1206, %v1188
      %v1208 = vadd.f32 %v1207, %v1191
      %v1209 = vadd.f32 %v1208, %v1194
      %v1210 = vrot.slane %v1209, 4
      %v1211 = vadd.f32 %v1209, %v1210
      %v1212 = vrot.slane %v1211, 2
      %v1213 = vadd.f32 %v1211, %v1212
      %v1214 = vrot.slane %v1213, 1
      %v1215 = vadd.f32 %v1213, %v1214
      %v1216 = vadd.f32 %v1114, %v1215
      %vm1217 = vcmask 0
      %1218 = vst.msk [vmem:[%s257] sm:$0x1] %vm1217, %v1216
      %p1219 = scmp.lt.s32.totalorder %s19, 1
      %s1220 = scalar_select %p1219, %s19, 1
      %s1221 = scalar_lea.vmem %s4, %s1220
      // Predicated region
      $region41: #{closed_call.55} parent=35 // pred_check
        %p1222 = pneg %p143
      $region42: #{closed_call.55} parent=35 // pred_check_branch
        %1224 = sbr.rel (%p1222) target = $region44
      $region43: #{closed_call.55} parent=35 // pred_region
        _
      $region44: #{closed_call.55} parent=35 // pred_fallthru
        _
    $region36: #{closed_call.55} parent=5 // pred_fallthru
      _
    %p1225 = scmp.le.s32.totalorder 2, %s10
    // Predicated region
    $region45: #{closed_call.55} parent=5 // pred_check
      %p1226 = pneg %p1225
    $region46: #{closed_call.55} parent=5 // pred_check_branch
      %1228 = sbr.rel (%p1226) target = $region48
    $region47: #{closed_call.55} parent=5 // pred_region
      %s1229 = ssub.s32 %s10, 2
      // Predicated region
      $region49: #{closed_call.55} parent=47 // pred_check
        %p1230 = pneg %p149
      $region50: #{closed_call.55} parent=47 // pred_check_branch
        %1232 = sbr.rel (%p1230) target = $region52
      $region51: #{closed_call.55} parent=47 // pred_region
        %p1233 = scmp.lt.s32.totalorder %s21, 1
        %s1234 = scalar_select %p1233, %s21, 1
        %s1235 = scalar_lea.vmem %s4, %s1234
      $region52: #{closed_call.55} parent=47 // pred_fallthru
        _
    $region48: #{closed_call.55} parent=5 // pred_fallthru
      _
  $region6: #{closed_call.55} parent=0 // loop_footer
    %s14 = sadd.s32 1, %s10
  $region7: #{closed_call.55} parent=0 // loop_footer_branch
    %9 = sbr.rel target = $region3
  $region8: #{closed_call.55} parent=0 // loop_exit
    _

// kernel: closed_call.54
$region0: #{closed_call.54}
  #allocation0 [shape = 'u32[]', space=smem, size = 0x4, offset = 0x4, fixed_abs, tag = 'smem constant byte address 0x4 - core index']
  #allocation1 [shape = 'u32[144,128]{1,0:T(1,128)}', space=vmem, size = 0x12000, scoped, tag = 'internal scratch']
  %s0 = inlined_call_operand.vmem [shape: f32[2,4,256], index: 0, kind: input, shape index: {}]
  %s1 = inlined_call_operand.vmem [shape: f32[128,4], index: 1, kind: input, shape index: {}]
  %s2 = inlined_call_operand.vmem [shape: f32[4,128], index: 2, kind: input, shape index: {}]
  %s3 = inlined_call_operand.vmem [shape: f32[128,1], index: 3, kind: input, shape index: {}]
  %s4 = inlined_call_operand.vmem [shape: f32[128,128], index: 4, kind: input, shape index: {}]
  %s5 = inlined_call_operand.vmem [shape: bf16[2,128,256], index: 5, kind: input, shape index: {}]
  %s6 = inlined_call_operand.vmem [shape: f32[2,1,128], index: 6, kind: input, shape index: {}]
  %s7 = inlined_call_operand.vmem [shape: f32[2,1,1], index: 7, kind: input, shape index: {}]
  %s8 = inlined_call_operand.vmem [shape: f32[2,4,256], index: 8, kind: output, shape index: {0}]
  %s9 = inlined_call_operand.vmem [shape: f32[2,1,1], index: 9, kind: output, shape index: {1}]
  %10 = xla_tuple %s8, %s9
  %s11 = sld [smem:[#allocation0]]
  $region77: #{closed_call.54} parent=0
    _
  %s13 = ssub.s32 1, %s11
  %s14 = scalar_select 0, %s13, %s11
  loop: start=0, step=1, limit=4
  $region2: #{closed_call.54} parent=0 // loop_pre_header
    _
  $region3: #{closed_call.54} parent=0 // loop_header
    %s16 = sphi 0, %s20
    %p17 = scmp.ge.s32.totalorder %s16, 4
    %s23 = sphi 0, %s35
    %s24 = sphi 0, %s31
    %s25 = sphi 0, %s23
    %s26 = sphi 0, %s24
    %s27 = sphi 0, %s25
    %s28 = sphi 0, %s26
    %s40 = sphi 0, %s42
    %s43 = sphi 0, %s40
    %s44 = sphi 0, %s43
    %s60 = sphi 0, %s44
    %s64 = sphi 0, %s64
    %s66 = sphi 0, %s64
    %s67 = sphi 0, %s66
    %s81 = sphi 0, %s67
    %s85 = sphi 0, %s85
    %s87 = sphi 0, %s85
    %s88 = sphi 0, %s87
    %s102 = sphi 0, %s88
    %s106 = sphi 0, %s106
    %s108 = sphi 0, %s106
    %s109 = sphi 0, %s108
    %s123 = sphi 0, %s109
    %s127 = sphi 0, %s127
    %s129 = sphi 0, %s127
    %s130 = sphi 0, %s129
    %s144 = sphi 0, %s130
    %s152 = sphi 0, %s154
    %s155 = sphi 0, %s152
    %s156 = sphi 0, %s155
    %s172 = sphi 0, %s156
    %s178 = sphi 0, %s180
    %s181 = sphi 0, %s178
    %s182 = sphi 0, %s181
    %s198 = sphi 0, %s182
    %s204 = sphi 0, %s206
    %s207 = sphi 0, %s204
    %s208 = sphi 0, %s207
    %s224 = sphi 0, %s208
    %s232 = sphi 0, %s234
    %s235 = sphi 0, %s232
    %s236 = sphi 0, %s235
    %s252 = sphi 0, %s236
    %s258 = sphi 0, %s260
    %s261 = sphi 0, %s258
    %s262 = sphi 0, %s261
    %s278 = sphi 0, %s262
  $region4: #{closed_call.54} parent=0 // loop_header_branch
    %19 = sbr.rel (%p17) target = $region8
  $region5: #{closed_call.54} parent=0 // loop_body
    %s21 = ssub.s32 %s16, 1
    %s22 = ssub.s32 %s16, 2
    %s29 = sadd.s32 1, %s24
    %p30 = scmp.ge.s32.totalorder %s29, 1
    %s31 = scalar_select %p30, 0, %s29
    %s32 = sadd.s32 1, %s23
    %s33 = scalar_select %p30, %s32, %s23
    %p34 = scmp.ge.s32.totalorder %s33, 2
    %s35 = scalar_select %p34, 0, %s33
    %s36 = ssub.s32 %s23, %s35
    %s37 = ssub.s32 %s24, %s31
    %s38 = sor.u32 %s36, %s37
    %p39 = scmp.eq.s32.totalorder %s38, 0
    %s41 = sadd.s32 %s40, 1
    %s42 = scalar_select %p39, %s40, %s41
    %p45 = pneg %p39
    %p46 = scmp.eq.s32.totalorder %s16, 1
    %p47 = por %p45, %p46
    %p48 = scmp.ne.s32.totalorder %s40, %s43
    %p49 = scmp.eq.s32.totalorder %s16, 0
    %p50 = por %p48, %p49
    %p51 = scmp.ne.s32.totalorder %s40, %s43
    %p52 = scmp.eq.s32.totalorder %s21, 1
    %p53 = por %p51, %p52
    %p54 = scmp.ne.s32.totalorder %s43, %s44
    %p55 = scmp.eq.s32.totalorder %s21, 0
    %p56 = por %p54, %p55
    %p57 = scmp.ne.s32.totalorder %s43, %s44
    %p58 = scmp.eq.s32.totalorder %s22, 1
    %p59 = por %p57, %p58
    %p61 = scmp.ne.s32.totalorder %s44, %s60
    %p62 = scmp.eq.s32.totalorder %s22, 0
    %p63 = por %p61, %p62
    %s65 = sadd.s32 %s64, 1
    %p68 = scmp.eq.s32.totalorder %s16, 1
    %p69 = scmp.ne.s32.totalorder %s64, %s66
    %p70 = scmp.eq.s32.totalorder %s16, 0
    %p71 = por %p69, %p70
    %p72 = scmp.ne.s32.totalorder %s64, %s66
    %p73 = scmp.eq.s32.totalorder %s21, 1
    %p74 = por %p72, %p73
    %p75 = scmp.ne.s32.totalorder %s66, %s67
    %p76 = scmp.eq.s32.totalorder %s21, 0
    %p77 = por %p75, %p76
    %p78 = scmp.ne.s32.totalorder %s66, %s67
    %p79 = scmp.eq.s32.totalorder %s22, 1
    %p80 = por %p78, %p79
    %p82 = scmp.ne.s32.totalorder %s67, %s81
    %p83 = scmp.eq.s32.totalorder %s22, 0
    %p84 = por %p82, %p83
    %s86 = sadd.s32 %s85, 1
    %p89 = scmp.eq.s32.totalorder %s16, 1
    %p90 = scmp.ne.s32.totalorder %s85, %s87
    %p91 = scmp.eq.s32.totalorder %s16, 0
    %p92 = por %p90, %p91
    %p93 = scmp.ne.s32.totalorder %s85, %s87
    %p94 = scmp.eq.s32.totalorder %s21, 1
    %p95 = por %p93, %p94
    %p96 = scmp.ne.s32.totalorder %s87, %s88
    %p97 = scmp.eq.s32.totalorder %s21, 0
    %p98 = por %p96, %p97
    %p99 = scmp.ne.s32.totalorder %s87, %s88
    %p100 = scmp.eq.s32.totalorder %s22, 1
    %p101 = por %p99, %p100
    %p103 = scmp.ne.s32.totalorder %s88, %s102
    %p104 = scmp.eq.s32.totalorder %s22, 0
    %p105 = por %p103, %p104
    %s107 = sadd.s32 %s106, 1
    %p110 = scmp.eq.s32.totalorder %s16, 1
    %p111 = scmp.ne.s32.totalorder %s106, %s108
    %p112 = scmp.eq.s32.totalorder %s16, 0
    %p113 = por %p111, %p112
    %p114 = scmp.ne.s32.totalorder %s106, %s108
    %p115 = scmp.eq.s32.totalorder %s21, 1
    %p116 = por %p114, %p115
    %p117 = scmp.ne.s32.totalorder %s108, %s109
    %p118 = scmp.eq.s32.totalorder %s21, 0
    %p119 = por %p117, %p118
    %p120 = scmp.ne.s32.totalorder %s108, %s109
    %p121 = scmp.eq.s32.totalorder %s22, 1
    %p122 = por %p120, %p121
    %p124 = scmp.ne.s32.totalorder %s109, %s123
    %p125 = scmp.eq.s32.totalorder %s22, 0
    %p126 = por %p124, %p125
    %s128 = sadd.s32 %s127, 1
    %p131 = scmp.eq.s32.totalorder %s16, 1
    %p132 = scmp.ne.s32.totalorder %s127, %s129
    %p133 = scmp.eq.s32.totalorder %s16, 0
    %p134 = por %p132, %p133
    %p135 = scmp.ne.s32.totalorder %s127, %s129
    %p136 = scmp.eq.s32.totalorder %s21, 1
    %p137 = por %p135, %p136
    %p138 = scmp.ne.s32.totalorder %s129, %s130
    %p139 = scmp.eq.s32.totalorder %s21, 0
    %p140 = por %p138, %p139
    %p141 = scmp.ne.s32.totalorder %s129, %s130
    %p142 = scmp.eq.s32.totalorder %s22, 1
    %p143 = por %p141, %p142
    %p145 = scmp.ne.s32.totalorder %s130, %s144
    %p146 = scmp.eq.s32.totalorder %s22, 0
    %p147 = por %p145, %p146
    %s148 = ssub.s32 %s23, %s35
    %s149 = ssub.s32 %s24, %s31
    %s150 = sor.u32 %s148, %s149
    %p151 = scmp.eq.s32.totalorder %s150, 0
    %s153 = sadd.s32 %s152, 1
    %s154 = scalar_select %p151, %s152, %s153
    %p157 = pneg %p151
    %p158 = scmp.eq.s32.totalorder %s16, 1
    %p159 = por %p157, %p158
    %p160 = scmp.ne.s32.totalorder %s152, %s155
    %p161 = scmp.eq.s32.totalorder %s16, 0
    %p162 = por %p160, %p161
    %p163 = scmp.ne.s32.totalorder %s152, %s155
    %p164 = scmp.eq.s32.totalorder %s21, 1
    %p165 = por %p163, %p164
    %p166 = scmp.ne.s32.totalorder %s155, %s156
    %p167 = scmp.eq.s32.totalorder %s21, 0
    %p168 = por %p166, %p167
    %p169 = scmp.ne.s32.totalorder %s155, %s156
    %p170 = scmp.eq.s32.totalorder %s22, 1
    %p171 = por %p169, %p170
    %p173 = scmp.ne.s32.totalorder %s156, %s172
    %p174 = scmp.eq.s32.totalorder %s22, 0
    %p175 = por %p173, %p174
    %s176 = ssub.s32 %s23, %s35
    %p177 = scmp.eq.s32.totalorder %s176, 0
    %s179 = sadd.s32 %s178, 1
    %s180 = scalar_select %p177, %s178, %s179
    %p183 = pneg %p177
    %p184 = scmp.eq.s32.totalorder %s16, 1
    %p185 = por %p183, %p184
    %p186 = scmp.ne.s32.totalorder %s178, %s181
    %p187 = scmp.eq.s32.totalorder %s16, 0
    %p188 = por %p186, %p187
    %p189 = scmp.ne.s32.totalorder %s178, %s181
    %p190 = scmp.eq.s32.totalorder %s21, 1
    %p191 = por %p189, %p190
    %p192 = scmp.ne.s32.totalorder %s181, %s182
    %p193 = scmp.eq.s32.totalorder %s21, 0
    %p194 = por %p192, %p193
    %p195 = scmp.ne.s32.totalorder %s181, %s182
    %p196 = scmp.eq.s32.totalorder %s22, 1
    %p197 = por %p195, %p196
    %p199 = scmp.ne.s32.totalorder %s182, %s198
    %p200 = scmp.eq.s32.totalorder %s22, 0
    %p201 = por %p199, %p200
    %s202 = ssub.s32 %s23, %s35
    %p203 = scmp.eq.s32.totalorder %s202, 0
    %s205 = sadd.s32 %s204, 1
    %s206 = scalar_select %p203, %s204, %s205
    %p209 = pneg %p203
    %p210 = scmp.eq.s32.totalorder %s16, 1
    %p211 = por %p209, %p210
    %p212 = scmp.ne.s32.totalorder %s204, %s207
    %p213 = scmp.eq.s32.totalorder %s16, 0
    %p214 = por %p212, %p213
    %p215 = scmp.ne.s32.totalorder %s204, %s207
    %p216 = scmp.eq.s32.totalorder %s21, 1
    %p217 = por %p215, %p216
    %p218 = scmp.ne.s32.totalorder %s207, %s208
    %p219 = scmp.eq.s32.totalorder %s21, 0
    %p220 = por %p218, %p219
    %p221 = scmp.ne.s32.totalorder %s207, %s208
    %p222 = scmp.eq.s32.totalorder %s22, 1
    %p223 = por %p221, %p222
    %p225 = scmp.ne.s32.totalorder %s208, %s224
    %p226 = scmp.eq.s32.totalorder %s22, 0
    %p227 = por %p225, %p226
    %s228 = ssub.s32 %s23, %s35
    %s229 = ssub.s32 %s24, %s31
    %s230 = sor.u32 %s228, %s229
    %p231 = scmp.eq.s32.totalorder %s230, 0
    %s233 = sadd.s32 %s232, 1
    %s234 = scalar_select %p231, %s232, %s233
    %p237 = pneg %p231
    %p238 = scmp.eq.s32.totalorder %s16, 1
    %p239 = por %p237, %p238
    %p240 = scmp.ne.s32.totalorder %s232, %s235
    %p241 = scmp.eq.s32.totalorder %s16, 0
    %p242 = por %p240, %p241
    %p243 = scmp.ne.s32.totalorder %s232, %s235
    %p244 = scmp.eq.s32.totalorder %s21, 1
    %p245 = por %p243, %p244
    %p246 = scmp.ne.s32.totalorder %s235, %s236
    %p247 = scmp.eq.s32.totalorder %s21, 0
    %p248 = por %p246, %p247
    %p249 = scmp.ne.s32.totalorder %s235, %s236
    %p250 = scmp.eq.s32.totalorder %s22, 1
    %p251 = por %p249, %p250
    %p253 = scmp.ne.s32.totalorder %s236, %s252
    %p254 = scmp.eq.s32.totalorder %s22, 0
    %p255 = por %p253, %p254
    %s256 = ssub.s32 %s23, %s35
    %p257 = scmp.eq.s32.totalorder %s256, 0
    %s259 = sadd.s32 %s258, 1
    %s260 = scalar_select %p257, %s258, %s259
    %p263 = pneg %p257
    %p264 = scmp.eq.s32.totalorder %s16, 1
    %p265 = por %p263, %p264
    %p266 = scmp.ne.s32.totalorder %s258, %s261
    %p267 = scmp.eq.s32.totalorder %s16, 0
    %p268 = por %p266, %p267
    %p269 = scmp.ne.s32.totalorder %s258, %s261
    %p270 = scmp.eq.s32.totalorder %s21, 1
    %p271 = por %p269, %p270
    %p272 = scmp.ne.s32.totalorder %s261, %s262
    %p273 = scmp.eq.s32.totalorder %s21, 0
    %p274 = por %p272, %p273
    %p275 = scmp.ne.s32.totalorder %s261, %s262
    %p276 = scmp.eq.s32.totalorder %s22, 1
    %p277 = por %p275, %p276
    %p279 = scmp.ne.s32.totalorder %s262, %s278
    %p280 = scmp.eq.s32.totalorder %s22, 0
    %p281 = por %p279, %p280
    %p282 = scmp.le.s32.totalorder 1, %s16
    %p283 = scmp.lt.s32.totalorder %s16, 3
    %p284 = pnand %p282, %p283
    %p285 = pneg %p284
    // Predicated region
    $region9: #{closed_call.54} parent=5 // pred_check
      _
    $region10: #{closed_call.54} parent=5 // pred_check_branch
      %287 = sbr.rel (%p284) target = $region12
    $region11: #{closed_call.54} parent=5 // pred_region
      %s288 = ssub.s32 %s16, 1
      // Predicated region
      $region13: #{closed_call.54} parent=11 // pred_check
        %p289 = pneg %p77
      $region14: #{closed_call.54} parent=11 // pred_check_branch
        %291 = sbr.rel (%p289) target = $region16
      $region15: #{closed_call.54} parent=11 // pred_region
        _
      $region16: #{closed_call.54} parent=11 // pred_fallthru
        _
      // Predicated region
      $region17: #{closed_call.54} parent=11 // pred_check
        %p292 = pneg %p98
      $region18: #{closed_call.54} parent=11 // pred_check_branch
        %294 = sbr.rel (%p292) target = $region20
      $region19: #{closed_call.54} parent=11 // pred_region
        _
      $region20: #{closed_call.54} parent=11 // pred_fallthru
        _
      // Predicated region
      $region21: #{closed_call.54} parent=11 // pred_check
        %p295 = pneg %p119
      $region22: #{closed_call.54} parent=11 // pred_check_branch
        %297 = sbr.rel (%p295) target = $region24
      $region23: #{closed_call.54} parent=11 // pred_region
        _
      $region24: #{closed_call.54} parent=11 // pred_fallthru
        _
      // Predicated region
      $region25: #{closed_call.54} parent=11 // pred_check
        %p298 = pneg %p140
      $region26: #{closed_call.54} parent=11 // pred_check_branch
        %300 = sbr.rel (%p298) target = $region28
      $region27: #{closed_call.54} parent=11 // pred_region
        _
      $region28: #{closed_call.54} parent=11 // pred_fallthru
        _
    $region12: #{closed_call.54} parent=5 // pred_fallthru
      _
    %p301 = scmp.lt.s32.totalorder %s16, 2
    // Predicated region
    $region29: #{closed_call.54} parent=5 // pred_check
      %p302 = pneg %p301
    $region30: #{closed_call.54} parent=5 // pred_check_branch
      %304 = sbr.rel (%p302) target = $region32
    $region31: #{closed_call.54} parent=5 // pred_region
      // Predicated region
      $region33: #{closed_call.54} parent=31 // pred_check
        %p305 = pneg %p50
      $region34: #{closed_call.54} parent=31 // pred_check_branch
        %307 = sbr.rel (%p305) target = $region36
      $region35: #{closed_call.54} parent=31 // pred_region
        %s308 = smul.u32 2, %s24
        %p309 = scmp.lt.s32.totalorder %s23, 1
        %s310 = scalar_select %p309, %s23, 1
        %p311 = scmp.lt.s32.totalorder %s308, 1
        %s312 = scalar_select %p311, %s308, 1
        %s313 = smul.addr %s310, 2
        %s314 = sadd.s32 %s312, %s313
        %s315 = smul.addr %s314, 4
        %s316 = scalar_lea.vmem %s0, %s315
        %s317 = smul.u32 2, %s24
      $region36: #{closed_call.54} parent=31 // pred_fallthru
        _
      // Predicated region
      $region37: #{closed_call.54} parent=31 // pred_check
        %p318 = pneg %p162
      $region38: #{closed_call.54} parent=31 // pred_check_branch
        %320 = sbr.rel (%p318) target = $region40
      $region39: #{closed_call.54} parent=31 // pred_region
        %s321 = smul.u32 2, %s24
        %p322 = scmp.lt.s32.totalorder %s23, 1
        %s323 = scalar_select %p322, %s23, 1
        %p324 = scmp.lt.s32.totalorder %s321, 1
        %s325 = scalar_select %p324, %s321, 1
        %s326 = smul.addr %s323, 32
        %s327 = sadd.s32 %s325, %s326
        %s328 = smul.addr %s327, 4
        %s329 = scalar_lea.vmem %s5, %s328
        %s330 = smul.u32 2, %s24
      $region40: #{closed_call.54} parent=31 // pred_fallthru
        _
      // Predicated region
      $region41: #{closed_call.54} parent=31 // pred_check
        %p331 = pneg %p188
      $region42: #{closed_call.54} parent=31 // pred_check_branch
        %333 = sbr.rel (%p331) target = $region44
      $region43: #{closed_call.54} parent=31 // pred_region
        %p334 = scmp.lt.s32.totalorder %s23, 1
        %s335 = scalar_select %p334, %s23, 1
        %s336 = scalar_lea.vmem %s6, %s335
      $region44: #{closed_call.54} parent=31 // pred_fallthru
        _
      // Predicated region
      $region45: #{closed_call.54} parent=31 // pred_check
        %p337 = pneg %p214
      $region46: #{closed_call.54} parent=31 // pred_check_branch
        %339 = sbr.rel (%p337) target = $region48
      $region47: #{closed_call.54} parent=31 // pred_region
        %p340 = scmp.lt.s32.totalorder %s23, 1
        %s341 = scalar_select %p340, %s23, 1
        %s342 = scalar_lea.vmem %s7, %s341
      $region48: #{closed_call.54} parent=31 // pred_fallthru
        _
    $region32: #{closed_call.54} parent=5 // pred_fallthru
      _
    %p343 = scmp.le.s32.totalorder 1, %s16
    %p344 = scmp.lt.s32.totalorder %s16, 3
    %p345 = pnand %p343, %p344
    %p346 = pneg %p345
    // Predicated region
    $region49: #{closed_call.54} parent=5 // pred_check
      _
    $region50: #{closed_call.54} parent=5 // pred_check_branch
      %348 = sbr.rel (%p345) target = $region52
    $region51: #{closed_call.54} parent=5 // pred_region
      %s349 = ssub.s32 %s16, 1
      %s350 = smul.u32 2, %s26
      %p351 = scmp.lt.s32.totalorder %s25, 1
      %s352 = scalar_select %p351, %s25, 1
      %p353 = scmp.lt.s32.totalorder %s350, 1
      %s354 = scalar_select %p353, %s350, 1
      %s355 = smul.addr %s352, 2
      %s356 = sadd.s32 %s354, %s355
      %s357 = smul.addr %s356, 4
      %s358 = scalar_lea.vmem %s0, %s357
      %p359 = pneg %p56
      %p360 = pneg %p53
      %p361 = pneg %p77
      %p362 = pneg %p74
      %p363 = pneg %p98
      %p364 = pneg %p95
      %p365 = pneg %p119
      %p366 = pneg %p116
      %p367 = pneg %p140
      %p368 = pneg %p137
      %s369 = smul.u32 2, %s26
      %p370 = scmp.lt.s32.totalorder %s25, 1
      %s371 = scalar_select %p370, %s25, 1
      %p372 = scmp.lt.s32.totalorder %s369, 1
      %s373 = scalar_select %p372, %s369, 1
      %s374 = smul.addr %s371, 32
      %s375 = sadd.s32 %s373, %s374
      %s376 = smul.addr %s375, 4
      %s377 = scalar_lea.vmem %s5, %s376
      %p378 = pneg %p168
      %p379 = pneg %p165
      %p380 = scmp.lt.s32.totalorder %s25, 1
      %s381 = scalar_select %p380, %s25, 1
      %s382 = scalar_lea.vmem %s6, %s381
      %p383 = pneg %p194
      %p384 = pneg %p191
      %p385 = scmp.lt.s32.totalorder %s25, 1
      %s386 = scalar_select %p385, %s25, 1
      %s387 = scalar_lea.vmem %s7, %s386
      %p388 = pneg %p220
      %p389 = pneg %p217
      %p390 = pneg %p248
      %p391 = pneg %p245
      %s392 = smul.u32 2, %s26
      %p393 = scmp.lt.s32.totalorder %s25, 1
      %s394 = scalar_select %p393, %s25, 1
      %p395 = scmp.lt.s32.totalorder %s392, 1
      %s396 = scalar_select %p395, %s392, 1
      %s397 = smul.addr %s394, 2
      %s398 = sadd.s32 %s396, %s397
      %s399 = smul.addr %s398, 4
      %s400 = scalar_lea.vmem %s8, %s399
      %p401 = pneg %p274
      %p402 = pneg %p271
      %p403 = scmp.lt.s32.totalorder %s25, 1
      %s404 = scalar_select %p403, %s25, 1
      %s405 = scalar_lea.vmem %s9, %s404
      %s406 = smul.u32 2, %s26
      %p407 = scmp.lt.s32.totalorder %s25, 1
      %s408 = scalar_select %p407, %s25, 1
      %p409 = scmp.lt.s32.totalorder %s406, 1
      %s410 = scalar_select %p409, %s406, 1
      %s411 = smul.addr %s408, 2
      %s412 = sadd.s32 %s410, %s411
      %s413 = smul.addr %s412, 4
      %s414 = scalar_lea.vmem %s0, %s413
      %s415 = smul.u32 2, %s26
      %s416 = smul.u32 2, %s26
      %p417 = scmp.lt.s32.totalorder %s25, 1
      %s418 = scalar_select %p417, %s25, 1
      %p419 = scmp.lt.s32.totalorder %s416, 1
      %s420 = scalar_select %p419, %s416, 1
      %s421 = smul.addr %s418, 32
      %s422 = sadd.s32 %s420, %s421
      %s423 = smul.addr %s422, 4
      %s424 = scalar_lea.vmem %s5, %s423
      %s425 = smul.u32 2, %s26
      %p426 = scmp.lt.s32.totalorder %s25, 1
      %s427 = scalar_select %p426, %s25, 1
      %s428 = scalar_lea.vmem %s6, %s427
      %p429 = scmp.lt.s32.totalorder %s25, 1
      %s430 = scalar_select %p429, %s25, 1
      %s431 = scalar_lea.vmem %s7, %s430
      %s432 = smul.u32 2, %s26
      %p433 = scmp.lt.s32.totalorder %s25, 1
      %s434 = scalar_select %p433, %s25, 1
      %p435 = scmp.lt.s32.totalorder %s432, 1
      %s436 = scalar_select %p435, %s432, 1
      %s437 = smul.addr %s434, 2
      %s438 = sadd.s32 %s436, %s437
      %s439 = smul.addr %s438, 4
      %s440 = scalar_lea.vmem %s8, %s439
      %s441 = smul.u32 2, %s26
      %p442 = scmp.lt.s32.totalorder %s25, 1
      %s443 = scalar_select %p442, %s25, 1
      %s444 = scalar_lea.vmem %s9, %s443
      %p445 = scmp.eq.s32.totalorder %s26, 0
      // Predicated region
      $region53: #{closed_call.54} parent=51 // pred_check
        %p446 = pneg %p445
      $region54: #{closed_call.54} parent=51 // pred_check_branch
        %448 = sbr.rel (%p446) target = $region56
      $region55: #{closed_call.54} parent=51 // pred_region
        %vm449 = vcmask 0
        %450 = vst.msk [vmem:[%s444] sm:$0x1] %vm449, 0.0
      $region56: #{closed_call.54} parent=51 // pred_fallthru
        _
      %v451 = vld [vmem:[%s414] sm:$0xff]
      %v452 = vld [vmem:[%s1] sm:$0xff]
      %v453 = vld [vmem:[%s1 + $0x8] sm:$0xff]
      %v454 = vld [vmem:[%s1 + $0x10] sm:$0xff]
      %v455 = vld [vmem:[%s1 + $0x18] sm:$0xff]
      %v456 = vld [vmem:[%s1 + $0x20] sm:$0xff]
      %v457 = vld [vmem:[%s1 + $0x28] sm:$0xff]
      %v458 = vld [vmem:[%s1 + $0x30] sm:$0xff]
      %v459 = vld [vmem:[%s1 + $0x38] sm:$0xff]
      %v460 = vld [vmem:[%s1 + $0x40] sm:$0xff]
      %v461 = vld [vmem:[%s1 + $0x48] sm:$0xff]
      %v462 = vld [vmem:[%s1 + $0x50] sm:$0xff]
      %v463 = vld [vmem:[%s1 + $0x58] sm:$0xff]
      %v464 = vld [vmem:[%s1 + $0x60] sm:$0xff]
      %v465 = vld [vmem:[%s1 + $0x68] sm:$0xff]
      %v466 = vld [vmem:[%s1 + $0x70] sm:$0xff]
      %v467 = vld [vmem:[%s1 + $0x78] sm:$0xff]
      %v468 = vld [vmem:[%s3] sm:$0xff]
      %v469 = vld [vmem:[%s3 + $0x8] sm:$0xff]
      %v470 = vld [vmem:[%s3 + $0x10] sm:$0xff]
      %v471 = vld [vmem:[%s3 + $0x18] sm:$0xff]
      %v472 = vld [vmem:[%s3 + $0x20] sm:$0xff]
      %v473 = vld [vmem:[%s3 + $0x28] sm:$0xff]
      %v474 = vld [vmem:[%s3 + $0x30] sm:$0xff]
      %v475 = vld [vmem:[%s3 + $0x38] sm:$0xff]
      %v476 = vld [vmem:[%s3 + $0x40] sm:$0xff]
      %v477 = vld [vmem:[%s3 + $0x48] sm:$0xff]
      %v478 = vld [vmem:[%s3 + $0x50] sm:$0xff]
      %v479 = vld [vmem:[%s3 + $0x58] sm:$0xff]
      %v480 = vld [vmem:[%s3 + $0x60] sm:$0xff]
      %v481 = vld [vmem:[%s3 + $0x68] sm:$0xff]
      %v482 = vld [vmem:[%s3 + $0x70] sm:$0xff]
      %v483 = vld [vmem:[%s3 + $0x78] sm:$0xff]
      %485 = vset.pattern.permute.xlu0 0
      %486 = vperm.xlu0 %485, %v468
      %v487 = vpop.permute.xlu0 %486
      %490 = vset.pattern.permute.xlu0 0
      %491 = vperm.xlu0 %490, %v469
      %v492 = vpop.permute.xlu0 %491
      %495 = vset.pattern.permute.xlu0 0
      %496 = vperm.xlu0 %495, %v470
      %v497 = vpop.permute.xlu0 %496
      %500 = vset.pattern.permute.xlu0 0
      %501 = vperm.xlu0 %500, %v471
      %v502 = vpop.permute.xlu0 %501
      %505 = vset.pattern.permute.xlu0 0
      %506 = vperm.xlu0 %505, %v472
      %v507 = vpop.permute.xlu0 %506
      %510 = vset.pattern.permute.xlu0 0
      %511 = vperm.xlu0 %510, %v473
      %v512 = vpop.permute.xlu0 %511
      %515 = vset.pattern.permute.xlu0 0
      %516 = vperm.xlu0 %515, %v474
      %v517 = vpop.permute.xlu0 %516
      %520 = vset.pattern.permute.xlu0 0
      %521 = vperm.xlu0 %520, %v475
      %v522 = vpop.permute.xlu0 %521
      %525 = vset.pattern.permute.xlu0 0
      %526 = vperm.xlu0 %525, %v476
      %v527 = vpop.permute.xlu0 %526
      %530 = vset.pattern.permute.xlu0 0
      %531 = vperm.xlu0 %530, %v477
      %v532 = vpop.permute.xlu0 %531
      %535 = vset.pattern.permute.xlu0 0
      %536 = vperm.xlu0 %535, %v478
      %v537 = vpop.permute.xlu0 %536
      %540 = vset.pattern.permute.xlu0 0
      %541 = vperm.xlu0 %540, %v479
      %v542 = vpop.permute.xlu0 %541
      %545 = vset.pattern.permute.xlu0 0
      %546 = vperm.xlu0 %545, %v480
      %v547 = vpop.permute.xlu0 %546
      %550 = vset.pattern.permute.xlu0 0
      %551 = vperm.xlu0 %550, %v481
      %v552 = vpop.permute.xlu0 %551
      %555 = vset.pattern.permute.xlu0 0
      %556 = vperm.xlu0 %555, %v482
      %v557 = vpop.permute.xlu0 %556
      %560 = vset.pattern.permute.xlu0 0
      %561 = vperm.xlu0 %560, %v483
      %v562 = vpop.permute.xlu0 %561
      %v565 = vcombine.high %v451, %v451
      %vm566 = vcmask 31744
      %v568 = vsel %vm566, %v452, 0
      %v571 = vsel %vm566, %v453, 0
      %v574 = vsel %vm566, %v454, 0
      %v577 = vsel %vm566, %v455, 0
      %v580 = vsel %vm566, %v456, 0
      %v583 = vsel %vm566, %v457, 0
      %v586 = vsel %vm566, %v458, 0
      %v589 = vsel %vm566, %v459, 0
      %v592 = vsel %vm566, %v460, 0
      %v595 = vsel %vm566, %v461, 0
      %v598 = vsel %vm566, %v462, 0
      %v601 = vsel %vm566, %v463, 0
      %v604 = vsel %vm566, %v464, 0
      %v607 = vsel %vm566, %v465, 0
      %v610 = vsel %vm566, %v466, 0
      %v613 = vsel %vm566, %v467, 0
      %vm615 = vcmask 1043456
      %v616 = vsel %vm615, %v451, 0
      %v618 = vsel %vm615, %v565, 0
      %620 = vmatprep.subr.mxu0 0.0
      %621 = vmatpush1.msra.mxu0 0.0
      %622 = vmatprep.subr.mxu0 0.0
      %623 = vmatpush1.msra.mxu0 0.0
      %624 = vmatprep.subr.mxu0 0.0
      %625 = vmatpush1.msra.mxu0 0.0
      %626 = vmatprep.subr.mxu0 0.0
      %627 = vmatpush1.msra.mxu0 0.0
      %628 = vmatprep.subr.mxu0 0.0
      %629 = vmatpush1.msra.mxu0 0.0
      %630 = vmatprep.subr.mxu0 0.0
      %631 = vmatpush1.msra.mxu0 0.0
      %632 = vmatprep.subr.mxu0 0.0
      %633 = vmatpush1.msra.mxu0 0.0
      %634 = vmatprep.subr.mxu0 0.0
      %635 = vmatpush1.msra.mxu0 0.0
      %636 = vmatprep.subr.mxu0 0.0
      %637 = vmatpush1.msra.mxu0 0.0
      %638 = vmatprep.subr.mxu0 0.0
      %639 = vmatpush1.msra.mxu0 0.0
      %640 = vmatprep.subr.mxu0 0.0
      %641 = vmatpush1.msra.mxu0 0.0
      %642 = vmatprep.subr.mxu0 0.0
      %643 = vmatpush1.msra.mxu0 0.0
      %644 = vmatprep.subr.mxu0 0.0
      %645 = vmatpush1.msra.mxu0 0.0
      %646 = vmatprep.subr.mxu0 0.0
      %647 = vmatpush1.msra.mxu0 0.0
      %648 = vmatprep.subr.mxu0 0.0
      %649 = vmatpush1.msra.mxu0 0.0
      %650 = vmatprep.subr.mxu0 %v618
      %651 = vmatpush1.msra.mxu0 %v616
      %652 = vmatprep.subr.mxu0 0.0
      %653 = vmatpush2.msra.mxu0 0.0
      %654 = vmatprep.subr.mxu0 0.0
      %655 = vmatpush2.msra.mxu0 0.0
      %656 = vmatprep.subr.mxu0 0.0
      %657 = vmatpush2.msra.mxu0 0.0
      %658 = vmatprep.subr.mxu0 0.0
      %659 = vmatpush2.msra.mxu0 0.0
      %660 = vmatprep.subr.mxu0 0.0
      %661 = vmatpush2.msra.mxu0 0.0
      %662 = vmatprep.subr.mxu0 0.0
      %663 = vmatpush2.msra.mxu0 0.0
      %664 = vmatprep.subr.mxu0 0.0
      %665 = vmatpush2.msra.mxu0 0.0
      %666 = vmatprep.subr.mxu0 0.0
      %667 = vmatpush2.msra.mxu0 0.0
      %668 = vmatprep.subr.mxu0 0.0
      %669 = vmatpush2.msra.mxu0 0.0
      %670 = vmatprep.subr.mxu0 0.0
      %671 = vmatpush2.msra.mxu0 0.0
      %672 = vmatprep.subr.mxu0 0.0
      %673 = vmatpush2.msra.mxu0 0.0
      %674 = vmatprep.subr.mxu0 0.0
      %675 = vmatpush2.msra.mxu0 0.0
      %676 = vmatprep.subr.mxu0 0.0
      %677 = vmatpush2.msra.mxu0 0.0
      %678 = vmatprep.subr.mxu0 0.0
      %679 = vmatpush2.msra.mxu0 0.0
      %680 = vmatprep.subr.mxu0 0.0
      %681 = vmatpush2.msra.mxu0 0.0
      %682 = vmatprep.subr.mxu0 0.0
      %683 = vmatpush2.msra.mxu0 0.0
      %684 = vmatprep.mubr.f32.mxu0 0.0
      %685 = vmatmul.mubr.f32.gmra.mxu0 %v568
      %v686 = vpop.f32.mrf.mxu0
      %v687 = vadd.f32 %v487, %v686
      %v688 = vpop.f32.mrf.mxu0
      %v689 = vadd.f32 %v487, %v688
      %690 = vmatprep.mubr.f32.mxu0 0.0
      %691 = vmatmul.mubr.f32.gmra.mxu0 %v571
      %v692 = vpop.f32.mrf.mxu0
      %v693 = vadd.f32 %v492, %v692
      %v694 = vpop.f32.mrf.mxu0
      %v695 = vadd.f32 %v492, %v694
      %696 = vmatprep.mubr.f32.mxu0 0.0
      %697 = vmatmul.mubr.f32.gmra.mxu0 %v574
      %v698 = vpop.f32.mrf.mxu0
      %v699 = vadd.f32 %v497, %v698
      %v700 = vpop.f32.mrf.mxu0
      %v701 = vadd.f32 %v497, %v700
      %702 = vmatprep.mubr.f32.mxu0 0.0
      %703 = vmatmul.mubr.f32.gmra.mxu0 %v577
      %v704 = vpop.f32.mrf.mxu0
      %v705 = vadd.f32 %v502, %v704
      %v706 = vpop.f32.mrf.mxu0
      %v707 = vadd.f32 %v502, %v706
      %708 = vmatprep.mubr.f32.mxu0 0.0
      %709 = vmatmul.mubr.f32.gmra.mxu0 %v580
      %v710 = vpop.f32.mrf.mxu0
      %v711 = vadd.f32 %v507, %v710
      %v712 = vpop.f32.mrf.mxu0
      %v713 = vadd.f32 %v507, %v712
      %714 = vmatprep.mubr.f32.mxu0 0.0
      %715 = vmatmul.mubr.f32.gmra.mxu0 %v583
      %v716 = vpop.f32.mrf.mxu0
      %v717 = vadd.f32 %v512, %v716
      %v718 = vpop.f32.mrf.mxu0
      %v719 = vadd.f32 %v512, %v718
      %720 = vmatprep.mubr.f32.mxu0 0.0
      %721 = vmatmul.mubr.f32.gmra.mxu0 %v586
      %v722 = vpop.f32.mrf.mxu0
      %v723 = vadd.f32 %v517, %v722
      %v724 = vpop.f32.mrf.mxu0
      %v725 = vadd.f32 %v517, %v724
      %726 = vmatprep.mubr.f32.mxu0 0.0
      %727 = vmatmul.mubr.f32.gmra.mxu0 %v589
      %v728 = vpop.f32.mrf.mxu0
      %v729 = vadd.f32 %v522, %v728
      %v730 = vpop.f32.mrf.mxu0
      %v731 = vadd.f32 %v522, %v730
      %732 = vmatprep.mubr.f32.mxu0 0.0
      %733 = vmatmul.mubr.f32.gmra.mxu0 %v592
      %v734 = vpop.f32.mrf.mxu0
      %v735 = vadd.f32 %v527, %v734
      %v736 = vpop.f32.mrf.mxu0
      %v737 = vadd.f32 %v527, %v736
      %738 = vmatprep.mubr.f32.mxu0 0.0
      %739 = vmatmul.mubr.f32.gmra.mxu0 %v595
      %v740 = vpop.f32.mrf.mxu0
      %v741 = vadd.f32 %v532, %v740
      %v742 = vpop.f32.mrf.mxu0
      %v743 = vadd.f32 %v532, %v742
      %744 = vmatprep.mubr.f32.mxu0 0.0
      %745 = vmatmul.mubr.f32.gmra.mxu0 %v598
      %v746 = vpop.f32.mrf.mxu0
      %v747 = vadd.f32 %v537, %v746
      %v748 = vpop.f32.mrf.mxu0
      %v749 = vadd.f32 %v537, %v748
      %750 = vmatprep.mubr.f32.mxu0 0.0
      %751 = vmatmul.mubr.f32.gmra.mxu0 %v601
      %v752 = vpop.f32.mrf.mxu0
      %v753 = vadd.f32 %v542, %v752
      %v754 = vpop.f32.mrf.mxu0
      %v755 = vadd.f32 %v542, %v754
      %756 = vmatprep.mubr.f32.mxu0 0.0
      %757 = vmatmul.mubr.f32.gmra.mxu0 %v604
      %v758 = vpop.f32.mrf.mxu0
      %v759 = vadd.f32 %v547, %v758
      %v760 = vpop.f32.mrf.mxu0
      %v761 = vadd.f32 %v547, %v760
      %762 = vmatprep.mubr.f32.mxu0 0.0
      %763 = vmatmul.mubr.f32.gmra.mxu0 %v607
      %v764 = vpop.f32.mrf.mxu0
      %v765 = vadd.f32 %v552, %v764
      %v766 = vpop.f32.mrf.mxu0
      %v767 = vadd.f32 %v552, %v766
      %768 = vmatprep.mubr.f32.mxu0 0.0
      %769 = vmatmul.mubr.f32.gmra.mxu0 %v610
      %v770 = vpop.f32.mrf.mxu0
      %v771 = vadd.f32 %v557, %v770
      %v772 = vpop.f32.mrf.mxu0
      %v773 = vadd.f32 %v557, %v772
      %774 = vmatprep.mubr.f32.mxu0 0.0
      %775 = vmatmul.mubr.f32.gmra.mxu0 %v613
      %v776 = vpop.f32.mrf.mxu0
      %v777 = vadd.f32 %v562, %v776
      %v778 = vpop.f32.mrf.mxu0
      %v779 = vadd.f32 %v562, %v778
      %780 = vdwg.mxu0
      %v781 = vmax.f32 %v687, 0.0
      %v782 = vmax.f32 %v689, 0.0
      %v783 = vmax.f32 %v693, 0.0
      %v784 = vmax.f32 %v695, 0.0
      %v785 = vmax.f32 %v699, 0.0
      %v786 = vmax.f32 %v701, 0.0
      %v787 = vmax.f32 %v705, 0.0
      %v788 = vmax.f32 %v707, 0.0
      %v789 = vmax.f32 %v711, 0.0
      %v790 = vmax.f32 %v713, 0.0
      %v791 = vmax.f32 %v717, 0.0
      %v792 = vmax.f32 %v719, 0.0
      %v793 = vmax.f32 %v723, 0.0
      %v794 = vmax.f32 %v725, 0.0
      %v795 = vmax.f32 %v729, 0.0
      %v796 = vmax.f32 %v731, 0.0
      %v797 = vmax.f32 %v735, 0.0
      %v798 = vmax.f32 %v737, 0.0
      %v799 = vmax.f32 %v741, 0.0
      %v800 = vmax.f32 %v743, 0.0
      %v801 = vmax.f32 %v747, 0.0
      %v802 = vmax.f32 %v749, 0.0
      %v803 = vmax.f32 %v753, 0.0
      %v804 = vmax.f32 %v755, 0.0
      %v805 = vmax.f32 %v759, 0.0
      %v806 = vmax.f32 %v761, 0.0
      %v807 = vmax.f32 %v765, 0.0
      %v808 = vmax.f32 %v767, 0.0
      %v809 = vmax.f32 %v771, 0.0
      %v810 = vmax.f32 %v773, 0.0
      %v811 = vmax.f32 %v777, 0.0
      %v812 = vmax.f32 %v779, 0.0
      %v813 = vmul.f32 %v781, %v781
      %v814 = vmul.f32 %v782, %v782
      %v815 = vmul.f32 %v783, %v783
      %v816 = vmul.f32 %v784, %v784
      %v817 = vmul.f32 %v785, %v785
      %v818 = vmul.f32 %v786, %v786
      %v819 = vmul.f32 %v787, %v787
      %v820 = vmul.f32 %v788, %v788
      %v821 = vmul.f32 %v789, %v789
      %v822 = vmul.f32 %v790, %v790
      %v823 = vmul.f32 %v791, %v791
      %v824 = vmul.f32 %v792, %v792
      %v825 = vmul.f32 %v793, %v793
      %v826 = vmul.f32 %v794, %v794
      %v827 = vmul.f32 %v795, %v795
      %v828 = vmul.f32 %v796, %v796
      %v829 = vmul.f32 %v797, %v797
      %v830 = vmul.f32 %v798, %v798
      %v831 = vmul.f32 %v799, %v799
      %v832 = vmul.f32 %v800, %v800
      %v833 = vmul.f32 %v801, %v801
      %v834 = vmul.f32 %v802, %v802
      %v835 = vmul.f32 %v803, %v803
      %v836 = vmul.f32 %v804, %v804
      %v837 = vmul.f32 %v805, %v805
      %v838 = vmul.f32 %v806, %v806
      %v839 = vmul.f32 %v807, %v807
      %v840 = vmul.f32 %v808, %v808
      %v841 = vmul.f32 %v809, %v809
      %v842 = vmul.f32 %v810, %v810
      %v843 = vmul.f32 %v811, %v811
      %v844 = vmul.f32 %v812, %v812
      %v845 = vadd.f32 %v813, %v815
      %v846 = vadd.f32 %v845, %v817
      %v847 = vadd.f32 %v846, %v819
      %v848 = vadd.f32 %v847, %v821
      %v849 = vadd.f32 %v848, %v823
      %v850 = vadd.f32 %v849, %v825
      %v851 = vadd.f32 %v850, %v827
      %v852 = vadd.f32 %v851, %v829
      %v853 = vadd.f32 %v852, %v831
      %v854 = vadd.f32 %v853, %v833
      %v855 = vadd.f32 %v854, %v835
      %v856 = vadd.f32 %v855, %v837
      %v857 = vadd.f32 %v856, %v839
      %v858 = vadd.f32 %v857, %v841
      %v859 = vadd.f32 %v858, %v843
      %v860 = vrot.slane %v859, 4
      %v861 = vadd.f32 %v859, %v860
      %v862 = vrot.slane %v861, 2
      %v863 = vadd.f32 %v861, %v862
      %v864 = vrot.slane %v863, 1
      %v865 = vadd.f32 %v863, %v864
      %v866 = vadd.f32 %v814, %v816
      %v867 = vadd.f32 %v866, %v818
      %v868 = vadd.f32 %v867, %v820
      %v869 = vadd.f32 %v868, %v822
      %v870 = vadd.f32 %v869, %v824
      %v871 = vadd.f32 %v870, %v826
      %v872 = vadd.f32 %v871, %v828
      %v873 = vadd.f32 %v872, %v830
      %v874 = vadd.f32 %v873, %v832
      %v875 = vadd.f32 %v874, %v834
      %v876 = vadd.f32 %v875, %v836
      %v877 = vadd.f32 %v876, %v838
      %v878 = vadd.f32 %v877, %v840
      %v879 = vadd.f32 %v878, %v842
      %v880 = vadd.f32 %v879, %v844
      %v881 = vrot.slane %v880, 4
      %v882 = vadd.f32 %v880, %v881
      %v883 = vrot.slane %v882, 2
      %v884 = vadd.f32 %v882, %v883
      %v885 = vrot.slane %v884, 1
      %v886 = vadd.f32 %v884, %v885
      %v887 = vrsqrt.pop %v865
      %v888 = vmul.f32 %v865, %v887
      %vm889 = vcmp.eq.f32.partialorder %v865, inf
      %v890 = vsel %vm889, %v865, %v888
      %vm891 = vcmp.eq.f32.partialorder %v865, 0.0
      %v892 = vand.u32 %v865, 2147483648
      %v893 = vsel %vm891, %v892, %v890
      %v894 = vrsqrt.pop %v886
      %v895 = vmul.f32 %v886, %v894
      %vm896 = vcmp.eq.f32.partialorder %v886, inf
      %v897 = vsel %vm896, %v886, %v895
      %vm898 = vcmp.eq.f32.partialorder %v886, 0.0
      %v899 = vand.u32 %v886, 2147483648
      %v900 = vsel %vm898, %v899, %v897
      %v901 = vadd.f32 %v893, 1e-10
      %v902 = vadd.f32 %v900, 1e-10
      %v903 = vmul.f32 %v901, 16.0
      %v904 = vmul.f32 %v902, 16.0
      %v905 = vrcp.pop %v903
      %v906 = vmul.f32 1.0, %v905
      %v907 = vrcp.pop %v904
      %v908 = vmul.f32 1.0, %v907
      %v909 = vmul.f32 %v781, %v906
      %v910 = vmul.f32 %v782, %v908
      %v911 = vmul.f32 %v783, %v906
      %v912 = vmul.f32 %v784, %v908
      %v913 = vmul.f32 %v785, %v906
      %v914 = vmul.f32 %v786, %v908
      %v915 = vmul.f32 %v787, %v906
      %v916 = vmul.f32 %v788, %v908
      %v917 = vmul.f32 %v789, %v906
      %v918 = vmul.f32 %v790, %v908
      %v919 = vmul.f32 %v791, %v906
      %v920 = vmul.f32 %v792, %v908
      %v921 = vmul.f32 %v793, %v906
      %v922 = vmul.f32 %v794, %v908
      %v923 = vmul.f32 %v795, %v906
      %v924 = vmul.f32 %v796, %v908
      %v925 = vmul.f32 %v797, %v906
      %v926 = vmul.f32 %v798, %v908
      %v927 = vmul.f32 %v799, %v906
      %v928 = vmul.f32 %v800, %v908
      %v929 = vmul.f32 %v801, %v906
      %v930 = vmul.f32 %v802, %v908
      %v931 = vmul.f32 %v803, %v906
      %v932 = vmul.f32 %v804, %v908
      %v933 = vmul.f32 %v805, %v906
      %v934 = vmul.f32 %v806, %v908
      %v935 = vmul.f32 %v807, %v906
      %v936 = vmul.f32 %v808, %v908
      %v937 = vmul.f32 %v809, %v906
      %v938 = vmul.f32 %v810, %v908
      %v939 = vmul.f32 %v811, %v906
      %v940 = vmul.f32 %v812, %v908
      %v941 = vld [vmem:[%s431] sm:$0x1]
      %v942 = vmul.f32 %v941, 2.0
      %v943 = vld [vmem:[%s424] sm:$0xff]
      %v944 = vld [vmem:[%s424 + $0x8] sm:$0xff]
      %v945 = vld [vmem:[%s424 + $0x10] sm:$0xff]
      %v946 = vld [vmem:[%s424 + $0x18] sm:$0xff]
      %v947 = vld [vmem:[%s424 + $0x20] sm:$0xff]
      %v948 = vld [vmem:[%s424 + $0x28] sm:$0xff]
      %v949 = vld [vmem:[%s424 + $0x30] sm:$0xff]
      %v950 = vld [vmem:[%s424 + $0x38] sm:$0xff]
      %v951 = vld [vmem:[%s424 + $0x40] sm:$0xff]
      %v952 = vld [vmem:[%s424 + $0x48] sm:$0xff]
      %v953 = vld [vmem:[%s424 + $0x50] sm:$0xff]
      %v954 = vld [vmem:[%s424 + $0x58] sm:$0xff]
      %v955 = vld [vmem:[%s424 + $0x60] sm:$0xff]
      %v956 = vld [vmem:[%s424 + $0x68] sm:$0xff]
      %v957 = vld [vmem:[%s424 + $0x70] sm:$0xff]
      %v958 = vld [vmem:[%s424 + $0x78] sm:$0xff]
      %v959 = vunpack.c.l.bf16 %v943
      %v960 = vunpack.c.h.bf16 %v943
      %v961 = vunpack.c.l.bf16 %v944
      %v962 = vunpack.c.h.bf16 %v944
      %v963 = vunpack.c.l.bf16 %v945
      %v964 = vunpack.c.h.bf16 %v945
      %v965 = vunpack.c.l.bf16 %v946
      %v966 = vunpack.c.h.bf16 %v946
      %v967 = vunpack.c.l.bf16 %v947
      %v968 = vunpack.c.h.bf16 %v947
      %v969 = vunpack.c.l.bf16 %v948
      %v970 = vunpack.c.h.bf16 %v948
      %v971 = vunpack.c.l.bf16 %v949
      %v972 = vunpack.c.h.bf16 %v949
      %v973 = vunpack.c.l.bf16 %v950
      %v974 = vunpack.c.h.bf16 %v950
      %v975 = vunpack.c.l.bf16 %v951
      %v976 = vunpack.c.h.bf16 %v951
      %v977 = vunpack.c.l.bf16 %v952
      %v978 = vunpack.c.h.bf16 %v952
      %v979 = vunpack.c.l.bf16 %v953
      %v980 = vunpack.c.h.bf16 %v953
      %v981 = vunpack.c.l.bf16 %v954
      %v982 = vunpack.c.h.bf16 %v954
      %v983 = vunpack.c.l.bf16 %v955
      %v984 = vunpack.c.h.bf16 %v955
      %v985 = vunpack.c.l.bf16 %v956
      %v986 = vunpack.c.h.bf16 %v956
      %v987 = vunpack.c.l.bf16 %v957
      %v988 = vunpack.c.h.bf16 %v957
      %v989 = vunpack.c.l.bf16 %v958
      %v990 = vunpack.c.h.bf16 %v958
      %v991 = vsub.f32 %v909, %v959
      %v992 = vsub.f32 %v910, %v960
      %v993 = vsub.f32 %v911, %v961
      %v994 = vsub.f32 %v912, %v962
      %v995 = vsub.f32 %v913, %v963
      %v996 = vsub.f32 %v914, %v964
      %v997 = vsub.f32 %v915, %v965
      %v998 = vsub.f32 %v916, %v966
      %v999 = vsub.f32 %v917, %v967
      %v1000 = vsub.f32 %v918, %v968
      %v1001 = vsub.f32 %v919, %v969
      %v1002 = vsub.f32 %v920, %v970
      %v1003 = vsub.f32 %v921, %v971
      %v1004 = vsub.f32 %v922, %v972
      %v1005 = vsub.f32 %v923, %v973
      %v1006 = vsub.f32 %v924, %v974
      %v1007 = vsub.f32 %v925, %v975
      %v1008 = vsub.f32 %v926, %v976
      %v1009 = vsub.f32 %v927, %v977
      %v1010 = vsub.f32 %v928, %v978
      %v1011 = vsub.f32 %v929, %v979
      %v1012 = vsub.f32 %v930, %v980
      %v1013 = vsub.f32 %v931, %v981
      %v1014 = vsub.f32 %v932, %v982
      %v1015 = vsub.f32 %v933, %v983
      %v1016 = vsub.f32 %v934, %v984
      %v1017 = vsub.f32 %v935, %v985
      %v1018 = vsub.f32 %v936, %v986
      %v1019 = vsub.f32 %v937, %v987
      %v1020 = vsub.f32 %v938, %v988
      %v1021 = vsub.f32 %v939, %v989
      %v1022 = vsub.f32 %v940, %v990
      %v1024 = vlaneseq
      %v1025 = vshrl.u32 %v1024, 7
      %v1026 = vsub.s32 0, %v1025
      %v1027 = vrot.slane %v942, %v1026
      %1028 = vset.pattern.permute.xlu0 0
      %1029 = vperm.xlu0 %1028, %v1027
      %v1030 = vpop.permute.xlu0 %1029
      %v1032 = vmul.f32 %v1030, %v991
      %v1033 = vmul.f32 %v1030, %v992
      %v1034 = vmul.f32 %v1030, %v993
      %v1035 = vmul.f32 %v1030, %v994
      %v1036 = vmul.f32 %v1030, %v995
      %v1037 = vmul.f32 %v1030, %v996
      %v1038 = vmul.f32 %v1030, %v997
      %v1039 = vmul.f32 %v1030, %v998
      %v1040 = vmul.f32 %v1030, %v999
      %v1041 = vmul.f32 %v1030, %v1000
      %v1042 = vmul.f32 %v1030, %v1001
      %v1043 = vmul.f32 %v1030, %v1002
      %v1044 = vmul.f32 %v1030, %v1003
      %v1045 = vmul.f32 %v1030, %v1004
      %v1046 = vmul.f32 %v1030, %v1005
      %v1047 = vmul.f32 %v1030, %v1006
      %v1048 = vmul.f32 %v1030, %v1007
      %v1049 = vmul.f32 %v1030, %v1008
      %v1050 = vmul.f32 %v1030, %v1009
      %v1051 = vmul.f32 %v1030, %v1010
      %v1052 = vmul.f32 %v1030, %v1011
      %v1053 = vmul.f32 %v1030, %v1012
      %v1054 = vmul.f32 %v1030, %v1013
      %v1055 = vmul.f32 %v1030, %v1014
      %v1056 = vmul.f32 %v1030, %v1015
      %v1057 = vmul.f32 %v1030, %v1016
      %v1058 = vmul.f32 %v1030, %v1017
      %v1059 = vmul.f32 %v1030, %v1018
      %v1060 = vmul.f32 %v1030, %v1019
      %v1061 = vmul.f32 %v1030, %v1020
      %v1062 = vmul.f32 %v1030, %v1021
      %v1063 = vmul.f32 %v1030, %v1022
      %v1064 = vmul.f32 %v1032, %v909
      %v1065 = vmul.f32 %v1033, %v910
      %v1066 = vmul.f32 %v1034, %v911
      %v1067 = vmul.f32 %v1035, %v912
      %v1068 = vmul.f32 %v1036, %v913
      %v1069 = vmul.f32 %v1037, %v914
      %v1070 = vmul.f32 %v1038, %v915
      %v1071 = vmul.f32 %v1039, %v916
      %v1072 = vmul.f32 %v1040, %v917
      %v1073 = vmul.f32 %v1041, %v918
      %v1074 = vmul.f32 %v1042, %v919
      %v1075 = vmul.f32 %v1043, %v920
      %v1076 = vmul.f32 %v1044, %v921
      %v1077 = vmul.f32 %v1045, %v922
      %v1078 = vmul.f32 %v1046, %v923
      %v1079 = vmul.f32 %v1047, %v924
      %v1080 = vmul.f32 %v1048, %v925
      %v1081 = vmul.f32 %v1049, %v926
      %v1082 = vmul.f32 %v1050, %v927
      %v1083 = vmul.f32 %v1051, %v928
      %v1084 = vmul.f32 %v1052, %v929
      %v1085 = vmul.f32 %v1053, %v930
      %v1086 = vmul.f32 %v1054, %v931
      %v1087 = vmul.f32 %v1055, %v932
      %v1088 = vmul.f32 %v1056, %v933
      %v1089 = vmul.f32 %v1057, %v934
      %v1090 = vmul.f32 %v1058, %v935
      %v1091 = vmul.f32 %v1059, %v936
      %v1092 = vmul.f32 %v1060, %v937
      %v1093 = vmul.f32 %v1061, %v938
      %v1094 = vmul.f32 %v1062, %v939
      %v1095 = vmul.f32 %v1063, %v940
      %v1096 = vadd.f32 %v1064, %v1066
      %v1097 = vadd.f32 %v1096, %v1068
      %v1098 = vadd.f32 %v1097, %v1070
      %v1099 = vadd.f32 %v1098, %v1072
      %v1100 = vadd.f32 %v1099, %v1074
      %v1101 = vadd.f32 %v1100, %v1076
      %v1102 = vadd.f32 %v1101, %v1078
      %v1103 = vadd.f32 %v1102, %v1080
      %v1104 = vadd.f32 %v1103, %v1082
      %v1105 = vadd.f32 %v1104, %v1084
      %v1106 = vadd.f32 %v1105, %v1086
      %v1107 = vadd.f32 %v1106, %v1088
      %v1108 = vadd.f32 %v1107, %v1090
      %v1109 = vadd.f32 %v1108, %v1092
      %v1110 = vadd.f32 %v1109, %v1094
      %v1111 = vrot.slane %v1110, 4
      %v1112 = vadd.f32 %v1110, %v1111
      %v1113 = vrot.slane %v1112, 2
      %v1114 = vadd.f32 %v1112, %v1113
      %v1115 = vrot.slane %v1114, 1
      %v1116 = vadd.f32 %v1114, %v1115
      %v1117 = vadd.f32 %v1065, %v1067
      %v1118 = vadd.f32 %v1117, %v1069
      %v1119 = vadd.f32 %v1118, %v1071
      %v1120 = vadd.f32 %v1119, %v1073
      %v1121 = vadd.f32 %v1120, %v1075
      %v1122 = vadd.f32 %v1121, %v1077
      %v1123 = vadd.f32 %v1122, %v1079
      %v1124 = vadd.f32 %v1123, %v1081
      %v1125 = vadd.f32 %v1124, %v1083
      %v1126 = vadd.f32 %v1125, %v1085
      %v1127 = vadd.f32 %v1126, %v1087
      %v1128 = vadd.f32 %v1127, %v1089
      %v1129 = vadd.f32 %v1128, %v1091
      %v1130 = vadd.f32 %v1129, %v1093
      %v1131 = vadd.f32 %v1130, %v1095
      %v1132 = vrot.slane %v1131, 4
      %v1133 = vadd.f32 %v1131, %v1132
      %v1134 = vrot.slane %v1133, 2
      %v1135 = vadd.f32 %v1133, %v1134
      %v1136 = vrot.slane %v1135, 1
      %v1137 = vadd.f32 %v1135, %v1136
      %v1138 = vmul.f32 %v1032, %v906
      %v1139 = vmul.f32 %v1033, %v908
      %v1140 = vmul.f32 %v1034, %v906
      %v1141 = vmul.f32 %v1035, %v908
      %v1142 = vmul.f32 %v1036, %v906
      %v1143 = vmul.f32 %v1037, %v908
      %v1144 = vmul.f32 %v1038, %v906
      %v1145 = vmul.f32 %v1039, %v908
      %v1146 = vmul.f32 %v1040, %v906
      %v1147 = vmul.f32 %v1041, %v908
      %v1148 = vmul.f32 %v1042, %v906
      %v1149 = vmul.f32 %v1043, %v908
      %v1150 = vmul.f32 %v1044, %v906
      %v1151 = vmul.f32 %v1045, %v908
      %v1152 = vmul.f32 %v1046, %v906
      %v1153 = vmul.f32 %v1047, %v908
      %v1154 = vmul.f32 %v1048, %v906
      %v1155 = vmul.f32 %v1049, %v908
      %v1156 = vmul.f32 %v1050, %v906
      %v1157 = vmul.f32 %v1051, %v908
      %v1158 = vmul.f32 %v1052, %v906
      %v1159 = vmul.f32 %v1053, %v908
      %v1160 = vmul.f32 %v1054, %v906
      %v1161 = vmul.f32 %v1055, %v908
      %v1162 = vmul.f32 %v1056, %v906
      %v1163 = vmul.f32 %v1057, %v908
      %v1164 = vmul.f32 %v1058, %v906
      %v1165 = vmul.f32 %v1059, %v908
      %v1166 = vmul.f32 %v1060, %v906
      %v1167 = vmul.f32 %v1061, %v908
      %v1168 = vmul.f32 %v1062, %v906
      %v1169 = vmul.f32 %v1063, %v908
      %v1170 = vmul.f32 %v1116, 16.0
      %v1171 = vmul.f32 %v1137, 16.0
      %v1172 = vmax.f32 %v893, 1e-20
      %v1173 = vmax.f32 %v900, 1e-20
      %v1174 = vrcp.pop %v1172
      %v1175 = vmul.f32 %v1170, %v1174
      %v1176 = vrcp.pop %v1173
      %v1177 = vmul.f32 %v1171, %v1176
      %v1178 = vmul.f32 %v909, %v1175
      %v1179 = vmul.f32 %v910, %v1177
      %v1180 = vmul.f32 %v911, %v1175
      %v1181 = vmul.f32 %v912, %v1177
      %v1182 = vmul.f32 %v913, %v1175
      %v1183 = vmul.f32 %v914, %v1177
      %v1184 = vmul.f32 %v915, %v1175
      %v1185 = vmul.f32 %v916, %v1177
      %v1186 = vmul.f32 %v917, %v1175
      %v1187 = vmul.f32 %v918, %v1177
      %v1188 = vmul.f32 %v919, %v1175
      %v1189 = vmul.f32 %v920, %v1177
      %v1190 = vmul.f32 %v921, %v1175
      %v1191 = vmul.f32 %v922, %v1177
      %v1192 = vmul.f32 %v923, %v1175
      %v1193 = vmul.f32 %v924, %v1177
      %v1194 = vmul.f32 %v925, %v1175
      %v1195 = vmul.f32 %v926, %v1177
      %v1196 = vmul.f32 %v927, %v1175
      %v1197 = vmul.f32 %v928, %v1177
      %v1198 = vmul.f32 %v929, %v1175
      %v1199 = vmul.f32 %v930, %v1177
      %v1200 = vmul.f32 %v931, %v1175
      %v1201 = vmul.f32 %v932, %v1177
      %v1202 = vmul.f32 %v933, %v1175
      %v1203 = vmul.f32 %v934, %v1177
      %v1204 = vmul.f32 %v935, %v1175
      %v1205 = vmul.f32 %v936, %v1177
      %v1206 = vmul.f32 %v937, %v1175
      %v1207 = vmul.f32 %v938, %v1177
      %v1208 = vmul.f32 %v939, %v1175
      %v1209 = vmul.f32 %v940, %v1177
      %v1210 = vsub.f32 %v1138, %v1178
      %v1211 = vsub.f32 %v1139, %v1179
      %v1212 = vsub.f32 %v1140, %v1180
      %v1213 = vsub.f32 %v1141, %v1181
      %v1214 = vsub.f32 %v1142, %v1182
      %v1215 = vsub.f32 %v1143, %v1183
      %v1216 = vsub.f32 %v1144, %v1184
      %v1217 = vsub.f32 %v1145, %v1185
      %v1218 = vsub.f32 %v1146, %v1186
      %v1219 = vsub.f32 %v1147, %v1187
      %v1220 = vsub.f32 %v1148, %v1188
      %v1221 = vsub.f32 %v1149, %v1189
      %v1222 = vsub.f32 %v1150, %v1190
      %v1223 = vsub.f32 %v1151, %v1191
      %v1224 = vsub.f32 %v1152, %v1192
      %v1225 = vsub.f32 %v1153, %v1193
      %v1226 = vsub.f32 %v1154, %v1194
      %v1227 = vsub.f32 %v1155, %v1195
      %v1228 = vsub.f32 %v1156, %v1196
      %v1229 = vsub.f32 %v1157, %v1197
      %v1230 = vsub.f32 %v1158, %v1198
      %v1231 = vsub.f32 %v1159, %v1199
      %v1232 = vsub.f32 %v1160, %v1200
      %v1233 = vsub.f32 %v1161, %v1201
      %v1234 = vsub.f32 %v1162, %v1202
      %v1235 = vsub.f32 %v1163, %v1203
      %v1236 = vsub.f32 %v1164, %v1204
      %v1237 = vsub.f32 %v1165, %v1205
      %v1238 = vsub.f32 %v1166, %v1206
      %v1239 = vsub.f32 %v1167, %v1207
      %v1240 = vsub.f32 %v1168, %v1208
      %v1241 = vsub.f32 %v1169, %v1209
      %v1242 = vld [vmem:[%s4] sm:$0xff]
      %v1243 = vld [vmem:[%s4 + $0x8] sm:$0xff]
      %v1244 = vld [vmem:[%s4 + $0x10] sm:$0xff]
      %v1245 = vld [vmem:[%s4 + $0x18] sm:$0xff]
      %v1246 = vld [vmem:[%s4 + $0x20] sm:$0xff]
      %v1247 = vld [vmem:[%s4 + $0x28] sm:$0xff]
      %v1248 = vld [vmem:[%s4 + $0x30] sm:$0xff]
      %v1249 = vld [vmem:[%s4 + $0x38] sm:$0xff]
      %v1250 = vld [vmem:[%s4 + $0x40] sm:$0xff]
      %v1251 = vld [vmem:[%s4 + $0x48] sm:$0xff]
      %v1252 = vld [vmem:[%s4 + $0x50] sm:$0xff]
      %v1253 = vld [vmem:[%s4 + $0x58] sm:$0xff]
      %v1254 = vld [vmem:[%s4 + $0x60] sm:$0xff]
      %v1255 = vld [vmem:[%s4 + $0x68] sm:$0xff]
      %v1256 = vld [vmem:[%s4 + $0x70] sm:$0xff]
      %v1257 = vld [vmem:[%s4 + $0x78] sm:$0xff]
      %v1258 = vld [vmem:[%s428] sm:$0x1]
      %v1260 = vlaneseq
      %v1261 = vshrl.u32 %v1260, 7
      %v1262 = vsub.s32 0, %v1261
      %v1263 = vrot.slane %v1258, %v1262
      %v1265 = vmul.f32 %v1242, %v1263
      %v1266 = vmul.f32 %v1243, %v1263
      %v1267 = vmul.f32 %v1244, %v1263
      %v1268 = vmul.f32 %v1245, %v1263
      %v1269 = vmul.f32 %v1246, %v1263
      %v1270 = vmul.f32 %v1247, %v1263
      %v1271 = vmul.f32 %v1248, %v1263
      %v1272 = vmul.f32 %v1249, %v1263
      %v1273 = vmul.f32 %v1250, %v1263
      %v1274 = vmul.f32 %v1251, %v1263
      %v1275 = vmul.f32 %v1252, %v1263
      %v1276 = vmul.f32 %v1253, %v1263
      %v1277 = vmul.f32 %v1254, %v1263
      %v1278 = vmul.f32 %v1255, %v1263
      %v1279 = vmul.f32 %v1256, %v1263
      %v1280 = vmul.f32 %v1257, %v1263
      %1281 = vadd.xlane.f32.xlu0 %v1265
      %v1282 = vpop.xlane.xlu0 %1281
      %1283 = vadd.xlane.f32.xlu0 %v1266
      %v1284 = vpop.xlane.xlu0 %1283
      %1285 = vadd.xlane.f32.xlu0 %v1267
      %v1286 = vpop.xlane.xlu0 %1285
      %1287 = vadd.xlane.f32.xlu0 %v1268
      %v1288 = vpop.xlane.xlu0 %1287
      %1289 = vadd.xlane.f32.xlu0 %v1269
      %v1290 = vpop.xlane.xlu0 %1289
      %1291 = vadd.xlane.f32.xlu0 %v1270
      %v1292 = vpop.xlane.xlu0 %1291
      %1293 = vadd.xlane.f32.xlu0 %v1271
      %v1294 = vpop.xlane.xlu0 %1293
      %1295 = vadd.xlane.f32.xlu0 %v1272
      %v1296 = vpop.xlane.xlu0 %1295
      %1297 = vadd.xlane.f32.xlu0 %v1273
      %v1298 = vpop.xlane.xlu0 %1297
      %1299 = vadd.xlane.f32.xlu0 %v1274
      %v1300 = vpop.xlane.xlu0 %1299
      %1301 = vadd.xlane.f32.xlu0 %v1275
      %v1302 = vpop.xlane.xlu0 %1301
      %1303 = vadd.xlane.f32.xlu0 %v1276
      %v1304 = vpop.xlane.xlu0 %1303
      %1305 = vadd.xlane.f32.xlu0 %v1277
      %v1306 = vpop.xlane.xlu0 %1305
      %1307 = vadd.xlane.f32.xlu0 %v1278
      %v1308 = vpop.xlane.xlu0 %1307
      %1309 = vadd.xlane.f32.xlu0 %v1279
      %v1310 = vpop.xlane.xlu0 %1309
      %1311 = vadd.xlane.f32.xlu0 %v1280
      %v1312 = vpop.xlane.xlu0 %1311
      %v1313 = vmul.f32 %v1282, 0.00390625
      %v1314 = vmul.f32 %v1284, 0.00390625
      %v1315 = vmul.f32 %v1286, 0.00390625
      %v1316 = vmul.f32 %v1288, 0.00390625
      %v1317 = vmul.f32 %v1290, 0.00390625
      %v1318 = vmul.f32 %v1292, 0.00390625
      %v1319 = vmul.f32 %v1294, 0.00390625
      %v1320 = vmul.f32 %v1296, 0.00390625
      %v1321 = vmul.f32 %v1298, 0.00390625
      %v1322 = vmul.f32 %v1300, 0.00390625
      %v1323 = vmul.f32 %v1302, 0.00390625
      %v1324 = vmul.f32 %v1304, 0.00390625
      %v1325 = vmul.f32 %v1306, 0.00390625
      %v1326 = vmul.f32 %v1308, 0.00390625
      %v1327 = vmul.f32 %v1310, 0.00390625
      %v1328 = vmul.f32 %v1312, 0.00390625
      %v1329 = vadd.f32 %v1210, %v1313
      %v1330 = vadd.f32 %v1211, %v1313
      %v1331 = vadd.f32 %v1212, %v1314
      %v1332 = vadd.f32 %v1213, %v1314
      %v1333 = vadd.f32 %v1214, %v1315
      %v1334 = vadd.f32 %v1215, %v1315
      %v1335 = vadd.f32 %v1216, %v1316
      %v1336 = vadd.f32 %v1217, %v1316
      %v1337 = vadd.f32 %v1218, %v1317
      %v1338 = vadd.f32 %v1219, %v1317
      %v1339 = vadd.f32 %v1220, %v1318
      %v1340 = vadd.f32 %v1221, %v1318
      %v1341 = vadd.f32 %v1222, %v1319
      %v1342 = vadd.f32 %v1223, %v1319
      %v1343 = vadd.f32 %v1224, %v1320
      %v1344 = vadd.f32 %v1225, %v1320
      %v1345 = vadd.f32 %v1226, %v1321
      %v1346 = vadd.f32 %v1227, %v1321
      %v1347 = vadd.f32 %v1228, %v1322
      %v1348 = vadd.f32 %v1229, %v1322
      %v1349 = vadd.f32 %v1230, %v1323
      %v1350 = vadd.f32 %v1231, %v1323
      %v1351 = vadd.f32 %v1232, %v1324
      %v1352 = vadd.f32 %v1233, %v1324
      %v1353 = vadd.f32 %v1234, %v1325
      %v1354 = vadd.f32 %v1235, %v1325
      %v1355 = vadd.f32 %v1236, %v1326
      %v1356 = vadd.f32 %v1237, %v1326
      %v1357 = vadd.f32 %v1238, %v1327
      %v1358 = vadd.f32 %v1239, %v1327
      %v1359 = vadd.f32 %v1240, %v1328
      %v1360 = vadd.f32 %v1241, %v1328
      %vm1361 = vcmp.gt.f32.partialorder %v687, 0.0
      %vm1362 = vcmp.gt.f32.partialorder %v689, 0.0
      %vm1363 = vcmp.gt.f32.partialorder %v693, 0.0
      %vm1364 = vcmp.gt.f32.partialorder %v695, 0.0
      %vm1365 = vcmp.gt.f32.partialorder %v699, 0.0
      %vm1366 = vcmp.gt.f32.partialorder %v701, 0.0
      %vm1367 = vcmp.gt.f32.partialorder %v705, 0.0
      %vm1368 = vcmp.gt.f32.partialorder %v707, 0.0
      %vm1369 = vcmp.gt.f32.partialorder %v711, 0.0
      %vm1370 = vcmp.gt.f32.partialorder %v713, 0.0
      %vm1371 = vcmp.gt.f32.partialorder %v717, 0.0
      %vm1372 = vcmp.gt.f32.partialorder %v719, 0.0
      %vm1373 = vcmp.gt.f32.partialorder %v723, 0.0
      %vm1374 = vcmp.gt.f32.partialorder %v725, 0.0
      %vm1375 = vcmp.gt.f32.partialorder %v729, 0.0
      %vm1376 = vcmp.gt.f32.partialorder %v731, 0.0
      %vm1377 = vcmp.gt.f32.partialorder %v735, 0.0
      %vm1378 = vcmp.gt.f32.partialorder %v737, 0.0
      %vm1379 = vcmp.gt.f32.partialorder %v741, 0.0
      %vm1380 = vcmp.gt.f32.partialorder %v743, 0.0
      %vm1381 = vcmp.gt.f32.partialorder %v747, 0.0
      %vm1382 = vcmp.gt.f32.partialorder %v749, 0.0
      %vm1383 = vcmp.gt.f32.partialorder %v753, 0.0
      %vm1384 = vcmp.gt.f32.partialorder %v755, 0.0
      %vm1385 = vcmp.gt.f32.partialorder %v759, 0.0
      %vm1386 = vcmp.gt.f32.partialorder %v761, 0.0
      %vm1387 = vcmp.gt.f32.partialorder %v765, 0.0
      %vm1388 = vcmp.gt.f32.partialorder %v767, 0.0
      %vm1389 = vcmp.gt.f32.partialorder %v771, 0.0
      %vm1390 = vcmp.gt.f32.partialorder %v773, 0.0
      %vm1391 = vcmp.gt.f32.partialorder %v777, 0.0
      %vm1392 = vcmp.gt.f32.partialorder %v779, 0.0
      %v1393 = vsel %vm1361, %v1329, 0.0
      %v1394 = vsel %vm1362, %v1330, 0.0
      %v1395 = vsel %vm1363, %v1331, 0.0
      %v1396 = vsel %vm1364, %v1332, 0.0
      %v1397 = vsel %vm1365, %v1333, 0.0
      %v1398 = vsel %vm1366, %v1334, 0.0
      %v1399 = vsel %vm1367, %v1335, 0.0
      %v1400 = vsel %vm1368, %v1336, 0.0
      %v1401 = vsel %vm1369, %v1337, 0.0
      %v1402 = vsel %vm1370, %v1338, 0.0
      %v1403 = vsel %vm1371, %v1339, 0.0
      %v1404 = vsel %vm1372, %v1340, 0.0
      %v1405 = vsel %vm1373, %v1341, 0.0
      %v1406 = vsel %vm1374, %v1342, 0.0
      %v1407 = vsel %vm1375, %v1343, 0.0
      %v1408 = vsel %vm1376, %v1344, 0.0
      %v1409 = vsel %vm1377, %v1345, 0.0
      %v1410 = vsel %vm1378, %v1346, 0.0
      %v1411 = vsel %vm1379, %v1347, 0.0
      %v1412 = vsel %vm1380, %v1348, 0.0
      %v1413 = vsel %vm1381, %v1349, 0.0
      %v1414 = vsel %vm1382, %v1350, 0.0
      %v1415 = vsel %vm1383, %v1351, 0.0
      %v1416 = vsel %vm1384, %v1352, 0.0
      %v1417 = vsel %vm1385, %v1353, 0.0
      %v1418 = vsel %vm1386, %v1354, 0.0
      %v1419 = vsel %vm1387, %v1355, 0.0
      %v1420 = vsel %vm1388, %v1356, 0.0
      %v1421 = vsel %vm1389, %v1357, 0.0
      %v1422 = vsel %vm1390, %v1358, 0.0
      %v1423 = vsel %vm1391, %v1359, 0.0
      %v1424 = vsel %vm1392, %v1360, 0.0
      %v1425 = vld [vmem:[%s2] sm:$0xf]
      %1426 = vmatprep.subr.mxu0 %v1424
      %1427 = vmatpush1.msra.mxu0 %v1423
      %1428 = vmatprep.subr.mxu0 %v1422
      %1429 = vmatpush1.msra.mxu0 %v1421
      %1430 = vmatprep.subr.mxu0 %v1420
      %1431 = vmatpush1.msra.mxu0 %v1419
      %1432 = vmatprep.subr.mxu0 %v1418
      %1433 = vmatpush1.msra.mxu0 %v1417
      %1434 = vmatprep.subr.mxu0 %v1416
      %1435 = vmatpush1.msra.mxu0 %v1415
      %1436 = vmatprep.subr.mxu0 %v1414
      %1437 = vmatpush1.msra.mxu0 %v1413
      %1438 = vmatprep.subr.mxu0 %v1412
      %1439 = vmatpush1.msra.mxu0 %v1411
      %1440 = vmatprep.subr.mxu0 %v1410
      %1441 = vmatpush1.msra.mxu0 %v1409
      %1442 = vmatprep.subr.mxu0 %v1408
      %1443 = vmatpush1.msra.mxu0 %v1407
      %1444 = vmatprep.subr.mxu0 %v1406
      %1445 = vmatpush1.msra.mxu0 %v1405
      %1446 = vmatprep.subr.mxu0 %v1404
      %1447 = vmatpush1.msra.mxu0 %v1403
      %1448 = vmatprep.subr.mxu0 %v1402
      %1449 = vmatpush1.msra.mxu0 %v1401
      %1450 = vmatprep.subr.mxu0 %v1400
      %1451 = vmatpush1.msra.mxu0 %v1399
      %1452 = vmatprep.subr.mxu0 %v1398
      %1453 = vmatpush1.msra.mxu0 %v1397
      %1454 = vmatprep.subr.mxu0 %v1396
      %1455 = vmatpush1.msra.mxu0 %v1395
      %1456 = vmatprep.subr.mxu0 %v1394
      %1457 = vmatpush1.msra.mxu0 %v1393
      %1458 = vmatprep.subr.mxu0 0.0
      %1459 = vmatpush2.msra.mxu0 0.0
      %1460 = vmatprep.subr.mxu0 0.0
      %1461 = vmatpush2.msra.mxu0 0.0
      %1462 = vmatprep.subr.mxu0 0.0
      %1463 = vmatpush2.msra.mxu0 0.0
      %1464 = vmatprep.subr.mxu0 0.0
      %1465 = vmatpush2.msra.mxu0 0.0
      %1466 = vmatprep.subr.mxu0 0.0
      %1467 = vmatpush2.msra.mxu0 0.0
      %1468 = vmatprep.subr.mxu0 0.0
      %1469 = vmatpush2.msra.mxu0 0.0
      %1470 = vmatprep.subr.mxu0 0.0
      %1471 = vmatpush2.msra.mxu0 0.0
      %1472 = vmatprep.subr.mxu0 0.0
      %1473 = vmatpush2.msra.mxu0 0.0
      %1474 = vmatprep.subr.mxu0 0.0
      %1475 = vmatpush2.msra.mxu0 0.0
      %1476 = vmatprep.subr.mxu0 0.0
      %1477 = vmatpush2.msra.mxu0 0.0
      %1478 = vmatprep.subr.mxu0 0.0
      %1479 = vmatpush2.msra.mxu0 0.0
      %1480 = vmatprep.subr.mxu0 0.0
      %1481 = vmatpush2.msra.mxu0 0.0
      %1482 = vmatprep.subr.mxu0 0.0
      %1483 = vmatpush2.msra.mxu0 0.0
      %1484 = vmatprep.subr.mxu0 0.0
      %1485 = vmatpush2.msra.mxu0 0.0
      %1486 = vmatprep.subr.mxu0 0.0
      %1487 = vmatpush2.msra.mxu0 0.0
      %1488 = vmatprep.subr.mxu0 0.0
      %1489 = vmatpush2.msra.mxu0 0.0
      %1490 = vmatprep.mubr.f32.mxu0 0.0
      %1491 = vmatmul.mubr.f32.gmra.mxu0 %v1425
      %v1492 = vpop.f32.mrf.mxu0
      %v1493 = vadd.f32 0.0, %v1492
      %v1494 = vpop.f32.mrf.mxu0
      %v1495 = vadd.f32 0.0, %v1494
      %1496 = vdwg.mxu0
      %v1499 = vcombine.low %v1493, %v1495
      %1501 = vst [vmem:[%s440] sm:$0xff] %v1499
      %v1502 = vld [vmem:[%s444] sm:$0x1]
      %v1503 = vmul.f32 %v1493, %v1493
      %v1504 = vmul.f32 %v1495, %v1495
      %v1505 = vsel %vm615, %v1503, 0.0
      %v1506 = vsel %vm615, %v1504, 0.0
      %v1507 = vadd.f32 %v1505, %v1506
      %1508 = vadd.xlane.f32.xlu0 %v1507
      %v1509 = vpop.xlane.xlu0 %1508
      %v1510 = vsel %vm615, %v1509, 0.0
      %v1511 = vrot.slane %v1510, 4
      %v1512 = vadd.f32 %v1510, %v1511
      %v1513 = vrot.slane %v1512, 2
      %v1514 = vadd.f32 %v1512, %v1513
      %v1515 = vrot.slane %v1514, 1
      %v1516 = vadd.f32 %v1514, %v1515
      %v1517 = vadd.f32 %v1502, %v1516
      %vm1518 = vcmask 0
      %1519 = vst.msk [vmem:[%s444] sm:$0x1] %vm1518, %v1517
      %s1520 = smul.u32 2, %s26
      %p1521 = scmp.lt.s32.totalorder %s25, 1
      %s1522 = scalar_select %p1521, %s25, 1
      %p1523 = scmp.lt.s32.totalorder %s1520, 1
      %s1524 = scalar_select %p1523, %s1520, 1
      %s1525 = smul.addr %s1522, 2
      %s1526 = sadd.s32 %s1524, %s1525
      %s1527 = smul.addr %s1526, 4
      %s1528 = scalar_lea.vmem %s8, %s1527
      %p1529 = scmp.lt.s32.totalorder %s25, 1
      %s1530 = scalar_select %p1529, %s25, 1
      %s1531 = scalar_lea.vmem %s9, %s1530
      // Predicated region
      $region57: #{closed_call.54} parent=51 // pred_check
        %p1532 = pneg %p245
      $region58: #{closed_call.54} parent=51 // pred_check_branch
        %1534 = sbr.rel (%p1532) target = $region60
      $region59: #{closed_call.54} parent=51 // pred_region
        %s1535 = smul.u32 2, %s26
      $region60: #{closed_call.54} parent=51 // pred_fallthru
        _
      // Predicated region
      $region61: #{closed_call.54} parent=51 // pred_check
        %p1536 = pneg %p271
      $region62: #{closed_call.54} parent=51 // pred_check_branch
        %1538 = sbr.rel (%p1536) target = $region64
      $region63: #{closed_call.54} parent=51 // pred_region
        _
      $region64: #{closed_call.54} parent=51 // pred_fallthru
        _
    $region52: #{closed_call.54} parent=5 // pred_fallthru
      _
    %p1539 = scmp.le.s32.totalorder 2, %s16
    // Predicated region
    $region65: #{closed_call.54} parent=5 // pred_check
      %p1540 = pneg %p1539
    $region66: #{closed_call.54} parent=5 // pred_check_branch
      %1542 = sbr.rel (%p1540) target = $region68
    $region67: #{closed_call.54} parent=5 // pred_region
      %s1543 = ssub.s32 %s16, 2
      // Predicated region
      $region69: #{closed_call.54} parent=67 // pred_check
        %p1544 = pneg %p251
      $region70: #{closed_call.54} parent=67 // pred_check_branch
        %1546 = sbr.rel (%p1544) target = $region72
      $region71: #{closed_call.54} parent=67 // pred_region
        %s1547 = smul.u32 2, %s28
        %p1548 = scmp.lt.s32.totalorder %s27, 1
        %s1549 = scalar_select %p1548, %s27, 1
        %p1550 = scmp.lt.s32.totalorder %s1547, 1
        %s1551 = scalar_select %p1550, %s1547, 1
        %s1552 = smul.addr %s1549, 2
        %s1553 = sadd.s32 %s1551, %s1552
        %s1554 = smul.addr %s1553, 4
        %s1555 = scalar_lea.vmem %s8, %s1554
      $region72: #{closed_call.54} parent=67 // pred_fallthru
        _
      // Predicated region
      $region73: #{closed_call.54} parent=67 // pred_check
        %p1556 = pneg %p277
      $region74: #{closed_call.54} parent=67 // pred_check_branch
        %1558 = sbr.rel (%p1556) target = $region76
      $region75: #{closed_call.54} parent=67 // pred_region
        %p1559 = scmp.lt.s32.totalorder %s27, 1
        %s1560 = scalar_select %p1559, %s27, 1
        %s1561 = scalar_lea.vmem %s9, %s1560
      $region76: #{closed_call.54} parent=67 // pred_fallthru
        _
    $region68: #{closed_call.54} parent=5 // pred_fallthru
      _
  $region6: #{closed_call.54} parent=0 // loop_footer
    %s20 = sadd.s32 1, %s16
  $region7: #{closed_call.54} parent=0 // loop_footer_branch
    %15 = sbr.rel target = $region3
  $region8: #{closed_call.54} parent=0 // loop_exit
    _

// kernel: closed_call.52
$region0: #{closed_call.52}
  #allocation0 [shape = 'u32[]', space=smem, size = 0x4, offset = 0x4, fixed_abs, tag = 'smem constant byte address 0x4 - core index']
  #allocation1 [shape = 'u32[144,128]{1,0:T(1,128)}', space=vmem, size = 0x12000, scoped, tag = 'internal scratch']
  %s0 = inlined_call_operand.vmem [shape: f32[2,4,256], index: 0, kind: input, shape index: {}]
  %s1 = inlined_call_operand.vmem [shape: f32[128,4], index: 1, kind: input, shape index: {}]
  %s2 = inlined_call_operand.vmem [shape: f32[128,1], index: 2, kind: input, shape index: {}]
  %s3 = inlined_call_operand.vmem [shape: bf16[2,128,256], index: 3, kind: input, shape index: {}]
  %s4 = inlined_call_operand.vmem [shape: f32[2,1,1], index: 4, kind: output, shape index: {}]
  %s5 = sld [smem:[#allocation0]]
  $region53: #{closed_call.52} parent=0
    _
  %s7 = ssub.s32 1, %s5
  %s8 = scalar_select 0, %s7, %s5
  loop: start=0, step=1, limit=4
  $region2: #{closed_call.52} parent=0 // loop_pre_header
    _
  $region3: #{closed_call.52} parent=0 // loop_header
    %s10 = sphi 0, %s14
    %p11 = scmp.ge.s32.totalorder %s10, 4
    %s17 = sphi 0, %s29
    %s18 = sphi 0, %s25
    %s19 = sphi 0, %s17
    %s20 = sphi 0, %s18
    %s21 = sphi 0, %s19
    %s22 = sphi 0, %s20
    %s34 = sphi 0, %s36
    %s37 = sphi 0, %s34
    %s38 = sphi 0, %s37
    %s54 = sphi 0, %s38
    %s58 = sphi 0, %s58
    %s60 = sphi 0, %s58
    %s61 = sphi 0, %s60
    %s75 = sphi 0, %s61
    %s79 = sphi 0, %s79
    %s81 = sphi 0, %s79
    %s82 = sphi 0, %s81
    %s96 = sphi 0, %s82
    %s104 = sphi 0, %s106
    %s107 = sphi 0, %s104
    %s108 = sphi 0, %s107
    %s124 = sphi 0, %s108
    %s130 = sphi 0, %s132
    %s133 = sphi 0, %s130
    %s134 = sphi 0, %s133
    %s150 = sphi 0, %s134
  $region4: #{closed_call.52} parent=0 // loop_header_branch
    %13 = sbr.rel (%p11) target = $region8
  $region5: #{closed_call.52} parent=0 // loop_body
    %s15 = ssub.s32 %s10, 1
    %s16 = ssub.s32 %s10, 2
    %s23 = sadd.s32 1, %s18
    %p24 = scmp.ge.s32.totalorder %s23, 1
    %s25 = scalar_select %p24, 0, %s23
    %s26 = sadd.s32 1, %s17
    %s27 = scalar_select %p24, %s26, %s17
    %p28 = scmp.ge.s32.totalorder %s27, 2
    %s29 = scalar_select %p28, 0, %s27
    %s30 = ssub.s32 %s17, %s29
    %s31 = ssub.s32 %s18, %s25
    %s32 = sor.u32 %s30, %s31
    %p33 = scmp.eq.s32.totalorder %s32, 0
    %s35 = sadd.s32 %s34, 1
    %s36 = scalar_select %p33, %s34, %s35
    %p39 = pneg %p33
    %p40 = scmp.eq.s32.totalorder %s10, 1
    %p41 = por %p39, %p40
    %p42 = scmp.ne.s32.totalorder %s34, %s37
    %p43 = scmp.eq.s32.totalorder %s10, 0
    %p44 = por %p42, %p43
    %p45 = scmp.ne.s32.totalorder %s34, %s37
    %p46 = scmp.eq.s32.totalorder %s15, 1
    %p47 = por %p45, %p46
    %p48 = scmp.ne.s32.totalorder %s37, %s38
    %p49 = scmp.eq.s32.totalorder %s15, 0
    %p50 = por %p48, %p49
    %p51 = scmp.ne.s32.totalorder %s37, %s38
    %p52 = scmp.eq.s32.totalorder %s16, 1
    %p53 = por %p51, %p52
    %p55 = scmp.ne.s32.totalorder %s38, %s54
    %p56 = scmp.eq.s32.totalorder %s16, 0
    %p57 = por %p55, %p56
    %s59 = sadd.s32 %s58, 1
    %p62 = scmp.eq.s32.totalorder %s10, 1
    %p63 = scmp.ne.s32.totalorder %s58, %s60
    %p64 = scmp.eq.s32.totalorder %s10, 0
    %p65 = por %p63, %p64
    %p66 = scmp.ne.s32.totalorder %s58, %s60
    %p67 = scmp.eq.s32.totalorder %s15, 1
    %p68 = por %p66, %p67
    %p69 = scmp.ne.s32.totalorder %s60, %s61
    %p70 = scmp.eq.s32.totalorder %s15, 0
    %p71 = por %p69, %p70
    %p72 = scmp.ne.s32.totalorder %s60, %s61
    %p73 = scmp.eq.s32.totalorder %s16, 1
    %p74 = por %p72, %p73
    %p76 = scmp.ne.s32.totalorder %s61, %s75
    %p77 = scmp.eq.s32.totalorder %s16, 0
    %p78 = por %p76, %p77
    %s80 = sadd.s32 %s79, 1
    %p83 = scmp.eq.s32.totalorder %s10, 1
    %p84 = scmp.ne.s32.totalorder %s79, %s81
    %p85 = scmp.eq.s32.totalorder %s10, 0
    %p86 = por %p84, %p85
    %p87 = scmp.ne.s32.totalorder %s79, %s81
    %p88 = scmp.eq.s32.totalorder %s15, 1
    %p89 = por %p87, %p88
    %p90 = scmp.ne.s32.totalorder %s81, %s82
    %p91 = scmp.eq.s32.totalorder %s15, 0
    %p92 = por %p90, %p91
    %p93 = scmp.ne.s32.totalorder %s81, %s82
    %p94 = scmp.eq.s32.totalorder %s16, 1
    %p95 = por %p93, %p94
    %p97 = scmp.ne.s32.totalorder %s82, %s96
    %p98 = scmp.eq.s32.totalorder %s16, 0
    %p99 = por %p97, %p98
    %s100 = ssub.s32 %s17, %s29
    %s101 = ssub.s32 %s18, %s25
    %s102 = sor.u32 %s100, %s101
    %p103 = scmp.eq.s32.totalorder %s102, 0
    %s105 = sadd.s32 %s104, 1
    %s106 = scalar_select %p103, %s104, %s105
    %p109 = pneg %p103
    %p110 = scmp.eq.s32.totalorder %s10, 1
    %p111 = por %p109, %p110
    %p112 = scmp.ne.s32.totalorder %s104, %s107
    %p113 = scmp.eq.s32.totalorder %s10, 0
    %p114 = por %p112, %p113
    %p115 = scmp.ne.s32.totalorder %s104, %s107
    %p116 = scmp.eq.s32.totalorder %s15, 1
    %p117 = por %p115, %p116
    %p118 = scmp.ne.s32.totalorder %s107, %s108
    %p119 = scmp.eq.s32.totalorder %s15, 0
    %p120 = por %p118, %p119
    %p121 = scmp.ne.s32.totalorder %s107, %s108
    %p122 = scmp.eq.s32.totalorder %s16, 1
    %p123 = por %p121, %p122
    %p125 = scmp.ne.s32.totalorder %s108, %s124
    %p126 = scmp.eq.s32.totalorder %s16, 0
    %p127 = por %p125, %p126
    %s128 = ssub.s32 %s17, %s29
    %p129 = scmp.eq.s32.totalorder %s128, 0
    %s131 = sadd.s32 %s130, 1
    %s132 = scalar_select %p129, %s130, %s131
    %p135 = pneg %p129
    %p136 = scmp.eq.s32.totalorder %s10, 1
    %p137 = por %p135, %p136
    %p138 = scmp.ne.s32.totalorder %s130, %s133
    %p139 = scmp.eq.s32.totalorder %s10, 0
    %p140 = por %p138, %p139
    %p141 = scmp.ne.s32.totalorder %s130, %s133
    %p142 = scmp.eq.s32.totalorder %s15, 1
    %p143 = por %p141, %p142
    %p144 = scmp.ne.s32.totalorder %s133, %s134
    %p145 = scmp.eq.s32.totalorder %s15, 0
    %p146 = por %p144, %p145
    %p147 = scmp.ne.s32.totalorder %s133, %s134
    %p148 = scmp.eq.s32.totalorder %s16, 1
    %p149 = por %p147, %p148
    %p151 = scmp.ne.s32.totalorder %s134, %s150
    %p152 = scmp.eq.s32.totalorder %s16, 0
    %p153 = por %p151, %p152
    %p154 = scmp.le.s32.totalorder 1, %s10
    %p155 = scmp.lt.s32.totalorder %s10, 3
    %p156 = pnand %p154, %p155
    %p157 = pneg %p156
    // Predicated region
    $region9: #{closed_call.52} parent=5 // pred_check
      _
    $region10: #{closed_call.52} parent=5 // pred_check_branch
      %159 = sbr.rel (%p156) target = $region12
    $region11: #{closed_call.52} parent=5 // pred_region
      %s160 = ssub.s32 %s10, 1
      // Predicated region
      $region13: #{closed_call.52} parent=11 // pred_check
        %p161 = pneg %p71
      $region14: #{closed_call.52} parent=11 // pred_check_branch
        %163 = sbr.rel (%p161) target = $region16
      $region15: #{closed_call.52} parent=11 // pred_region
        _
      $region16: #{closed_call.52} parent=11 // pred_fallthru
        _
      // Predicated region
      $region17: #{closed_call.52} parent=11 // pred_check
        %p164 = pneg %p92
      $region18: #{closed_call.52} parent=11 // pred_check_branch
        %166 = sbr.rel (%p164) target = $region20
      $region19: #{closed_call.52} parent=11 // pred_region
        _
      $region20: #{closed_call.52} parent=11 // pred_fallthru
        _
    $region12: #{closed_call.52} parent=5 // pred_fallthru
      _
    %p167 = scmp.lt.s32.totalorder %s10, 2
    // Predicated region
    $region21: #{closed_call.52} parent=5 // pred_check
      %p168 = pneg %p167
    $region22: #{closed_call.52} parent=5 // pred_check_branch
      %170 = sbr.rel (%p168) target = $region24
    $region23: #{closed_call.52} parent=5 // pred_region
      // Predicated region
      $region25: #{closed_call.52} parent=23 // pred_check
        %p171 = pneg %p44
      $region26: #{closed_call.52} parent=23 // pred_check_branch
        %173 = sbr.rel (%p171) target = $region28
      $region27: #{closed_call.52} parent=23 // pred_region
        %s174 = smul.u32 2, %s18
        %p175 = scmp.lt.s32.totalorder %s17, 1
        %s176 = scalar_select %p175, %s17, 1
        %p177 = scmp.lt.s32.totalorder %s174, 1
        %s178 = scalar_select %p177, %s174, 1
        %s179 = smul.addr %s176, 2
        %s180 = sadd.s32 %s178, %s179
        %s181 = smul.addr %s180, 4
        %s182 = scalar_lea.vmem %s0, %s181
        %s183 = smul.u32 2, %s18
      $region28: #{closed_call.52} parent=23 // pred_fallthru
        _
      // Predicated region
      $region29: #{closed_call.52} parent=23 // pred_check
        %p184 = pneg %p114
      $region30: #{closed_call.52} parent=23 // pred_check_branch
        %186 = sbr.rel (%p184) target = $region32
      $region31: #{closed_call.52} parent=23 // pred_region
        %s187 = smul.u32 2, %s18
        %p188 = scmp.lt.s32.totalorder %s17, 1
        %s189 = scalar_select %p188, %s17, 1
        %p190 = scmp.lt.s32.totalorder %s187, 1
        %s191 = scalar_select %p190, %s187, 1
        %s192 = smul.addr %s189, 32
        %s193 = sadd.s32 %s191, %s192
        %s194 = smul.addr %s193, 4
        %s195 = scalar_lea.vmem %s3, %s194
        %s196 = smul.u32 2, %s18
      $region32: #{closed_call.52} parent=23 // pred_fallthru
        _
    $region24: #{closed_call.52} parent=5 // pred_fallthru
      _
    %p197 = scmp.le.s32.totalorder 1, %s10
    %p198 = scmp.lt.s32.totalorder %s10, 3
    %p199 = pnand %p197, %p198
    %p200 = pneg %p199
    // Predicated region
    $region33: #{closed_call.52} parent=5 // pred_check
      _
    $region34: #{closed_call.52} parent=5 // pred_check_branch
      %202 = sbr.rel (%p199) target = $region36
    $region35: #{closed_call.52} parent=5 // pred_region
      %s203 = ssub.s32 %s10, 1
      %s204 = smul.u32 2, %s20
      %p205 = scmp.lt.s32.totalorder %s19, 1
      %s206 = scalar_select %p205, %s19, 1
      %p207 = scmp.lt.s32.totalorder %s204, 1
      %s208 = scalar_select %p207, %s204, 1
      %s209 = smul.addr %s206, 2
      %s210 = sadd.s32 %s208, %s209
      %s211 = smul.addr %s210, 4
      %s212 = scalar_lea.vmem %s0, %s211
      %p213 = pneg %p50
      %p214 = pneg %p47
      %p215 = pneg %p71
      %p216 = pneg %p68
      %p217 = pneg %p92
      %p218 = pneg %p89
      %s219 = smul.u32 2, %s20
      %p220 = scmp.lt.s32.totalorder %s19, 1
      %s221 = scalar_select %p220, %s19, 1
      %p222 = scmp.lt.s32.totalorder %s219, 1
      %s223 = scalar_select %p222, %s219, 1
      %s224 = smul.addr %s221, 32
      %s225 = sadd.s32 %s223, %s224
      %s226 = smul.addr %s225, 4
      %s227 = scalar_lea.vmem %s3, %s226
      %p228 = pneg %p120
      %p229 = pneg %p117
      %p230 = pneg %p146
      %p231 = pneg %p143
      %p232 = scmp.lt.s32.totalorder %s19, 1
      %s233 = scalar_select %p232, %s19, 1
      %s234 = scalar_lea.vmem %s4, %s233
      %s235 = smul.u32 2, %s20
      %p236 = scmp.lt.s32.totalorder %s19, 1
      %s237 = scalar_select %p236, %s19, 1
      %p238 = scmp.lt.s32.totalorder %s235, 1
      %s239 = scalar_select %p238, %s235, 1
      %s240 = smul.addr %s237, 2
      %s241 = sadd.s32 %s239, %s240
      %s242 = smul.addr %s241, 4
      %s243 = scalar_lea.vmem %s0, %s242
      %s244 = smul.u32 2, %s20
      %s245 = smul.u32 2, %s20
      %p246 = scmp.lt.s32.totalorder %s19, 1
      %s247 = scalar_select %p246, %s19, 1
      %p248 = scmp.lt.s32.totalorder %s245, 1
      %s249 = scalar_select %p248, %s245, 1
      %s250 = smul.addr %s247, 32
      %s251 = sadd.s32 %s249, %s250
      %s252 = smul.addr %s251, 4
      %s253 = scalar_lea.vmem %s3, %s252
      %s254 = smul.u32 2, %s20
      %p255 = scmp.lt.s32.totalorder %s19, 1
      %s256 = scalar_select %p255, %s19, 1
      %s257 = scalar_lea.vmem %s4, %s256
      %p258 = scmp.eq.s32.totalorder %s20, 0
      // Predicated region
      $region37: #{closed_call.52} parent=35 // pred_check
        %p259 = pneg %p258
      $region38: #{closed_call.52} parent=35 // pred_check_branch
        %261 = sbr.rel (%p259) target = $region40
      $region39: #{closed_call.52} parent=35 // pred_region
        %vm262 = vcmask 0
        %263 = vst.msk [vmem:[%s257] sm:$0x1] %vm262, 0.0
      $region40: #{closed_call.52} parent=35 // pred_fallthru
        _
      %v264 = vld [vmem:[%s243] sm:$0xff]
      %v265 = vld [vmem:[%s1] sm:$0xff]
      %v266 = vld [vmem:[%s1 + $0x8] sm:$0xff]
      %v267 = vld [vmem:[%s1 + $0x10] sm:$0xff]
      %v268 = vld [vmem:[%s1 + $0x18] sm:$0xff]
      %v269 = vld [vmem:[%s1 + $0x20] sm:$0xff]
      %v270 = vld [vmem:[%s1 + $0x28] sm:$0xff]
      %v271 = vld [vmem:[%s1 + $0x30] sm:$0xff]
      %v272 = vld [vmem:[%s1 + $0x38] sm:$0xff]
      %v273 = vld [vmem:[%s1 + $0x40] sm:$0xff]
      %v274 = vld [vmem:[%s1 + $0x48] sm:$0xff]
      %v275 = vld [vmem:[%s1 + $0x50] sm:$0xff]
      %v276 = vld [vmem:[%s1 + $0x58] sm:$0xff]
      %v277 = vld [vmem:[%s1 + $0x60] sm:$0xff]
      %v278 = vld [vmem:[%s1 + $0x68] sm:$0xff]
      %v279 = vld [vmem:[%s1 + $0x70] sm:$0xff]
      %v280 = vld [vmem:[%s1 + $0x78] sm:$0xff]
      %v281 = vld [vmem:[%s2] sm:$0xff]
      %v282 = vld [vmem:[%s2 + $0x8] sm:$0xff]
      %v283 = vld [vmem:[%s2 + $0x10] sm:$0xff]
      %v284 = vld [vmem:[%s2 + $0x18] sm:$0xff]
      %v285 = vld [vmem:[%s2 + $0x20] sm:$0xff]
      %v286 = vld [vmem:[%s2 + $0x28] sm:$0xff]
      %v287 = vld [vmem:[%s2 + $0x30] sm:$0xff]
      %v288 = vld [vmem:[%s2 + $0x38] sm:$0xff]
      %v289 = vld [vmem:[%s2 + $0x40] sm:$0xff]
      %v290 = vld [vmem:[%s2 + $0x48] sm:$0xff]
      %v291 = vld [vmem:[%s2 + $0x50] sm:$0xff]
      %v292 = vld [vmem:[%s2 + $0x58] sm:$0xff]
      %v293 = vld [vmem:[%s2 + $0x60] sm:$0xff]
      %v294 = vld [vmem:[%s2 + $0x68] sm:$0xff]
      %v295 = vld [vmem:[%s2 + $0x70] sm:$0xff]
      %v296 = vld [vmem:[%s2 + $0x78] sm:$0xff]
      %298 = vset.pattern.permute.xlu0 0
      %299 = vperm.xlu0 %298, %v281
      %v300 = vpop.permute.xlu0 %299
      %303 = vset.pattern.permute.xlu0 0
      %304 = vperm.xlu0 %303, %v282
      %v305 = vpop.permute.xlu0 %304
      %308 = vset.pattern.permute.xlu0 0
      %309 = vperm.xlu0 %308, %v283
      %v310 = vpop.permute.xlu0 %309
      %313 = vset.pattern.permute.xlu0 0
      %314 = vperm.xlu0 %313, %v284
      %v315 = vpop.permute.xlu0 %314
      %318 = vset.pattern.permute.xlu0 0
      %319 = vperm.xlu0 %318, %v285
      %v320 = vpop.permute.xlu0 %319
      %323 = vset.pattern.permute.xlu0 0
      %324 = vperm.xlu0 %323, %v286
      %v325 = vpop.permute.xlu0 %324
      %328 = vset.pattern.permute.xlu0 0
      %329 = vperm.xlu0 %328, %v287
      %v330 = vpop.permute.xlu0 %329
      %333 = vset.pattern.permute.xlu0 0
      %334 = vperm.xlu0 %333, %v288
      %v335 = vpop.permute.xlu0 %334
      %338 = vset.pattern.permute.xlu0 0
      %339 = vperm.xlu0 %338, %v289
      %v340 = vpop.permute.xlu0 %339
      %343 = vset.pattern.permute.xlu0 0
      %344 = vperm.xlu0 %343, %v290
      %v345 = vpop.permute.xlu0 %344
      %348 = vset.pattern.permute.xlu0 0
      %349 = vperm.xlu0 %348, %v291
      %v350 = vpop.permute.xlu0 %349
      %353 = vset.pattern.permute.xlu0 0
      %354 = vperm.xlu0 %353, %v292
      %v355 = vpop.permute.xlu0 %354
      %358 = vset.pattern.permute.xlu0 0
      %359 = vperm.xlu0 %358, %v293
      %v360 = vpop.permute.xlu0 %359
      %363 = vset.pattern.permute.xlu0 0
      %364 = vperm.xlu0 %363, %v294
      %v365 = vpop.permute.xlu0 %364
      %368 = vset.pattern.permute.xlu0 0
      %369 = vperm.xlu0 %368, %v295
      %v370 = vpop.permute.xlu0 %369
      %373 = vset.pattern.permute.xlu0 0
      %374 = vperm.xlu0 %373, %v296
      %v375 = vpop.permute.xlu0 %374
      %v378 = vcombine.high %v264, %v264
      %vm379 = vcmask 31744
      %v381 = vsel %vm379, %v265, 0
      %v384 = vsel %vm379, %v266, 0
      %v387 = vsel %vm379, %v267, 0
      %v390 = vsel %vm379, %v268, 0
      %v393 = vsel %vm379, %v269, 0
      %v396 = vsel %vm379, %v270, 0
      %v399 = vsel %vm379, %v271, 0
      %v402 = vsel %vm379, %v272, 0
      %v405 = vsel %vm379, %v273, 0
      %v408 = vsel %vm379, %v274, 0
      %v411 = vsel %vm379, %v275, 0
      %v414 = vsel %vm379, %v276, 0
      %v417 = vsel %vm379, %v277, 0
      %v420 = vsel %vm379, %v278, 0
      %v423 = vsel %vm379, %v279, 0
      %v426 = vsel %vm379, %v280, 0
      %vm428 = vcmask 1043456
      %v429 = vsel %vm428, %v264, 0
      %v431 = vsel %vm428, %v378, 0
      %433 = vmatprep.subr.mxu0 0.0
      %434 = vmatpush1.msra.mxu0 0.0
      %435 = vmatprep.subr.mxu0 0.0
      %436 = vmatpush1.msra.mxu0 0.0
      %437 = vmatprep.subr.mxu0 0.0
      %438 = vmatpush1.msra.mxu0 0.0
      %439 = vmatprep.subr.mxu0 0.0
      %440 = vmatpush1.msra.mxu0 0.0
      %441 = vmatprep.subr.mxu0 0.0
      %442 = vmatpush1.msra.mxu0 0.0
      %443 = vmatprep.subr.mxu0 0.0
      %444 = vmatpush1.msra.mxu0 0.0
      %445 = vmatprep.subr.mxu0 0.0
      %446 = vmatpush1.msra.mxu0 0.0
      %447 = vmatprep.subr.mxu0 0.0
      %448 = vmatpush1.msra.mxu0 0.0
      %449 = vmatprep.subr.mxu0 0.0
      %450 = vmatpush1.msra.mxu0 0.0
      %451 = vmatprep.subr.mxu0 0.0
      %452 = vmatpush1.msra.mxu0 0.0
      %453 = vmatprep.subr.mxu0 0.0
      %454 = vmatpush1.msra.mxu0 0.0
      %455 = vmatprep.subr.mxu0 0.0
      %456 = vmatpush1.msra.mxu0 0.0
      %457 = vmatprep.subr.mxu0 0.0
      %458 = vmatpush1.msra.mxu0 0.0
      %459 = vmatprep.subr.mxu0 0.0
      %460 = vmatpush1.msra.mxu0 0.0
      %461 = vmatprep.subr.mxu0 0.0
      %462 = vmatpush1.msra.mxu0 0.0
      %463 = vmatprep.subr.mxu0 %v431
      %464 = vmatpush1.msra.mxu0 %v429
      %465 = vmatprep.subr.mxu0 0.0
      %466 = vmatpush2.msra.mxu0 0.0
      %467 = vmatprep.subr.mxu0 0.0
      %468 = vmatpush2.msra.mxu0 0.0
      %469 = vmatprep.subr.mxu0 0.0
      %470 = vmatpush2.msra.mxu0 0.0
      %471 = vmatprep.subr.mxu0 0.0
      %472 = vmatpush2.msra.mxu0 0.0
      %473 = vmatprep.subr.mxu0 0.0
      %474 = vmatpush2.msra.mxu0 0.0
      %475 = vmatprep.subr.mxu0 0.0
      %476 = vmatpush2.msra.mxu0 0.0
      %477 = vmatprep.subr.mxu0 0.0
      %478 = vmatpush2.msra.mxu0 0.0
      %479 = vmatprep.subr.mxu0 0.0
      %480 = vmatpush2.msra.mxu0 0.0
      %481 = vmatprep.subr.mxu0 0.0
      %482 = vmatpush2.msra.mxu0 0.0
      %483 = vmatprep.subr.mxu0 0.0
      %484 = vmatpush2.msra.mxu0 0.0
      %485 = vmatprep.subr.mxu0 0.0
      %486 = vmatpush2.msra.mxu0 0.0
      %487 = vmatprep.subr.mxu0 0.0
      %488 = vmatpush2.msra.mxu0 0.0
      %489 = vmatprep.subr.mxu0 0.0
      %490 = vmatpush2.msra.mxu0 0.0
      %491 = vmatprep.subr.mxu0 0.0
      %492 = vmatpush2.msra.mxu0 0.0
      %493 = vmatprep.subr.mxu0 0.0
      %494 = vmatpush2.msra.mxu0 0.0
      %495 = vmatprep.subr.mxu0 0.0
      %496 = vmatpush2.msra.mxu0 0.0
      %497 = vmatprep.mubr.f32.mxu0 0.0
      %498 = vmatmul.mubr.f32.gmra.mxu0 %v381
      %v499 = vpop.f32.mrf.mxu0
      %v500 = vadd.f32 %v300, %v499
      %v501 = vpop.f32.mrf.mxu0
      %v502 = vadd.f32 %v300, %v501
      %503 = vmatprep.mubr.f32.mxu0 0.0
      %504 = vmatmul.mubr.f32.gmra.mxu0 %v384
      %v505 = vpop.f32.mrf.mxu0
      %v506 = vadd.f32 %v305, %v505
      %v507 = vpop.f32.mrf.mxu0
      %v508 = vadd.f32 %v305, %v507
      %509 = vmatprep.mubr.f32.mxu0 0.0
      %510 = vmatmul.mubr.f32.gmra.mxu0 %v387
      %v511 = vpop.f32.mrf.mxu0
      %v512 = vadd.f32 %v310, %v511
      %v513 = vpop.f32.mrf.mxu0
      %v514 = vadd.f32 %v310, %v513
      %515 = vmatprep.mubr.f32.mxu0 0.0
      %516 = vmatmul.mubr.f32.gmra.mxu0 %v390
      %v517 = vpop.f32.mrf.mxu0
      %v518 = vadd.f32 %v315, %v517
      %v519 = vpop.f32.mrf.mxu0
      %v520 = vadd.f32 %v315, %v519
      %521 = vmatprep.mubr.f32.mxu0 0.0
      %522 = vmatmul.mubr.f32.gmra.mxu0 %v393
      %v523 = vpop.f32.mrf.mxu0
      %v524 = vadd.f32 %v320, %v523
      %v525 = vpop.f32.mrf.mxu0
      %v526 = vadd.f32 %v320, %v525
      %527 = vmatprep.mubr.f32.mxu0 0.0
      %528 = vmatmul.mubr.f32.gmra.mxu0 %v396
      %v529 = vpop.f32.mrf.mxu0
      %v530 = vadd.f32 %v325, %v529
      %v531 = vpop.f32.mrf.mxu0
      %v532 = vadd.f32 %v325, %v531
      %533 = vmatprep.mubr.f32.mxu0 0.0
      %534 = vmatmul.mubr.f32.gmra.mxu0 %v399
      %v535 = vpop.f32.mrf.mxu0
      %v536 = vadd.f32 %v330, %v535
      %v537 = vpop.f32.mrf.mxu0
      %v538 = vadd.f32 %v330, %v537
      %539 = vmatprep.mubr.f32.mxu0 0.0
      %540 = vmatmul.mubr.f32.gmra.mxu0 %v402
      %v541 = vpop.f32.mrf.mxu0
      %v542 = vadd.f32 %v335, %v541
      %v543 = vpop.f32.mrf.mxu0
      %v544 = vadd.f32 %v335, %v543
      %545 = vmatprep.mubr.f32.mxu0 0.0
      %546 = vmatmul.mubr.f32.gmra.mxu0 %v405
      %v547 = vpop.f32.mrf.mxu0
      %v548 = vadd.f32 %v340, %v547
      %v549 = vpop.f32.mrf.mxu0
      %v550 = vadd.f32 %v340, %v549
      %551 = vmatprep.mubr.f32.mxu0 0.0
      %552 = vmatmul.mubr.f32.gmra.mxu0 %v408
      %v553 = vpop.f32.mrf.mxu0
      %v554 = vadd.f32 %v345, %v553
      %v555 = vpop.f32.mrf.mxu0
      %v556 = vadd.f32 %v345, %v555
      %557 = vmatprep.mubr.f32.mxu0 0.0
      %558 = vmatmul.mubr.f32.gmra.mxu0 %v411
      %v559 = vpop.f32.mrf.mxu0
      %v560 = vadd.f32 %v350, %v559
      %v561 = vpop.f32.mrf.mxu0
      %v562 = vadd.f32 %v350, %v561
      %563 = vmatprep.mubr.f32.mxu0 0.0
      %564 = vmatmul.mubr.f32.gmra.mxu0 %v414
      %v565 = vpop.f32.mrf.mxu0
      %v566 = vadd.f32 %v355, %v565
      %v567 = vpop.f32.mrf.mxu0
      %v568 = vadd.f32 %v355, %v567
      %569 = vmatprep.mubr.f32.mxu0 0.0
      %570 = vmatmul.mubr.f32.gmra.mxu0 %v417
      %v571 = vpop.f32.mrf.mxu0
      %v572 = vadd.f32 %v360, %v571
      %v573 = vpop.f32.mrf.mxu0
      %v574 = vadd.f32 %v360, %v573
      %575 = vmatprep.mubr.f32.mxu0 0.0
      %576 = vmatmul.mubr.f32.gmra.mxu0 %v420
      %v577 = vpop.f32.mrf.mxu0
      %v578 = vadd.f32 %v365, %v577
      %v579 = vpop.f32.mrf.mxu0
      %v580 = vadd.f32 %v365, %v579
      %581 = vmatprep.mubr.f32.mxu0 0.0
      %582 = vmatmul.mubr.f32.gmra.mxu0 %v423
      %v583 = vpop.f32.mrf.mxu0
      %v584 = vadd.f32 %v370, %v583
      %v585 = vpop.f32.mrf.mxu0
      %v586 = vadd.f32 %v370, %v585
      %587 = vmatprep.mubr.f32.mxu0 0.0
      %588 = vmatmul.mubr.f32.gmra.mxu0 %v426
      %v589 = vpop.f32.mrf.mxu0
      %v590 = vadd.f32 %v375, %v589
      %v591 = vpop.f32.mrf.mxu0
      %v592 = vadd.f32 %v375, %v591
      %593 = vdwg.mxu0
      %v594 = vmax.f32 %v500, 0.0
      %v595 = vmax.f32 %v502, 0.0
      %v596 = vmax.f32 %v506, 0.0
      %v597 = vmax.f32 %v508, 0.0
      %v598 = vmax.f32 %v512, 0.0
      %v599 = vmax.f32 %v514, 0.0
      %v600 = vmax.f32 %v518, 0.0
      %v601 = vmax.f32 %v520, 0.0
      %v602 = vmax.f32 %v524, 0.0
      %v603 = vmax.f32 %v526, 0.0
      %v604 = vmax.f32 %v530, 0.0
      %v605 = vmax.f32 %v532, 0.0
      %v606 = vmax.f32 %v536, 0.0
      %v607 = vmax.f32 %v538, 0.0
      %v608 = vmax.f32 %v542, 0.0
      %v609 = vmax.f32 %v544, 0.0
      %v610 = vmax.f32 %v548, 0.0
      %v611 = vmax.f32 %v550, 0.0
      %v612 = vmax.f32 %v554, 0.0
      %v613 = vmax.f32 %v556, 0.0
      %v614 = vmax.f32 %v560, 0.0
      %v615 = vmax.f32 %v562, 0.0
      %v616 = vmax.f32 %v566, 0.0
      %v617 = vmax.f32 %v568, 0.0
      %v618 = vmax.f32 %v572, 0.0
      %v619 = vmax.f32 %v574, 0.0
      %v620 = vmax.f32 %v578, 0.0
      %v621 = vmax.f32 %v580, 0.0
      %v622 = vmax.f32 %v584, 0.0
      %v623 = vmax.f32 %v586, 0.0
      %v624 = vmax.f32 %v590, 0.0
      %v625 = vmax.f32 %v592, 0.0
      %v626 = vmul.f32 %v594, %v594
      %v627 = vmul.f32 %v595, %v595
      %v628 = vmul.f32 %v596, %v596
      %v629 = vmul.f32 %v597, %v597
      %v630 = vmul.f32 %v598, %v598
      %v631 = vmul.f32 %v599, %v599
      %v632 = vmul.f32 %v600, %v600
      %v633 = vmul.f32 %v601, %v601
      %v634 = vmul.f32 %v602, %v602
      %v635 = vmul.f32 %v603, %v603
      %v636 = vmul.f32 %v604, %v604
      %v637 = vmul.f32 %v605, %v605
      %v638 = vmul.f32 %v606, %v606
      %v639 = vmul.f32 %v607, %v607
      %v640 = vmul.f32 %v608, %v608
      %v641 = vmul.f32 %v609, %v609
      %v642 = vmul.f32 %v610, %v610
      %v643 = vmul.f32 %v611, %v611
      %v644 = vmul.f32 %v612, %v612
      %v645 = vmul.f32 %v613, %v613
      %v646 = vmul.f32 %v614, %v614
      %v647 = vmul.f32 %v615, %v615
      %v648 = vmul.f32 %v616, %v616
      %v649 = vmul.f32 %v617, %v617
      %v650 = vmul.f32 %v618, %v618
      %v651 = vmul.f32 %v619, %v619
      %v652 = vmul.f32 %v620, %v620
      %v653 = vmul.f32 %v621, %v621
      %v654 = vmul.f32 %v622, %v622
      %v655 = vmul.f32 %v623, %v623
      %v656 = vmul.f32 %v624, %v624
      %v657 = vmul.f32 %v625, %v625
      %v658 = vadd.f32 %v626, %v628
      %v659 = vadd.f32 %v658, %v630
      %v660 = vadd.f32 %v659, %v632
      %v661 = vadd.f32 %v660, %v634
      %v662 = vadd.f32 %v661, %v636
      %v663 = vadd.f32 %v662, %v638
      %v664 = vadd.f32 %v663, %v640
      %v665 = vadd.f32 %v664, %v642
      %v666 = vadd.f32 %v665, %v644
      %v667 = vadd.f32 %v666, %v646
      %v668 = vadd.f32 %v667, %v648
      %v669 = vadd.f32 %v668, %v650
      %v670 = vadd.f32 %v669, %v652
      %v671 = vadd.f32 %v670, %v654
      %v672 = vadd.f32 %v671, %v656
      %v673 = vrot.slane %v672, 4
      %v674 = vadd.f32 %v672, %v673
      %v675 = vrot.slane %v674, 2
      %v676 = vadd.f32 %v674, %v675
      %v677 = vrot.slane %v676, 1
      %v678 = vadd.f32 %v676, %v677
      %v679 = vadd.f32 %v627, %v629
      %v680 = vadd.f32 %v679, %v631
      %v681 = vadd.f32 %v680, %v633
      %v682 = vadd.f32 %v681, %v635
      %v683 = vadd.f32 %v682, %v637
      %v684 = vadd.f32 %v683, %v639
      %v685 = vadd.f32 %v684, %v641
      %v686 = vadd.f32 %v685, %v643
      %v687 = vadd.f32 %v686, %v645
      %v688 = vadd.f32 %v687, %v647
      %v689 = vadd.f32 %v688, %v649
      %v690 = vadd.f32 %v689, %v651
      %v691 = vadd.f32 %v690, %v653
      %v692 = vadd.f32 %v691, %v655
      %v693 = vadd.f32 %v692, %v657
      %v694 = vrot.slane %v693, 4
      %v695 = vadd.f32 %v693, %v694
      %v696 = vrot.slane %v695, 2
      %v697 = vadd.f32 %v695, %v696
      %v698 = vrot.slane %v697, 1
      %v699 = vadd.f32 %v697, %v698
      %v700 = vrsqrt.pop %v678
      %v701 = vmul.f32 %v678, %v700
      %vm702 = vcmp.eq.f32.partialorder %v678, inf
      %v703 = vsel %vm702, %v678, %v701
      %vm704 = vcmp.eq.f32.partialorder %v678, 0.0
      %v705 = vand.u32 %v678, 2147483648
      %v706 = vsel %vm704, %v705, %v703
      %v707 = vrsqrt.pop %v699
      %v708 = vmul.f32 %v699, %v707
      %vm709 = vcmp.eq.f32.partialorder %v699, inf
      %v710 = vsel %vm709, %v699, %v708
      %vm711 = vcmp.eq.f32.partialorder %v699, 0.0
      %v712 = vand.u32 %v699, 2147483648
      %v713 = vsel %vm711, %v712, %v710
      %v714 = vadd.f32 %v706, 1e-10
      %v715 = vadd.f32 %v713, 1e-10
      %v716 = vmul.f32 %v714, 16.0
      %v717 = vmul.f32 %v715, 16.0
      %v718 = vrcp.pop %v716
      %v719 = vmul.f32 1.0, %v718
      %v720 = vrcp.pop %v717
      %v721 = vmul.f32 1.0, %v720
      %v722 = vmul.f32 %v594, %v719
      %v723 = vmul.f32 %v595, %v721
      %v724 = vmul.f32 %v596, %v719
      %v725 = vmul.f32 %v597, %v721
      %v726 = vmul.f32 %v598, %v719
      %v727 = vmul.f32 %v599, %v721
      %v728 = vmul.f32 %v600, %v719
      %v729 = vmul.f32 %v601, %v721
      %v730 = vmul.f32 %v602, %v719
      %v731 = vmul.f32 %v603, %v721
      %v732 = vmul.f32 %v604, %v719
      %v733 = vmul.f32 %v605, %v721
      %v734 = vmul.f32 %v606, %v719
      %v735 = vmul.f32 %v607, %v721
      %v736 = vmul.f32 %v608, %v719
      %v737 = vmul.f32 %v609, %v721
      %v738 = vmul.f32 %v610, %v719
      %v739 = vmul.f32 %v611, %v721
      %v740 = vmul.f32 %v612, %v719
      %v741 = vmul.f32 %v613, %v721
      %v742 = vmul.f32 %v614, %v719
      %v743 = vmul.f32 %v615, %v721
      %v744 = vmul.f32 %v616, %v719
      %v745 = vmul.f32 %v617, %v721
      %v746 = vmul.f32 %v618, %v719
      %v747 = vmul.f32 %v619, %v721
      %v748 = vmul.f32 %v620, %v719
      %v749 = vmul.f32 %v621, %v721
      %v750 = vmul.f32 %v622, %v719
      %v751 = vmul.f32 %v623, %v721
      %v752 = vmul.f32 %v624, %v719
      %v753 = vmul.f32 %v625, %v721
      %v754 = vld [vmem:[%s253] sm:$0xff]
      %v755 = vld [vmem:[%s253 + $0x8] sm:$0xff]
      %v756 = vld [vmem:[%s253 + $0x10] sm:$0xff]
      %v757 = vld [vmem:[%s253 + $0x18] sm:$0xff]
      %v758 = vld [vmem:[%s253 + $0x20] sm:$0xff]
      %v759 = vld [vmem:[%s253 + $0x28] sm:$0xff]
      %v760 = vld [vmem:[%s253 + $0x30] sm:$0xff]
      %v761 = vld [vmem:[%s253 + $0x38] sm:$0xff]
      %v762 = vld [vmem:[%s253 + $0x40] sm:$0xff]
      %v763 = vld [vmem:[%s253 + $0x48] sm:$0xff]
      %v764 = vld [vmem:[%s253 + $0x50] sm:$0xff]
      %v765 = vld [vmem:[%s253 + $0x58] sm:$0xff]
      %v766 = vld [vmem:[%s253 + $0x60] sm:$0xff]
      %v767 = vld [vmem:[%s253 + $0x68] sm:$0xff]
      %v768 = vld [vmem:[%s253 + $0x70] sm:$0xff]
      %v769 = vld [vmem:[%s253 + $0x78] sm:$0xff]
      %v770 = vunpack.c.l.bf16 %v754
      %v771 = vunpack.c.h.bf16 %v754
      %v772 = vunpack.c.l.bf16 %v755
      %v773 = vunpack.c.h.bf16 %v755
      %v774 = vunpack.c.l.bf16 %v756
      %v775 = vunpack.c.h.bf16 %v756
      %v776 = vunpack.c.l.bf16 %v757
      %v777 = vunpack.c.h.bf16 %v757
      %v778 = vunpack.c.l.bf16 %v758
      %v779 = vunpack.c.h.bf16 %v758
      %v780 = vunpack.c.l.bf16 %v759
      %v781 = vunpack.c.h.bf16 %v759
      %v782 = vunpack.c.l.bf16 %v760
      %v783 = vunpack.c.h.bf16 %v760
      %v784 = vunpack.c.l.bf16 %v761
      %v785 = vunpack.c.h.bf16 %v761
      %v786 = vunpack.c.l.bf16 %v762
      %v787 = vunpack.c.h.bf16 %v762
      %v788 = vunpack.c.l.bf16 %v763
      %v789 = vunpack.c.h.bf16 %v763
      %v790 = vunpack.c.l.bf16 %v764
      %v791 = vunpack.c.h.bf16 %v764
      %v792 = vunpack.c.l.bf16 %v765
      %v793 = vunpack.c.h.bf16 %v765
      %v794 = vunpack.c.l.bf16 %v766
      %v795 = vunpack.c.h.bf16 %v766
      %v796 = vunpack.c.l.bf16 %v767
      %v797 = vunpack.c.h.bf16 %v767
      %v798 = vunpack.c.l.bf16 %v768
      %v799 = vunpack.c.h.bf16 %v768
      %v800 = vunpack.c.l.bf16 %v769
      %v801 = vunpack.c.h.bf16 %v769
      %v802 = vsub.f32 %v722, %v770
      %v803 = vsub.f32 %v723, %v771
      %v804 = vsub.f32 %v724, %v772
      %v805 = vsub.f32 %v725, %v773
      %v806 = vsub.f32 %v726, %v774
      %v807 = vsub.f32 %v727, %v775
      %v808 = vsub.f32 %v728, %v776
      %v809 = vsub.f32 %v729, %v777
      %v810 = vsub.f32 %v730, %v778
      %v811 = vsub.f32 %v731, %v779
      %v812 = vsub.f32 %v732, %v780
      %v813 = vsub.f32 %v733, %v781
      %v814 = vsub.f32 %v734, %v782
      %v815 = vsub.f32 %v735, %v783
      %v816 = vsub.f32 %v736, %v784
      %v817 = vsub.f32 %v737, %v785
      %v818 = vsub.f32 %v738, %v786
      %v819 = vsub.f32 %v739, %v787
      %v820 = vsub.f32 %v740, %v788
      %v821 = vsub.f32 %v741, %v789
      %v822 = vsub.f32 %v742, %v790
      %v823 = vsub.f32 %v743, %v791
      %v824 = vsub.f32 %v744, %v792
      %v825 = vsub.f32 %v745, %v793
      %v826 = vsub.f32 %v746, %v794
      %v827 = vsub.f32 %v747, %v795
      %v828 = vsub.f32 %v748, %v796
      %v829 = vsub.f32 %v749, %v797
      %v830 = vsub.f32 %v750, %v798
      %v831 = vsub.f32 %v751, %v799
      %v832 = vsub.f32 %v752, %v800
      %v833 = vsub.f32 %v753, %v801
      %v834 = vld [vmem:[%s257] sm:$0x1]
      %v835 = vmul.f32 %v802, %v802
      %v836 = vmul.f32 %v803, %v803
      %v837 = vmul.f32 %v804, %v804
      %v838 = vmul.f32 %v805, %v805
      %v839 = vmul.f32 %v806, %v806
      %v840 = vmul.f32 %v807, %v807
      %v841 = vmul.f32 %v808, %v808
      %v842 = vmul.f32 %v809, %v809
      %v843 = vmul.f32 %v810, %v810
      %v844 = vmul.f32 %v811, %v811
      %v845 = vmul.f32 %v812, %v812
      %v846 = vmul.f32 %v813, %v813
      %v847 = vmul.f32 %v814, %v814
      %v848 = vmul.f32 %v815, %v815
      %v849 = vmul.f32 %v816, %v816
      %v850 = vmul.f32 %v817, %v817
      %v851 = vmul.f32 %v818, %v818
      %v852 = vmul.f32 %v819, %v819
      %v853 = vmul.f32 %v820, %v820
      %v854 = vmul.f32 %v821, %v821
      %v855 = vmul.f32 %v822, %v822
      %v856 = vmul.f32 %v823, %v823
      %v857 = vmul.f32 %v824, %v824
      %v858 = vmul.f32 %v825, %v825
      %v859 = vmul.f32 %v826, %v826
      %v860 = vmul.f32 %v827, %v827
      %v861 = vmul.f32 %v828, %v828
      %v862 = vmul.f32 %v829, %v829
      %v863 = vmul.f32 %v830, %v830
      %v864 = vmul.f32 %v831, %v831
      %v865 = vmul.f32 %v832, %v832
      %v866 = vmul.f32 %v833, %v833
      %v867 = vadd.f32 %v835, %v836
      %868 = vadd.xlane.f32.xlu0 %v867
      %v869 = vpop.xlane.xlu0 %868
      %v870 = vadd.f32 %v837, %v838
      %871 = vadd.xlane.f32.xlu0 %v870
      %v872 = vpop.xlane.xlu0 %871
      %v873 = vadd.f32 %v839, %v840
      %874 = vadd.xlane.f32.xlu0 %v873
      %v875 = vpop.xlane.xlu0 %874
      %v876 = vadd.f32 %v841, %v842
      %877 = vadd.xlane.f32.xlu0 %v876
      %v878 = vpop.xlane.xlu0 %877
      %v879 = vadd.f32 %v843, %v844
      %880 = vadd.xlane.f32.xlu0 %v879
      %v881 = vpop.xlane.xlu0 %880
      %v882 = vadd.f32 %v845, %v846
      %883 = vadd.xlane.f32.xlu0 %v882
      %v884 = vpop.xlane.xlu0 %883
      %v885 = vadd.f32 %v847, %v848
      %886 = vadd.xlane.f32.xlu0 %v885
      %v887 = vpop.xlane.xlu0 %886
      %v888 = vadd.f32 %v849, %v850
      %889 = vadd.xlane.f32.xlu0 %v888
      %v890 = vpop.xlane.xlu0 %889
      %v891 = vadd.f32 %v851, %v852
      %892 = vadd.xlane.f32.xlu0 %v891
      %v893 = vpop.xlane.xlu0 %892
      %v894 = vadd.f32 %v853, %v854
      %895 = vadd.xlane.f32.xlu0 %v894
      %v896 = vpop.xlane.xlu0 %895
      %v897 = vadd.f32 %v855, %v856
      %898 = vadd.xlane.f32.xlu0 %v897
      %v899 = vpop.xlane.xlu0 %898
      %v900 = vadd.f32 %v857, %v858
      %901 = vadd.xlane.f32.xlu0 %v900
      %v902 = vpop.xlane.xlu0 %901
      %v903 = vadd.f32 %v859, %v860
      %904 = vadd.xlane.f32.xlu0 %v903
      %v905 = vpop.xlane.xlu0 %904
      %v906 = vadd.f32 %v861, %v862
      %907 = vadd.xlane.f32.xlu0 %v906
      %v908 = vpop.xlane.xlu0 %907
      %v909 = vadd.f32 %v863, %v864
      %910 = vadd.xlane.f32.xlu0 %v909
      %v911 = vpop.xlane.xlu0 %910
      %v912 = vadd.f32 %v865, %v866
      %913 = vadd.xlane.f32.xlu0 %v912
      %v914 = vpop.xlane.xlu0 %913
      %v915 = vadd.f32 %v869, %v872
      %v916 = vadd.f32 %v915, %v875
      %v917 = vadd.f32 %v916, %v878
      %v918 = vadd.f32 %v917, %v881
      %v919 = vadd.f32 %v918, %v884
      %v920 = vadd.f32 %v919, %v887
      %v921 = vadd.f32 %v920, %v890
      %v922 = vadd.f32 %v921, %v893
      %v923 = vadd.f32 %v922, %v896
      %v924 = vadd.f32 %v923, %v899
      %v925 = vadd.f32 %v924, %v902
      %v926 = vadd.f32 %v925, %v905
      %v927 = vadd.f32 %v926, %v908
      %v928 = vadd.f32 %v927, %v911
      %v929 = vadd.f32 %v928, %v914
      %v930 = vrot.slane %v929, 4
      %v931 = vadd.f32 %v929, %v930
      %v932 = vrot.slane %v931, 2
      %v933 = vadd.f32 %v931, %v932
      %v934 = vrot.slane %v933, 1
      %v935 = vadd.f32 %v933, %v934
      %v936 = vadd.f32 %v834, %v935
      %vm937 = vcmask 0
      %938 = vst.msk [vmem:[%s257] sm:$0x1] %vm937, %v936
      %p939 = scmp.lt.s32.totalorder %s19, 1
      %s940 = scalar_select %p939, %s19, 1
      %s941 = scalar_lea.vmem %s4, %s940
      // Predicated region
      $region41: #{closed_call.52} parent=35 // pred_check
        %p942 = pneg %p143
      $region42: #{closed_call.52} parent=35 // pred_check_branch
        %944 = sbr.rel (%p942) target = $region44
      $region43: #{closed_call.52} parent=35 // pred_region
        _
      $region44: #{closed_call.52} parent=35 // pred_fallthru
        _
    $region36: #{closed_call.52} parent=5 // pred_fallthru
      _
    %p945 = scmp.le.s32.totalorder 2, %s10
    // Predicated region
    $region45: #{closed_call.52} parent=5 // pred_check
      %p946 = pneg %p945
    $region46: #{closed_call.52} parent=5 // pred_check_branch
      %948 = sbr.rel (%p946) target = $region48
    $region47: #{closed_call.52} parent=5 // pred_region
      %s949 = ssub.s32 %s10, 2
      // Predicated region
      $region49: #{closed_call.52} parent=47 // pred_check
        %p950 = pneg %p149
      $region50: #{closed_call.52} parent=47 // pred_check_branch
        %952 = sbr.rel (%p950) target = $region52
      $region51: #{closed_call.52} parent=47 // pred_region
        %p953 = scmp.lt.s32.totalorder %s21, 1
        %s954 = scalar_select %p953, %s21, 1
        %s955 = scalar_lea.vmem %s4, %s954
      $region52: #{closed_call.52} parent=47 // pred_fallthru
        _
    $region48: #{closed_call.52} parent=5 // pred_fallthru
      _
  $region6: #{closed_call.52} parent=0 // loop_footer
    %s14 = sadd.s32 1, %s10
  $region7: #{closed_call.52} parent=0 // loop_footer_branch
    %9 = sbr.rel target = $region3
  $region8: #{closed_call.52} parent=0 // loop_exit
    _

</llo_original>
